<compile_context>
chip_gen: v7x
topology: tpu7x:2x2x1
jax: 0.10.0
libtpu: 0.0.40
codegen_flags: <defaults>
</compile_context>

<pallas_src>
import functools

import jax
import jax.numpy as jnp
from jax.experimental import pallas as pl
from jax.experimental.pallas import tpu as pltpu


# --------------------------------------------------------------------------- #
# GELU (tanh approximation), used identically in kernel and reference.
# TODO(synk): PyTorch F.gelu defaults to the exact erf form; erf has no clean
# Mosaic lowering, so the tanh approximation is used (max abs deviation ~3e-3).
# --------------------------------------------------------------------------- #
def _gelu_tanh(x):
    c = 0.7978845608028654  # sqrt(2/pi)
    return 0.5 * x * (1.0 + jnp.tanh(c * (x + 0.044715 * x * x * x)))


# --------------------------------------------------------------------------- #
# Fused encoder kernel: one invocation, all blocks inline, activation resident
# in vregs/VMEM for the whole encoder.
# --------------------------------------------------------------------------- #
def make_encoder_kernel(block_dims, num_heads, batch, seq):
    n_blocks = len(block_dims)
    nh = num_heads

    def kernel(*refs):
        x_ref = refs[0]
        out_ref = refs[-1]
        p_refs = refs[1:-1]                       # 3 packed refs per block

        h = x_ref[...].astype(jnp.float32)        # (batch*seq, d_in0)

        for blk in range(n_blocks):
            d_in, d_h, d_out = block_dims[blk]
            wattn, wffn, bias = p_refs[3 * blk:3 * blk + 3]
            # bias-slab row indices (see pack_params)
            BO, G, BE, B1, B2 = 2 * nh, 2 * nh + 1, 2 * nh + 2, 2 * nh + 3, 2 * nh + 4

            # ---- per-head projections (weights pre-split / pre-scaled at
            #      init -> no runtime lane slicing of activations) ------------
            score_tiles = []
            vo_heads = []
            for hh in range(nh):
                wq = wattn[hh * d_in:(hh + 1) * d_in, :]                 # scaled Wq_h (lane-padded)
                wk = wattn[(nh + hh) * d_in:(nh + hh + 1) * d_in, :]     # Wk_h (lane-padded)
                wvo = wattn[(2 * nh + hh) * d_in:(2 * nh + hh + 1) * d_in, :]  # Wv_h @ Wo_h
                q = (jnp.dot(h, wq, preferred_element_type=jnp.float32)
                     + bias[hh:hh + 1, :d_in])
                k = jnp.dot(h, wk, preferred_element_type=jnp.float32)
                vo = (jnp.dot(h, wvo, preferred_element_type=jnp.float32)
                      + bias[nh + hh:nh + hh + 1, :d_in])
                vo_heads.append(vo)
                for b in range(batch):            # scores per (head, batch)
                    qb = q[b * seq:(b + 1) * seq, :]
                    kb = k[b * seq:(b + 1) * seq, :]
                    score_tiles.append(jax.lax.dot_general(
                        qb, kb, (((1,), (1,)), ((), ())),
                        preferred_element_type=jnp.float32))             # (seq, seq)

            # ---- softmax batched over (head, batch) along sublanes ----------
            s_all = jnp.concatenate(score_tiles, axis=0)                 # (nh*batch*seq, seq)
            s_all = s_all - jnp.max(s_all, axis=-1, keepdims=True)
            e = jnp.exp(s_all)
            p_all = e * pl.reciprocal(jnp.sum(e, axis=-1, keepdims=True), approx=False)

            # ---- P @ (V Wo): output projection already folded into Wv·Wo ----
            attn_rows = []
            for b in range(batch):
                acc = None
                for hh in range(nh):
                    t = hh * batch + b
                    p_t = p_all[t * seq:(t + 1) * seq, :]                # (seq, seq)
                    vo_b = vo_heads[hh][b * seq:(b + 1) * seq, :]        # (seq, d_in)
                    c = jnp.dot(p_t, vo_b, preferred_element_type=jnp.float32)
                    acc = c if acc is None else acc + c
                attn_rows.append(acc)
            attn = jnp.concatenate(attn_rows, axis=0) + bias[BO:BO + 1, :d_in]

            # ---- residual + LayerNorm (norm1) -------------------------------
            y = h + attn
            mu = jnp.mean(y, axis=-1, keepdims=True)
            var = jnp.mean(jnp.square(y - mu), axis=-1, keepdims=True)
            y = ((y - mu) * jax.lax.rsqrt(var + 1e-5) * bias[G:G + 1, :d_in]
                 + bias[BE:BE + 1, :d_in])

            # ---- feed-forward: fc2(gelu(fc1(y))) ----------------------------
            ff = (jnp.dot(y, wffn[:d_in, :], preferred_element_type=jnp.float32)
                  + bias[B1:B1 + 1, :d_h])
            ff = _gelu_tanh(ff)
            o = (jnp.dot(ff, wffn[d_in:d_in + d_h, :], preferred_element_type=jnp.float32)
                 + bias[B2:B2 + 1, :d_h])
            h = o[:, :d_out]
            # NOTE: the PyTorch block defines norm2 but never applies it in forward.

        out_ref[...] = h.astype(out_ref.dtype)

    return kernel


# --------------------------------------------------------------------------- #
# Wrapper: one no-grid pallas_call for the entire encoder
# --------------------------------------------------------------------------- #
def transformer_encoder_forward(x_sbd, packed_params, *, block_dims, num_heads):
    """x_sbd: [seq, batch, d_input] (PyTorch nn.MultiheadAttention default layout)."""
    seq, batch, d0 = x_sbd.shape
    assert seq % 8 == 0, "seq must be a multiple of 8 (sublane alignment)"
    d_out = block_dims[-1][2]

    # Fold batch into the matmul M dimension: one (batch*seq, d) slab.
    # TODO(synk): the two tiny transposes could be dropped by making
    # [batch, seq, d] the call-boundary layout (data-contract change).
    x2d = jnp.transpose(x_sbd, (1, 0, 2)).reshape(batch * seq, d0)

    flat_inputs = [x2d]
    for blk in packed_params:
        flat_inputs.extend(blk)                   # (wattn, wffn, bias) per block

    kernel = make_encoder_kernel(block_dims, num_heads, batch, seq)
    out2d = pl.pallas_call(
        kernel,
        out_shape=jax.ShapeDtypeStruct((batch * seq, d_out), x_sbd.dtype),
        in_specs=[pl.BlockSpec(memory_space=pltpu.MemorySpace.VMEM)] * len(flat_inputs),
        out_specs=pl.BlockSpec(memory_space=pltpu.MemorySpace.VMEM),
    )(*flat_inputs)

    return jnp.transpose(out2d.reshape(batch, seq, d_out), (1, 0, 2))


# --------------------------------------------------------------------------- #
# Parameter schedule / init (standard PyTorch-style layout) + packing
# --------------------------------------------------------------------------- #
def encoder_block_dims(d_input, d_hidden, d_output, num_blocks):
    dims = [(int(d_input / 2 ** i), d_hidden, int(d_input / 2 ** (i + 1)))
            for i in range(num_blocks)]
    dims.append((int(d_input / 2 ** num_blocks), d_hidden, d_output))
    return tuple(dims)


def init_torch_params(key, block_dims, num_heads):
    """Standard-layout parameters (weights [out, in] like nn.Linear)."""
    params = []
    for (d_in, d_h, d_out) in block_dims:
        assert d_in % num_heads == 0, (d_in, num_heads)
        key, *ks = jax.random.split(key, 11)
        xav = (6.0 / (4.0 * d_in)) ** 0.5
        bi = 1.0 / d_in ** 0.5
        bh = 1.0 / d_h ** 0.5
        w_qkv = jax.random.uniform(ks[0], (3 * d_in, d_in), jnp.float32, -xav, xav)
        b_qkv = jax.random.uniform(ks[1], (3 * d_in,), jnp.float32, -bi, bi)
        w_o = jax.random.uniform(ks[2], (d_in, d_in), jnp.float32, -bi, bi)
        b_o = jax.random.uniform(ks[3], (d_in,), jnp.float32, -bi, bi)
        gamma = 1.0 + 0.1 * jax.random.uniform(ks[4], (d_in,), jnp.float32, -1.0, 1.0)
        beta = 0.1 * jax.random.uniform(ks[5], (d_in,), jnp.float32, -1.0, 1.0)
        w1 = jax.random.uniform(ks[6], (d_h, d_in), jnp.float32, -bi, bi)
        b1 = jax.random.uniform(ks[7], (d_h,), jnp.float32, -bi, bi)
        w2 = jax.random.uniform(ks[8], (d_out, d_h), jnp.float32, -bh, bh)
        b2 = jax.random.uniform(ks[9], (d_out,), jnp.float32, -bh, bh)
        params.append((w_qkv, b_qkv, w_o, b_o, gamma, beta, w1, b1, w2, b2))
    return tuple(params)


def _pad_cols(a, width):
    return jnp.pad(a, ((0, 0), (0, width - a.shape[1])))


def _pad_vec(v, width):
    return jnp.pad(v, (0, width - v.shape[0]))


def pack_params(torch_params, block_dims, num_heads):
    """Pack each block's params into 3 slabs (done once at init, not per call)."""
    hp = jax.lax.Precision.HIGHEST
    nh = num_heads
    packed = []
    for (d_in, d_h, d_out), p in zip(block_dims, torch_params):
        w_qkv, b_qkv, w_o, b_o, gamma, beta, w1, b1, w2, b2 = p
        hd = d_in // nh
        scale = 1.0 / float(hd) ** 0.5
        assert d_h >= d_out, "fc2 is lane-padded into the ffn slab; needs d_h >= d_out"

        wq_t = w_qkv[:d_in].T                      # (d_in, d_in): x @ wq_t
        wk_t = w_qkv[d_in:2 * d_in].T
        wv_t = w_qkv[2 * d_in:].T
        wo_t = w_o.T                               # (d_in, d_in): o @ wo_t
        bq = b_qkv[:d_in]
        bv = b_qkv[2 * d_in:]
        # b_k is dropped: it adds a per-query constant to every score column,
        # which the softmax is exactly invariant to.

        rows = []
        for h in range(nh):                        # scaled per-head Wq, lane-padded
            rows.append(_pad_cols(wq_t[:, h * hd:(h + 1) * hd] * scale, d_in))
        for h in range(nh):                        # per-head Wk, lane-padded
            rows.append(_pad_cols(wk_t[:, h * hd:(h + 1) * hd], d_in))
        for h in range(nh):                        # per-head Wv @ Wo (out-proj folded)
            rows.append(jnp.dot(wv_t[:, h * hd:(h + 1) * hd],
                                wo_t[h * hd:(h + 1) * hd, :], precision=hp))
        wattn = jnp.concatenate(rows, axis=0)      # (3*nh*d_in, d_in)

        wffn = jnp.concatenate([w1.T, _pad_cols(w2.T, d_h)], axis=0)  # (d_in+d_h, d_h)

        bw = max(d_in, d_h, d_out)
        bw = ((bw + 127) // 128) * 128             # lane-dense bias slab
        brows = []
        for h in range(nh):                        # rows 0..nh-1 : scaled per-head bq
            brows.append(_pad_vec(bq[h * hd:(h + 1) * hd] * scale, bw))
        for h in range(nh):                        # rows nh..2nh-1 : per-head bv @ Wo
            brows.append(_pad_vec(jnp.dot(bv[h * hd:(h + 1) * hd],
                                          wo_t[h * hd:(h + 1) * hd, :], precision=hp), bw))
        brows.append(_pad_vec(b_o, bw))            # 2nh   : out-proj bias
        brows.append(_pad_vec(gamma, bw))          # 2nh+1 : LayerNorm weight
        brows.append(_pad_vec(beta, bw))           # 2nh+2 : LayerNorm bias
        brows.append(_pad_vec(b1, bw))             # 2nh+3 : fc1 bias
        brows.append(_pad_vec(b2, bw))             # 2nh+4 : fc2 bias
        brows += [jnp.zeros((bw,), jnp.float32)] * ((-len(brows)) % 8)
        bias = jnp.stack(brows, axis=0)            # (8k, bw)

        packed.append((wattn, wffn, bias))
    return tuple(packed)


# --------------------------------------------------------------------------- #
# Pure-JAX reference (PyTorch math, full precision) for correctness checking
# --------------------------------------------------------------------------- #
def encoder_forward_ref(x_sbd, torch_params, block_dims, num_heads):
    hp = jax.lax.Precision.HIGHEST
    h = jnp.transpose(x_sbd, (1, 0, 2))            # [batch, seq, d]
    for (d_in, _d_h, _d_out), p in zip(block_dims, torch_params):
        w_qkv, b_qkv, w_o, b_o, gamma, beta, w1, b1, w2, b2 = p
        nh = num_heads
        hd = d_in // nh
        B, S, _ = h.shape
        qkv = jnp.einsum('bse,fe->bsf', h, w_qkv, precision=hp) + b_qkv
        q, k, v = qkv[..., :d_in], qkv[..., d_in:2 * d_in], qkv[..., 2 * d_in:]
        qh = q.reshape(B, S, nh, hd).transpose(0, 2, 1, 3)
        kh = k.reshape(B, S, nh, hd).transpose(0, 2, 1, 3)
        vh = v.reshape(B, S, nh, hd).transpose(0, 2, 1, 3)
        s = jnp.einsum('bhqd,bhkd->bhqk', qh, kh, precision=hp) * (1.0 / hd ** 0.5)
        pr = jax.nn.softmax(s, axis=-1)
        o = jnp.einsum('bhqk,bhkd->bhqd', pr, vh, precision=hp)
        o = o.transpose(0, 2, 1, 3).reshape(B, S, d_in)
        attn = jnp.einsum('bse,fe->bsf', o, w_o, precision=hp) + b_o
        y = h + attn
        mu = jnp.mean(y, axis=-1, keepdims=True)
        var = jnp.mean((y - mu) ** 2, axis=-1, keepdims=True)
        y = (y - mu) / jnp.sqrt(var + 1e-5) * gamma + beta
        ff = _gelu_tanh(jnp.einsum('bse,he->bsh', y, w1, precision=hp) + b1)
        h = jnp.einsum('bsh,oh->bso', ff, w2, precision=hp) + b2
    return jnp.transpose(h, (1, 0, 2))


# --------------------------------------------------------------------------- #
if __name__ == "__main__":
    d_input, d_hidden, d_output = 64, 128, 16
    num_blocks = 2
    num_heads = 4
    seq, batch = 8, 2

    key = jax.random.PRNGKey(0)
    key, kx = jax.random.split(key)
    x = jax.random.normal(kx, (seq, batch, d_input), jnp.float32)

    block_dims = encoder_block_dims(d_input, d_hidden, d_output, num_blocks)
    torch_params = init_torch_params(key, block_dims, num_heads)
    packed_params = pack_params(torch_params, block_dims, num_heads)

    fwd = jax.jit(functools.partial(transformer_encoder_forward,
                                    block_dims=block_dims, num_heads=num_heads))
    out = jax.block_until_ready(fwd(x, packed_params))

    ref = encoder_forward_ref(x, torch_params, block_dims, num_heads)
    assert out.shape == (seq, batch, d_output), out.shape
    max_err = float(jnp.max(jnp.abs(out - ref)))
    assert jnp.allclose(out, ref, atol=2e-3, rtol=2e-3), (
        f"mismatch vs reference, max abs err = {max_err}")

    print("KERNEL_OK")
</pallas_src>

<mosaic_0001>
module attributes {stable_mosaic.version = 11 : i64} {
  func.func @kernel(%arg0: memref<16x64xf32, #tpu.memory_space<vmem>>, %arg1: memref<768x64xf32, #tpu.memory_space<vmem>>, %arg2: memref<192x128xf32, #tpu.memory_space<vmem>>, %arg3: memref<16x128xf32, #tpu.memory_space<vmem>>, %arg4: memref<384x32xf32, #tpu.memory_space<vmem>>, %arg5: memref<160x128xf32, #tpu.memory_space<vmem>>, %arg6: memref<16x128xf32, #tpu.memory_space<vmem>>, %arg7: memref<192x16xf32, #tpu.memory_space<vmem>>, %arg8: memref<144x128xf32, #tpu.memory_space<vmem>>, %arg9: memref<16x128xf32, #tpu.memory_space<vmem>>, %arg10: memref<16x16xf32, #tpu.memory_space<vmem>>) attributes {dimension_semantics = [], scalar_prefetch = 0 : i64, scratch_operands = 0 : i64, tpu.core_type = #tpu.core_type<tc>} {
    %c0 = arith.constant 0 : index
    %c0_0 = arith.constant 0 : index
    %0 = vector.load %arg0[%c0, %c0_0] : memref<16x64xf32, #tpu.memory_space<vmem>>, vector<16x64xf32>
    %c0_1 = arith.constant 0 : index
    %c0_2 = arith.constant 0 : index
    %1 = vector.load %arg1[%c0_1, %c0_2] : memref<768x64xf32, #tpu.memory_space<vmem>>, vector<64x64xf32>
    %c256 = arith.constant 256 : index
    %c0_3 = arith.constant 0 : index
    %2 = vector.load %arg1[%c256, %c0_3] : memref<768x64xf32, #tpu.memory_space<vmem>>, vector<64x64xf32>
    %c512 = arith.constant 512 : index
    %c0_4 = arith.constant 0 : index
    %3 = vector.load %arg1[%c512, %c0_4] : memref<768x64xf32, #tpu.memory_space<vmem>>, vector<64x64xf32>
    %cst = arith.constant dense<0.000000e+00> : vector<16x64xf32>
    %4 = tpu.matmul %0, %1, %cst {dimension_numbers = #tpu.dot_dimension_numbers<[1], [0], [0], [1], [0, 0, 1, 1], [], []>} : vector<16x64xf32>, vector<64x64xf32>, vector<16x64xf32> -> vector<16x64xf32>
    %c0_5 = arith.constant 0 : index
    %c0_6 = arith.constant 0 : index
    %5 = vector.load %arg3[%c0_5, %c0_6] : memref<16x128xf32, #tpu.memory_space<vmem>>, vector<1x64xf32>
    %6 = vector.broadcast %5 : vector<1x64xf32> to vector<16x64xf32>
    %7 = arith.addf %4, %6 : vector<16x64xf32>
    %cst_7 = arith.constant dense<0.000000e+00> : vector<16x64xf32>
    %8 = tpu.matmul %0, %2, %cst_7 {dimension_numbers = #tpu.dot_dimension_numbers<[1], [0], [0], [1], [0, 0, 1, 1], [], []>} : vector<16x64xf32>, vector<64x64xf32>, vector<16x64xf32> -> vector<16x64xf32>
    %cst_8 = arith.constant dense<0.000000e+00> : vector<16x64xf32>
    %9 = tpu.matmul %0, %3, %cst_8 {dimension_numbers = #tpu.dot_dimension_numbers<[1], [0], [0], [1], [0, 0, 1, 1], [], []>} : vector<16x64xf32>, vector<64x64xf32>, vector<16x64xf32> -> vector<16x64xf32>
    %c4 = arith.constant 4 : index
    %c0_9 = arith.constant 0 : index
    %10 = vector.load %arg3[%c4, %c0_9] : memref<16x128xf32, #tpu.memory_space<vmem>>, vector<1x64xf32>
    %11 = vector.broadcast %10 : vector<1x64xf32> to vector<16x64xf32>
    %12 = arith.addf %9, %11 : vector<16x64xf32>
    %13 = vector.extract_strided_slice %7 {offsets = [0, 0], sizes = [8, 64], strides = [1, 1]} : vector<16x64xf32> to vector<8x64xf32>
    %14 = vector.extract_strided_slice %8 {offsets = [0, 0], sizes = [8, 64], strides = [1, 1]} : vector<16x64xf32> to vector<8x64xf32>
    %cst_10 = arith.constant dense<0.000000e+00> : vector<8x8xf32>
    %15 = tpu.matmul %13, %14, %cst_10 {dimension_numbers = #tpu.dot_dimension_numbers<[1], [1], [0], [0], [0, 0, 1, 0], [], []>} : vector<8x64xf32>, vector<8x64xf32>, vector<8x8xf32> -> vector<8x8xf32>
    %16 = vector.extract_strided_slice %7 {offsets = [8, 0], sizes = [8, 64], strides = [1, 1]} : vector<16x64xf32> to vector<8x64xf32>
    %17 = vector.extract_strided_slice %8 {offsets = [8, 0], sizes = [8, 64], strides = [1, 1]} : vector<16x64xf32> to vector<8x64xf32>
    %cst_11 = arith.constant dense<0.000000e+00> : vector<8x8xf32>
    %18 = tpu.matmul %16, %17, %cst_11 {dimension_numbers = #tpu.dot_dimension_numbers<[1], [1], [0], [0], [0, 0, 1, 0], [], []>} : vector<8x64xf32>, vector<8x64xf32>, vector<8x8xf32> -> vector<8x8xf32>
    %c64 = arith.constant 64 : index
    %c0_12 = arith.constant 0 : index
    %19 = vector.load %arg1[%c64, %c0_12] : memref<768x64xf32, #tpu.memory_space<vmem>>, vector<64x64xf32>
    %c320 = arith.constant 320 : index
    %c0_13 = arith.constant 0 : index
    %20 = vector.load %arg1[%c320, %c0_13] : memref<768x64xf32, #tpu.memory_space<vmem>>, vector<64x64xf32>
    %c576 = arith.constant 576 : index
    %c0_14 = arith.constant 0 : index
    %21 = vector.load %arg1[%c576, %c0_14] : memref<768x64xf32, #tpu.memory_space<vmem>>, vector<64x64xf32>
    %cst_15 = arith.constant dense<0.000000e+00> : vector<16x64xf32>
    %22 = tpu.matmul %0, %19, %cst_15 {dimension_numbers = #tpu.dot_dimension_numbers<[1], [0], [0], [1], [0, 0, 1, 1], [], []>} : vector<16x64xf32>, vector<64x64xf32>, vector<16x64xf32> -> vector<16x64xf32>
    %c1 = arith.constant 1 : index
    %c0_16 = arith.constant 0 : index
    %23 = vector.load %arg3[%c1, %c0_16] : memref<16x128xf32, #tpu.memory_space<vmem>>, vector<1x64xf32>
    %24 = vector.broadcast %23 : vector<1x64xf32> to vector<16x64xf32>
    %25 = arith.addf %22, %24 : vector<16x64xf32>
    %cst_17 = arith.constant dense<0.000000e+00> : vector<16x64xf32>
    %26 = tpu.matmul %0, %20, %cst_17 {dimension_numbers = #tpu.dot_dimension_numbers<[1], [0], [0], [1], [0, 0, 1, 1], [], []>} : vector<16x64xf32>, vector<64x64xf32>, vector<16x64xf32> -> vector<16x64xf32>
    %cst_18 = arith.constant dense<0.000000e+00> : vector<16x64xf32>
    %27 = tpu.matmul %0, %21, %cst_18 {dimension_numbers = #tpu.dot_dimension_numbers<[1], [0], [0], [1], [0, 0, 1, 1], [], []>} : vector<16x64xf32>, vector<64x64xf32>, vector<16x64xf32> -> vector<16x64xf32>
    %c5 = arith.constant 5 : index
    %c0_19 = arith.constant 0 : index
    %28 = vector.load %arg3[%c5, %c0_19] : memref<16x128xf32, #tpu.memory_space<vmem>>, vector<1x64xf32>
    %29 = vector.broadcast %28 : vector<1x64xf32> to vector<16x64xf32>
    %30 = arith.addf %27, %29 : vector<16x64xf32>
    %31 = vector.extract_strided_slice %25 {offsets = [0, 0], sizes = [8, 64], strides = [1, 1]} : vector<16x64xf32> to vector<8x64xf32>
    %32 = vector.extract_strided_slice %26 {offsets = [0, 0], sizes = [8, 64], strides = [1, 1]} : vector<16x64xf32> to vector<8x64xf32>
    %cst_20 = arith.constant dense<0.000000e+00> : vector<8x8xf32>
    %33 = tpu.matmul %31, %32, %cst_20 {dimension_numbers = #tpu.dot_dimension_numbers<[1], [1], [0], [0], [0, 0, 1, 0], [], []>} : vector<8x64xf32>, vector<8x64xf32>, vector<8x8xf32> -> vector<8x8xf32>
    %34 = vector.extract_strided_slice %25 {offsets = [8, 0], sizes = [8, 64], strides = [1, 1]} : vector<16x64xf32> to vector<8x64xf32>
    %35 = vector.extract_strided_slice %26 {offsets = [8, 0], sizes = [8, 64], strides = [1, 1]} : vector<16x64xf32> to vector<8x64xf32>
    %cst_21 = arith.constant dense<0.000000e+00> : vector<8x8xf32>
    %36 = tpu.matmul %34, %35, %cst_21 {dimension_numbers = #tpu.dot_dimension_numbers<[1], [1], [0], [0], [0, 0, 1, 0], [], []>} : vector<8x64xf32>, vector<8x64xf32>, vector<8x8xf32> -> vector<8x8xf32>
    %c128 = arith.constant 128 : index
    %c0_22 = arith.constant 0 : index
    %37 = vector.load %arg1[%c128, %c0_22] : memref<768x64xf32, #tpu.memory_space<vmem>>, vector<64x64xf32>
    %c384 = arith.constant 384 : index
    %c0_23 = arith.constant 0 : index
    %38 = vector.load %arg1[%c384, %c0_23] : memref<768x64xf32, #tpu.memory_space<vmem>>, vector<64x64xf32>
    %c640 = arith.constant 640 : index
    %c0_24 = arith.constant 0 : index
    %39 = vector.load %arg1[%c640, %c0_24] : memref<768x64xf32, #tpu.memory_space<vmem>>, vector<64x64xf32>
    %cst_25 = arith.constant dense<0.000000e+00> : vector<16x64xf32>
    %40 = tpu.matmul %0, %37, %cst_25 {dimension_numbers = #tpu.dot_dimension_numbers<[1], [0], [0], [1], [0, 0, 1, 1], [], []>} : vector<16x64xf32>, vector<64x64xf32>, vector<16x64xf32> -> vector<16x64xf32>
    %c2 = arith.constant 2 : index
    %c0_26 = arith.constant 0 : index
    %41 = vector.load %arg3[%c2, %c0_26] : memref<16x128xf32, #tpu.memory_space<vmem>>, vector<1x64xf32>
    %42 = vector.broadcast %41 : vector<1x64xf32> to vector<16x64xf32>
    %43 = arith.addf %40, %42 : vector<16x64xf32>
    %cst_27 = arith.constant dense<0.000000e+00> : vector<16x64xf32>
    %44 = tpu.matmul %0, %38, %cst_27 {dimension_numbers = #tpu.dot_dimension_numbers<[1], [0], [0], [1], [0, 0, 1, 1], [], []>} : vector<16x64xf32>, vector<64x64xf32>, vector<16x64xf32> -> vector<16x64xf32>
    %cst_28 = arith.constant dense<0.000000e+00> : vector<16x64xf32>
    %45 = tpu.matmul %0, %39, %cst_28 {dimension_numbers = #tpu.dot_dimension_numbers<[1], [0], [0], [1], [0, 0, 1, 1], [], []>} : vector<16x64xf32>, vector<64x64xf32>, vector<16x64xf32> -> vector<16x64xf32>
    %c6 = arith.constant 6 : index
    %c0_29 = arith.constant 0 : index
    %46 = vector.load %arg3[%c6, %c0_29] : memref<16x128xf32, #tpu.memory_space<vmem>>, vector<1x64xf32>
    %47 = vector.broadcast %46 : vector<1x64xf32> to vector<16x64xf32>
    %48 = arith.addf %45, %47 : vector<16x64xf32>
    %49 = vector.extract_strided_slice %43 {offsets = [0, 0], sizes = [8, 64], strides = [1, 1]} : vector<16x64xf32> to vector<8x64xf32>
    %50 = vector.extract_strided_slice %44 {offsets = [0, 0], sizes = [8, 64], strides = [1, 1]} : vector<16x64xf32> to vector<8x64xf32>
    %cst_30 = arith.constant dense<0.000000e+00> : vector<8x8xf32>
    %51 = tpu.matmul %49, %50, %cst_30 {dimension_numbers = #tpu.dot_dimension_numbers<[1], [1], [0], [0], [0, 0, 1, 0], [], []>} : vector<8x64xf32>, vector<8x64xf32>, vector<8x8xf32> -> vector<8x8xf32>
    %52 = vector.extract_strided_slice %43 {offsets = [8, 0], sizes = [8, 64], strides = [1, 1]} : vector<16x64xf32> to vector<8x64xf32>
    %53 = vector.extract_strided_slice %44 {offsets = [8, 0], sizes = [8, 64], strides = [1, 1]} : vector<16x64xf32> to vector<8x64xf32>
    %cst_31 = arith.constant dense<0.000000e+00> : vector<8x8xf32>
    %54 = tpu.matmul %52, %53, %cst_31 {dimension_numbers = #tpu.dot_dimension_numbers<[1], [1], [0], [0], [0, 0, 1, 0], [], []>} : vector<8x64xf32>, vector<8x64xf32>, vector<8x8xf32> -> vector<8x8xf32>
    %c192 = arith.constant 192 : index
    %c0_32 = arith.constant 0 : index
    %55 = vector.load %arg1[%c192, %c0_32] : memref<768x64xf32, #tpu.memory_space<vmem>>, vector<64x64xf32>
    %c448 = arith.constant 448 : index
    %c0_33 = arith.constant 0 : index
    %56 = vector.load %arg1[%c448, %c0_33] : memref<768x64xf32, #tpu.memory_space<vmem>>, vector<64x64xf32>
    %c704 = arith.constant 704 : index
    %c0_34 = arith.constant 0 : index
    %57 = vector.load %arg1[%c704, %c0_34] : memref<768x64xf32, #tpu.memory_space<vmem>>, vector<64x64xf32>
    %cst_35 = arith.constant dense<0.000000e+00> : vector<16x64xf32>
    %58 = tpu.matmul %0, %55, %cst_35 {dimension_numbers = #tpu.dot_dimension_numbers<[1], [0], [0], [1], [0, 0, 1, 1], [], []>} : vector<16x64xf32>, vector<64x64xf32>, vector<16x64xf32> -> vector<16x64xf32>
    %c3 = arith.constant 3 : index
    %c0_36 = arith.constant 0 : index
    %59 = vector.load %arg3[%c3, %c0_36] : memref<16x128xf32, #tpu.memory_space<vmem>>, vector<1x64xf32>
    %60 = vector.broadcast %59 : vector<1x64xf32> to vector<16x64xf32>
    %61 = arith.addf %58, %60 : vector<16x64xf32>
    %cst_37 = arith.constant dense<0.000000e+00> : vector<16x64xf32>
    %62 = tpu.matmul %0, %56, %cst_37 {dimension_numbers = #tpu.dot_dimension_numbers<[1], [0], [0], [1], [0, 0, 1, 1], [], []>} : vector<16x64xf32>, vector<64x64xf32>, vector<16x64xf32> -> vector<16x64xf32>
    %cst_38 = arith.constant dense<0.000000e+00> : vector<16x64xf32>
    %63 = tpu.matmul %0, %57, %cst_38 {dimension_numbers = #tpu.dot_dimension_numbers<[1], [0], [0], [1], [0, 0, 1, 1], [], []>} : vector<16x64xf32>, vector<64x64xf32>, vector<16x64xf32> -> vector<16x64xf32>
    %c7 = arith.constant 7 : index
    %c0_39 = arith.constant 0 : index
    %64 = vector.load %arg3[%c7, %c0_39] : memref<16x128xf32, #tpu.memory_space<vmem>>, vector<1x64xf32>
    %65 = vector.broadcast %64 : vector<1x64xf32> to vector<16x64xf32>
    %66 = arith.addf %63, %65 : vector<16x64xf32>
    %67 = vector.extract_strided_slice %61 {offsets = [0, 0], sizes = [8, 64], strides = [1, 1]} : vector<16x64xf32> to vector<8x64xf32>
    %68 = vector.extract_strided_slice %62 {offsets = [0, 0], sizes = [8, 64], strides = [1, 1]} : vector<16x64xf32> to vector<8x64xf32>
    %cst_40 = arith.constant dense<0.000000e+00> : vector<8x8xf32>
    %69 = tpu.matmul %67, %68, %cst_40 {dimension_numbers = #tpu.dot_dimension_numbers<[1], [1], [0], [0], [0, 0, 1, 0], [], []>} : vector<8x64xf32>, vector<8x64xf32>, vector<8x8xf32> -> vector<8x8xf32>
    %70 = vector.extract_strided_slice %61 {offsets = [8, 0], sizes = [8, 64], strides = [1, 1]} : vector<16x64xf32> to vector<8x64xf32>
    %71 = vector.extract_strided_slice %62 {offsets = [8, 0], sizes = [8, 64], strides = [1, 1]} : vector<16x64xf32> to vector<8x64xf32>
    %cst_41 = arith.constant dense<0.000000e+00> : vector<8x8xf32>
    %72 = tpu.matmul %70, %71, %cst_41 {dimension_numbers = #tpu.dot_dimension_numbers<[1], [1], [0], [0], [0, 0, 1, 0], [], []>} : vector<8x64xf32>, vector<8x64xf32>, vector<8x8xf32> -> vector<8x8xf32>
    %73 = tpu.concatenate %15, %18, %33, %36, %51, %54, %69, %72 in 0 : vector<8x8xf32>, vector<8x8xf32>, vector<8x8xf32>, vector<8x8xf32>, vector<8x8xf32>, vector<8x8xf32>, vector<8x8xf32>, vector<8x8xf32> -> vector<64x8xf32>
    %cst_42 = arith.constant dense<0xFF800000> : vector<64xf32>
    %74 = vector.multi_reduction <maximumf>, %73, %cst_42 [1] : vector<64x8xf32> to vector<64xf32>
    %75 = vector.shape_cast %74 : vector<64xf32> to vector<64x1xf32>
    %76 = vector.broadcast %75 : vector<64x1xf32> to vector<64x8xf32>
    %77 = arith.subf %73, %76 : vector<64x8xf32>
    %78 = math.exp %77 : vector<64x8xf32>
    %cst_43 = arith.constant dense<0.000000e+00> : vector<64xf32>
    %79 = vector.multi_reduction <add>, %78, %cst_43 [1] : vector<64x8xf32> to vector<64xf32>
    %80 = vector.shape_cast %79 : vector<64xf32> to vector<64x1xf32>
    %81 = tpu.reciprocal %80 : vector<64x1xf32> -> vector<64x1xf32>
    %82 = vector.broadcast %81 : vector<64x1xf32> to vector<64x8xf32>
    %83 = arith.mulf %78, %82 : vector<64x8xf32>
    %84 = vector.extract_strided_slice %83 {offsets = [0, 0], sizes = [8, 8], strides = [1, 1]} : vector<64x8xf32> to vector<8x8xf32>
    %85 = vector.extract_strided_slice %12 {offsets = [0, 0], sizes = [8, 64], strides = [1, 1]} : vector<16x64xf32> to vector<8x64xf32>
    %cst_44 = arith.constant dense<0.000000e+00> : vector<8x64xf32>
    %86 = tpu.matmul %84, %85, %cst_44 {dimension_numbers = #tpu.dot_dimension_numbers<[1], [0], [0], [1], [0, 0, 1, 1], [], []>} : vector<8x8xf32>, vector<8x64xf32>, vector<8x64xf32> -> vector<8x64xf32>
    %87 = vector.extract_strided_slice %83 {offsets = [16, 0], sizes = [8, 8], strides = [1, 1]} : vector<64x8xf32> to vector<8x8xf32>
    %88 = vector.extract_strided_slice %30 {offsets = [0, 0], sizes = [8, 64], strides = [1, 1]} : vector<16x64xf32> to vector<8x64xf32>
    %cst_45 = arith.constant dense<0.000000e+00> : vector<8x64xf32>
    %89 = tpu.matmul %87, %88, %cst_45 {dimension_numbers = #tpu.dot_dimension_numbers<[1], [0], [0], [1], [0, 0, 1, 1], [], []>} : vector<8x8xf32>, vector<8x64xf32>, vector<8x64xf32> -> vector<8x64xf32>
    %90 = arith.addf %86, %89 : vector<8x64xf32>
    %91 = vector.extract_strided_slice %83 {offsets = [32, 0], sizes = [8, 8], strides = [1, 1]} : vector<64x8xf32> to vector<8x8xf32>
    %92 = vector.extract_strided_slice %48 {offsets = [0, 0], sizes = [8, 64], strides = [1, 1]} : vector<16x64xf32> to vector<8x64xf32>
    %cst_46 = arith.constant dense<0.000000e+00> : vector<8x64xf32>
    %93 = tpu.matmul %91, %92, %cst_46 {dimension_numbers = #tpu.dot_dimension_numbers<[1], [0], [0], [1], [0, 0, 1, 1], [], []>} : vector<8x8xf32>, vector<8x64xf32>, vector<8x64xf32> -> vector<8x64xf32>
    %94 = arith.addf %90, %93 : vector<8x64xf32>
    %95 = vector.extract_strided_slice %83 {offsets = [48, 0], sizes = [8, 8], strides = [1, 1]} : vector<64x8xf32> to vector<8x8xf32>
    %96 = vector.extract_strided_slice %66 {offsets = [0, 0], sizes = [8, 64], strides = [1, 1]} : vector<16x64xf32> to vector<8x64xf32>
    %cst_47 = arith.constant dense<0.000000e+00> : vector<8x64xf32>
    %97 = tpu.matmul %95, %96, %cst_47 {dimension_numbers = #tpu.dot_dimension_numbers<[1], [0], [0], [1], [0, 0, 1, 1], [], []>} : vector<8x8xf32>, vector<8x64xf32>, vector<8x64xf32> -> vector<8x64xf32>
    %98 = arith.addf %94, %97 : vector<8x64xf32>
    %99 = vector.extract_strided_slice %83 {offsets = [8, 0], sizes = [8, 8], strides = [1, 1]} : vector<64x8xf32> to vector<8x8xf32>
    %100 = vector.extract_strided_slice %12 {offsets = [8, 0], sizes = [8, 64], strides = [1, 1]} : vector<16x64xf32> to vector<8x64xf32>
    %cst_48 = arith.constant dense<0.000000e+00> : vector<8x64xf32>
    %101 = tpu.matmul %99, %100, %cst_48 {dimension_numbers = #tpu.dot_dimension_numbers<[1], [0], [0], [1], [0, 0, 1, 1], [], []>} : vector<8x8xf32>, vector<8x64xf32>, vector<8x64xf32> -> vector<8x64xf32>
    %102 = vector.extract_strided_slice %83 {offsets = [24, 0], sizes = [8, 8], strides = [1, 1]} : vector<64x8xf32> to vector<8x8xf32>
    %103 = vector.extract_strided_slice %30 {offsets = [8, 0], sizes = [8, 64], strides = [1, 1]} : vector<16x64xf32> to vector<8x64xf32>
    %cst_49 = arith.constant dense<0.000000e+00> : vector<8x64xf32>
    %104 = tpu.matmul %102, %103, %cst_49 {dimension_numbers = #tpu.dot_dimension_numbers<[1], [0], [0], [1], [0, 0, 1, 1], [], []>} : vector<8x8xf32>, vector<8x64xf32>, vector<8x64xf32> -> vector<8x64xf32>
    %105 = arith.addf %101, %104 : vector<8x64xf32>
    %106 = vector.extract_strided_slice %83 {offsets = [40, 0], sizes = [8, 8], strides = [1, 1]} : vector<64x8xf32> to vector<8x8xf32>
    %107 = vector.extract_strided_slice %48 {offsets = [8, 0], sizes = [8, 64], strides = [1, 1]} : vector<16x64xf32> to vector<8x64xf32>
    %cst_50 = arith.constant dense<0.000000e+00> : vector<8x64xf32>
    %108 = tpu.matmul %106, %107, %cst_50 {dimension_numbers = #tpu.dot_dimension_numbers<[1], [0], [0], [1], [0, 0, 1, 1], [], []>} : vector<8x8xf32>, vector<8x64xf32>, vector<8x64xf32> -> vector<8x64xf32>
    %109 = arith.addf %105, %108 : vector<8x64xf32>
    %110 = vector.extract_strided_slice %83 {offsets = [56, 0], sizes = [8, 8], strides = [1, 1]} : vector<64x8xf32> to vector<8x8xf32>
    %111 = vector.extract_strided_slice %66 {offsets = [8, 0], sizes = [8, 64], strides = [1, 1]} : vector<16x64xf32> to vector<8x64xf32>
    %cst_51 = arith.constant dense<0.000000e+00> : vector<8x64xf32>
    %112 = tpu.matmul %110, %111, %cst_51 {dimension_numbers = #tpu.dot_dimension_numbers<[1], [0], [0], [1], [0, 0, 1, 1], [], []>} : vector<8x8xf32>, vector<8x64xf32>, vector<8x64xf32> -> vector<8x64xf32>
    %113 = arith.addf %109, %112 : vector<8x64xf32>
    %114 = tpu.concatenate %98, %113 in 0 : vector<8x64xf32>, vector<8x64xf32> -> vector<16x64xf32>
    %c8 = arith.constant 8 : index
    %c0_52 = arith.constant 0 : index
    %115 = vector.load %arg3[%c8, %c0_52] : memref<16x128xf32, #tpu.memory_space<vmem>>, vector<1x64xf32>
    %116 = vector.broadcast %115 : vector<1x64xf32> to vector<16x64xf32>
    %117 = arith.addf %114, %116 : vector<16x64xf32>
    %118 = arith.addf %0, %117 : vector<16x64xf32>
    %cst_53 = arith.constant dense<0.000000e+00> : vector<16xf32>
    %119 = vector.multi_reduction <add>, %118, %cst_53 [1] : vector<16x64xf32> to vector<16xf32>
    %120 = vector.shape_cast %119 : vector<16xf32> to vector<16x1xf32>
    %cst_54 = arith.constant 6.400000e+01 : f32
    %121 = vector.broadcast %cst_54 : f32 to vector<16x1xf32>
    %122 = arith.divf %120, %121 : vector<16x1xf32>
    %123 = vector.broadcast %122 : vector<16x1xf32> to vector<16x64xf32>
    %124 = arith.subf %118, %123 : vector<16x64xf32>
    %125 = arith.mulf %124, %124 : vector<16x64xf32>
    %cst_55 = arith.constant dense<0.000000e+00> : vector<16xf32>
    %126 = vector.multi_reduction <add>, %125, %cst_55 [1] : vector<16x64xf32> to vector<16xf32>
    %127 = vector.shape_cast %126 : vector<16xf32> to vector<16x1xf32>
    %cst_56 = arith.constant 6.400000e+01 : f32
    %128 = vector.broadcast %cst_56 : f32 to vector<16x1xf32>
    %129 = arith.divf %127, %128 : vector<16x1xf32>
    %130 = vector.broadcast %122 : vector<16x1xf32> to vector<16x64xf32>
    %131 = arith.subf %118, %130 : vector<16x64xf32>
    %cst_57 = arith.constant 9.99999974E-6 : f32
    %132 = vector.broadcast %cst_57 : f32 to vector<16x1xf32>
    %133 = arith.addf %129, %132 : vector<16x1xf32>
    %134 = math.rsqrt %133 : vector<16x1xf32>
    %135 = vector.broadcast %134 : vector<16x1xf32> to vector<16x64xf32>
    %136 = arith.mulf %131, %135 : vector<16x64xf32>
    %c9 = arith.constant 9 : index
    %c0_58 = arith.constant 0 : index
    %137 = vector.load %arg3[%c9, %c0_58] : memref<16x128xf32, #tpu.memory_space<vmem>>, vector<1x64xf32>
    %138 = vector.broadcast %137 : vector<1x64xf32> to vector<16x64xf32>
    %139 = arith.mulf %136, %138 : vector<16x64xf32>
    %c10 = arith.constant 10 : index
    %c0_59 = arith.constant 0 : index
    %140 = vector.load %arg3[%c10, %c0_59] : memref<16x128xf32, #tpu.memory_space<vmem>>, vector<1x64xf32>
    %141 = vector.broadcast %140 : vector<1x64xf32> to vector<16x64xf32>
    %142 = arith.addf %139, %141 : vector<16x64xf32>
    %c0_60 = arith.constant 0 : index
    %c0_61 = arith.constant 0 : index
    %143 = vector.load %arg2[%c0_60, %c0_61] : memref<192x128xf32, #tpu.memory_space<vmem>>, vector<64x128xf32>
    %cst_62 = arith.constant dense<0.000000e+00> : vector<16x128xf32>
    %144 = tpu.matmul %142, %143, %cst_62 {dimension_numbers = #tpu.dot_dimension_numbers<[1], [0], [0], [1], [0, 0, 1, 1], [], []>} : vector<16x64xf32>, vector<64x128xf32>, vector<16x128xf32> -> vector<16x128xf32>
    %c11 = arith.constant 11 : index
    %c0_63 = arith.constant 0 : index
    %145 = vector.load %arg3[%c11, %c0_63] : memref<16x128xf32, #tpu.memory_space<vmem>>, vector<1x128xf32>
    %146 = vector.broadcast %145 : vector<1x128xf32> to vector<16x128xf32>
    %147 = arith.addf %144, %146 : vector<16x128xf32>
    %cst_64 = arith.constant 5.000000e-01 : f32
    %148 = vector.broadcast %cst_64 : f32 to vector<16x128xf32>
    %149 = arith.mulf %148, %147 : vector<16x128xf32>
    %cst_65 = arith.constant 4.471500e-02 : f32
    %150 = vector.broadcast %cst_65 : f32 to vector<16x128xf32>
    %151 = arith.mulf %150, %147 : vector<16x128xf32>
    %152 = arith.mulf %151, %147 : vector<16x128xf32>
    %153 = arith.mulf %152, %147 : vector<16x128xf32>
    %154 = arith.addf %147, %153 : vector<16x128xf32>
    %cst_66 = arith.constant 0.797884583 : f32
    %155 = vector.broadcast %cst_66 : f32 to vector<16x128xf32>
    %156 = arith.mulf %155, %154 : vector<16x128xf32>
    %157 = math.tanh %156 : vector<16x128xf32>
    %cst_67 = arith.constant 1.000000e+00 : f32
    %158 = vector.broadcast %cst_67 : f32 to vector<16x128xf32>
    %159 = arith.addf %158, %157 : vector<16x128xf32>
    %160 = arith.mulf %149, %159 : vector<16x128xf32>
    %c64_68 = arith.constant 64 : index
    %c0_69 = arith.constant 0 : index
    %161 = vector.load %arg2[%c64_68, %c0_69] : memref<192x128xf32, #tpu.memory_space<vmem>>, vector<128x128xf32>
    %cst_70 = arith.constant dense<0.000000e+00> : vector<16x128xf32>
    %162 = tpu.matmul %160, %161, %cst_70 {dimension_numbers = #tpu.dot_dimension_numbers<[1], [0], [0], [1], [0, 0, 1, 1], [], []>} : vector<16x128xf32>, vector<128x128xf32>, vector<16x128xf32> -> vector<16x128xf32>
    %c12 = arith.constant 12 : index
    %c0_71 = arith.constant 0 : index
    %163 = vector.load %arg3[%c12, %c0_71] : memref<16x128xf32, #tpu.memory_space<vmem>>, vector<1x128xf32>
    %164 = vector.broadcast %163 : vector<1x128xf32> to vector<16x128xf32>
    %165 = arith.addf %162, %164 : vector<16x128xf32>
    %166 = vector.extract_strided_slice %165 {offsets = [0, 0], sizes = [16, 32], strides = [1, 1]} : vector<16x128xf32> to vector<16x32xf32>
    %c0_72 = arith.constant 0 : index
    %c0_73 = arith.constant 0 : index
    %167 = vector.load %arg4[%c0_72, %c0_73] : memref<384x32xf32, #tpu.memory_space<vmem>>, vector<32x32xf32>
    %c128_74 = arith.constant 128 : index
    %c0_75 = arith.constant 0 : index
    %168 = vector.load %arg4[%c128_74, %c0_75] : memref<384x32xf32, #tpu.memory_space<vmem>>, vector<32x32xf32>
    %c256_76 = arith.constant 256 : index
    %c0_77 = arith.constant 0 : index
    %169 = vector.load %arg4[%c256_76, %c0_77] : memref<384x32xf32, #tpu.memory_space<vmem>>, vector<32x32xf32>
    %cst_78 = arith.constant dense<0.000000e+00> : vector<16x32xf32>
    %170 = tpu.matmul %166, %167, %cst_78 {dimension_numbers = #tpu.dot_dimension_numbers<[1], [0], [0], [1], [0, 0, 1, 1], [], []>} : vector<16x32xf32>, vector<32x32xf32>, vector<16x32xf32> -> vector<16x32xf32>
    %c0_79 = arith.constant 0 : index
    %c0_80 = arith.constant 0 : index
    %171 = vector.load %arg6[%c0_79, %c0_80] : memref<16x128xf32, #tpu.memory_space<vmem>>, vector<1x32xf32>
    %172 = vector.broadcast %171 : vector<1x32xf32> to vector<16x32xf32>
    %173 = arith.addf %170, %172 : vector<16x32xf32>
    %cst_81 = arith.constant dense<0.000000e+00> : vector<16x32xf32>
    %174 = tpu.matmul %166, %168, %cst_81 {dimension_numbers = #tpu.dot_dimension_numbers<[1], [0], [0], [1], [0, 0, 1, 1], [], []>} : vector<16x32xf32>, vector<32x32xf32>, vector<16x32xf32> -> vector<16x32xf32>
    %cst_82 = arith.constant dense<0.000000e+00> : vector<16x32xf32>
    %175 = tpu.matmul %166, %169, %cst_82 {dimension_numbers = #tpu.dot_dimension_numbers<[1], [0], [0], [1], [0, 0, 1, 1], [], []>} : vector<16x32xf32>, vector<32x32xf32>, vector<16x32xf32> -> vector<16x32xf32>
    %c4_83 = arith.constant 4 : index
    %c0_84 = arith.constant 0 : index
    %176 = vector.load %arg6[%c4_83, %c0_84] : memref<16x128xf32, #tpu.memory_space<vmem>>, vector<1x32xf32>
    %177 = vector.broadcast %176 : vector<1x32xf32> to vector<16x32xf32>
    %178 = arith.addf %175, %177 : vector<16x32xf32>
    %179 = vector.extract_strided_slice %173 {offsets = [0, 0], sizes = [8, 32], strides = [1, 1]} : vector<16x32xf32> to vector<8x32xf32>
    %180 = vector.extract_strided_slice %174 {offsets = [0, 0], sizes = [8, 32], strides = [1, 1]} : vector<16x32xf32> to vector<8x32xf32>
    %cst_85 = arith.constant dense<0.000000e+00> : vector<8x8xf32>
    %181 = tpu.matmul %179, %180, %cst_85 {dimension_numbers = #tpu.dot_dimension_numbers<[1], [1], [0], [0], [0, 0, 1, 0], [], []>} : vector<8x32xf32>, vector<8x32xf32>, vector<8x8xf32> -> vector<8x8xf32>
    %182 = vector.extract_strided_slice %173 {offsets = [8, 0], sizes = [8, 32], strides = [1, 1]} : vector<16x32xf32> to vector<8x32xf32>
    %183 = vector.extract_strided_slice %174 {offsets = [8, 0], sizes = [8, 32], strides = [1, 1]} : vector<16x32xf32> to vector<8x32xf32>
    %cst_86 = arith.constant dense<0.000000e+00> : vector<8x8xf32>
    %184 = tpu.matmul %182, %183, %cst_86 {dimension_numbers = #tpu.dot_dimension_numbers<[1], [1], [0], [0], [0, 0, 1, 0], [], []>} : vector<8x32xf32>, vector<8x32xf32>, vector<8x8xf32> -> vector<8x8xf32>
    %c32 = arith.constant 32 : index
    %c0_87 = arith.constant 0 : index
    %185 = vector.load %arg4[%c32, %c0_87] : memref<384x32xf32, #tpu.memory_space<vmem>>, vector<32x32xf32>
    %c160 = arith.constant 160 : index
    %c0_88 = arith.constant 0 : index
    %186 = vector.load %arg4[%c160, %c0_88] : memref<384x32xf32, #tpu.memory_space<vmem>>, vector<32x32xf32>
    %c288 = arith.constant 288 : index
    %c0_89 = arith.constant 0 : index
    %187 = vector.load %arg4[%c288, %c0_89] : memref<384x32xf32, #tpu.memory_space<vmem>>, vector<32x32xf32>
    %cst_90 = arith.constant dense<0.000000e+00> : vector<16x32xf32>
    %188 = tpu.matmul %166, %185, %cst_90 {dimension_numbers = #tpu.dot_dimension_numbers<[1], [0], [0], [1], [0, 0, 1, 1], [], []>} : vector<16x32xf32>, vector<32x32xf32>, vector<16x32xf32> -> vector<16x32xf32>
    %c1_91 = arith.constant 1 : index
    %c0_92 = arith.constant 0 : index
    %189 = vector.load %arg6[%c1_91, %c0_92] : memref<16x128xf32, #tpu.memory_space<vmem>>, vector<1x32xf32>
    %190 = vector.broadcast %189 : vector<1x32xf32> to vector<16x32xf32>
    %191 = arith.addf %188, %190 : vector<16x32xf32>
    %cst_93 = arith.constant dense<0.000000e+00> : vector<16x32xf32>
    %192 = tpu.matmul %166, %186, %cst_93 {dimension_numbers = #tpu.dot_dimension_numbers<[1], [0], [0], [1], [0, 0, 1, 1], [], []>} : vector<16x32xf32>, vector<32x32xf32>, vector<16x32xf32> -> vector<16x32xf32>
    %cst_94 = arith.constant dense<0.000000e+00> : vector<16x32xf32>
    %193 = tpu.matmul %166, %187, %cst_94 {dimension_numbers = #tpu.dot_dimension_numbers<[1], [0], [0], [1], [0, 0, 1, 1], [], []>} : vector<16x32xf32>, vector<32x32xf32>, vector<16x32xf32> -> vector<16x32xf32>
    %c5_95 = arith.constant 5 : index
    %c0_96 = arith.constant 0 : index
    %194 = vector.load %arg6[%c5_95, %c0_96] : memref<16x128xf32, #tpu.memory_space<vmem>>, vector<1x32xf32>
    %195 = vector.broadcast %194 : vector<1x32xf32> to vector<16x32xf32>
    %196 = arith.addf %193, %195 : vector<16x32xf32>
    %197 = vector.extract_strided_slice %191 {offsets = [0, 0], sizes = [8, 32], strides = [1, 1]} : vector<16x32xf32> to vector<8x32xf32>
    %198 = vector.extract_strided_slice %192 {offsets = [0, 0], sizes = [8, 32], strides = [1, 1]} : vector<16x32xf32> to vector<8x32xf32>
    %cst_97 = arith.constant dense<0.000000e+00> : vector<8x8xf32>
    %199 = tpu.matmul %197, %198, %cst_97 {dimension_numbers = #tpu.dot_dimension_numbers<[1], [1], [0], [0], [0, 0, 1, 0], [], []>} : vector<8x32xf32>, vector<8x32xf32>, vector<8x8xf32> -> vector<8x8xf32>
    %200 = vector.extract_strided_slice %191 {offsets = [8, 0], sizes = [8, 32], strides = [1, 1]} : vector<16x32xf32> to vector<8x32xf32>
    %201 = vector.extract_strided_slice %192 {offsets = [8, 0], sizes = [8, 32], strides = [1, 1]} : vector<16x32xf32> to vector<8x32xf32>
    %cst_98 = arith.constant dense<0.000000e+00> : vector<8x8xf32>
    %202 = tpu.matmul %200, %201, %cst_98 {dimension_numbers = #tpu.dot_dimension_numbers<[1], [1], [0], [0], [0, 0, 1, 0], [], []>} : vector<8x32xf32>, vector<8x32xf32>, vector<8x8xf32> -> vector<8x8xf32>
    %c64_99 = arith.constant 64 : index
    %c0_100 = arith.constant 0 : index
    %203 = vector.load %arg4[%c64_99, %c0_100] : memref<384x32xf32, #tpu.memory_space<vmem>>, vector<32x32xf32>
    %c192_101 = arith.constant 192 : index
    %c0_102 = arith.constant 0 : index
    %204 = vector.load %arg4[%c192_101, %c0_102] : memref<384x32xf32, #tpu.memory_space<vmem>>, vector<32x32xf32>
    %c320_103 = arith.constant 320 : index
    %c0_104 = arith.constant 0 : index
    %205 = vector.load %arg4[%c320_103, %c0_104] : memref<384x32xf32, #tpu.memory_space<vmem>>, vector<32x32xf32>
    %cst_105 = arith.constant dense<0.000000e+00> : vector<16x32xf32>
    %206 = tpu.matmul %166, %203, %cst_105 {dimension_numbers = #tpu.dot_dimension_numbers<[1], [0], [0], [1], [0, 0, 1, 1], [], []>} : vector<16x32xf32>, vector<32x32xf32>, vector<16x32xf32> -> vector<16x32xf32>
    %c2_106 = arith.constant 2 : index
    %c0_107 = arith.constant 0 : index
    %207 = vector.load %arg6[%c2_106, %c0_107] : memref<16x128xf32, #tpu.memory_space<vmem>>, vector<1x32xf32>
    %208 = vector.broadcast %207 : vector<1x32xf32> to vector<16x32xf32>
    %209 = arith.addf %206, %208 : vector<16x32xf32>
    %cst_108 = arith.constant dense<0.000000e+00> : vector<16x32xf32>
    %210 = tpu.matmul %166, %204, %cst_108 {dimension_numbers = #tpu.dot_dimension_numbers<[1], [0], [0], [1], [0, 0, 1, 1], [], []>} : vector<16x32xf32>, vector<32x32xf32>, vector<16x32xf32> -> vector<16x32xf32>
    %cst_109 = arith.constant dense<0.000000e+00> : vector<16x32xf32>
    %211 = tpu.matmul %166, %205, %cst_109 {dimension_numbers = #tpu.dot_dimension_numbers<[1], [0], [0], [1], [0, 0, 1, 1], [], []>} : vector<16x32xf32>, vector<32x32xf32>, vector<16x32xf32> -> vector<16x32xf32>
    %c6_110 = arith.constant 6 : index
    %c0_111 = arith.constant 0 : index
    %212 = vector.load %arg6[%c6_110, %c0_111] : memref<16x128xf32, #tpu.memory_space<vmem>>, vector<1x32xf32>
    %213 = vector.broadcast %212 : vector<1x32xf32> to vector<16x32xf32>
    %214 = arith.addf %211, %213 : vector<16x32xf32>
    %215 = vector.extract_strided_slice %209 {offsets = [0, 0], sizes = [8, 32], strides = [1, 1]} : vector<16x32xf32> to vector<8x32xf32>
    %216 = vector.extract_strided_slice %210 {offsets = [0, 0], sizes = [8, 32], strides = [1, 1]} : vector<16x32xf32> to vector<8x32xf32>
    %cst_112 = arith.constant dense<0.000000e+00> : vector<8x8xf32>
    %217 = tpu.matmul %215, %216, %cst_112 {dimension_numbers = #tpu.dot_dimension_numbers<[1], [1], [0], [0], [0, 0, 1, 0], [], []>} : vector<8x32xf32>, vector<8x32xf32>, vector<8x8xf32> -> vector<8x8xf32>
    %218 = vector.extract_strided_slice %209 {offsets = [8, 0], sizes = [8, 32], strides = [1, 1]} : vector<16x32xf32> to vector<8x32xf32>
    %219 = vector.extract_strided_slice %210 {offsets = [8, 0], sizes = [8, 32], strides = [1, 1]} : vector<16x32xf32> to vector<8x32xf32>
    %cst_113 = arith.constant dense<0.000000e+00> : vector<8x8xf32>
    %220 = tpu.matmul %218, %219, %cst_113 {dimension_numbers = #tpu.dot_dimension_numbers<[1], [1], [0], [0], [0, 0, 1, 0], [], []>} : vector<8x32xf32>, vector<8x32xf32>, vector<8x8xf32> -> vector<8x8xf32>
    %c96 = arith.constant 96 : index
    %c0_114 = arith.constant 0 : index
    %221 = vector.load %arg4[%c96, %c0_114] : memref<384x32xf32, #tpu.memory_space<vmem>>, vector<32x32xf32>
    %c224 = arith.constant 224 : index
    %c0_115 = arith.constant 0 : index
    %222 = vector.load %arg4[%c224, %c0_115] : memref<384x32xf32, #tpu.memory_space<vmem>>, vector<32x32xf32>
    %c352 = arith.constant 352 : index
    %c0_116 = arith.constant 0 : index
    %223 = vector.load %arg4[%c352, %c0_116] : memref<384x32xf32, #tpu.memory_space<vmem>>, vector<32x32xf32>
    %cst_117 = arith.constant dense<0.000000e+00> : vector<16x32xf32>
    %224 = tpu.matmul %166, %221, %cst_117 {dimension_numbers = #tpu.dot_dimension_numbers<[1], [0], [0], [1], [0, 0, 1, 1], [], []>} : vector<16x32xf32>, vector<32x32xf32>, vector<16x32xf32> -> vector<16x32xf32>
    %c3_118 = arith.constant 3 : index
    %c0_119 = arith.constant 0 : index
    %225 = vector.load %arg6[%c3_118, %c0_119] : memref<16x128xf32, #tpu.memory_space<vmem>>, vector<1x32xf32>
    %226 = vector.broadcast %225 : vector<1x32xf32> to vector<16x32xf32>
    %227 = arith.addf %224, %226 : vector<16x32xf32>
    %cst_120 = arith.constant dense<0.000000e+00> : vector<16x32xf32>
    %228 = tpu.matmul %166, %222, %cst_120 {dimension_numbers = #tpu.dot_dimension_numbers<[1], [0], [0], [1], [0, 0, 1, 1], [], []>} : vector<16x32xf32>, vector<32x32xf32>, vector<16x32xf32> -> vector<16x32xf32>
    %cst_121 = arith.constant dense<0.000000e+00> : vector<16x32xf32>
    %229 = tpu.matmul %166, %223, %cst_121 {dimension_numbers = #tpu.dot_dimension_numbers<[1], [0], [0], [1], [0, 0, 1, 1], [], []>} : vector<16x32xf32>, vector<32x32xf32>, vector<16x32xf32> -> vector<16x32xf32>
    %c7_122 = arith.constant 7 : index
    %c0_123 = arith.constant 0 : index
    %230 = vector.load %arg6[%c7_122, %c0_123] : memref<16x128xf32, #tpu.memory_space<vmem>>, vector<1x32xf32>
    %231 = vector.broadcast %230 : vector<1x32xf32> to vector<16x32xf32>
    %232 = arith.addf %229, %231 : vector<16x32xf32>
    %233 = vector.extract_strided_slice %227 {offsets = [0, 0], sizes = [8, 32], strides = [1, 1]} : vector<16x32xf32> to vector<8x32xf32>
    %234 = vector.extract_strided_slice %228 {offsets = [0, 0], sizes = [8, 32], strides = [1, 1]} : vector<16x32xf32> to vector<8x32xf32>
    %cst_124 = arith.constant dense<0.000000e+00> : vector<8x8xf32>
    %235 = tpu.matmul %233, %234, %cst_124 {dimension_numbers = #tpu.dot_dimension_numbers<[1], [1], [0], [0], [0, 0, 1, 0], [], []>} : vector<8x32xf32>, vector<8x32xf32>, vector<8x8xf32> -> vector<8x8xf32>
    %236 = vector.extract_strided_slice %227 {offsets = [8, 0], sizes = [8, 32], strides = [1, 1]} : vector<16x32xf32> to vector<8x32xf32>
    %237 = vector.extract_strided_slice %228 {offsets = [8, 0], sizes = [8, 32], strides = [1, 1]} : vector<16x32xf32> to vector<8x32xf32>
    %cst_125 = arith.constant dense<0.000000e+00> : vector<8x8xf32>
    %238 = tpu.matmul %236, %237, %cst_125 {dimension_numbers = #tpu.dot_dimension_numbers<[1], [1], [0], [0], [0, 0, 1, 0], [], []>} : vector<8x32xf32>, vector<8x32xf32>, vector<8x8xf32> -> vector<8x8xf32>
    %239 = tpu.concatenate %181, %184, %199, %202, %217, %220, %235, %238 in 0 : vector<8x8xf32>, vector<8x8xf32>, vector<8x8xf32>, vector<8x8xf32>, vector<8x8xf32>, vector<8x8xf32>, vector<8x8xf32>, vector<8x8xf32> -> vector<64x8xf32>
    %cst_126 = arith.constant dense<0xFF800000> : vector<64xf32>
    %240 = vector.multi_reduction <maximumf>, %239, %cst_126 [1] : vector<64x8xf32> to vector<64xf32>
    %241 = vector.shape_cast %240 : vector<64xf32> to vector<64x1xf32>
    %242 = vector.broadcast %241 : vector<64x1xf32> to vector<64x8xf32>
    %243 = arith.subf %239, %242 : vector<64x8xf32>
    %244 = math.exp %243 : vector<64x8xf32>
    %cst_127 = arith.constant dense<0.000000e+00> : vector<64xf32>
    %245 = vector.multi_reduction <add>, %244, %cst_127 [1] : vector<64x8xf32> to vector<64xf32>
    %246 = vector.shape_cast %245 : vector<64xf32> to vector<64x1xf32>
    %247 = tpu.reciprocal %246 : vector<64x1xf32> -> vector<64x1xf32>
    %248 = vector.broadcast %247 : vector<64x1xf32> to vector<64x8xf32>
    %249 = arith.mulf %244, %248 : vector<64x8xf32>
    %250 = vector.extract_strided_slice %249 {offsets = [0, 0], sizes = [8, 8], strides = [1, 1]} : vector<64x8xf32> to vector<8x8xf32>
    %251 = vector.extract_strided_slice %178 {offsets = [0, 0], sizes = [8, 32], strides = [1, 1]} : vector<16x32xf32> to vector<8x32xf32>
    %cst_128 = arith.constant dense<0.000000e+00> : vector<8x32xf32>
    %252 = tpu.matmul %250, %251, %cst_128 {dimension_numbers = #tpu.dot_dimension_numbers<[1], [0], [0], [1], [0, 0, 1, 1], [], []>} : vector<8x8xf32>, vector<8x32xf32>, vector<8x32xf32> -> vector<8x32xf32>
    %253 = vector.extract_strided_slice %249 {offsets = [16, 0], sizes = [8, 8], strides = [1, 1]} : vector<64x8xf32> to vector<8x8xf32>
    %254 = vector.extract_strided_slice %196 {offsets = [0, 0], sizes = [8, 32], strides = [1, 1]} : vector<16x32xf32> to vector<8x32xf32>
    %cst_129 = arith.constant dense<0.000000e+00> : vector<8x32xf32>
    %255 = tpu.matmul %253, %254, %cst_129 {dimension_numbers = #tpu.dot_dimension_numbers<[1], [0], [0], [1], [0, 0, 1, 1], [], []>} : vector<8x8xf32>, vector<8x32xf32>, vector<8x32xf32> -> vector<8x32xf32>
    %256 = arith.addf %252, %255 : vector<8x32xf32>
    %257 = vector.extract_strided_slice %249 {offsets = [32, 0], sizes = [8, 8], strides = [1, 1]} : vector<64x8xf32> to vector<8x8xf32>
    %258 = vector.extract_strided_slice %214 {offsets = [0, 0], sizes = [8, 32], strides = [1, 1]} : vector<16x32xf32> to vector<8x32xf32>
    %cst_130 = arith.constant dense<0.000000e+00> : vector<8x32xf32>
    %259 = tpu.matmul %257, %258, %cst_130 {dimension_numbers = #tpu.dot_dimension_numbers<[1], [0], [0], [1], [0, 0, 1, 1], [], []>} : vector<8x8xf32>, vector<8x32xf32>, vector<8x32xf32> -> vector<8x32xf32>
    %260 = arith.addf %256, %259 : vector<8x32xf32>
    %261 = vector.extract_strided_slice %249 {offsets = [48, 0], sizes = [8, 8], strides = [1, 1]} : vector<64x8xf32> to vector<8x8xf32>
    %262 = vector.extract_strided_slice %232 {offsets = [0, 0], sizes = [8, 32], strides = [1, 1]} : vector<16x32xf32> to vector<8x32xf32>
    %cst_131 = arith.constant dense<0.000000e+00> : vector<8x32xf32>
    %263 = tpu.matmul %261, %262, %cst_131 {dimension_numbers = #tpu.dot_dimension_numbers<[1], [0], [0], [1], [0, 0, 1, 1], [], []>} : vector<8x8xf32>, vector<8x32xf32>, vector<8x32xf32> -> vector<8x32xf32>
    %264 = arith.addf %260, %263 : vector<8x32xf32>
    %265 = vector.extract_strided_slice %249 {offsets = [8, 0], sizes = [8, 8], strides = [1, 1]} : vector<64x8xf32> to vector<8x8xf32>
    %266 = vector.extract_strided_slice %178 {offsets = [8, 0], sizes = [8, 32], strides = [1, 1]} : vector<16x32xf32> to vector<8x32xf32>
    %cst_132 = arith.constant dense<0.000000e+00> : vector<8x32xf32>
    %267 = tpu.matmul %265, %266, %cst_132 {dimension_numbers = #tpu.dot_dimension_numbers<[1], [0], [0], [1], [0, 0, 1, 1], [], []>} : vector<8x8xf32>, vector<8x32xf32>, vector<8x32xf32> -> vector<8x32xf32>
    %268 = vector.extract_strided_slice %249 {offsets = [24, 0], sizes = [8, 8], strides = [1, 1]} : vector<64x8xf32> to vector<8x8xf32>
    %269 = vector.extract_strided_slice %196 {offsets = [8, 0], sizes = [8, 32], strides = [1, 1]} : vector<16x32xf32> to vector<8x32xf32>
    %cst_133 = arith.constant dense<0.000000e+00> : vector<8x32xf32>
    %270 = tpu.matmul %268, %269, %cst_133 {dimension_numbers = #tpu.dot_dimension_numbers<[1], [0], [0], [1], [0, 0, 1, 1], [], []>} : vector<8x8xf32>, vector<8x32xf32>, vector<8x32xf32> -> vector<8x32xf32>
    %271 = arith.addf %267, %270 : vector<8x32xf32>
    %272 = vector.extract_strided_slice %249 {offsets = [40, 0], sizes = [8, 8], strides = [1, 1]} : vector<64x8xf32> to vector<8x8xf32>
    %273 = vector.extract_strided_slice %214 {offsets = [8, 0], sizes = [8, 32], strides = [1, 1]} : vector<16x32xf32> to vector<8x32xf32>
    %cst_134 = arith.constant dense<0.000000e+00> : vector<8x32xf32>
    %274 = tpu.matmul %272, %273, %cst_134 {dimension_numbers = #tpu.dot_dimension_numbers<[1], [0], [0], [1], [0, 0, 1, 1], [], []>} : vector<8x8xf32>, vector<8x32xf32>, vector<8x32xf32> -> vector<8x32xf32>
    %275 = arith.addf %271, %274 : vector<8x32xf32>
    %276 = vector.extract_strided_slice %249 {offsets = [56, 0], sizes = [8, 8], strides = [1, 1]} : vector<64x8xf32> to vector<8x8xf32>
    %277 = vector.extract_strided_slice %232 {offsets = [8, 0], sizes = [8, 32], strides = [1, 1]} : vector<16x32xf32> to vector<8x32xf32>
    %cst_135 = arith.constant dense<0.000000e+00> : vector<8x32xf32>
    %278 = tpu.matmul %276, %277, %cst_135 {dimension_numbers = #tpu.dot_dimension_numbers<[1], [0], [0], [1], [0, 0, 1, 1], [], []>} : vector<8x8xf32>, vector<8x32xf32>, vector<8x32xf32> -> vector<8x32xf32>
    %279 = arith.addf %275, %278 : vector<8x32xf32>
    %280 = tpu.concatenate %264, %279 in 0 : vector<8x32xf32>, vector<8x32xf32> -> vector<16x32xf32>
    %c8_136 = arith.constant 8 : index
    %c0_137 = arith.constant 0 : index
    %281 = vector.load %arg6[%c8_136, %c0_137] : memref<16x128xf32, #tpu.memory_space<vmem>>, vector<1x32xf32>
    %282 = vector.broadcast %281 : vector<1x32xf32> to vector<16x32xf32>
    %283 = arith.addf %280, %282 : vector<16x32xf32>
    %284 = arith.addf %166, %283 : vector<16x32xf32>
    %cst_138 = arith.constant dense<0.000000e+00> : vector<16xf32>
    %285 = vector.multi_reduction <add>, %284, %cst_138 [1] : vector<16x32xf32> to vector<16xf32>
    %286 = vector.shape_cast %285 : vector<16xf32> to vector<16x1xf32>
    %cst_139 = arith.constant 3.200000e+01 : f32
    %287 = vector.broadcast %cst_139 : f32 to vector<16x1xf32>
    %288 = arith.divf %286, %287 : vector<16x1xf32>
    %289 = vector.broadcast %288 : vector<16x1xf32> to vector<16x32xf32>
    %290 = arith.subf %284, %289 : vector<16x32xf32>
    %291 = arith.mulf %290, %290 : vector<16x32xf32>
    %cst_140 = arith.constant dense<0.000000e+00> : vector<16xf32>
    %292 = vector.multi_reduction <add>, %291, %cst_140 [1] : vector<16x32xf32> to vector<16xf32>
    %293 = vector.shape_cast %292 : vector<16xf32> to vector<16x1xf32>
    %cst_141 = arith.constant 3.200000e+01 : f32
    %294 = vector.broadcast %cst_141 : f32 to vector<16x1xf32>
    %295 = arith.divf %293, %294 : vector<16x1xf32>
    %296 = vector.broadcast %288 : vector<16x1xf32> to vector<16x32xf32>
    %297 = arith.subf %284, %296 : vector<16x32xf32>
    %cst_142 = arith.constant 9.99999974E-6 : f32
    %298 = vector.broadcast %cst_142 : f32 to vector<16x1xf32>
    %299 = arith.addf %295, %298 : vector<16x1xf32>
    %300 = math.rsqrt %299 : vector<16x1xf32>
    %301 = vector.broadcast %300 : vector<16x1xf32> to vector<16x32xf32>
    %302 = arith.mulf %297, %301 : vector<16x32xf32>
    %c9_143 = arith.constant 9 : index
    %c0_144 = arith.constant 0 : index
    %303 = vector.load %arg6[%c9_143, %c0_144] : memref<16x128xf32, #tpu.memory_space<vmem>>, vector<1x32xf32>
    %304 = vector.broadcast %303 : vector<1x32xf32> to vector<16x32xf32>
    %305 = arith.mulf %302, %304 : vector<16x32xf32>
    %c10_145 = arith.constant 10 : index
    %c0_146 = arith.constant 0 : index
    %306 = vector.load %arg6[%c10_145, %c0_146] : memref<16x128xf32, #tpu.memory_space<vmem>>, vector<1x32xf32>
    %307 = vector.broadcast %306 : vector<1x32xf32> to vector<16x32xf32>
    %308 = arith.addf %305, %307 : vector<16x32xf32>
    %c0_147 = arith.constant 0 : index
    %c0_148 = arith.constant 0 : index
    %309 = vector.load %arg5[%c0_147, %c0_148] : memref<160x128xf32, #tpu.memory_space<vmem>>, vector<32x128xf32>
    %cst_149 = arith.constant dense<0.000000e+00> : vector<16x128xf32>
    %310 = tpu.matmul %308, %309, %cst_149 {dimension_numbers = #tpu.dot_dimension_numbers<[1], [0], [0], [1], [0, 0, 1, 1], [], []>} : vector<16x32xf32>, vector<32x128xf32>, vector<16x128xf32> -> vector<16x128xf32>
    %c11_150 = arith.constant 11 : index
    %c0_151 = arith.constant 0 : index
    %311 = vector.load %arg6[%c11_150, %c0_151] : memref<16x128xf32, #tpu.memory_space<vmem>>, vector<1x128xf32>
    %312 = vector.broadcast %311 : vector<1x128xf32> to vector<16x128xf32>
    %313 = arith.addf %310, %312 : vector<16x128xf32>
    %cst_152 = arith.constant 5.000000e-01 : f32
    %314 = vector.broadcast %cst_152 : f32 to vector<16x128xf32>
    %315 = arith.mulf %314, %313 : vector<16x128xf32>
    %cst_153 = arith.constant 4.471500e-02 : f32
    %316 = vector.broadcast %cst_153 : f32 to vector<16x128xf32>
    %317 = arith.mulf %316, %313 : vector<16x128xf32>
    %318 = arith.mulf %317, %313 : vector<16x128xf32>
    %319 = arith.mulf %318, %313 : vector<16x128xf32>
    %320 = arith.addf %313, %319 : vector<16x128xf32>
    %cst_154 = arith.constant 0.797884583 : f32
    %321 = vector.broadcast %cst_154 : f32 to vector<16x128xf32>
    %322 = arith.mulf %321, %320 : vector<16x128xf32>
    %323 = math.tanh %322 : vector<16x128xf32>
    %cst_155 = arith.constant 1.000000e+00 : f32
    %324 = vector.broadcast %cst_155 : f32 to vector<16x128xf32>
    %325 = arith.addf %324, %323 : vector<16x128xf32>
    %326 = arith.mulf %315, %325 : vector<16x128xf32>
    %c32_156 = arith.constant 32 : index
    %c0_157 = arith.constant 0 : index
    %327 = vector.load %arg5[%c32_156, %c0_157] : memref<160x128xf32, #tpu.memory_space<vmem>>, vector<128x128xf32>
    %cst_158 = arith.constant dense<0.000000e+00> : vector<16x128xf32>
    %328 = tpu.matmul %326, %327, %cst_158 {dimension_numbers = #tpu.dot_dimension_numbers<[1], [0], [0], [1], [0, 0, 1, 1], [], []>} : vector<16x128xf32>, vector<128x128xf32>, vector<16x128xf32> -> vector<16x128xf32>
    %c12_159 = arith.constant 12 : index
    %c0_160 = arith.constant 0 : index
    %329 = vector.load %arg6[%c12_159, %c0_160] : memref<16x128xf32, #tpu.memory_space<vmem>>, vector<1x128xf32>
    %330 = vector.broadcast %329 : vector<1x128xf32> to vector<16x128xf32>
    %331 = arith.addf %328, %330 : vector<16x128xf32>
    %332 = vector.extract_strided_slice %331 {offsets = [0, 0], sizes = [16, 16], strides = [1, 1]} : vector<16x128xf32> to vector<16x16xf32>
    %c0_161 = arith.constant 0 : index
    %c0_162 = arith.constant 0 : index
    %333 = vector.load %arg7[%c0_161, %c0_162] : memref<192x16xf32, #tpu.memory_space<vmem>>, vector<16x16xf32>
    %c64_163 = arith.constant 64 : index
    %c0_164 = arith.constant 0 : index
    %334 = vector.load %arg7[%c64_163, %c0_164] : memref<192x16xf32, #tpu.memory_space<vmem>>, vector<16x16xf32>
    %c128_165 = arith.constant 128 : index
    %c0_166 = arith.constant 0 : index
    %335 = vector.load %arg7[%c128_165, %c0_166] : memref<192x16xf32, #tpu.memory_space<vmem>>, vector<16x16xf32>
    %cst_167 = arith.constant dense<0.000000e+00> : vector<16x16xf32>
    %336 = tpu.matmul %332, %333, %cst_167 {dimension_numbers = #tpu.dot_dimension_numbers<[1], [0], [0], [1], [0, 0, 1, 1], [], []>} : vector<16x16xf32>, vector<16x16xf32>, vector<16x16xf32> -> vector<16x16xf32>
    %c0_168 = arith.constant 0 : index
    %c0_169 = arith.constant 0 : index
    %337 = vector.load %arg9[%c0_168, %c0_169] : memref<16x128xf32, #tpu.memory_space<vmem>>, vector<1x16xf32>
    %338 = vector.broadcast %337 : vector<1x16xf32> to vector<16x16xf32>
    %339 = arith.addf %336, %338 : vector<16x16xf32>
    %cst_170 = arith.constant dense<0.000000e+00> : vector<16x16xf32>
    %340 = tpu.matmul %332, %334, %cst_170 {dimension_numbers = #tpu.dot_dimension_numbers<[1], [0], [0], [1], [0, 0, 1, 1], [], []>} : vector<16x16xf32>, vector<16x16xf32>, vector<16x16xf32> -> vector<16x16xf32>
    %cst_171 = arith.constant dense<0.000000e+00> : vector<16x16xf32>
    %341 = tpu.matmul %332, %335, %cst_171 {dimension_numbers = #tpu.dot_dimension_numbers<[1], [0], [0], [1], [0, 0, 1, 1], [], []>} : vector<16x16xf32>, vector<16x16xf32>, vector<16x16xf32> -> vector<16x16xf32>
    %c4_172 = arith.constant 4 : index
    %c0_173 = arith.constant 0 : index
    %342 = vector.load %arg9[%c4_172, %c0_173] : memref<16x128xf32, #tpu.memory_space<vmem>>, vector<1x16xf32>
    %343 = vector.broadcast %342 : vector<1x16xf32> to vector<16x16xf32>
    %344 = arith.addf %341, %343 : vector<16x16xf32>
    %345 = vector.extract_strided_slice %339 {offsets = [0, 0], sizes = [8, 16], strides = [1, 1]} : vector<16x16xf32> to vector<8x16xf32>
    %346 = vector.extract_strided_slice %340 {offsets = [0, 0], sizes = [8, 16], strides = [1, 1]} : vector<16x16xf32> to vector<8x16xf32>
    %cst_174 = arith.constant dense<0.000000e+00> : vector<8x8xf32>
    %347 = tpu.matmul %345, %346, %cst_174 {dimension_numbers = #tpu.dot_dimension_numbers<[1], [1], [0], [0], [0, 0, 1, 0], [], []>} : vector<8x16xf32>, vector<8x16xf32>, vector<8x8xf32> -> vector<8x8xf32>
    %348 = vector.extract_strided_slice %339 {offsets = [8, 0], sizes = [8, 16], strides = [1, 1]} : vector<16x16xf32> to vector<8x16xf32>
    %349 = vector.extract_strided_slice %340 {offsets = [8, 0], sizes = [8, 16], strides = [1, 1]} : vector<16x16xf32> to vector<8x16xf32>
    %cst_175 = arith.constant dense<0.000000e+00> : vector<8x8xf32>
    %350 = tpu.matmul %348, %349, %cst_175 {dimension_numbers = #tpu.dot_dimension_numbers<[1], [1], [0], [0], [0, 0, 1, 0], [], []>} : vector<8x16xf32>, vector<8x16xf32>, vector<8x8xf32> -> vector<8x8xf32>
    %c16 = arith.constant 16 : index
    %c0_176 = arith.constant 0 : index
    %351 = vector.load %arg7[%c16, %c0_176] : memref<192x16xf32, #tpu.memory_space<vmem>>, vector<16x16xf32>
    %c80 = arith.constant 80 : index
    %c0_177 = arith.constant 0 : index
    %352 = vector.load %arg7[%c80, %c0_177] : memref<192x16xf32, #tpu.memory_space<vmem>>, vector<16x16xf32>
    %c144 = arith.constant 144 : index
    %c0_178 = arith.constant 0 : index
    %353 = vector.load %arg7[%c144, %c0_178] : memref<192x16xf32, #tpu.memory_space<vmem>>, vector<16x16xf32>
    %cst_179 = arith.constant dense<0.000000e+00> : vector<16x16xf32>
    %354 = tpu.matmul %332, %351, %cst_179 {dimension_numbers = #tpu.dot_dimension_numbers<[1], [0], [0], [1], [0, 0, 1, 1], [], []>} : vector<16x16xf32>, vector<16x16xf32>, vector<16x16xf32> -> vector<16x16xf32>
    %c1_180 = arith.constant 1 : index
    %c0_181 = arith.constant 0 : index
    %355 = vector.load %arg9[%c1_180, %c0_181] : memref<16x128xf32, #tpu.memory_space<vmem>>, vector<1x16xf32>
    %356 = vector.broadcast %355 : vector<1x16xf32> to vector<16x16xf32>
    %357 = arith.addf %354, %356 : vector<16x16xf32>
    %cst_182 = arith.constant dense<0.000000e+00> : vector<16x16xf32>
    %358 = tpu.matmul %332, %352, %cst_182 {dimension_numbers = #tpu.dot_dimension_numbers<[1], [0], [0], [1], [0, 0, 1, 1], [], []>} : vector<16x16xf32>, vector<16x16xf32>, vector<16x16xf32> -> vector<16x16xf32>
    %cst_183 = arith.constant dense<0.000000e+00> : vector<16x16xf32>
    %359 = tpu.matmul %332, %353, %cst_183 {dimension_numbers = #tpu.dot_dimension_numbers<[1], [0], [0], [1], [0, 0, 1, 1], [], []>} : vector<16x16xf32>, vector<16x16xf32>, vector<16x16xf32> -> vector<16x16xf32>
    %c5_184 = arith.constant 5 : index
    %c0_185 = arith.constant 0 : index
    %360 = vector.load %arg9[%c5_184, %c0_185] : memref<16x128xf32, #tpu.memory_space<vmem>>, vector<1x16xf32>
    %361 = vector.broadcast %360 : vector<1x16xf32> to vector<16x16xf32>
    %362 = arith.addf %359, %361 : vector<16x16xf32>
    %363 = vector.extract_strided_slice %357 {offsets = [0, 0], sizes = [8, 16], strides = [1, 1]} : vector<16x16xf32> to vector<8x16xf32>
    %364 = vector.extract_strided_slice %358 {offsets = [0, 0], sizes = [8, 16], strides = [1, 1]} : vector<16x16xf32> to vector<8x16xf32>
    %cst_186 = arith.constant dense<0.000000e+00> : vector<8x8xf32>
    %365 = tpu.matmul %363, %364, %cst_186 {dimension_numbers = #tpu.dot_dimension_numbers<[1], [1], [0], [0], [0, 0, 1, 0], [], []>} : vector<8x16xf32>, vector<8x16xf32>, vector<8x8xf32> -> vector<8x8xf32>
    %366 = vector.extract_strided_slice %357 {offsets = [8, 0], sizes = [8, 16], strides = [1, 1]} : vector<16x16xf32> to vector<8x16xf32>
    %367 = vector.extract_strided_slice %358 {offsets = [8, 0], sizes = [8, 16], strides = [1, 1]} : vector<16x16xf32> to vector<8x16xf32>
    %cst_187 = arith.constant dense<0.000000e+00> : vector<8x8xf32>
    %368 = tpu.matmul %366, %367, %cst_187 {dimension_numbers = #tpu.dot_dimension_numbers<[1], [1], [0], [0], [0, 0, 1, 0], [], []>} : vector<8x16xf32>, vector<8x16xf32>, vector<8x8xf32> -> vector<8x8xf32>
    %c32_188 = arith.constant 32 : index
    %c0_189 = arith.constant 0 : index
    %369 = vector.load %arg7[%c32_188, %c0_189] : memref<192x16xf32, #tpu.memory_space<vmem>>, vector<16x16xf32>
    %c96_190 = arith.constant 96 : index
    %c0_191 = arith.constant 0 : index
    %370 = vector.load %arg7[%c96_190, %c0_191] : memref<192x16xf32, #tpu.memory_space<vmem>>, vector<16x16xf32>
    %c160_192 = arith.constant 160 : index
    %c0_193 = arith.constant 0 : index
    %371 = vector.load %arg7[%c160_192, %c0_193] : memref<192x16xf32, #tpu.memory_space<vmem>>, vector<16x16xf32>
    %cst_194 = arith.constant dense<0.000000e+00> : vector<16x16xf32>
    %372 = tpu.matmul %332, %369, %cst_194 {dimension_numbers = #tpu.dot_dimension_numbers<[1], [0], [0], [1], [0, 0, 1, 1], [], []>} : vector<16x16xf32>, vector<16x16xf32>, vector<16x16xf32> -> vector<16x16xf32>
    %c2_195 = arith.constant 2 : index
    %c0_196 = arith.constant 0 : index
    %373 = vector.load %arg9[%c2_195, %c0_196] : memref<16x128xf32, #tpu.memory_space<vmem>>, vector<1x16xf32>
    %374 = vector.broadcast %373 : vector<1x16xf32> to vector<16x16xf32>
    %375 = arith.addf %372, %374 : vector<16x16xf32>
    %cst_197 = arith.constant dense<0.000000e+00> : vector<16x16xf32>
    %376 = tpu.matmul %332, %370, %cst_197 {dimension_numbers = #tpu.dot_dimension_numbers<[1], [0], [0], [1], [0, 0, 1, 1], [], []>} : vector<16x16xf32>, vector<16x16xf32>, vector<16x16xf32> -> vector<16x16xf32>
    %cst_198 = arith.constant dense<0.000000e+00> : vector<16x16xf32>
    %377 = tpu.matmul %332, %371, %cst_198 {dimension_numbers = #tpu.dot_dimension_numbers<[1], [0], [0], [1], [0, 0, 1, 1], [], []>} : vector<16x16xf32>, vector<16x16xf32>, vector<16x16xf32> -> vector<16x16xf32>
    %c6_199 = arith.constant 6 : index
    %c0_200 = arith.constant 0 : index
    %378 = vector.load %arg9[%c6_199, %c0_200] : memref<16x128xf32, #tpu.memory_space<vmem>>, vector<1x16xf32>
    %379 = vector.broadcast %378 : vector<1x16xf32> to vector<16x16xf32>
    %380 = arith.addf %377, %379 : vector<16x16xf32>
    %381 = vector.extract_strided_slice %375 {offsets = [0, 0], sizes = [8, 16], strides = [1, 1]} : vector<16x16xf32> to vector<8x16xf32>
    %382 = vector.extract_strided_slice %376 {offsets = [0, 0], sizes = [8, 16], strides = [1, 1]} : vector<16x16xf32> to vector<8x16xf32>
    %cst_201 = arith.constant dense<0.000000e+00> : vector<8x8xf32>
    %383 = tpu.matmul %381, %382, %cst_201 {dimension_numbers = #tpu.dot_dimension_numbers<[1], [1], [0], [0], [0, 0, 1, 0], [], []>} : vector<8x16xf32>, vector<8x16xf32>, vector<8x8xf32> -> vector<8x8xf32>
    %384 = vector.extract_strided_slice %375 {offsets = [8, 0], sizes = [8, 16], strides = [1, 1]} : vector<16x16xf32> to vector<8x16xf32>
    %385 = vector.extract_strided_slice %376 {offsets = [8, 0], sizes = [8, 16], strides = [1, 1]} : vector<16x16xf32> to vector<8x16xf32>
    %cst_202 = arith.constant dense<0.000000e+00> : vector<8x8xf32>
    %386 = tpu.matmul %384, %385, %cst_202 {dimension_numbers = #tpu.dot_dimension_numbers<[1], [1], [0], [0], [0, 0, 1, 0], [], []>} : vector<8x16xf32>, vector<8x16xf32>, vector<8x8xf32> -> vector<8x8xf32>
    %c48 = arith.constant 48 : index
    %c0_203 = arith.constant 0 : index
    %387 = vector.load %arg7[%c48, %c0_203] : memref<192x16xf32, #tpu.memory_space<vmem>>, vector<16x16xf32>
    %c112 = arith.constant 112 : index
    %c0_204 = arith.constant 0 : index
    %388 = vector.load %arg7[%c112, %c0_204] : memref<192x16xf32, #tpu.memory_space<vmem>>, vector<16x16xf32>
    %c176 = arith.constant 176 : index
    %c0_205 = arith.constant 0 : index
    %389 = vector.load %arg7[%c176, %c0_205] : memref<192x16xf32, #tpu.memory_space<vmem>>, vector<16x16xf32>
    %cst_206 = arith.constant dense<0.000000e+00> : vector<16x16xf32>
    %390 = tpu.matmul %332, %387, %cst_206 {dimension_numbers = #tpu.dot_dimension_numbers<[1], [0], [0], [1], [0, 0, 1, 1], [], []>} : vector<16x16xf32>, vector<16x16xf32>, vector<16x16xf32> -> vector<16x16xf32>
    %c3_207 = arith.constant 3 : index
    %c0_208 = arith.constant 0 : index
    %391 = vector.load %arg9[%c3_207, %c0_208] : memref<16x128xf32, #tpu.memory_space<vmem>>, vector<1x16xf32>
    %392 = vector.broadcast %391 : vector<1x16xf32> to vector<16x16xf32>
    %393 = arith.addf %390, %392 : vector<16x16xf32>
    %cst_209 = arith.constant dense<0.000000e+00> : vector<16x16xf32>
    %394 = tpu.matmul %332, %388, %cst_209 {dimension_numbers = #tpu.dot_dimension_numbers<[1], [0], [0], [1], [0, 0, 1, 1], [], []>} : vector<16x16xf32>, vector<16x16xf32>, vector<16x16xf32> -> vector<16x16xf32>
    %cst_210 = arith.constant dense<0.000000e+00> : vector<16x16xf32>
    %395 = tpu.matmul %332, %389, %cst_210 {dimension_numbers = #tpu.dot_dimension_numbers<[1], [0], [0], [1], [0, 0, 1, 1], [], []>} : vector<16x16xf32>, vector<16x16xf32>, vector<16x16xf32> -> vector<16x16xf32>
    %c7_211 = arith.constant 7 : index
    %c0_212 = arith.constant 0 : index
    %396 = vector.load %arg9[%c7_211, %c0_212] : memref<16x128xf32, #tpu.memory_space<vmem>>, vector<1x16xf32>
    %397 = vector.broadcast %396 : vector<1x16xf32> to vector<16x16xf32>
    %398 = arith.addf %395, %397 : vector<16x16xf32>
    %399 = vector.extract_strided_slice %393 {offsets = [0, 0], sizes = [8, 16], strides = [1, 1]} : vector<16x16xf32> to vector<8x16xf32>
    %400 = vector.extract_strided_slice %394 {offsets = [0, 0], sizes = [8, 16], strides = [1, 1]} : vector<16x16xf32> to vector<8x16xf32>
    %cst_213 = arith.constant dense<0.000000e+00> : vector<8x8xf32>
    %401 = tpu.matmul %399, %400, %cst_213 {dimension_numbers = #tpu.dot_dimension_numbers<[1], [1], [0], [0], [0, 0, 1, 0], [], []>} : vector<8x16xf32>, vector<8x16xf32>, vector<8x8xf32> -> vector<8x8xf32>
    %402 = vector.extract_strided_slice %393 {offsets = [8, 0], sizes = [8, 16], strides = [1, 1]} : vector<16x16xf32> to vector<8x16xf32>
    %403 = vector.extract_strided_slice %394 {offsets = [8, 0], sizes = [8, 16], strides = [1, 1]} : vector<16x16xf32> to vector<8x16xf32>
    %cst_214 = arith.constant dense<0.000000e+00> : vector<8x8xf32>
    %404 = tpu.matmul %402, %403, %cst_214 {dimension_numbers = #tpu.dot_dimension_numbers<[1], [1], [0], [0], [0, 0, 1, 0], [], []>} : vector<8x16xf32>, vector<8x16xf32>, vector<8x8xf32> -> vector<8x8xf32>
    %405 = tpu.concatenate %347, %350, %365, %368, %383, %386, %401, %404 in 0 : vector<8x8xf32>, vector<8x8xf32>, vector<8x8xf32>, vector<8x8xf32>, vector<8x8xf32>, vector<8x8xf32>, vector<8x8xf32>, vector<8x8xf32> -> vector<64x8xf32>
    %cst_215 = arith.constant dense<0xFF800000> : vector<64xf32>
    %406 = vector.multi_reduction <maximumf>, %405, %cst_215 [1] : vector<64x8xf32> to vector<64xf32>
    %407 = vector.shape_cast %406 : vector<64xf32> to vector<64x1xf32>
    %408 = vector.broadcast %407 : vector<64x1xf32> to vector<64x8xf32>
    %409 = arith.subf %405, %408 : vector<64x8xf32>
    %410 = math.exp %409 : vector<64x8xf32>
    %cst_216 = arith.constant dense<0.000000e+00> : vector<64xf32>
    %411 = vector.multi_reduction <add>, %410, %cst_216 [1] : vector<64x8xf32> to vector<64xf32>
    %412 = vector.shape_cast %411 : vector<64xf32> to vector<64x1xf32>
    %413 = tpu.reciprocal %412 : vector<64x1xf32> -> vector<64x1xf32>
    %414 = vector.broadcast %413 : vector<64x1xf32> to vector<64x8xf32>
    %415 = arith.mulf %410, %414 : vector<64x8xf32>
    %416 = vector.extract_strided_slice %415 {offsets = [0, 0], sizes = [8, 8], strides = [1, 1]} : vector<64x8xf32> to vector<8x8xf32>
    %417 = vector.extract_strided_slice %344 {offsets = [0, 0], sizes = [8, 16], strides = [1, 1]} : vector<16x16xf32> to vector<8x16xf32>
    %cst_217 = arith.constant dense<0.000000e+00> : vector<8x16xf32>
    %418 = tpu.matmul %416, %417, %cst_217 {dimension_numbers = #tpu.dot_dimension_numbers<[1], [0], [0], [1], [0, 0, 1, 1], [], []>} : vector<8x8xf32>, vector<8x16xf32>, vector<8x16xf32> -> vector<8x16xf32>
    %419 = vector.extract_strided_slice %415 {offsets = [16, 0], sizes = [8, 8], strides = [1, 1]} : vector<64x8xf32> to vector<8x8xf32>
    %420 = vector.extract_strided_slice %362 {offsets = [0, 0], sizes = [8, 16], strides = [1, 1]} : vector<16x16xf32> to vector<8x16xf32>
    %cst_218 = arith.constant dense<0.000000e+00> : vector<8x16xf32>
    %421 = tpu.matmul %419, %420, %cst_218 {dimension_numbers = #tpu.dot_dimension_numbers<[1], [0], [0], [1], [0, 0, 1, 1], [], []>} : vector<8x8xf32>, vector<8x16xf32>, vector<8x16xf32> -> vector<8x16xf32>
    %422 = arith.addf %418, %421 : vector<8x16xf32>
    %423 = vector.extract_strided_slice %415 {offsets = [32, 0], sizes = [8, 8], strides = [1, 1]} : vector<64x8xf32> to vector<8x8xf32>
    %424 = vector.extract_strided_slice %380 {offsets = [0, 0], sizes = [8, 16], strides = [1, 1]} : vector<16x16xf32> to vector<8x16xf32>
    %cst_219 = arith.constant dense<0.000000e+00> : vector<8x16xf32>
    %425 = tpu.matmul %423, %424, %cst_219 {dimension_numbers = #tpu.dot_dimension_numbers<[1], [0], [0], [1], [0, 0, 1, 1], [], []>} : vector<8x8xf32>, vector<8x16xf32>, vector<8x16xf32> -> vector<8x16xf32>
    %426 = arith.addf %422, %425 : vector<8x16xf32>
    %427 = vector.extract_strided_slice %415 {offsets = [48, 0], sizes = [8, 8], strides = [1, 1]} : vector<64x8xf32> to vector<8x8xf32>
    %428 = vector.extract_strided_slice %398 {offsets = [0, 0], sizes = [8, 16], strides = [1, 1]} : vector<16x16xf32> to vector<8x16xf32>
    %cst_220 = arith.constant dense<0.000000e+00> : vector<8x16xf32>
    %429 = tpu.matmul %427, %428, %cst_220 {dimension_numbers = #tpu.dot_dimension_numbers<[1], [0], [0], [1], [0, 0, 1, 1], [], []>} : vector<8x8xf32>, vector<8x16xf32>, vector<8x16xf32> -> vector<8x16xf32>
    %430 = arith.addf %426, %429 : vector<8x16xf32>
    %431 = vector.extract_strided_slice %415 {offsets = [8, 0], sizes = [8, 8], strides = [1, 1]} : vector<64x8xf32> to vector<8x8xf32>
    %432 = vector.extract_strided_slice %344 {offsets = [8, 0], sizes = [8, 16], strides = [1, 1]} : vector<16x16xf32> to vector<8x16xf32>
    %cst_221 = arith.constant dense<0.000000e+00> : vector<8x16xf32>
    %433 = tpu.matmul %431, %432, %cst_221 {dimension_numbers = #tpu.dot_dimension_numbers<[1], [0], [0], [1], [0, 0, 1, 1], [], []>} : vector<8x8xf32>, vector<8x16xf32>, vector<8x16xf32> -> vector<8x16xf32>
    %434 = vector.extract_strided_slice %415 {offsets = [24, 0], sizes = [8, 8], strides = [1, 1]} : vector<64x8xf32> to vector<8x8xf32>
    %435 = vector.extract_strided_slice %362 {offsets = [8, 0], sizes = [8, 16], strides = [1, 1]} : vector<16x16xf32> to vector<8x16xf32>
    %cst_222 = arith.constant dense<0.000000e+00> : vector<8x16xf32>
    %436 = tpu.matmul %434, %435, %cst_222 {dimension_numbers = #tpu.dot_dimension_numbers<[1], [0], [0], [1], [0, 0, 1, 1], [], []>} : vector<8x8xf32>, vector<8x16xf32>, vector<8x16xf32> -> vector<8x16xf32>
    %437 = arith.addf %433, %436 : vector<8x16xf32>
    %438 = vector.extract_strided_slice %415 {offsets = [40, 0], sizes = [8, 8], strides = [1, 1]} : vector<64x8xf32> to vector<8x8xf32>
    %439 = vector.extract_strided_slice %380 {offsets = [8, 0], sizes = [8, 16], strides = [1, 1]} : vector<16x16xf32> to vector<8x16xf32>
    %cst_223 = arith.constant dense<0.000000e+00> : vector<8x16xf32>
    %440 = tpu.matmul %438, %439, %cst_223 {dimension_numbers = #tpu.dot_dimension_numbers<[1], [0], [0], [1], [0, 0, 1, 1], [], []>} : vector<8x8xf32>, vector<8x16xf32>, vector<8x16xf32> -> vector<8x16xf32>
    %441 = arith.addf %437, %440 : vector<8x16xf32>
    %442 = vector.extract_strided_slice %415 {offsets = [56, 0], sizes = [8, 8], strides = [1, 1]} : vector<64x8xf32> to vector<8x8xf32>
    %443 = vector.extract_strided_slice %398 {offsets = [8, 0], sizes = [8, 16], strides = [1, 1]} : vector<16x16xf32> to vector<8x16xf32>
    %cst_224 = arith.constant dense<0.000000e+00> : vector<8x16xf32>
    %444 = tpu.matmul %442, %443, %cst_224 {dimension_numbers = #tpu.dot_dimension_numbers<[1], [0], [0], [1], [0, 0, 1, 1], [], []>} : vector<8x8xf32>, vector<8x16xf32>, vector<8x16xf32> -> vector<8x16xf32>
    %445 = arith.addf %441, %444 : vector<8x16xf32>
    %446 = tpu.concatenate %430, %445 in 0 : vector<8x16xf32>, vector<8x16xf32> -> vector<16x16xf32>
    %c8_225 = arith.constant 8 : index
    %c0_226 = arith.constant 0 : index
    %447 = vector.load %arg9[%c8_225, %c0_226] : memref<16x128xf32, #tpu.memory_space<vmem>>, vector<1x16xf32>
    %448 = vector.broadcast %447 : vector<1x16xf32> to vector<16x16xf32>
    %449 = arith.addf %446, %448 : vector<16x16xf32>
    %450 = arith.addf %332, %449 : vector<16x16xf32>
    %cst_227 = arith.constant dense<0.000000e+00> : vector<16xf32>
    %451 = vector.multi_reduction <add>, %450, %cst_227 [1] : vector<16x16xf32> to vector<16xf32>
    %452 = vector.shape_cast %451 : vector<16xf32> to vector<16x1xf32>
    %cst_228 = arith.constant 1.600000e+01 : f32
    %453 = vector.broadcast %cst_228 : f32 to vector<16x1xf32>
    %454 = arith.divf %452, %453 : vector<16x1xf32>
    %455 = vector.broadcast %454 : vector<16x1xf32> to vector<16x16xf32>
    %456 = arith.subf %450, %455 : vector<16x16xf32>
    %457 = arith.mulf %456, %456 : vector<16x16xf32>
    %cst_229 = arith.constant dense<0.000000e+00> : vector<16xf32>
    %458 = vector.multi_reduction <add>, %457, %cst_229 [1] : vector<16x16xf32> to vector<16xf32>
    %459 = vector.shape_cast %458 : vector<16xf32> to vector<16x1xf32>
    %cst_230 = arith.constant 1.600000e+01 : f32
    %460 = vector.broadcast %cst_230 : f32 to vector<16x1xf32>
    %461 = arith.divf %459, %460 : vector<16x1xf32>
    %462 = vector.broadcast %454 : vector<16x1xf32> to vector<16x16xf32>
    %463 = arith.subf %450, %462 : vector<16x16xf32>
    %cst_231 = arith.constant 9.99999974E-6 : f32
    %464 = vector.broadcast %cst_231 : f32 to vector<16x1xf32>
    %465 = arith.addf %461, %464 : vector<16x1xf32>
    %466 = math.rsqrt %465 : vector<16x1xf32>
    %467 = vector.broadcast %466 : vector<16x1xf32> to vector<16x16xf32>
    %468 = arith.mulf %463, %467 : vector<16x16xf32>
    %c9_232 = arith.constant 9 : index
    %c0_233 = arith.constant 0 : index
    %469 = vector.load %arg9[%c9_232, %c0_233] : memref<16x128xf32, #tpu.memory_space<vmem>>, vector<1x16xf32>
    %470 = vector.broadcast %469 : vector<1x16xf32> to vector<16x16xf32>
    %471 = arith.mulf %468, %470 : vector<16x16xf32>
    %c10_234 = arith.constant 10 : index
    %c0_235 = arith.constant 0 : index
    %472 = vector.load %arg9[%c10_234, %c0_235] : memref<16x128xf32, #tpu.memory_space<vmem>>, vector<1x16xf32>
    %473 = vector.broadcast %472 : vector<1x16xf32> to vector<16x16xf32>
    %474 = arith.addf %471, %473 : vector<16x16xf32>
    %c0_236 = arith.constant 0 : index
    %c0_237 = arith.constant 0 : index
    %475 = vector.load %arg8[%c0_236, %c0_237] : memref<144x128xf32, #tpu.memory_space<vmem>>, vector<16x128xf32>
    %cst_238 = arith.constant dense<0.000000e+00> : vector<16x128xf32>
    %476 = tpu.matmul %474, %475, %cst_238 {dimension_numbers = #tpu.dot_dimension_numbers<[1], [0], [0], [1], [0, 0, 1, 1], [], []>} : vector<16x16xf32>, vector<16x128xf32>, vector<16x128xf32> -> vector<16x128xf32>
    %c11_239 = arith.constant 11 : index
    %c0_240 = arith.constant 0 : index
    %477 = vector.load %arg9[%c11_239, %c0_240] : memref<16x128xf32, #tpu.memory_space<vmem>>, vector<1x128xf32>
    %478 = vector.broadcast %477 : vector<1x128xf32> to vector<16x128xf32>
    %479 = arith.addf %476, %478 : vector<16x128xf32>
    %cst_241 = arith.constant 5.000000e-01 : f32
    %480 = vector.broadcast %cst_241 : f32 to vector<16x128xf32>
    %481 = arith.mulf %480, %479 : vector<16x128xf32>
    %cst_242 = arith.constant 4.471500e-02 : f32
    %482 = vector.broadcast %cst_242 : f32 to vector<16x128xf32>
    %483 = arith.mulf %482, %479 : vector<16x128xf32>
    %484 = arith.mulf %483, %479 : vector<16x128xf32>
    %485 = arith.mulf %484, %479 : vector<16x128xf32>
    %486 = arith.addf %479, %485 : vector<16x128xf32>
    %cst_243 = arith.constant 0.797884583 : f32
    %487 = vector.broadcast %cst_243 : f32 to vector<16x128xf32>
    %488 = arith.mulf %487, %486 : vector<16x128xf32>
    %489 = math.tanh %488 : vector<16x128xf32>
    %cst_244 = arith.constant 1.000000e+00 : f32
    %490 = vector.broadcast %cst_244 : f32 to vector<16x128xf32>
    %491 = arith.addf %490, %489 : vector<16x128xf32>
    %492 = arith.mulf %481, %491 : vector<16x128xf32>
    %c16_245 = arith.constant 16 : index
    %c0_246 = arith.constant 0 : index
    %493 = vector.load %arg8[%c16_245, %c0_246] : memref<144x128xf32, #tpu.memory_space<vmem>>, vector<128x128xf32>
    %cst_247 = arith.constant dense<0.000000e+00> : vector<16x128xf32>
    %494 = tpu.matmul %492, %493, %cst_247 {dimension_numbers = #tpu.dot_dimension_numbers<[1], [0], [0], [1], [0, 0, 1, 1], [], []>} : vector<16x128xf32>, vector<128x128xf32>, vector<16x128xf32> -> vector<16x128xf32>
    %c12_248 = arith.constant 12 : index
    %c0_249 = arith.constant 0 : index
    %495 = vector.load %arg9[%c12_248, %c0_249] : memref<16x128xf32, #tpu.memory_space<vmem>>, vector<1x128xf32>
    %496 = vector.broadcast %495 : vector<1x128xf32> to vector<16x128xf32>
    %497 = arith.addf %494, %496 : vector<16x128xf32>
    %498 = vector.extract_strided_slice %497 {offsets = [0, 0], sizes = [16, 16], strides = [1, 1]} : vector<16x128xf32> to vector<16x16xf32>
    %c0_250 = arith.constant 0 : index
    %c0_251 = arith.constant 0 : index
    %499 = vector.load %arg10[%c0_250, %c0_251] : memref<16x16xf32, #tpu.memory_space<vmem>>, vector<16x16xf32>
    tpu.vector_store %arg10[%c0_250, %c0_251], %498 {strides = array<i32>} : memref<16x16xf32, #tpu.memory_space<vmem>>, vector<16x16xf32>,
    return
  }
}

</mosaic_0001>

<llo_original>
// kernel: transformer_encoder_forward.1
$region0: #{transformer_encoder_forward.1}
  #allocation0 [shape = 'u32[]', space=smem, size = 0x4, offset = 0x4, fixed_abs, tag = 'smem constant byte address 0x4 - core index']
  #allocation1 [shape = 'u32[144,128]{1,0:T(1,128)}', space=vmem, size = 0x12000, scoped, tag = 'internal scratch']
  %s0 = inlined_call_operand.vmem [shape: f32[16,64], index: 0, kind: input, shape index: {}]
  %s1 = inlined_call_operand.vmem [shape: f32[768,64], index: 1, kind: input, shape index: {}]
  %s2 = inlined_call_operand.vmem [shape: f32[192,128], index: 2, kind: input, shape index: {}]
  %s3 = inlined_call_operand.vmem [shape: f32[16,128], index: 3, kind: input, shape index: {}]
  %s4 = inlined_call_operand.vmem [shape: f32[384,32], index: 4, kind: input, shape index: {}]
  %s5 = inlined_call_operand.vmem [shape: f32[160,128], index: 5, kind: input, shape index: {}]
  %s6 = inlined_call_operand.vmem [shape: f32[16,128], index: 6, kind: input, shape index: {}]
  %s7 = inlined_call_operand.vmem [shape: f32[192,16], index: 7, kind: input, shape index: {}]
  %s8 = inlined_call_operand.vmem [shape: f32[144,128], index: 8, kind: input, shape index: {}]
  %s9 = inlined_call_operand.vmem [shape: f32[16,128], index: 9, kind: input, shape index: {}]
  %s10 = inlined_call_operand.vmem [shape: f32[16,16], index: 10, kind: output, shape index: {}]
  %s11 = sld [smem:[#allocation0]]
  $region50: #{transformer_encoder_forward.1} parent=0
    _
  %s13 = ssub.s32 1, %s11
  %s14 = scalar_select 0, %s13, %s11
  // Predicated region
  $region2: #{transformer_encoder_forward.1} parent=0 // pred_check
    _
  $region3: #{transformer_encoder_forward.1} parent=0 // pred_check_branch
    %16 = sbr.rel (0) target = $region5
  $region4: #{transformer_encoder_forward.1} parent=0 // pred_region
    _
  $region5: #{transformer_encoder_forward.1} parent=0 // pred_fallthru
    _
  // Predicated region
  $region6: #{transformer_encoder_forward.1} parent=0 // pred_check
    _
  $region7: #{transformer_encoder_forward.1} parent=0 // pred_check_branch
    %18 = sbr.rel (0) target = $region9
  $region8: #{transformer_encoder_forward.1} parent=0 // pred_region
    _
  $region9: #{transformer_encoder_forward.1} parent=0 // pred_fallthru
    _
  // Predicated region
  $region10: #{transformer_encoder_forward.1} parent=0 // pred_check
    _
  $region11: #{transformer_encoder_forward.1} parent=0 // pred_check_branch
    %20 = sbr.rel (0) target = $region13
  $region12: #{transformer_encoder_forward.1} parent=0 // pred_region
    _
  $region13: #{transformer_encoder_forward.1} parent=0 // pred_fallthru
    _
  // Predicated region
  $region14: #{transformer_encoder_forward.1} parent=0 // pred_check
    _
  $region15: #{transformer_encoder_forward.1} parent=0 // pred_check_branch
    %22 = sbr.rel (0) target = $region17
  $region16: #{transformer_encoder_forward.1} parent=0 // pred_region
    _
  $region17: #{transformer_encoder_forward.1} parent=0 // pred_fallthru
    _
  // Predicated region
  $region18: #{transformer_encoder_forward.1} parent=0 // pred_check
    _
  $region19: #{transformer_encoder_forward.1} parent=0 // pred_check_branch
    %24 = sbr.rel (0) target = $region21
  $region20: #{transformer_encoder_forward.1} parent=0 // pred_region
    _
  $region21: #{transformer_encoder_forward.1} parent=0 // pred_fallthru
    _
  // Predicated region
  $region22: #{transformer_encoder_forward.1} parent=0 // pred_check
    _
  $region23: #{transformer_encoder_forward.1} parent=0 // pred_check_branch
    %26 = sbr.rel (0) target = $region25
  $region24: #{transformer_encoder_forward.1} parent=0 // pred_region
    _
  $region25: #{transformer_encoder_forward.1} parent=0 // pred_fallthru
    _
  // Predicated region
  $region26: #{transformer_encoder_forward.1} parent=0 // pred_check
    _
  $region27: #{transformer_encoder_forward.1} parent=0 // pred_check_branch
    %28 = sbr.rel (0) target = $region29
  $region28: #{transformer_encoder_forward.1} parent=0 // pred_region
    _
  $region29: #{transformer_encoder_forward.1} parent=0 // pred_fallthru
    _
  // Predicated region
  $region30: #{transformer_encoder_forward.1} parent=0 // pred_check
    _
  $region31: #{transformer_encoder_forward.1} parent=0 // pred_check_branch
    %30 = sbr.rel (0) target = $region33
  $region32: #{transformer_encoder_forward.1} parent=0 // pred_region
    _
  $region33: #{transformer_encoder_forward.1} parent=0 // pred_fallthru
    _
  // Predicated region
  $region34: #{transformer_encoder_forward.1} parent=0 // pred_check
    _
  $region35: #{transformer_encoder_forward.1} parent=0 // pred_check_branch
    %32 = sbr.rel (0) target = $region37
  $region36: #{transformer_encoder_forward.1} parent=0 // pred_region
    _
  $region37: #{transformer_encoder_forward.1} parent=0 // pred_fallthru
    _
  // Predicated region
  $region38: #{transformer_encoder_forward.1} parent=0 // pred_check
    _
  $region39: #{transformer_encoder_forward.1} parent=0 // pred_check_branch
    %34 = sbr.rel (0) target = $region41
  $region40: #{transformer_encoder_forward.1} parent=0 // pred_region
    _
  $region41: #{transformer_encoder_forward.1} parent=0 // pred_fallthru
    _
  %v35 = vld [vmem:[%s0] sm:$0xff]
  %v36 = vld [vmem:[%s0 + $0x8] sm:$0xff]
  %v37 = vld [vmem:[%s1] sm:$0xff]
  %v38 = vld [vmem:[%s1 + $0x8] sm:$0xff]
  %v39 = vld [vmem:[%s1 + $0x10] sm:$0xff]
  %v40 = vld [vmem:[%s1 + $0x18] sm:$0xff]
  %v41 = vld [vmem:[%s1 + $0x20] sm:$0xff]
  %v42 = vld [vmem:[%s1 + $0x28] sm:$0xff]
  %v43 = vld [vmem:[%s1 + $0x30] sm:$0xff]
  %v44 = vld [vmem:[%s1 + $0x38] sm:$0xff]
  %v45 = vld [vmem:[%s1 + $0x100] sm:$0xff]
  %v46 = vld [vmem:[%s1 + $0x108] sm:$0xff]
  %v47 = vld [vmem:[%s1 + $0x110] sm:$0xff]
  %v48 = vld [vmem:[%s1 + $0x118] sm:$0xff]
  %v49 = vld [vmem:[%s1 + $0x120] sm:$0xff]
  %v50 = vld [vmem:[%s1 + $0x128] sm:$0xff]
  %v51 = vld [vmem:[%s1 + $0x130] sm:$0xff]
  %v52 = vld [vmem:[%s1 + $0x138] sm:$0xff]
  %v53 = vld [vmem:[%s1 + $0x200] sm:$0xff]
  %v54 = vld [vmem:[%s1 + $0x208] sm:$0xff]
  %v55 = vld [vmem:[%s1 + $0x210] sm:$0xff]
  %v56 = vld [vmem:[%s1 + $0x218] sm:$0xff]
  %v57 = vld [vmem:[%s1 + $0x220] sm:$0xff]
  %v58 = vld [vmem:[%s1 + $0x228] sm:$0xff]
  %v59 = vld [vmem:[%s1 + $0x230] sm:$0xff]
  %v60 = vld [vmem:[%s1 + $0x238] sm:$0xff]
  %v61 = vld [vmem:[%s3] sm:$0x1]
  %v62 = vlaneseq
  %v63 = vshrl.u32 %v62, 7
  %v64 = vsub.s32 0, %v63
  %v65 = vrot.slane %v61, %v64
  %vm66 = vcmask 523264
  %v68 = vsel %vm66, %v35, 0
  %v71 = vsel %vm66, %v36, 0
  %73 = vmatprep.subr.mxu0 0.0
  %74 = vmatpush1.msra.mxu0 %v37
  %75 = vmatprep.subr.mxu0 0.0
  %76 = vmatpush1.msra.mxu0 %v38
  %77 = vmatprep.subr.mxu0 0.0
  %78 = vmatpush1.msra.mxu0 %v39
  %79 = vmatprep.subr.mxu0 0.0
  %80 = vmatpush1.msra.mxu0 %v40
  %81 = vmatprep.subr.mxu0 0.0
  %82 = vmatpush1.msra.mxu0 %v41
  %83 = vmatprep.subr.mxu0 0.0
  %84 = vmatpush1.msra.mxu0 %v42
  %85 = vmatprep.subr.mxu0 0.0
  %86 = vmatpush1.msra.mxu0 %v43
  %87 = vmatprep.subr.mxu0 0.0
  %88 = vmatpush1.msra.mxu0 %v44
  %89 = vmatprep.subr.mxu0 0.0
  %90 = vmatpush1.msra.mxu0 0.0
  %91 = vmatprep.subr.mxu0 0.0
  %92 = vmatpush1.msra.mxu0 0.0
  %93 = vmatprep.subr.mxu0 0.0
  %94 = vmatpush1.msra.mxu0 0.0
  %95 = vmatprep.subr.mxu0 0.0
  %96 = vmatpush1.msra.mxu0 0.0
  %97 = vmatprep.subr.mxu0 0.0
  %98 = vmatpush1.msra.mxu0 0.0
  %99 = vmatprep.subr.mxu0 0.0
  %100 = vmatpush1.msra.mxu0 0.0
  %101 = vmatprep.subr.mxu0 0.0
  %102 = vmatpush1.msra.mxu0 0.0
  %103 = vmatprep.subr.mxu0 0.0
  %104 = vmatpush1.msra.mxu0 0.0
  %105 = vmatprep.subr.mxu0 0.0
  %106 = vmatpush1.msra.mxu0 0.0
  %107 = vmatprep.subr.mxu0 0.0
  %108 = vmatpush1.msra.mxu0 0.0
  %109 = vmatprep.subr.mxu0 0.0
  %110 = vmatpush1.msra.mxu0 0.0
  %111 = vmatprep.subr.mxu0 0.0
  %112 = vmatpush1.msra.mxu0 0.0
  %113 = vmatprep.subr.mxu0 0.0
  %114 = vmatpush1.msra.mxu0 0.0
  %115 = vmatprep.subr.mxu0 0.0
  %116 = vmatpush1.msra.mxu0 0.0
  %117 = vmatprep.subr.mxu0 0.0
  %118 = vmatpush1.msra.mxu0 0.0
  %119 = vmatprep.subr.mxu0 0.0
  %120 = vmatpush1.msra.mxu0 0.0
  %121 = vmatprep.subr.mxu0 0.0
  %122 = vmatpush1.msra.mxu0 0.0
  %123 = vmatprep.subr.mxu0 0.0
  %124 = vmatpush1.msra.mxu0 0.0
  %125 = vmatprep.subr.mxu0 0.0
  %126 = vmatpush1.msra.mxu0 0.0
  %127 = vmatprep.subr.mxu0 0.0
  %128 = vmatpush1.msra.mxu0 0.0
  %129 = vmatprep.subr.mxu0 0.0
  %130 = vmatpush1.msra.mxu0 0.0
  %131 = vmatprep.subr.mxu0 0.0
  %132 = vmatpush1.msra.mxu0 0.0
  %133 = vmatprep.subr.mxu0 0.0
  %134 = vmatpush1.msra.mxu0 0.0
  %135 = vmatprep.subr.mxu0 0.0
  %136 = vmatpush1.msra.mxu0 0.0
  %137 = vmatprep.mubr.f32.mxu0 0.0
  %138 = vmatmul.mubr.f32.gmra.mrb[0].mxu0 %v68
  %v139 = vpop.f32.mrb[0].mxu0
  %v140 = vadd.f32 %v65, %v139
  %v141 = vpop.f32.mrb[0].mxu0
  %142 = vmatprep.mubr.f32.mxu0 0.0
  %143 = vmatmul.mubr.f32.gmra.mrb[0].mxu0 %v71
  %v144 = vpop.f32.mrb[0].mxu0
  %v145 = vadd.f32 %v65, %v144
  %v146 = vpop.f32.mrb[0].mxu0
  %147 = vdwg.mxu0
  %148 = vmatprep.subr.mxu0 0.0
  %149 = vmatpush1.msra.mxu0 %v45
  %150 = vmatprep.subr.mxu0 0.0
  %151 = vmatpush1.msra.mxu0 %v46
  %152 = vmatprep.subr.mxu0 0.0
  %153 = vmatpush1.msra.mxu0 %v47
  %154 = vmatprep.subr.mxu0 0.0
  %155 = vmatpush1.msra.mxu0 %v48
  %156 = vmatprep.subr.mxu0 0.0
  %157 = vmatpush1.msra.mxu0 %v49
  %158 = vmatprep.subr.mxu0 0.0
  %159 = vmatpush1.msra.mxu0 %v50
  %160 = vmatprep.subr.mxu0 0.0
  %161 = vmatpush1.msra.mxu0 %v51
  %162 = vmatprep.subr.mxu0 0.0
  %163 = vmatpush1.msra.mxu0 %v52
  %164 = vmatprep.subr.mxu0 0.0
  %165 = vmatpush1.msra.mxu0 0.0
  %166 = vmatprep.subr.mxu0 0.0
  %167 = vmatpush1.msra.mxu0 0.0
  %168 = vmatprep.subr.mxu0 0.0
  %169 = vmatpush1.msra.mxu0 0.0
  %170 = vmatprep.subr.mxu0 0.0
  %171 = vmatpush1.msra.mxu0 0.0
  %172 = vmatprep.subr.mxu0 0.0
  %173 = vmatpush1.msra.mxu0 0.0
  %174 = vmatprep.subr.mxu0 0.0
  %175 = vmatpush1.msra.mxu0 0.0
  %176 = vmatprep.subr.mxu0 0.0
  %177 = vmatpush1.msra.mxu0 0.0
  %178 = vmatprep.subr.mxu0 0.0
  %179 = vmatpush1.msra.mxu0 0.0
  %180 = vmatprep.subr.mxu0 0.0
  %181 = vmatpush1.msra.mxu0 0.0
  %182 = vmatprep.subr.mxu0 0.0
  %183 = vmatpush1.msra.mxu0 0.0
  %184 = vmatprep.subr.mxu0 0.0
  %185 = vmatpush1.msra.mxu0 0.0
  %186 = vmatprep.subr.mxu0 0.0
  %187 = vmatpush1.msra.mxu0 0.0
  %188 = vmatprep.subr.mxu0 0.0
  %189 = vmatpush1.msra.mxu0 0.0
  %190 = vmatprep.subr.mxu0 0.0
  %191 = vmatpush1.msra.mxu0 0.0
  %192 = vmatprep.subr.mxu0 0.0
  %193 = vmatpush1.msra.mxu0 0.0
  %194 = vmatprep.subr.mxu0 0.0
  %195 = vmatpush1.msra.mxu0 0.0
  %196 = vmatprep.subr.mxu0 0.0
  %197 = vmatpush1.msra.mxu0 0.0
  %198 = vmatprep.subr.mxu0 0.0
  %199 = vmatpush1.msra.mxu0 0.0
  %200 = vmatprep.subr.mxu0 0.0
  %201 = vmatpush1.msra.mxu0 0.0
  %202 = vmatprep.subr.mxu0 0.0
  %203 = vmatpush1.msra.mxu0 0.0
  %204 = vmatprep.subr.mxu0 0.0
  %205 = vmatpush1.msra.mxu0 0.0
  %206 = vmatprep.subr.mxu0 0.0
  %207 = vmatpush1.msra.mxu0 0.0
  %208 = vmatprep.subr.mxu0 0.0
  %209 = vmatpush1.msra.mxu0 0.0
  %210 = vmatprep.subr.mxu0 0.0
  %211 = vmatpush1.msra.mxu0 0.0
  %212 = vmatprep.mubr.f32.mxu0 0.0
  %213 = vmatmul.mubr.f32.gmra.mrb[0].mxu0 %v68
  %v214 = vpop.f32.mrb[0].mxu0
  %v215 = vadd.f32 0.0, %v214
  %v216 = vpop.f32.mrb[0].mxu0
  %217 = vmatprep.mubr.f32.mxu0 0.0
  %218 = vmatmul.mubr.f32.gmra.mrb[0].mxu0 %v71
  %v219 = vpop.f32.mrb[0].mxu0
  %v220 = vadd.f32 0.0, %v219
  %v221 = vpop.f32.mrb[0].mxu0
  %222 = vdwg.mxu0
  %v223 = vld [vmem:[%s3 + $0x4] sm:$0x1]
  %v224 = vlaneseq
  %v225 = vshrl.u32 %v224, 7
  %v226 = vsub.s32 0, %v225
  %v227 = vrot.slane %v223, %v226
  %228 = vmatprep.subr.mxu0 0.0
  %229 = vmatpush1.msra.mxu0 %v53
  %230 = vmatprep.subr.mxu0 0.0
  %231 = vmatpush1.msra.mxu0 %v54
  %232 = vmatprep.subr.mxu0 0.0
  %233 = vmatpush1.msra.mxu0 %v55
  %234 = vmatprep.subr.mxu0 0.0
  %235 = vmatpush1.msra.mxu0 %v56
  %236 = vmatprep.subr.mxu0 0.0
  %237 = vmatpush1.msra.mxu0 %v57
  %238 = vmatprep.subr.mxu0 0.0
  %239 = vmatpush1.msra.mxu0 %v58
  %240 = vmatprep.subr.mxu0 0.0
  %241 = vmatpush1.msra.mxu0 %v59
  %242 = vmatprep.subr.mxu0 0.0
  %243 = vmatpush1.msra.mxu0 %v60
  %244 = vmatprep.subr.mxu0 0.0
  %245 = vmatpush1.msra.mxu0 0.0
  %246 = vmatprep.subr.mxu0 0.0
  %247 = vmatpush1.msra.mxu0 0.0
  %248 = vmatprep.subr.mxu0 0.0
  %249 = vmatpush1.msra.mxu0 0.0
  %250 = vmatprep.subr.mxu0 0.0
  %251 = vmatpush1.msra.mxu0 0.0
  %252 = vmatprep.subr.mxu0 0.0
  %253 = vmatpush1.msra.mxu0 0.0
  %254 = vmatprep.subr.mxu0 0.0
  %255 = vmatpush1.msra.mxu0 0.0
  %256 = vmatprep.subr.mxu0 0.0
  %257 = vmatpush1.msra.mxu0 0.0
  %258 = vmatprep.subr.mxu0 0.0
  %259 = vmatpush1.msra.mxu0 0.0
  %260 = vmatprep.subr.mxu0 0.0
  %261 = vmatpush1.msra.mxu0 0.0
  %262 = vmatprep.subr.mxu0 0.0
  %263 = vmatpush1.msra.mxu0 0.0
  %264 = vmatprep.subr.mxu0 0.0
  %265 = vmatpush1.msra.mxu0 0.0
  %266 = vmatprep.subr.mxu0 0.0
  %267 = vmatpush1.msra.mxu0 0.0
  %268 = vmatprep.subr.mxu0 0.0
  %269 = vmatpush1.msra.mxu0 0.0
  %270 = vmatprep.subr.mxu0 0.0
  %271 = vmatpush1.msra.mxu0 0.0
  %272 = vmatprep.subr.mxu0 0.0
  %273 = vmatpush1.msra.mxu0 0.0
  %274 = vmatprep.subr.mxu0 0.0
  %275 = vmatpush1.msra.mxu0 0.0
  %276 = vmatprep.subr.mxu0 0.0
  %277 = vmatpush1.msra.mxu0 0.0
  %278 = vmatprep.subr.mxu0 0.0
  %279 = vmatpush1.msra.mxu0 0.0
  %280 = vmatprep.subr.mxu0 0.0
  %281 = vmatpush1.msra.mxu0 0.0
  %282 = vmatprep.subr.mxu0 0.0
  %283 = vmatpush1.msra.mxu0 0.0
  %284 = vmatprep.subr.mxu0 0.0
  %285 = vmatpush1.msra.mxu0 0.0
  %286 = vmatprep.subr.mxu0 0.0
  %287 = vmatpush1.msra.mxu0 0.0
  %288 = vmatprep.subr.mxu0 0.0
  %289 = vmatpush1.msra.mxu0 0.0
  %290 = vmatprep.subr.mxu0 0.0
  %291 = vmatpush1.msra.mxu0 0.0
  %292 = vmatprep.mubr.f32.mxu0 0.0
  %293 = vmatmul.mubr.f32.gmra.mrb[0].mxu0 %v68
  %v294 = vpop.f32.mrb[0].mxu0
  %v295 = vadd.f32 %v227, %v294
  %v296 = vpop.f32.mrb[0].mxu0
  %297 = vmatprep.mubr.f32.mxu0 0.0
  %298 = vmatmul.mubr.f32.gmra.mrb[0].mxu0 %v71
  %v299 = vpop.f32.mrb[0].mxu0
  %v300 = vadd.f32 %v227, %v299
  %v301 = vpop.f32.mrb[0].mxu0
  %302 = vdwg.mxu0
  %v304 = vsel %vm66, %v140, 0
  %v307 = vsel %vm66, %v215, 0
  %309 = vmatprep.subr.mxu0 0.0
  %310 = vmatpush1.xpose.msra.mxu0 %v307
  %311 = vmatprep.subr.mxu0 0.0
  %312 = vmatpush1.xpose.msra.mxu0 0.0
  %313 = vmatprep.subr.mxu0 0.0
  %314 = vmatpush1.xpose.msra.mxu0 0.0
  %315 = vmatprep.subr.mxu0 0.0
  %316 = vmatpush1.xpose.msra.mxu0 0.0
  %317 = vmatprep.subr.mxu0 0.0
  %318 = vmatpush1.xpose.msra.mxu0 0.0
  %319 = vmatprep.subr.mxu0 0.0
  %320 = vmatpush1.xpose.msra.mxu0 0.0
  %321 = vmatprep.subr.mxu0 0.0
  %322 = vmatpush1.xpose.msra.mxu0 0.0
  %323 = vmatprep.subr.mxu0 0.0
  %324 = vmatpush1.xpose.msra.mxu0 0.0
  %325 = vmatprep.subr.mxu0 0.0
  %326 = vmatpush1.xpose.msra.mxu0 0.0
  %327 = vmatprep.subr.mxu0 0.0
  %328 = vmatpush1.xpose.msra.mxu0 0.0
  %329 = vmatprep.subr.mxu0 0.0
  %330 = vmatpush1.xpose.msra.mxu0 0.0
  %331 = vmatprep.subr.mxu0 0.0
  %332 = vmatpush1.xpose.msra.mxu0 0.0
  %333 = vmatprep.subr.mxu0 0.0
  %334 = vmatpush1.xpose.msra.mxu0 0.0
  %335 = vmatprep.subr.mxu0 0.0
  %336 = vmatpush1.xpose.msra.mxu0 0.0
  %337 = vmatprep.subr.mxu0 0.0
  %338 = vmatpush1.xpose.msra.mxu0 0.0
  %339 = vmatprep.subr.mxu0 0.0
  %340 = vmatpush1.xpose.msra.mxu0 0.0
  %341 = vmatprep.subr.mxu0 0.0
  %342 = vmatpush1.xpose.msra.mxu0 0.0
  %343 = vmatprep.subr.mxu0 0.0
  %344 = vmatpush1.xpose.msra.mxu0 0.0
  %345 = vmatprep.subr.mxu0 0.0
  %346 = vmatpush1.xpose.msra.mxu0 0.0
  %347 = vmatprep.subr.mxu0 0.0
  %348 = vmatpush1.xpose.msra.mxu0 0.0
  %349 = vmatprep.subr.mxu0 0.0
  %350 = vmatpush1.xpose.msra.mxu0 0.0
  %351 = vmatprep.subr.mxu0 0.0
  %352 = vmatpush1.xpose.msra.mxu0 0.0
  %353 = vmatprep.subr.mxu0 0.0
  %354 = vmatpush1.xpose.msra.mxu0 0.0
  %355 = vmatprep.subr.mxu0 0.0
  %356 = vmatpush1.xpose.msra.mxu0 0.0
  %357 = vmatprep.subr.mxu0 0.0
  %358 = vmatpush1.xpose.msra.mxu0 0.0
  %359 = vmatprep.subr.mxu0 0.0
  %360 = vmatpush1.xpose.msra.mxu0 0.0
  %361 = vmatprep.subr.mxu0 0.0
  %362 = vmatpush1.xpose.msra.mxu0 0.0
  %363 = vmatprep.subr.mxu0 0.0
  %364 = vmatpush1.xpose.msra.mxu0 0.0
  %365 = vmatprep.subr.mxu0 0.0
  %366 = vmatpush1.xpose.msra.mxu0 0.0
  %367 = vmatprep.subr.mxu0 0.0
  %368 = vmatpush1.xpose.msra.mxu0 0.0
  %369 = vmatprep.subr.mxu0 0.0
  %370 = vmatpush1.xpose.msra.mxu0 0.0
  %371 = vmatprep.subr.mxu0 0.0
  %372 = vmatpush1.xpose.msra.mxu0 0.0
  %373 = vmatprep.mubr.f32.mxu0 0.0
  %374 = vmatmul.mubr.f32.gmra.mrb[0].mxu0 %v304
  %v375 = vpop.f32.mrb[0].mxu0
  %v376 = vadd.f32 0.0, %v375
  %v377 = vpop.f32.mrb[0].mxu0
  %378 = vdwg.mxu0
  %v380 = vsel %vm66, %v145, 0
  %v383 = vsel %vm66, %v220, 0
  %385 = vmatprep.subr.mxu0 0.0
  %386 = vmatpush1.xpose.msra.mxu0 %v383
  %387 = vmatprep.subr.mxu0 0.0
  %388 = vmatpush1.xpose.msra.mxu0 0.0
  %389 = vmatprep.subr.mxu0 0.0
  %390 = vmatpush1.xpose.msra.mxu0 0.0
  %391 = vmatprep.subr.mxu0 0.0
  %392 = vmatpush1.xpose.msra.mxu0 0.0
  %393 = vmatprep.subr.mxu0 0.0
  %394 = vmatpush1.xpose.msra.mxu0 0.0
  %395 = vmatprep.subr.mxu0 0.0
  %396 = vmatpush1.xpose.msra.mxu0 0.0
  %397 = vmatprep.subr.mxu0 0.0
  %398 = vmatpush1.xpose.msra.mxu0 0.0
  %399 = vmatprep.subr.mxu0 0.0
  %400 = vmatpush1.xpose.msra.mxu0 0.0
  %401 = vmatprep.subr.mxu0 0.0
  %402 = vmatpush1.xpose.msra.mxu0 0.0
  %403 = vmatprep.subr.mxu0 0.0
  %404 = vmatpush1.xpose.msra.mxu0 0.0
  %405 = vmatprep.subr.mxu0 0.0
  %406 = vmatpush1.xpose.msra.mxu0 0.0
  %407 = vmatprep.subr.mxu0 0.0
  %408 = vmatpush1.xpose.msra.mxu0 0.0
  %409 = vmatprep.subr.mxu0 0.0
  %410 = vmatpush1.xpose.msra.mxu0 0.0
  %411 = vmatprep.subr.mxu0 0.0
  %412 = vmatpush1.xpose.msra.mxu0 0.0
  %413 = vmatprep.subr.mxu0 0.0
  %414 = vmatpush1.xpose.msra.mxu0 0.0
  %415 = vmatprep.subr.mxu0 0.0
  %416 = vmatpush1.xpose.msra.mxu0 0.0
  %417 = vmatprep.subr.mxu0 0.0
  %418 = vmatpush1.xpose.msra.mxu0 0.0
  %419 = vmatprep.subr.mxu0 0.0
  %420 = vmatpush1.xpose.msra.mxu0 0.0
  %421 = vmatprep.subr.mxu0 0.0
  %422 = vmatpush1.xpose.msra.mxu0 0.0
  %423 = vmatprep.subr.mxu0 0.0
  %424 = vmatpush1.xpose.msra.mxu0 0.0
  %425 = vmatprep.subr.mxu0 0.0
  %426 = vmatpush1.xpose.msra.mxu0 0.0
  %427 = vmatprep.subr.mxu0 0.0
  %428 = vmatpush1.xpose.msra.mxu0 0.0
  %429 = vmatprep.subr.mxu0 0.0
  %430 = vmatpush1.xpose.msra.mxu0 0.0
  %431 = vmatprep.subr.mxu0 0.0
  %432 = vmatpush1.xpose.msra.mxu0 0.0
  %433 = vmatprep.subr.mxu0 0.0
  %434 = vmatpush1.xpose.msra.mxu0 0.0
  %435 = vmatprep.subr.mxu0 0.0
  %436 = vmatpush1.xpose.msra.mxu0 0.0
  %437 = vmatprep.subr.mxu0 0.0
  %438 = vmatpush1.xpose.msra.mxu0 0.0
  %439 = vmatprep.subr.mxu0 0.0
  %440 = vmatpush1.xpose.msra.mxu0 0.0
  %441 = vmatprep.subr.mxu0 0.0
  %442 = vmatpush1.xpose.msra.mxu0 0.0
  %443 = vmatprep.subr.mxu0 0.0
  %444 = vmatpush1.xpose.msra.mxu0 0.0
  %445 = vmatprep.subr.mxu0 0.0
  %446 = vmatpush1.xpose.msra.mxu0 0.0
  %447 = vmatprep.subr.mxu0 0.0
  %448 = vmatpush1.xpose.msra.mxu0 0.0
  %449 = vmatprep.mubr.f32.mxu0 0.0
  %450 = vmatmul.mubr.f32.gmra.mrb[0].mxu0 %v380
  %v451 = vpop.f32.mrb[0].mxu0
  %v452 = vadd.f32 0.0, %v451
  %v453 = vpop.f32.mrb[0].mxu0
  %454 = vdwg.mxu0
  %v455 = vld [vmem:[%s1 + $0x40] sm:$0xff]
  %v456 = vld [vmem:[%s1 + $0x48] sm:$0xff]
  %v457 = vld [vmem:[%s1 + $0x50] sm:$0xff]
  %v458 = vld [vmem:[%s1 + $0x58] sm:$0xff]
  %v459 = vld [vmem:[%s1 + $0x60] sm:$0xff]
  %v460 = vld [vmem:[%s1 + $0x68] sm:$0xff]
  %v461 = vld [vmem:[%s1 + $0x70] sm:$0xff]
  %v462 = vld [vmem:[%s1 + $0x78] sm:$0xff]
  %v463 = vld [vmem:[%s1 + $0x140] sm:$0xff]
  %v464 = vld [vmem:[%s1 + $0x148] sm:$0xff]
  %v465 = vld [vmem:[%s1 + $0x150] sm:$0xff]
  %v466 = vld [vmem:[%s1 + $0x158] sm:$0xff]
  %v467 = vld [vmem:[%s1 + $0x160] sm:$0xff]
  %v468 = vld [vmem:[%s1 + $0x168] sm:$0xff]
  %v469 = vld [vmem:[%s1 + $0x170] sm:$0xff]
  %v470 = vld [vmem:[%s1 + $0x178] sm:$0xff]
  %v471 = vld [vmem:[%s1 + $0x240] sm:$0xff]
  %v472 = vld [vmem:[%s1 + $0x248] sm:$0xff]
  %v473 = vld [vmem:[%s1 + $0x250] sm:$0xff]
  %v474 = vld [vmem:[%s1 + $0x258] sm:$0xff]
  %v475 = vld [vmem:[%s1 + $0x260] sm:$0xff]
  %v476 = vld [vmem:[%s1 + $0x268] sm:$0xff]
  %v477 = vld [vmem:[%s1 + $0x270] sm:$0xff]
  %v478 = vld [vmem:[%s1 + $0x278] sm:$0xff]
  %v479 = vld [vmem:[%s3 + $0x1] sm:$0x1]
  %v480 = vlaneseq
  %v481 = vshrl.u32 %v480, 7
  %v482 = vsub.s32 0, %v481
  %v483 = vrot.slane %v479, %v482
  %484 = vmatprep.subr.mxu0 0.0
  %485 = vmatpush1.msra.mxu0 %v455
  %486 = vmatprep.subr.mxu0 0.0
  %487 = vmatpush1.msra.mxu0 %v456
  %488 = vmatprep.subr.mxu0 0.0
  %489 = vmatpush1.msra.mxu0 %v457
  %490 = vmatprep.subr.mxu0 0.0
  %491 = vmatpush1.msra.mxu0 %v458
  %492 = vmatprep.subr.mxu0 0.0
  %493 = vmatpush1.msra.mxu0 %v459
  %494 = vmatprep.subr.mxu0 0.0
  %495 = vmatpush1.msra.mxu0 %v460
  %496 = vmatprep.subr.mxu0 0.0
  %497 = vmatpush1.msra.mxu0 %v461
  %498 = vmatprep.subr.mxu0 0.0
  %499 = vmatpush1.msra.mxu0 %v462
  %500 = vmatprep.subr.mxu0 0.0
  %501 = vmatpush1.msra.mxu0 0.0
  %502 = vmatprep.subr.mxu0 0.0
  %503 = vmatpush1.msra.mxu0 0.0
  %504 = vmatprep.subr.mxu0 0.0
  %505 = vmatpush1.msra.mxu0 0.0
  %506 = vmatprep.subr.mxu0 0.0
  %507 = vmatpush1.msra.mxu0 0.0
  %508 = vmatprep.subr.mxu0 0.0
  %509 = vmatpush1.msra.mxu0 0.0
  %510 = vmatprep.subr.mxu0 0.0
  %511 = vmatpush1.msra.mxu0 0.0
  %512 = vmatprep.subr.mxu0 0.0
  %513 = vmatpush1.msra.mxu0 0.0
  %514 = vmatprep.subr.mxu0 0.0
  %515 = vmatpush1.msra.mxu0 0.0
  %516 = vmatprep.subr.mxu0 0.0
  %517 = vmatpush1.msra.mxu0 0.0
  %518 = vmatprep.subr.mxu0 0.0
  %519 = vmatpush1.msra.mxu0 0.0
  %520 = vmatprep.subr.mxu0 0.0
  %521 = vmatpush1.msra.mxu0 0.0
  %522 = vmatprep.subr.mxu0 0.0
  %523 = vmatpush1.msra.mxu0 0.0
  %524 = vmatprep.subr.mxu0 0.0
  %525 = vmatpush1.msra.mxu0 0.0
  %526 = vmatprep.subr.mxu0 0.0
  %527 = vmatpush1.msra.mxu0 0.0
  %528 = vmatprep.subr.mxu0 0.0
  %529 = vmatpush1.msra.mxu0 0.0
  %530 = vmatprep.subr.mxu0 0.0
  %531 = vmatpush1.msra.mxu0 0.0
  %532 = vmatprep.subr.mxu0 0.0
  %533 = vmatpush1.msra.mxu0 0.0
  %534 = vmatprep.subr.mxu0 0.0
  %535 = vmatpush1.msra.mxu0 0.0
  %536 = vmatprep.subr.mxu0 0.0
  %537 = vmatpush1.msra.mxu0 0.0
  %538 = vmatprep.subr.mxu0 0.0
  %539 = vmatpush1.msra.mxu0 0.0
  %540 = vmatprep.subr.mxu0 0.0
  %541 = vmatpush1.msra.mxu0 0.0
  %542 = vmatprep.subr.mxu0 0.0
  %543 = vmatpush1.msra.mxu0 0.0
  %544 = vmatprep.subr.mxu0 0.0
  %545 = vmatpush1.msra.mxu0 0.0
  %546 = vmatprep.subr.mxu0 0.0
  %547 = vmatpush1.msra.mxu0 0.0
  %548 = vmatprep.mubr.f32.mxu0 0.0
  %549 = vmatmul.mubr.f32.gmra.mrb[0].mxu0 %v68
  %v550 = vpop.f32.mrb[0].mxu0
  %v551 = vadd.f32 %v483, %v550
  %v552 = vpop.f32.mrb[0].mxu0
  %553 = vmatprep.mubr.f32.mxu0 0.0
  %554 = vmatmul.mubr.f32.gmra.mrb[0].mxu0 %v71
  %v555 = vpop.f32.mrb[0].mxu0
  %v556 = vadd.f32 %v483, %v555
  %v557 = vpop.f32.mrb[0].mxu0
  %558 = vdwg.mxu0
  %559 = vmatprep.subr.mxu0 0.0
  %560 = vmatpush1.msra.mxu0 %v463
  %561 = vmatprep.subr.mxu0 0.0
  %562 = vmatpush1.msra.mxu0 %v464
  %563 = vmatprep.subr.mxu0 0.0
  %564 = vmatpush1.msra.mxu0 %v465
  %565 = vmatprep.subr.mxu0 0.0
  %566 = vmatpush1.msra.mxu0 %v466
  %567 = vmatprep.subr.mxu0 0.0
  %568 = vmatpush1.msra.mxu0 %v467
  %569 = vmatprep.subr.mxu0 0.0
  %570 = vmatpush1.msra.mxu0 %v468
  %571 = vmatprep.subr.mxu0 0.0
  %572 = vmatpush1.msra.mxu0 %v469
  %573 = vmatprep.subr.mxu0 0.0
  %574 = vmatpush1.msra.mxu0 %v470
  %575 = vmatprep.subr.mxu0 0.0
  %576 = vmatpush1.msra.mxu0 0.0
  %577 = vmatprep.subr.mxu0 0.0
  %578 = vmatpush1.msra.mxu0 0.0
  %579 = vmatprep.subr.mxu0 0.0
  %580 = vmatpush1.msra.mxu0 0.0
  %581 = vmatprep.subr.mxu0 0.0
  %582 = vmatpush1.msra.mxu0 0.0
  %583 = vmatprep.subr.mxu0 0.0
  %584 = vmatpush1.msra.mxu0 0.0
  %585 = vmatprep.subr.mxu0 0.0
  %586 = vmatpush1.msra.mxu0 0.0
  %587 = vmatprep.subr.mxu0 0.0
  %588 = vmatpush1.msra.mxu0 0.0
  %589 = vmatprep.subr.mxu0 0.0
  %590 = vmatpush1.msra.mxu0 0.0
  %591 = vmatprep.subr.mxu0 0.0
  %592 = vmatpush1.msra.mxu0 0.0
  %593 = vmatprep.subr.mxu0 0.0
  %594 = vmatpush1.msra.mxu0 0.0
  %595 = vmatprep.subr.mxu0 0.0
  %596 = vmatpush1.msra.mxu0 0.0
  %597 = vmatprep.subr.mxu0 0.0
  %598 = vmatpush1.msra.mxu0 0.0
  %599 = vmatprep.subr.mxu0 0.0
  %600 = vmatpush1.msra.mxu0 0.0
  %601 = vmatprep.subr.mxu0 0.0
  %602 = vmatpush1.msra.mxu0 0.0
  %603 = vmatprep.subr.mxu0 0.0
  %604 = vmatpush1.msra.mxu0 0.0
  %605 = vmatprep.subr.mxu0 0.0
  %606 = vmatpush1.msra.mxu0 0.0
  %607 = vmatprep.subr.mxu0 0.0
  %608 = vmatpush1.msra.mxu0 0.0
  %609 = vmatprep.subr.mxu0 0.0
  %610 = vmatpush1.msra.mxu0 0.0
  %611 = vmatprep.subr.mxu0 0.0
  %612 = vmatpush1.msra.mxu0 0.0
  %613 = vmatprep.subr.mxu0 0.0
  %614 = vmatpush1.msra.mxu0 0.0
  %615 = vmatprep.subr.mxu0 0.0
  %616 = vmatpush1.msra.mxu0 0.0
  %617 = vmatprep.subr.mxu0 0.0
  %618 = vmatpush1.msra.mxu0 0.0
  %619 = vmatprep.subr.mxu0 0.0
  %620 = vmatpush1.msra.mxu0 0.0
  %621 = vmatprep.subr.mxu0 0.0
  %622 = vmatpush1.msra.mxu0 0.0
  %623 = vmatprep.mubr.f32.mxu0 0.0
  %624 = vmatmul.mubr.f32.gmra.mrb[0].mxu0 %v68
  %v625 = vpop.f32.mrb[0].mxu0
  %v626 = vadd.f32 0.0, %v625
  %v627 = vpop.f32.mrb[0].mxu0
  %628 = vmatprep.mubr.f32.mxu0 0.0
  %629 = vmatmul.mubr.f32.gmra.mrb[0].mxu0 %v71
  %v630 = vpop.f32.mrb[0].mxu0
  %v631 = vadd.f32 0.0, %v630
  %v632 = vpop.f32.mrb[0].mxu0
  %633 = vdwg.mxu0
  %v634 = vld [vmem:[%s3 + $0x5] sm:$0x1]
  %v635 = vlaneseq
  %v636 = vshrl.u32 %v635, 7
  %v637 = vsub.s32 0, %v636
  %v638 = vrot.slane %v634, %v637
  %639 = vmatprep.subr.mxu0 0.0
  %640 = vmatpush1.msra.mxu0 %v471
  %641 = vmatprep.subr.mxu0 0.0
  %642 = vmatpush1.msra.mxu0 %v472
  %643 = vmatprep.subr.mxu0 0.0
  %644 = vmatpush1.msra.mxu0 %v473
  %645 = vmatprep.subr.mxu0 0.0
  %646 = vmatpush1.msra.mxu0 %v474
  %647 = vmatprep.subr.mxu0 0.0
  %648 = vmatpush1.msra.mxu0 %v475
  %649 = vmatprep.subr.mxu0 0.0
  %650 = vmatpush1.msra.mxu0 %v476
  %651 = vmatprep.subr.mxu0 0.0
  %652 = vmatpush1.msra.mxu0 %v477
  %653 = vmatprep.subr.mxu0 0.0
  %654 = vmatpush1.msra.mxu0 %v478
  %655 = vmatprep.subr.mxu0 0.0
  %656 = vmatpush1.msra.mxu0 0.0
  %657 = vmatprep.subr.mxu0 0.0
  %658 = vmatpush1.msra.mxu0 0.0
  %659 = vmatprep.subr.mxu0 0.0
  %660 = vmatpush1.msra.mxu0 0.0
  %661 = vmatprep.subr.mxu0 0.0
  %662 = vmatpush1.msra.mxu0 0.0
  %663 = vmatprep.subr.mxu0 0.0
  %664 = vmatpush1.msra.mxu0 0.0
  %665 = vmatprep.subr.mxu0 0.0
  %666 = vmatpush1.msra.mxu0 0.0
  %667 = vmatprep.subr.mxu0 0.0
  %668 = vmatpush1.msra.mxu0 0.0
  %669 = vmatprep.subr.mxu0 0.0
  %670 = vmatpush1.msra.mxu0 0.0
  %671 = vmatprep.subr.mxu0 0.0
  %672 = vmatpush1.msra.mxu0 0.0
  %673 = vmatprep.subr.mxu0 0.0
  %674 = vmatpush1.msra.mxu0 0.0
  %675 = vmatprep.subr.mxu0 0.0
  %676 = vmatpush1.msra.mxu0 0.0
  %677 = vmatprep.subr.mxu0 0.0
  %678 = vmatpush1.msra.mxu0 0.0
  %679 = vmatprep.subr.mxu0 0.0
  %680 = vmatpush1.msra.mxu0 0.0
  %681 = vmatprep.subr.mxu0 0.0
  %682 = vmatpush1.msra.mxu0 0.0
  %683 = vmatprep.subr.mxu0 0.0
  %684 = vmatpush1.msra.mxu0 0.0
  %685 = vmatprep.subr.mxu0 0.0
  %686 = vmatpush1.msra.mxu0 0.0
  %687 = vmatprep.subr.mxu0 0.0
  %688 = vmatpush1.msra.mxu0 0.0
  %689 = vmatprep.subr.mxu0 0.0
  %690 = vmatpush1.msra.mxu0 0.0
  %691 = vmatprep.subr.mxu0 0.0
  %692 = vmatpush1.msra.mxu0 0.0
  %693 = vmatprep.subr.mxu0 0.0
  %694 = vmatpush1.msra.mxu0 0.0
  %695 = vmatprep.subr.mxu0 0.0
  %696 = vmatpush1.msra.mxu0 0.0
  %697 = vmatprep.subr.mxu0 0.0
  %698 = vmatpush1.msra.mxu0 0.0
  %699 = vmatprep.subr.mxu0 0.0
  %700 = vmatpush1.msra.mxu0 0.0
  %701 = vmatprep.subr.mxu0 0.0
  %702 = vmatpush1.msra.mxu0 0.0
  %703 = vmatprep.mubr.f32.mxu0 0.0
  %704 = vmatmul.mubr.f32.gmra.mrb[0].mxu0 %v68
  %v705 = vpop.f32.mrb[0].mxu0
  %v706 = vadd.f32 %v638, %v705
  %v707 = vpop.f32.mrb[0].mxu0
  %708 = vmatprep.mubr.f32.mxu0 0.0
  %709 = vmatmul.mubr.f32.gmra.mrb[0].mxu0 %v71
  %v710 = vpop.f32.mrb[0].mxu0
  %v711 = vadd.f32 %v638, %v710
  %v712 = vpop.f32.mrb[0].mxu0
  %713 = vdwg.mxu0
  %v715 = vsel %vm66, %v551, 0
  %v718 = vsel %vm66, %v626, 0
  %720 = vmatprep.subr.mxu0 0.0
  %721 = vmatpush1.xpose.msra.mxu0 %v718
  %722 = vmatprep.subr.mxu0 0.0
  %723 = vmatpush1.xpose.msra.mxu0 0.0
  %724 = vmatprep.subr.mxu0 0.0
  %725 = vmatpush1.xpose.msra.mxu0 0.0
  %726 = vmatprep.subr.mxu0 0.0
  %727 = vmatpush1.xpose.msra.mxu0 0.0
  %728 = vmatprep.subr.mxu0 0.0
  %729 = vmatpush1.xpose.msra.mxu0 0.0
  %730 = vmatprep.subr.mxu0 0.0
  %731 = vmatpush1.xpose.msra.mxu0 0.0
  %732 = vmatprep.subr.mxu0 0.0
  %733 = vmatpush1.xpose.msra.mxu0 0.0
  %734 = vmatprep.subr.mxu0 0.0
  %735 = vmatpush1.xpose.msra.mxu0 0.0
  %736 = vmatprep.subr.mxu0 0.0
  %737 = vmatpush1.xpose.msra.mxu0 0.0
  %738 = vmatprep.subr.mxu0 0.0
  %739 = vmatpush1.xpose.msra.mxu0 0.0
  %740 = vmatprep.subr.mxu0 0.0
  %741 = vmatpush1.xpose.msra.mxu0 0.0
  %742 = vmatprep.subr.mxu0 0.0
  %743 = vmatpush1.xpose.msra.mxu0 0.0
  %744 = vmatprep.subr.mxu0 0.0
  %745 = vmatpush1.xpose.msra.mxu0 0.0
  %746 = vmatprep.subr.mxu0 0.0
  %747 = vmatpush1.xpose.msra.mxu0 0.0
  %748 = vmatprep.subr.mxu0 0.0
  %749 = vmatpush1.xpose.msra.mxu0 0.0
  %750 = vmatprep.subr.mxu0 0.0
  %751 = vmatpush1.xpose.msra.mxu0 0.0
  %752 = vmatprep.subr.mxu0 0.0
  %753 = vmatpush1.xpose.msra.mxu0 0.0
  %754 = vmatprep.subr.mxu0 0.0
  %755 = vmatpush1.xpose.msra.mxu0 0.0
  %756 = vmatprep.subr.mxu0 0.0
  %757 = vmatpush1.xpose.msra.mxu0 0.0
  %758 = vmatprep.subr.mxu0 0.0
  %759 = vmatpush1.xpose.msra.mxu0 0.0
  %760 = vmatprep.subr.mxu0 0.0
  %761 = vmatpush1.xpose.msra.mxu0 0.0
  %762 = vmatprep.subr.mxu0 0.0
  %763 = vmatpush1.xpose.msra.mxu0 0.0
  %764 = vmatprep.subr.mxu0 0.0
  %765 = vmatpush1.xpose.msra.mxu0 0.0
  %766 = vmatprep.subr.mxu0 0.0
  %767 = vmatpush1.xpose.msra.mxu0 0.0
  %768 = vmatprep.subr.mxu0 0.0
  %769 = vmatpush1.xpose.msra.mxu0 0.0
  %770 = vmatprep.subr.mxu0 0.0
  %771 = vmatpush1.xpose.msra.mxu0 0.0
  %772 = vmatprep.subr.mxu0 0.0
  %773 = vmatpush1.xpose.msra.mxu0 0.0
  %774 = vmatprep.subr.mxu0 0.0
  %775 = vmatpush1.xpose.msra.mxu0 0.0
  %776 = vmatprep.subr.mxu0 0.0
  %777 = vmatpush1.xpose.msra.mxu0 0.0
  %778 = vmatprep.subr.mxu0 0.0
  %779 = vmatpush1.xpose.msra.mxu0 0.0
  %780 = vmatprep.subr.mxu0 0.0
  %781 = vmatpush1.xpose.msra.mxu0 0.0
  %782 = vmatprep.subr.mxu0 0.0
  %783 = vmatpush1.xpose.msra.mxu0 0.0
  %784 = vmatprep.mubr.f32.mxu0 0.0
  %785 = vmatmul.mubr.f32.gmra.mrb[0].mxu0 %v715
  %v786 = vpop.f32.mrb[0].mxu0
  %v787 = vadd.f32 0.0, %v786
  %v788 = vpop.f32.mrb[0].mxu0
  %789 = vdwg.mxu0
  %v791 = vsel %vm66, %v556, 0
  %v794 = vsel %vm66, %v631, 0
  %796 = vmatprep.subr.mxu0 0.0
  %797 = vmatpush1.xpose.msra.mxu0 %v794
  %798 = vmatprep.subr.mxu0 0.0
  %799 = vmatpush1.xpose.msra.mxu0 0.0
  %800 = vmatprep.subr.mxu0 0.0
  %801 = vmatpush1.xpose.msra.mxu0 0.0
  %802 = vmatprep.subr.mxu0 0.0
  %803 = vmatpush1.xpose.msra.mxu0 0.0
  %804 = vmatprep.subr.mxu0 0.0
  %805 = vmatpush1.xpose.msra.mxu0 0.0
  %806 = vmatprep.subr.mxu0 0.0
  %807 = vmatpush1.xpose.msra.mxu0 0.0
  %808 = vmatprep.subr.mxu0 0.0
  %809 = vmatpush1.xpose.msra.mxu0 0.0
  %810 = vmatprep.subr.mxu0 0.0
  %811 = vmatpush1.xpose.msra.mxu0 0.0
  %812 = vmatprep.subr.mxu0 0.0
  %813 = vmatpush1.xpose.msra.mxu0 0.0
  %814 = vmatprep.subr.mxu0 0.0
  %815 = vmatpush1.xpose.msra.mxu0 0.0
  %816 = vmatprep.subr.mxu0 0.0
  %817 = vmatpush1.xpose.msra.mxu0 0.0
  %818 = vmatprep.subr.mxu0 0.0
  %819 = vmatpush1.xpose.msra.mxu0 0.0
  %820 = vmatprep.subr.mxu0 0.0
  %821 = vmatpush1.xpose.msra.mxu0 0.0
  %822 = vmatprep.subr.mxu0 0.0
  %823 = vmatpush1.xpose.msra.mxu0 0.0
  %824 = vmatprep.subr.mxu0 0.0
  %825 = vmatpush1.xpose.msra.mxu0 0.0
  %826 = vmatprep.subr.mxu0 0.0
  %827 = vmatpush1.xpose.msra.mxu0 0.0
  %828 = vmatprep.subr.mxu0 0.0
  %829 = vmatpush1.xpose.msra.mxu0 0.0
  %830 = vmatprep.subr.mxu0 0.0
  %831 = vmatpush1.xpose.msra.mxu0 0.0
  %832 = vmatprep.subr.mxu0 0.0
  %833 = vmatpush1.xpose.msra.mxu0 0.0
  %834 = vmatprep.subr.mxu0 0.0
  %835 = vmatpush1.xpose.msra.mxu0 0.0
  %836 = vmatprep.subr.mxu0 0.0
  %837 = vmatpush1.xpose.msra.mxu0 0.0
  %838 = vmatprep.subr.mxu0 0.0
  %839 = vmatpush1.xpose.msra.mxu0 0.0
  %840 = vmatprep.subr.mxu0 0.0
  %841 = vmatpush1.xpose.msra.mxu0 0.0
  %842 = vmatprep.subr.mxu0 0.0
  %843 = vmatpush1.xpose.msra.mxu0 0.0
  %844 = vmatprep.subr.mxu0 0.0
  %845 = vmatpush1.xpose.msra.mxu0 0.0
  %846 = vmatprep.subr.mxu0 0.0
  %847 = vmatpush1.xpose.msra.mxu0 0.0
  %848 = vmatprep.subr.mxu0 0.0
  %849 = vmatpush1.xpose.msra.mxu0 0.0
  %850 = vmatprep.subr.mxu0 0.0
  %851 = vmatpush1.xpose.msra.mxu0 0.0
  %852 = vmatprep.subr.mxu0 0.0
  %853 = vmatpush1.xpose.msra.mxu0 0.0
  %854 = vmatprep.subr.mxu0 0.0
  %855 = vmatpush1.xpose.msra.mxu0 0.0
  %856 = vmatprep.subr.mxu0 0.0
  %857 = vmatpush1.xpose.msra.mxu0 0.0
  %858 = vmatprep.subr.mxu0 0.0
  %859 = vmatpush1.xpose.msra.mxu0 0.0
  %860 = vmatprep.mubr.f32.mxu0 0.0
  %861 = vmatmul.mubr.f32.gmra.mrb[0].mxu0 %v791
  %v862 = vpop.f32.mrb[0].mxu0
  %v863 = vadd.f32 0.0, %v862
  %v864 = vpop.f32.mrb[0].mxu0
  %865 = vdwg.mxu0
  %v866 = vld [vmem:[%s1 + $0x80] sm:$0xff]
  %v867 = vld [vmem:[%s1 + $0x88] sm:$0xff]
  %v868 = vld [vmem:[%s1 + $0x90] sm:$0xff]
  %v869 = vld [vmem:[%s1 + $0x98] sm:$0xff]
  %v870 = vld [vmem:[%s1 + $0xa0] sm:$0xff]
  %v871 = vld [vmem:[%s1 + $0xa8] sm:$0xff]
  %v872 = vld [vmem:[%s1 + $0xb0] sm:$0xff]
  %v873 = vld [vmem:[%s1 + $0xb8] sm:$0xff]
  %v874 = vld [vmem:[%s1 + $0x180] sm:$0xff]
  %v875 = vld [vmem:[%s1 + $0x188] sm:$0xff]
  %v876 = vld [vmem:[%s1 + $0x190] sm:$0xff]
  %v877 = vld [vmem:[%s1 + $0x198] sm:$0xff]
  %v878 = vld [vmem:[%s1 + $0x1a0] sm:$0xff]
  %v879 = vld [vmem:[%s1 + $0x1a8] sm:$0xff]
  %v880 = vld [vmem:[%s1 + $0x1b0] sm:$0xff]
  %v881 = vld [vmem:[%s1 + $0x1b8] sm:$0xff]
  %v882 = vld [vmem:[%s1 + $0x280] sm:$0xff]
  %v883 = vld [vmem:[%s1 + $0x288] sm:$0xff]
  %v884 = vld [vmem:[%s1 + $0x290] sm:$0xff]
  %v885 = vld [vmem:[%s1 + $0x298] sm:$0xff]
  %v886 = vld [vmem:[%s1 + $0x2a0] sm:$0xff]
  %v887 = vld [vmem:[%s1 + $0x2a8] sm:$0xff]
  %v888 = vld [vmem:[%s1 + $0x2b0] sm:$0xff]
  %v889 = vld [vmem:[%s1 + $0x2b8] sm:$0xff]
  %v890 = vld [vmem:[%s3 + $0x2] sm:$0x1]
  %v891 = vlaneseq
  %v892 = vshrl.u32 %v891, 7
  %v893 = vsub.s32 0, %v892
  %v894 = vrot.slane %v890, %v893
  %895 = vmatprep.subr.mxu0 0.0
  %896 = vmatpush1.msra.mxu0 %v866
  %897 = vmatprep.subr.mxu0 0.0
  %898 = vmatpush1.msra.mxu0 %v867
  %899 = vmatprep.subr.mxu0 0.0
  %900 = vmatpush1.msra.mxu0 %v868
  %901 = vmatprep.subr.mxu0 0.0
  %902 = vmatpush1.msra.mxu0 %v869
  %903 = vmatprep.subr.mxu0 0.0
  %904 = vmatpush1.msra.mxu0 %v870
  %905 = vmatprep.subr.mxu0 0.0
  %906 = vmatpush1.msra.mxu0 %v871
  %907 = vmatprep.subr.mxu0 0.0
  %908 = vmatpush1.msra.mxu0 %v872
  %909 = vmatprep.subr.mxu0 0.0
  %910 = vmatpush1.msra.mxu0 %v873
  %911 = vmatprep.subr.mxu0 0.0
  %912 = vmatpush1.msra.mxu0 0.0
  %913 = vmatprep.subr.mxu0 0.0
  %914 = vmatpush1.msra.mxu0 0.0
  %915 = vmatprep.subr.mxu0 0.0
  %916 = vmatpush1.msra.mxu0 0.0
  %917 = vmatprep.subr.mxu0 0.0
  %918 = vmatpush1.msra.mxu0 0.0
  %919 = vmatprep.subr.mxu0 0.0
  %920 = vmatpush1.msra.mxu0 0.0
  %921 = vmatprep.subr.mxu0 0.0
  %922 = vmatpush1.msra.mxu0 0.0
  %923 = vmatprep.subr.mxu0 0.0
  %924 = vmatpush1.msra.mxu0 0.0
  %925 = vmatprep.subr.mxu0 0.0
  %926 = vmatpush1.msra.mxu0 0.0
  %927 = vmatprep.subr.mxu0 0.0
  %928 = vmatpush1.msra.mxu0 0.0
  %929 = vmatprep.subr.mxu0 0.0
  %930 = vmatpush1.msra.mxu0 0.0
  %931 = vmatprep.subr.mxu0 0.0
  %932 = vmatpush1.msra.mxu0 0.0
  %933 = vmatprep.subr.mxu0 0.0
  %934 = vmatpush1.msra.mxu0 0.0
  %935 = vmatprep.subr.mxu0 0.0
  %936 = vmatpush1.msra.mxu0 0.0
  %937 = vmatprep.subr.mxu0 0.0
  %938 = vmatpush1.msra.mxu0 0.0
  %939 = vmatprep.subr.mxu0 0.0
  %940 = vmatpush1.msra.mxu0 0.0
  %941 = vmatprep.subr.mxu0 0.0
  %942 = vmatpush1.msra.mxu0 0.0
  %943 = vmatprep.subr.mxu0 0.0
  %944 = vmatpush1.msra.mxu0 0.0
  %945 = vmatprep.subr.mxu0 0.0
  %946 = vmatpush1.msra.mxu0 0.0
  %947 = vmatprep.subr.mxu0 0.0
  %948 = vmatpush1.msra.mxu0 0.0
  %949 = vmatprep.subr.mxu0 0.0
  %950 = vmatpush1.msra.mxu0 0.0
  %951 = vmatprep.subr.mxu0 0.0
  %952 = vmatpush1.msra.mxu0 0.0
  %953 = vmatprep.subr.mxu0 0.0
  %954 = vmatpush1.msra.mxu0 0.0
  %955 = vmatprep.subr.mxu0 0.0
  %956 = vmatpush1.msra.mxu0 0.0
  %957 = vmatprep.subr.mxu0 0.0
  %958 = vmatpush1.msra.mxu0 0.0
  %959 = vmatprep.mubr.f32.mxu0 0.0
  %960 = vmatmul.mubr.f32.gmra.mrb[0].mxu0 %v68
  %v961 = vpop.f32.mrb[0].mxu0
  %v962 = vadd.f32 %v894, %v961
  %v963 = vpop.f32.mrb[0].mxu0
  %964 = vmatprep.mubr.f32.mxu0 0.0
  %965 = vmatmul.mubr.f32.gmra.mrb[0].mxu0 %v71
  %v966 = vpop.f32.mrb[0].mxu0
  %v967 = vadd.f32 %v894, %v966
  %v968 = vpop.f32.mrb[0].mxu0
  %969 = vdwg.mxu0
  %970 = vmatprep.subr.mxu0 0.0
  %971 = vmatpush1.msra.mxu0 %v874
  %972 = vmatprep.subr.mxu0 0.0
  %973 = vmatpush1.msra.mxu0 %v875
  %974 = vmatprep.subr.mxu0 0.0
  %975 = vmatpush1.msra.mxu0 %v876
  %976 = vmatprep.subr.mxu0 0.0
  %977 = vmatpush1.msra.mxu0 %v877
  %978 = vmatprep.subr.mxu0 0.0
  %979 = vmatpush1.msra.mxu0 %v878
  %980 = vmatprep.subr.mxu0 0.0
  %981 = vmatpush1.msra.mxu0 %v879
  %982 = vmatprep.subr.mxu0 0.0
  %983 = vmatpush1.msra.mxu0 %v880
  %984 = vmatprep.subr.mxu0 0.0
  %985 = vmatpush1.msra.mxu0 %v881
  %986 = vmatprep.subr.mxu0 0.0
  %987 = vmatpush1.msra.mxu0 0.0
  %988 = vmatprep.subr.mxu0 0.0
  %989 = vmatpush1.msra.mxu0 0.0
  %990 = vmatprep.subr.mxu0 0.0
  %991 = vmatpush1.msra.mxu0 0.0
  %992 = vmatprep.subr.mxu0 0.0
  %993 = vmatpush1.msra.mxu0 0.0
  %994 = vmatprep.subr.mxu0 0.0
  %995 = vmatpush1.msra.mxu0 0.0
  %996 = vmatprep.subr.mxu0 0.0
  %997 = vmatpush1.msra.mxu0 0.0
  %998 = vmatprep.subr.mxu0 0.0
  %999 = vmatpush1.msra.mxu0 0.0
  %1000 = vmatprep.subr.mxu0 0.0
  %1001 = vmatpush1.msra.mxu0 0.0
  %1002 = vmatprep.subr.mxu0 0.0
  %1003 = vmatpush1.msra.mxu0 0.0
  %1004 = vmatprep.subr.mxu0 0.0
  %1005 = vmatpush1.msra.mxu0 0.0
  %1006 = vmatprep.subr.mxu0 0.0
  %1007 = vmatpush1.msra.mxu0 0.0
  %1008 = vmatprep.subr.mxu0 0.0
  %1009 = vmatpush1.msra.mxu0 0.0
  %1010 = vmatprep.subr.mxu0 0.0
  %1011 = vmatpush1.msra.mxu0 0.0
  %1012 = vmatprep.subr.mxu0 0.0
  %1013 = vmatpush1.msra.mxu0 0.0
  %1014 = vmatprep.subr.mxu0 0.0
  %1015 = vmatpush1.msra.mxu0 0.0
  %1016 = vmatprep.subr.mxu0 0.0
  %1017 = vmatpush1.msra.mxu0 0.0
  %1018 = vmatprep.subr.mxu0 0.0
  %1019 = vmatpush1.msra.mxu0 0.0
  %1020 = vmatprep.subr.mxu0 0.0
  %1021 = vmatpush1.msra.mxu0 0.0
  %1022 = vmatprep.subr.mxu0 0.0
  %1023 = vmatpush1.msra.mxu0 0.0
  %1024 = vmatprep.subr.mxu0 0.0
  %1025 = vmatpush1.msra.mxu0 0.0
  %1026 = vmatprep.subr.mxu0 0.0
  %1027 = vmatpush1.msra.mxu0 0.0
  %1028 = vmatprep.subr.mxu0 0.0
  %1029 = vmatpush1.msra.mxu0 0.0
  %1030 = vmatprep.subr.mxu0 0.0
  %1031 = vmatpush1.msra.mxu0 0.0
  %1032 = vmatprep.subr.mxu0 0.0
  %1033 = vmatpush1.msra.mxu0 0.0
  %1034 = vmatprep.mubr.f32.mxu0 0.0
  %1035 = vmatmul.mubr.f32.gmra.mrb[0].mxu0 %v68
  %v1036 = vpop.f32.mrb[0].mxu0
  %v1037 = vadd.f32 0.0, %v1036
  %v1038 = vpop.f32.mrb[0].mxu0
  %1039 = vmatprep.mubr.f32.mxu0 0.0
  %1040 = vmatmul.mubr.f32.gmra.mrb[0].mxu0 %v71
  %v1041 = vpop.f32.mrb[0].mxu0
  %v1042 = vadd.f32 0.0, %v1041
  %v1043 = vpop.f32.mrb[0].mxu0
  %1044 = vdwg.mxu0
  %v1045 = vld [vmem:[%s3 + $0x6] sm:$0x1]
  %v1046 = vlaneseq
  %v1047 = vshrl.u32 %v1046, 7
  %v1048 = vsub.s32 0, %v1047
  %v1049 = vrot.slane %v1045, %v1048
  %1050 = vmatprep.subr.mxu0 0.0
  %1051 = vmatpush1.msra.mxu0 %v882
  %1052 = vmatprep.subr.mxu0 0.0
  %1053 = vmatpush1.msra.mxu0 %v883
  %1054 = vmatprep.subr.mxu0 0.0
  %1055 = vmatpush1.msra.mxu0 %v884
  %1056 = vmatprep.subr.mxu0 0.0
  %1057 = vmatpush1.msra.mxu0 %v885
  %1058 = vmatprep.subr.mxu0 0.0
  %1059 = vmatpush1.msra.mxu0 %v886
  %1060 = vmatprep.subr.mxu0 0.0
  %1061 = vmatpush1.msra.mxu0 %v887
  %1062 = vmatprep.subr.mxu0 0.0
  %1063 = vmatpush1.msra.mxu0 %v888
  %1064 = vmatprep.subr.mxu0 0.0
  %1065 = vmatpush1.msra.mxu0 %v889
  %1066 = vmatprep.subr.mxu0 0.0
  %1067 = vmatpush1.msra.mxu0 0.0
  %1068 = vmatprep.subr.mxu0 0.0
  %1069 = vmatpush1.msra.mxu0 0.0
  %1070 = vmatprep.subr.mxu0 0.0
  %1071 = vmatpush1.msra.mxu0 0.0
  %1072 = vmatprep.subr.mxu0 0.0
  %1073 = vmatpush1.msra.mxu0 0.0
  %1074 = vmatprep.subr.mxu0 0.0
  %1075 = vmatpush1.msra.mxu0 0.0
  %1076 = vmatprep.subr.mxu0 0.0
  %1077 = vmatpush1.msra.mxu0 0.0
  %1078 = vmatprep.subr.mxu0 0.0
  %1079 = vmatpush1.msra.mxu0 0.0
  %1080 = vmatprep.subr.mxu0 0.0
  %1081 = vmatpush1.msra.mxu0 0.0
  %1082 = vmatprep.subr.mxu0 0.0
  %1083 = vmatpush1.msra.mxu0 0.0
  %1084 = vmatprep.subr.mxu0 0.0
  %1085 = vmatpush1.msra.mxu0 0.0
  %1086 = vmatprep.subr.mxu0 0.0
  %1087 = vmatpush1.msra.mxu0 0.0
  %1088 = vmatprep.subr.mxu0 0.0
  %1089 = vmatpush1.msra.mxu0 0.0
  %1090 = vmatprep.subr.mxu0 0.0
  %1091 = vmatpush1.msra.mxu0 0.0
  %1092 = vmatprep.subr.mxu0 0.0
  %1093 = vmatpush1.msra.mxu0 0.0
  %1094 = vmatprep.subr.mxu0 0.0
  %1095 = vmatpush1.msra.mxu0 0.0
  %1096 = vmatprep.subr.mxu0 0.0
  %1097 = vmatpush1.msra.mxu0 0.0
  %1098 = vmatprep.subr.mxu0 0.0
  %1099 = vmatpush1.msra.mxu0 0.0
  %1100 = vmatprep.subr.mxu0 0.0
  %1101 = vmatpush1.msra.mxu0 0.0
  %1102 = vmatprep.subr.mxu0 0.0
  %1103 = vmatpush1.msra.mxu0 0.0
  %1104 = vmatprep.subr.mxu0 0.0
  %1105 = vmatpush1.msra.mxu0 0.0
  %1106 = vmatprep.subr.mxu0 0.0
  %1107 = vmatpush1.msra.mxu0 0.0
  %1108 = vmatprep.subr.mxu0 0.0
  %1109 = vmatpush1.msra.mxu0 0.0
  %1110 = vmatprep.subr.mxu0 0.0
  %1111 = vmatpush1.msra.mxu0 0.0
  %1112 = vmatprep.subr.mxu0 0.0
  %1113 = vmatpush1.msra.mxu0 0.0
  %1114 = vmatprep.mubr.f32.mxu0 0.0
  %1115 = vmatmul.mubr.f32.gmra.mrb[0].mxu0 %v68
  %v1116 = vpop.f32.mrb[0].mxu0
  %v1117 = vadd.f32 %v1049, %v1116
  %v1118 = vpop.f32.mrb[0].mxu0
  %1119 = vmatprep.mubr.f32.mxu0 0.0
  %1120 = vmatmul.mubr.f32.gmra.mrb[0].mxu0 %v71
  %v1121 = vpop.f32.mrb[0].mxu0
  %v1122 = vadd.f32 %v1049, %v1121
  %v1123 = vpop.f32.mrb[0].mxu0
  %1124 = vdwg.mxu0
  %v1126 = vsel %vm66, %v962, 0
  %v1129 = vsel %vm66, %v1037, 0
  %1131 = vmatprep.subr.mxu0 0.0
  %1132 = vmatpush1.xpose.msra.mxu0 %v1129
  %1133 = vmatprep.subr.mxu0 0.0
  %1134 = vmatpush1.xpose.msra.mxu0 0.0
  %1135 = vmatprep.subr.mxu0 0.0
  %1136 = vmatpush1.xpose.msra.mxu0 0.0
  %1137 = vmatprep.subr.mxu0 0.0
  %1138 = vmatpush1.xpose.msra.mxu0 0.0
  %1139 = vmatprep.subr.mxu0 0.0
  %1140 = vmatpush1.xpose.msra.mxu0 0.0
  %1141 = vmatprep.subr.mxu0 0.0
  %1142 = vmatpush1.xpose.msra.mxu0 0.0
  %1143 = vmatprep.subr.mxu0 0.0
  %1144 = vmatpush1.xpose.msra.mxu0 0.0
  %1145 = vmatprep.subr.mxu0 0.0
  %1146 = vmatpush1.xpose.msra.mxu0 0.0
  %1147 = vmatprep.subr.mxu0 0.0
  %1148 = vmatpush1.xpose.msra.mxu0 0.0
  %1149 = vmatprep.subr.mxu0 0.0
  %1150 = vmatpush1.xpose.msra.mxu0 0.0
  %1151 = vmatprep.subr.mxu0 0.0
  %1152 = vmatpush1.xpose.msra.mxu0 0.0
  %1153 = vmatprep.subr.mxu0 0.0
  %1154 = vmatpush1.xpose.msra.mxu0 0.0
  %1155 = vmatprep.subr.mxu0 0.0
  %1156 = vmatpush1.xpose.msra.mxu0 0.0
  %1157 = vmatprep.subr.mxu0 0.0
  %1158 = vmatpush1.xpose.msra.mxu0 0.0
  %1159 = vmatprep.subr.mxu0 0.0
  %1160 = vmatpush1.xpose.msra.mxu0 0.0
  %1161 = vmatprep.subr.mxu0 0.0
  %1162 = vmatpush1.xpose.msra.mxu0 0.0
  %1163 = vmatprep.subr.mxu0 0.0
  %1164 = vmatpush1.xpose.msra.mxu0 0.0
  %1165 = vmatprep.subr.mxu0 0.0
  %1166 = vmatpush1.xpose.msra.mxu0 0.0
  %1167 = vmatprep.subr.mxu0 0.0
  %1168 = vmatpush1.xpose.msra.mxu0 0.0
  %1169 = vmatprep.subr.mxu0 0.0
  %1170 = vmatpush1.xpose.msra.mxu0 0.0
  %1171 = vmatprep.subr.mxu0 0.0
  %1172 = vmatpush1.xpose.msra.mxu0 0.0
  %1173 = vmatprep.subr.mxu0 0.0
  %1174 = vmatpush1.xpose.msra.mxu0 0.0
  %1175 = vmatprep.subr.mxu0 0.0
  %1176 = vmatpush1.xpose.msra.mxu0 0.0
  %1177 = vmatprep.subr.mxu0 0.0
  %1178 = vmatpush1.xpose.msra.mxu0 0.0
  %1179 = vmatprep.subr.mxu0 0.0
  %1180 = vmatpush1.xpose.msra.mxu0 0.0
  %1181 = vmatprep.subr.mxu0 0.0
  %1182 = vmatpush1.xpose.msra.mxu0 0.0
  %1183 = vmatprep.subr.mxu0 0.0
  %1184 = vmatpush1.xpose.msra.mxu0 0.0
  %1185 = vmatprep.subr.mxu0 0.0
  %1186 = vmatpush1.xpose.msra.mxu0 0.0
  %1187 = vmatprep.subr.mxu0 0.0
  %1188 = vmatpush1.xpose.msra.mxu0 0.0
  %1189 = vmatprep.subr.mxu0 0.0
  %1190 = vmatpush1.xpose.msra.mxu0 0.0
  %1191 = vmatprep.subr.mxu0 0.0
  %1192 = vmatpush1.xpose.msra.mxu0 0.0
  %1193 = vmatprep.subr.mxu0 0.0
  %1194 = vmatpush1.xpose.msra.mxu0 0.0
  %1195 = vmatprep.mubr.f32.mxu0 0.0
  %1196 = vmatmul.mubr.f32.gmra.mrb[0].mxu0 %v1126
  %v1197 = vpop.f32.mrb[0].mxu0
  %v1198 = vadd.f32 0.0, %v1197
  %v1199 = vpop.f32.mrb[0].mxu0
  %1200 = vdwg.mxu0
  %v1202 = vsel %vm66, %v967, 0
  %v1205 = vsel %vm66, %v1042, 0
  %1207 = vmatprep.subr.mxu0 0.0
  %1208 = vmatpush1.xpose.msra.mxu0 %v1205
  %1209 = vmatprep.subr.mxu0 0.0
  %1210 = vmatpush1.xpose.msra.mxu0 0.0
  %1211 = vmatprep.subr.mxu0 0.0
  %1212 = vmatpush1.xpose.msra.mxu0 0.0
  %1213 = vmatprep.subr.mxu0 0.0
  %1214 = vmatpush1.xpose.msra.mxu0 0.0
  %1215 = vmatprep.subr.mxu0 0.0
  %1216 = vmatpush1.xpose.msra.mxu0 0.0
  %1217 = vmatprep.subr.mxu0 0.0
  %1218 = vmatpush1.xpose.msra.mxu0 0.0
  %1219 = vmatprep.subr.mxu0 0.0
  %1220 = vmatpush1.xpose.msra.mxu0 0.0
  %1221 = vmatprep.subr.mxu0 0.0
  %1222 = vmatpush1.xpose.msra.mxu0 0.0
  %1223 = vmatprep.subr.mxu0 0.0
  %1224 = vmatpush1.xpose.msra.mxu0 0.0
  %1225 = vmatprep.subr.mxu0 0.0
  %1226 = vmatpush1.xpose.msra.mxu0 0.0
  %1227 = vmatprep.subr.mxu0 0.0
  %1228 = vmatpush1.xpose.msra.mxu0 0.0
  %1229 = vmatprep.subr.mxu0 0.0
  %1230 = vmatpush1.xpose.msra.mxu0 0.0
  %1231 = vmatprep.subr.mxu0 0.0
  %1232 = vmatpush1.xpose.msra.mxu0 0.0
  %1233 = vmatprep.subr.mxu0 0.0
  %1234 = vmatpush1.xpose.msra.mxu0 0.0
  %1235 = vmatprep.subr.mxu0 0.0
  %1236 = vmatpush1.xpose.msra.mxu0 0.0
  %1237 = vmatprep.subr.mxu0 0.0
  %1238 = vmatpush1.xpose.msra.mxu0 0.0
  %1239 = vmatprep.subr.mxu0 0.0
  %1240 = vmatpush1.xpose.msra.mxu0 0.0
  %1241 = vmatprep.subr.mxu0 0.0
  %1242 = vmatpush1.xpose.msra.mxu0 0.0
  %1243 = vmatprep.subr.mxu0 0.0
  %1244 = vmatpush1.xpose.msra.mxu0 0.0
  %1245 = vmatprep.subr.mxu0 0.0
  %1246 = vmatpush1.xpose.msra.mxu0 0.0
  %1247 = vmatprep.subr.mxu0 0.0
  %1248 = vmatpush1.xpose.msra.mxu0 0.0
  %1249 = vmatprep.subr.mxu0 0.0
  %1250 = vmatpush1.xpose.msra.mxu0 0.0
  %1251 = vmatprep.subr.mxu0 0.0
  %1252 = vmatpush1.xpose.msra.mxu0 0.0
  %1253 = vmatprep.subr.mxu0 0.0
  %1254 = vmatpush1.xpose.msra.mxu0 0.0
  %1255 = vmatprep.subr.mxu0 0.0
  %1256 = vmatpush1.xpose.msra.mxu0 0.0
  %1257 = vmatprep.subr.mxu0 0.0
  %1258 = vmatpush1.xpose.msra.mxu0 0.0
  %1259 = vmatprep.subr.mxu0 0.0
  %1260 = vmatpush1.xpose.msra.mxu0 0.0
  %1261 = vmatprep.subr.mxu0 0.0
  %1262 = vmatpush1.xpose.msra.mxu0 0.0
  %1263 = vmatprep.subr.mxu0 0.0
  %1264 = vmatpush1.xpose.msra.mxu0 0.0
  %1265 = vmatprep.subr.mxu0 0.0
  %1266 = vmatpush1.xpose.msra.mxu0 0.0
  %1267 = vmatprep.subr.mxu0 0.0
  %1268 = vmatpush1.xpose.msra.mxu0 0.0
  %1269 = vmatprep.subr.mxu0 0.0
  %1270 = vmatpush1.xpose.msra.mxu0 0.0
  %1271 = vmatprep.mubr.f32.mxu0 0.0
  %1272 = vmatmul.mubr.f32.gmra.mrb[0].mxu0 %v1202
  %v1273 = vpop.f32.mrb[0].mxu0
  %v1274 = vadd.f32 0.0, %v1273
  %v1275 = vpop.f32.mrb[0].mxu0
  %1276 = vdwg.mxu0
  %v1277 = vld [vmem:[%s1 + $0xc0] sm:$0xff]
  %v1278 = vld [vmem:[%s1 + $0xc8] sm:$0xff]
  %v1279 = vld [vmem:[%s1 + $0xd0] sm:$0xff]
  %v1280 = vld [vmem:[%s1 + $0xd8] sm:$0xff]
  %v1281 = vld [vmem:[%s1 + $0xe0] sm:$0xff]
  %v1282 = vld [vmem:[%s1 + $0xe8] sm:$0xff]
  %v1283 = vld [vmem:[%s1 + $0xf0] sm:$0xff]
  %v1284 = vld [vmem:[%s1 + $0xf8] sm:$0xff]
  %v1285 = vld [vmem:[%s1 + $0x1c0] sm:$0xff]
  %v1286 = vld [vmem:[%s1 + $0x1c8] sm:$0xff]
  %v1287 = vld [vmem:[%s1 + $0x1d0] sm:$0xff]
  %v1288 = vld [vmem:[%s1 + $0x1d8] sm:$0xff]
  %v1289 = vld [vmem:[%s1 + $0x1e0] sm:$0xff]
  %v1290 = vld [vmem:[%s1 + $0x1e8] sm:$0xff]
  %v1291 = vld [vmem:[%s1 + $0x1f0] sm:$0xff]
  %v1292 = vld [vmem:[%s1 + $0x1f8] sm:$0xff]
  %v1293 = vld [vmem:[%s1 + $0x2c0] sm:$0xff]
  %v1294 = vld [vmem:[%s1 + $0x2c8] sm:$0xff]
  %v1295 = vld [vmem:[%s1 + $0x2d0] sm:$0xff]
  %v1296 = vld [vmem:[%s1 + $0x2d8] sm:$0xff]
  %v1297 = vld [vmem:[%s1 + $0x2e0] sm:$0xff]
  %v1298 = vld [vmem:[%s1 + $0x2e8] sm:$0xff]
  %v1299 = vld [vmem:[%s1 + $0x2f0] sm:$0xff]
  %v1300 = vld [vmem:[%s1 + $0x2f8] sm:$0xff]
  %v1301 = vld [vmem:[%s3 + $0x3] sm:$0x1]
  %v1302 = vlaneseq
  %v1303 = vshrl.u32 %v1302, 7
  %v1304 = vsub.s32 0, %v1303
  %v1305 = vrot.slane %v1301, %v1304
  %1306 = vmatprep.subr.mxu0 0.0
  %1307 = vmatpush1.msra.mxu0 %v1277
  %1308 = vmatprep.subr.mxu0 0.0
  %1309 = vmatpush1.msra.mxu0 %v1278
  %1310 = vmatprep.subr.mxu0 0.0
  %1311 = vmatpush1.msra.mxu0 %v1279
  %1312 = vmatprep.subr.mxu0 0.0
  %1313 = vmatpush1.msra.mxu0 %v1280
  %1314 = vmatprep.subr.mxu0 0.0
  %1315 = vmatpush1.msra.mxu0 %v1281
  %1316 = vmatprep.subr.mxu0 0.0
  %1317 = vmatpush1.msra.mxu0 %v1282
  %1318 = vmatprep.subr.mxu0 0.0
  %1319 = vmatpush1.msra.mxu0 %v1283
  %1320 = vmatprep.subr.mxu0 0.0
  %1321 = vmatpush1.msra.mxu0 %v1284
  %1322 = vmatprep.subr.mxu0 0.0
  %1323 = vmatpush1.msra.mxu0 0.0
  %1324 = vmatprep.subr.mxu0 0.0
  %1325 = vmatpush1.msra.mxu0 0.0
  %1326 = vmatprep.subr.mxu0 0.0
  %1327 = vmatpush1.msra.mxu0 0.0
  %1328 = vmatprep.subr.mxu0 0.0
  %1329 = vmatpush1.msra.mxu0 0.0
  %1330 = vmatprep.subr.mxu0 0.0
  %1331 = vmatpush1.msra.mxu0 0.0
  %1332 = vmatprep.subr.mxu0 0.0
  %1333 = vmatpush1.msra.mxu0 0.0
  %1334 = vmatprep.subr.mxu0 0.0
  %1335 = vmatpush1.msra.mxu0 0.0
  %1336 = vmatprep.subr.mxu0 0.0
  %1337 = vmatpush1.msra.mxu0 0.0
  %1338 = vmatprep.subr.mxu0 0.0
  %1339 = vmatpush1.msra.mxu0 0.0
  %1340 = vmatprep.subr.mxu0 0.0
  %1341 = vmatpush1.msra.mxu0 0.0
  %1342 = vmatprep.subr.mxu0 0.0
  %1343 = vmatpush1.msra.mxu0 0.0
  %1344 = vmatprep.subr.mxu0 0.0
  %1345 = vmatpush1.msra.mxu0 0.0
  %1346 = vmatprep.subr.mxu0 0.0
  %1347 = vmatpush1.msra.mxu0 0.0
  %1348 = vmatprep.subr.mxu0 0.0
  %1349 = vmatpush1.msra.mxu0 0.0
  %1350 = vmatprep.subr.mxu0 0.0
  %1351 = vmatpush1.msra.mxu0 0.0
  %1352 = vmatprep.subr.mxu0 0.0
  %1353 = vmatpush1.msra.mxu0 0.0
  %1354 = vmatprep.subr.mxu0 0.0
  %1355 = vmatpush1.msra.mxu0 0.0
  %1356 = vmatprep.subr.mxu0 0.0
  %1357 = vmatpush1.msra.mxu0 0.0
  %1358 = vmatprep.subr.mxu0 0.0
  %1359 = vmatpush1.msra.mxu0 0.0
  %1360 = vmatprep.subr.mxu0 0.0
  %1361 = vmatpush1.msra.mxu0 0.0
  %1362 = vmatprep.subr.mxu0 0.0
  %1363 = vmatpush1.msra.mxu0 0.0
  %1364 = vmatprep.subr.mxu0 0.0
  %1365 = vmatpush1.msra.mxu0 0.0
  %1366 = vmatprep.subr.mxu0 0.0
  %1367 = vmatpush1.msra.mxu0 0.0
  %1368 = vmatprep.subr.mxu0 0.0
  %1369 = vmatpush1.msra.mxu0 0.0
  %1370 = vmatprep.mubr.f32.mxu0 0.0
  %1371 = vmatmul.mubr.f32.gmra.mrb[0].mxu0 %v68
  %v1372 = vpop.f32.mrb[0].mxu0
  %v1373 = vadd.f32 %v1305, %v1372
  %v1374 = vpop.f32.mrb[0].mxu0
  %1375 = vmatprep.mubr.f32.mxu0 0.0
  %1376 = vmatmul.mubr.f32.gmra.mrb[0].mxu0 %v71
  %v1377 = vpop.f32.mrb[0].mxu0
  %v1378 = vadd.f32 %v1305, %v1377
  %v1379 = vpop.f32.mrb[0].mxu0
  %1380 = vdwg.mxu0
  %1381 = vmatprep.subr.mxu0 0.0
  %1382 = vmatpush1.msra.mxu0 %v1285
  %1383 = vmatprep.subr.mxu0 0.0
  %1384 = vmatpush1.msra.mxu0 %v1286
  %1385 = vmatprep.subr.mxu0 0.0
  %1386 = vmatpush1.msra.mxu0 %v1287
  %1387 = vmatprep.subr.mxu0 0.0
  %1388 = vmatpush1.msra.mxu0 %v1288
  %1389 = vmatprep.subr.mxu0 0.0
  %1390 = vmatpush1.msra.mxu0 %v1289
  %1391 = vmatprep.subr.mxu0 0.0
  %1392 = vmatpush1.msra.mxu0 %v1290
  %1393 = vmatprep.subr.mxu0 0.0
  %1394 = vmatpush1.msra.mxu0 %v1291
  %1395 = vmatprep.subr.mxu0 0.0
  %1396 = vmatpush1.msra.mxu0 %v1292
  %1397 = vmatprep.subr.mxu0 0.0
  %1398 = vmatpush1.msra.mxu0 0.0
  %1399 = vmatprep.subr.mxu0 0.0
  %1400 = vmatpush1.msra.mxu0 0.0
  %1401 = vmatprep.subr.mxu0 0.0
  %1402 = vmatpush1.msra.mxu0 0.0
  %1403 = vmatprep.subr.mxu0 0.0
  %1404 = vmatpush1.msra.mxu0 0.0
  %1405 = vmatprep.subr.mxu0 0.0
  %1406 = vmatpush1.msra.mxu0 0.0
  %1407 = vmatprep.subr.mxu0 0.0
  %1408 = vmatpush1.msra.mxu0 0.0
  %1409 = vmatprep.subr.mxu0 0.0
  %1410 = vmatpush1.msra.mxu0 0.0
  %1411 = vmatprep.subr.mxu0 0.0
  %1412 = vmatpush1.msra.mxu0 0.0
  %1413 = vmatprep.subr.mxu0 0.0
  %1414 = vmatpush1.msra.mxu0 0.0
  %1415 = vmatprep.subr.mxu0 0.0
  %1416 = vmatpush1.msra.mxu0 0.0
  %1417 = vmatprep.subr.mxu0 0.0
  %1418 = vmatpush1.msra.mxu0 0.0
  %1419 = vmatprep.subr.mxu0 0.0
  %1420 = vmatpush1.msra.mxu0 0.0
  %1421 = vmatprep.subr.mxu0 0.0
  %1422 = vmatpush1.msra.mxu0 0.0
  %1423 = vmatprep.subr.mxu0 0.0
  %1424 = vmatpush1.msra.mxu0 0.0
  %1425 = vmatprep.subr.mxu0 0.0
  %1426 = vmatpush1.msra.mxu0 0.0
  %1427 = vmatprep.subr.mxu0 0.0
  %1428 = vmatpush1.msra.mxu0 0.0
  %1429 = vmatprep.subr.mxu0 0.0
  %1430 = vmatpush1.msra.mxu0 0.0
  %1431 = vmatprep.subr.mxu0 0.0
  %1432 = vmatpush1.msra.mxu0 0.0
  %1433 = vmatprep.subr.mxu0 0.0
  %1434 = vmatpush1.msra.mxu0 0.0
  %1435 = vmatprep.subr.mxu0 0.0
  %1436 = vmatpush1.msra.mxu0 0.0
  %1437 = vmatprep.subr.mxu0 0.0
  %1438 = vmatpush1.msra.mxu0 0.0
  %1439 = vmatprep.subr.mxu0 0.0
  %1440 = vmatpush1.msra.mxu0 0.0
  %1441 = vmatprep.subr.mxu0 0.0
  %1442 = vmatpush1.msra.mxu0 0.0
  %1443 = vmatprep.subr.mxu0 0.0
  %1444 = vmatpush1.msra.mxu0 0.0
  %1445 = vmatprep.mubr.f32.mxu0 0.0
  %1446 = vmatmul.mubr.f32.gmra.mrb[0].mxu0 %v68
  %v1447 = vpop.f32.mrb[0].mxu0
  %v1448 = vadd.f32 0.0, %v1447
  %v1449 = vpop.f32.mrb[0].mxu0
  %1450 = vmatprep.mubr.f32.mxu0 0.0
  %1451 = vmatmul.mubr.f32.gmra.mrb[0].mxu0 %v71
  %v1452 = vpop.f32.mrb[0].mxu0
  %v1453 = vadd.f32 0.0, %v1452
  %v1454 = vpop.f32.mrb[0].mxu0
  %1455 = vdwg.mxu0
  %v1456 = vld [vmem:[%s3 + $0x7] sm:$0x1]
  %v1457 = vlaneseq
  %v1458 = vshrl.u32 %v1457, 7
  %v1459 = vsub.s32 0, %v1458
  %v1460 = vrot.slane %v1456, %v1459
  %1461 = vmatprep.subr.mxu0 0.0
  %1462 = vmatpush1.msra.mxu0 %v1293
  %1463 = vmatprep.subr.mxu0 0.0
  %1464 = vmatpush1.msra.mxu0 %v1294
  %1465 = vmatprep.subr.mxu0 0.0
  %1466 = vmatpush1.msra.mxu0 %v1295
  %1467 = vmatprep.subr.mxu0 0.0
  %1468 = vmatpush1.msra.mxu0 %v1296
  %1469 = vmatprep.subr.mxu0 0.0
  %1470 = vmatpush1.msra.mxu0 %v1297
  %1471 = vmatprep.subr.mxu0 0.0
  %1472 = vmatpush1.msra.mxu0 %v1298
  %1473 = vmatprep.subr.mxu0 0.0
  %1474 = vmatpush1.msra.mxu0 %v1299
  %1475 = vmatprep.subr.mxu0 0.0
  %1476 = vmatpush1.msra.mxu0 %v1300
  %1477 = vmatprep.subr.mxu0 0.0
  %1478 = vmatpush1.msra.mxu0 0.0
  %1479 = vmatprep.subr.mxu0 0.0
  %1480 = vmatpush1.msra.mxu0 0.0
  %1481 = vmatprep.subr.mxu0 0.0
  %1482 = vmatpush1.msra.mxu0 0.0
  %1483 = vmatprep.subr.mxu0 0.0
  %1484 = vmatpush1.msra.mxu0 0.0
  %1485 = vmatprep.subr.mxu0 0.0
  %1486 = vmatpush1.msra.mxu0 0.0
  %1487 = vmatprep.subr.mxu0 0.0
  %1488 = vmatpush1.msra.mxu0 0.0
  %1489 = vmatprep.subr.mxu0 0.0
  %1490 = vmatpush1.msra.mxu0 0.0
  %1491 = vmatprep.subr.mxu0 0.0
  %1492 = vmatpush1.msra.mxu0 0.0
  %1493 = vmatprep.subr.mxu0 0.0
  %1494 = vmatpush1.msra.mxu0 0.0
  %1495 = vmatprep.subr.mxu0 0.0
  %1496 = vmatpush1.msra.mxu0 0.0
  %1497 = vmatprep.subr.mxu0 0.0
  %1498 = vmatpush1.msra.mxu0 0.0
  %1499 = vmatprep.subr.mxu0 0.0
  %1500 = vmatpush1.msra.mxu0 0.0
  %1501 = vmatprep.subr.mxu0 0.0
  %1502 = vmatpush1.msra.mxu0 0.0
  %1503 = vmatprep.subr.mxu0 0.0
  %1504 = vmatpush1.msra.mxu0 0.0
  %1505 = vmatprep.subr.mxu0 0.0
  %1506 = vmatpush1.msra.mxu0 0.0
  %1507 = vmatprep.subr.mxu0 0.0
  %1508 = vmatpush1.msra.mxu0 0.0
  %1509 = vmatprep.subr.mxu0 0.0
  %1510 = vmatpush1.msra.mxu0 0.0
  %1511 = vmatprep.subr.mxu0 0.0
  %1512 = vmatpush1.msra.mxu0 0.0
  %1513 = vmatprep.subr.mxu0 0.0
  %1514 = vmatpush1.msra.mxu0 0.0
  %1515 = vmatprep.subr.mxu0 0.0
  %1516 = vmatpush1.msra.mxu0 0.0
  %1517 = vmatprep.subr.mxu0 0.0
  %1518 = vmatpush1.msra.mxu0 0.0
  %1519 = vmatprep.subr.mxu0 0.0
  %1520 = vmatpush1.msra.mxu0 0.0
  %1521 = vmatprep.subr.mxu0 0.0
  %1522 = vmatpush1.msra.mxu0 0.0
  %1523 = vmatprep.subr.mxu0 0.0
  %1524 = vmatpush1.msra.mxu0 0.0
  %1525 = vmatprep.mubr.f32.mxu0 0.0
  %1526 = vmatmul.mubr.f32.gmra.mrb[0].mxu0 %v68
  %v1527 = vpop.f32.mrb[0].mxu0
  %v1528 = vadd.f32 %v1460, %v1527
  %v1529 = vpop.f32.mrb[0].mxu0
  %1530 = vmatprep.mubr.f32.mxu0 0.0
  %1531 = vmatmul.mubr.f32.gmra.mrb[0].mxu0 %v71
  %v1532 = vpop.f32.mrb[0].mxu0
  %v1533 = vadd.f32 %v1460, %v1532
  %v1534 = vpop.f32.mrb[0].mxu0
  %1535 = vdwg.mxu0
  %v1537 = vsel %vm66, %v1373, 0
  %v1540 = vsel %vm66, %v1448, 0
  %1542 = vmatprep.subr.mxu0 0.0
  %1543 = vmatpush1.xpose.msra.mxu0 %v1540
  %1544 = vmatprep.subr.mxu0 0.0
  %1545 = vmatpush1.xpose.msra.mxu0 0.0
  %1546 = vmatprep.subr.mxu0 0.0
  %1547 = vmatpush1.xpose.msra.mxu0 0.0
  %1548 = vmatprep.subr.mxu0 0.0
  %1549 = vmatpush1.xpose.msra.mxu0 0.0
  %1550 = vmatprep.subr.mxu0 0.0
  %1551 = vmatpush1.xpose.msra.mxu0 0.0
  %1552 = vmatprep.subr.mxu0 0.0
  %1553 = vmatpush1.xpose.msra.mxu0 0.0
  %1554 = vmatprep.subr.mxu0 0.0
  %1555 = vmatpush1.xpose.msra.mxu0 0.0
  %1556 = vmatprep.subr.mxu0 0.0
  %1557 = vmatpush1.xpose.msra.mxu0 0.0
  %1558 = vmatprep.subr.mxu0 0.0
  %1559 = vmatpush1.xpose.msra.mxu0 0.0
  %1560 = vmatprep.subr.mxu0 0.0
  %1561 = vmatpush1.xpose.msra.mxu0 0.0
  %1562 = vmatprep.subr.mxu0 0.0
  %1563 = vmatpush1.xpose.msra.mxu0 0.0
  %1564 = vmatprep.subr.mxu0 0.0
  %1565 = vmatpush1.xpose.msra.mxu0 0.0
  %1566 = vmatprep.subr.mxu0 0.0
  %1567 = vmatpush1.xpose.msra.mxu0 0.0
  %1568 = vmatprep.subr.mxu0 0.0
  %1569 = vmatpush1.xpose.msra.mxu0 0.0
  %1570 = vmatprep.subr.mxu0 0.0
  %1571 = vmatpush1.xpose.msra.mxu0 0.0
  %1572 = vmatprep.subr.mxu0 0.0
  %1573 = vmatpush1.xpose.msra.mxu0 0.0
  %1574 = vmatprep.subr.mxu0 0.0
  %1575 = vmatpush1.xpose.msra.mxu0 0.0
  %1576 = vmatprep.subr.mxu0 0.0
  %1577 = vmatpush1.xpose.msra.mxu0 0.0
  %1578 = vmatprep.subr.mxu0 0.0
  %1579 = vmatpush1.xpose.msra.mxu0 0.0
  %1580 = vmatprep.subr.mxu0 0.0
  %1581 = vmatpush1.xpose.msra.mxu0 0.0
  %1582 = vmatprep.subr.mxu0 0.0
  %1583 = vmatpush1.xpose.msra.mxu0 0.0
  %1584 = vmatprep.subr.mxu0 0.0
  %1585 = vmatpush1.xpose.msra.mxu0 0.0
  %1586 = vmatprep.subr.mxu0 0.0
  %1587 = vmatpush1.xpose.msra.mxu0 0.0
  %1588 = vmatprep.subr.mxu0 0.0
  %1589 = vmatpush1.xpose.msra.mxu0 0.0
  %1590 = vmatprep.subr.mxu0 0.0
  %1591 = vmatpush1.xpose.msra.mxu0 0.0
  %1592 = vmatprep.subr.mxu0 0.0
  %1593 = vmatpush1.xpose.msra.mxu0 0.0
  %1594 = vmatprep.subr.mxu0 0.0
  %1595 = vmatpush1.xpose.msra.mxu0 0.0
  %1596 = vmatprep.subr.mxu0 0.0
  %1597 = vmatpush1.xpose.msra.mxu0 0.0
  %1598 = vmatprep.subr.mxu0 0.0
  %1599 = vmatpush1.xpose.msra.mxu0 0.0
  %1600 = vmatprep.subr.mxu0 0.0
  %1601 = vmatpush1.xpose.msra.mxu0 0.0
  %1602 = vmatprep.subr.mxu0 0.0
  %1603 = vmatpush1.xpose.msra.mxu0 0.0
  %1604 = vmatprep.subr.mxu0 0.0
  %1605 = vmatpush1.xpose.msra.mxu0 0.0
  %1606 = vmatprep.mubr.f32.mxu0 0.0
  %1607 = vmatmul.mubr.f32.gmra.mrb[0].mxu0 %v1537
  %v1608 = vpop.f32.mrb[0].mxu0
  %v1609 = vadd.f32 0.0, %v1608
  %v1610 = vpop.f32.mrb[0].mxu0
  %1611 = vdwg.mxu0
  %v1613 = vsel %vm66, %v1378, 0
  %v1616 = vsel %vm66, %v1453, 0
  %1618 = vmatprep.subr.mxu0 0.0
  %1619 = vmatpush1.xpose.msra.mxu0 %v1616
  %1620 = vmatprep.subr.mxu0 0.0
  %1621 = vmatpush1.xpose.msra.mxu0 0.0
  %1622 = vmatprep.subr.mxu0 0.0
  %1623 = vmatpush1.xpose.msra.mxu0 0.0
  %1624 = vmatprep.subr.mxu0 0.0
  %1625 = vmatpush1.xpose.msra.mxu0 0.0
  %1626 = vmatprep.subr.mxu0 0.0
  %1627 = vmatpush1.xpose.msra.mxu0 0.0
  %1628 = vmatprep.subr.mxu0 0.0
  %1629 = vmatpush1.xpose.msra.mxu0 0.0
  %1630 = vmatprep.subr.mxu0 0.0
  %1631 = vmatpush1.xpose.msra.mxu0 0.0
  %1632 = vmatprep.subr.mxu0 0.0
  %1633 = vmatpush1.xpose.msra.mxu0 0.0
  %1634 = vmatprep.subr.mxu0 0.0
  %1635 = vmatpush1.xpose.msra.mxu0 0.0
  %1636 = vmatprep.subr.mxu0 0.0
  %1637 = vmatpush1.xpose.msra.mxu0 0.0
  %1638 = vmatprep.subr.mxu0 0.0
  %1639 = vmatpush1.xpose.msra.mxu0 0.0
  %1640 = vmatprep.subr.mxu0 0.0
  %1641 = vmatpush1.xpose.msra.mxu0 0.0
  %1642 = vmatprep.subr.mxu0 0.0
  %1643 = vmatpush1.xpose.msra.mxu0 0.0
  %1644 = vmatprep.subr.mxu0 0.0
  %1645 = vmatpush1.xpose.msra.mxu0 0.0
  %1646 = vmatprep.subr.mxu0 0.0
  %1647 = vmatpush1.xpose.msra.mxu0 0.0
  %1648 = vmatprep.subr.mxu0 0.0
  %1649 = vmatpush1.xpose.msra.mxu0 0.0
  %1650 = vmatprep.subr.mxu0 0.0
  %1651 = vmatpush1.xpose.msra.mxu0 0.0
  %1652 = vmatprep.subr.mxu0 0.0
  %1653 = vmatpush1.xpose.msra.mxu0 0.0
  %1654 = vmatprep.subr.mxu0 0.0
  %1655 = vmatpush1.xpose.msra.mxu0 0.0
  %1656 = vmatprep.subr.mxu0 0.0
  %1657 = vmatpush1.xpose.msra.mxu0 0.0
  %1658 = vmatprep.subr.mxu0 0.0
  %1659 = vmatpush1.xpose.msra.mxu0 0.0
  %1660 = vmatprep.subr.mxu0 0.0
  %1661 = vmatpush1.xpose.msra.mxu0 0.0
  %1662 = vmatprep.subr.mxu0 0.0
  %1663 = vmatpush1.xpose.msra.mxu0 0.0
  %1664 = vmatprep.subr.mxu0 0.0
  %1665 = vmatpush1.xpose.msra.mxu0 0.0
  %1666 = vmatprep.subr.mxu0 0.0
  %1667 = vmatpush1.xpose.msra.mxu0 0.0
  %1668 = vmatprep.subr.mxu0 0.0
  %1669 = vmatpush1.xpose.msra.mxu0 0.0
  %1670 = vmatprep.subr.mxu0 0.0
  %1671 = vmatpush1.xpose.msra.mxu0 0.0
  %1672 = vmatprep.subr.mxu0 0.0
  %1673 = vmatpush1.xpose.msra.mxu0 0.0
  %1674 = vmatprep.subr.mxu0 0.0
  %1675 = vmatpush1.xpose.msra.mxu0 0.0
  %1676 = vmatprep.subr.mxu0 0.0
  %1677 = vmatpush1.xpose.msra.mxu0 0.0
  %1678 = vmatprep.subr.mxu0 0.0
  %1679 = vmatpush1.xpose.msra.mxu0 0.0
  %1680 = vmatprep.subr.mxu0 0.0
  %1681 = vmatpush1.xpose.msra.mxu0 0.0
  %1682 = vmatprep.mubr.f32.mxu0 0.0
  %1683 = vmatmul.mubr.f32.gmra.mrb[0].mxu0 %v1613
  %v1684 = vpop.f32.mrb[0].mxu0
  %v1685 = vadd.f32 0.0, %v1684
  %v1686 = vpop.f32.mrb[0].mxu0
  %1687 = vdwg.mxu0
  %vm1688 = vcmask 64512
  %v1689 = vsel %vm1688, %v376, -inf
  %1690 = vmax.xlane.f32.xlu0 %v1689
  %v1691 = vpop.xlane.xlu0 %1690
  %v1692 = vsel %vm1688, %v452, -inf
  %1693 = vmax.xlane.f32.xlu0 %v1692
  %v1694 = vpop.xlane.xlu0 %1693
  %v1695 = vsel %vm1688, %v787, -inf
  %1696 = vmax.xlane.f32.xlu0 %v1695
  %v1697 = vpop.xlane.xlu0 %1696
  %v1698 = vsel %vm1688, %v863, -inf
  %1699 = vmax.xlane.f32.xlu0 %v1698
  %v1700 = vpop.xlane.xlu0 %1699
  %v1701 = vsel %vm1688, %v1198, -inf
  %1702 = vmax.xlane.f32.xlu0 %v1701
  %v1703 = vpop.xlane.xlu0 %1702
  %v1704 = vsel %vm1688, %v1274, -inf
  %1705 = vmax.xlane.f32.xlu0 %v1704
  %v1706 = vpop.xlane.xlu0 %1705
  %v1707 = vsel %vm1688, %v1609, -inf
  %1708 = vmax.xlane.f32.xlu0 %v1707
  %v1709 = vpop.xlane.xlu0 %1708
  %v1710 = vsel %vm1688, %v1685, -inf
  %1711 = vmax.xlane.f32.xlu0 %v1710
  %v1712 = vpop.xlane.xlu0 %1711
  %v1713 = vsub.f32 %v376, %v1691
  %v1714 = vsub.f32 %v452, %v1694
  %v1715 = vsub.f32 %v787, %v1697
  %v1716 = vsub.f32 %v863, %v1700
  %v1717 = vsub.f32 %v1198, %v1703
  %v1718 = vsub.f32 %v1274, %v1706
  %v1719 = vsub.f32 %v1609, %v1709
  %v1720 = vsub.f32 %v1685, %v1712
  %v1721 = vmul.f32 %v1713, 1.442695
  %v1722 = vpow.pop %v1721
  %v1723 = vmul.f32 %v1714, 1.442695
  %v1724 = vpow.pop %v1723
  %v1725 = vmul.f32 %v1715, 1.442695
  %v1726 = vpow.pop %v1725
  %v1727 = vmul.f32 %v1716, 1.442695
  %v1728 = vpow.pop %v1727
  %v1729 = vmul.f32 %v1717, 1.442695
  %v1730 = vpow.pop %v1729
  %v1731 = vmul.f32 %v1718, 1.442695
  %v1732 = vpow.pop %v1731
  %v1733 = vmul.f32 %v1719, 1.442695
  %v1734 = vpow.pop %v1733
  %v1735 = vmul.f32 %v1720, 1.442695
  %v1736 = vpow.pop %v1735
  %v1737 = vsel %vm1688, %v1722, 0.0
  %1738 = vadd.xlane.f32.xlu0 %v1737
  %v1739 = vpop.xlane.xlu0 %1738
  %v1740 = vsel %vm1688, %v1724, 0.0
  %1741 = vadd.xlane.f32.xlu0 %v1740
  %v1742 = vpop.xlane.xlu0 %1741
  %v1743 = vsel %vm1688, %v1726, 0.0
  %1744 = vadd.xlane.f32.xlu0 %v1743
  %v1745 = vpop.xlane.xlu0 %1744
  %v1746 = vsel %vm1688, %v1728, 0.0
  %1747 = vadd.xlane.f32.xlu0 %v1746
  %v1748 = vpop.xlane.xlu0 %1747
  %v1749 = vsel %vm1688, %v1730, 0.0
  %1750 = vadd.xlane.f32.xlu0 %v1749
  %v1751 = vpop.xlane.xlu0 %1750
  %v1752 = vsel %vm1688, %v1732, 0.0
  %1753 = vadd.xlane.f32.xlu0 %v1752
  %v1754 = vpop.xlane.xlu0 %1753
  %v1755 = vsel %vm1688, %v1734, 0.0
  %1756 = vadd.xlane.f32.xlu0 %v1755
  %v1757 = vpop.xlane.xlu0 %1756
  %v1758 = vsel %vm1688, %v1736, 0.0
  %1759 = vadd.xlane.f32.xlu0 %v1758
  %v1760 = vpop.xlane.xlu0 %1759
  %v1761 = vrcp.pop %v1739
  %v1762 = vrcp.pop %v1742
  %v1763 = vrcp.pop %v1745
  %v1764 = vrcp.pop %v1748
  %v1765 = vrcp.pop %v1751
  %v1766 = vrcp.pop %v1754
  %v1767 = vrcp.pop %v1757
  %v1768 = vrcp.pop %v1760
  %v1769 = vmul.f32 %v1722, %v1761
  %v1770 = vmul.f32 %v1724, %v1762
  %v1771 = vmul.f32 %v1726, %v1763
  %v1772 = vmul.f32 %v1728, %v1764
  %v1773 = vmul.f32 %v1730, %v1765
  %v1774 = vmul.f32 %v1732, %v1766
  %v1775 = vmul.f32 %v1734, %v1767
  %v1776 = vmul.f32 %v1736, %v1768
  %v1778 = vsel %vm1688, %v1771, 0
  %1780 = vmatprep.subr.mxu0 0.0
  %1781 = vmatpush1.msra.mxu0 %v706
  %1782 = vmatprep.subr.mxu0 0.0
  %1783 = vmatpush1.msra.mxu0 0.0
  %1784 = vmatprep.subr.mxu0 0.0
  %1785 = vmatpush1.msra.mxu0 0.0
  %1786 = vmatprep.subr.mxu0 0.0
  %1787 = vmatpush1.msra.mxu0 0.0
  %1788 = vmatprep.subr.mxu0 0.0
  %1789 = vmatpush1.msra.mxu0 0.0
  %1790 = vmatprep.subr.mxu0 0.0
  %1791 = vmatpush1.msra.mxu0 0.0
  %1792 = vmatprep.subr.mxu0 0.0
  %1793 = vmatpush1.msra.mxu0 0.0
  %1794 = vmatprep.subr.mxu0 0.0
  %1795 = vmatpush1.msra.mxu0 0.0
  %1796 = vmatprep.subr.mxu0 0.0
  %1797 = vmatpush1.msra.mxu0 0.0
  %1798 = vmatprep.subr.mxu0 0.0
  %1799 = vmatpush1.msra.mxu0 0.0
  %1800 = vmatprep.subr.mxu0 0.0
  %1801 = vmatpush1.msra.mxu0 0.0
  %1802 = vmatprep.subr.mxu0 0.0
  %1803 = vmatpush1.msra.mxu0 0.0
  %1804 = vmatprep.subr.mxu0 0.0
  %1805 = vmatpush1.msra.mxu0 0.0
  %1806 = vmatprep.subr.mxu0 0.0
  %1807 = vmatpush1.msra.mxu0 0.0
  %1808 = vmatprep.subr.mxu0 0.0
  %1809 = vmatpush1.msra.mxu0 0.0
  %1810 = vmatprep.subr.mxu0 0.0
  %1811 = vmatpush1.msra.mxu0 0.0
  %1812 = vmatprep.subr.mxu0 0.0
  %1813 = vmatpush1.msra.mxu0 0.0
  %1814 = vmatprep.subr.mxu0 0.0
  %1815 = vmatpush1.msra.mxu0 0.0
  %1816 = vmatprep.subr.mxu0 0.0
  %1817 = vmatpush1.msra.mxu0 0.0
  %1818 = vmatprep.subr.mxu0 0.0
  %1819 = vmatpush1.msra.mxu0 0.0
  %1820 = vmatprep.subr.mxu0 0.0
  %1821 = vmatpush1.msra.mxu0 0.0
  %1822 = vmatprep.subr.mxu0 0.0
  %1823 = vmatpush1.msra.mxu0 0.0
  %1824 = vmatprep.subr.mxu0 0.0
  %1825 = vmatpush1.msra.mxu0 0.0
  %1826 = vmatprep.subr.mxu0 0.0
  %1827 = vmatpush1.msra.mxu0 0.0
  %1828 = vmatprep.subr.mxu0 0.0
  %1829 = vmatpush1.msra.mxu0 0.0
  %1830 = vmatprep.subr.mxu0 0.0
  %1831 = vmatpush1.msra.mxu0 0.0
  %1832 = vmatprep.subr.mxu0 0.0
  %1833 = vmatpush1.msra.mxu0 0.0
  %1834 = vmatprep.subr.mxu0 0.0
  %1835 = vmatpush1.msra.mxu0 0.0
  %1836 = vmatprep.subr.mxu0 0.0
  %1837 = vmatpush1.msra.mxu0 0.0
  %1838 = vmatprep.subr.mxu0 0.0
  %1839 = vmatpush1.msra.mxu0 0.0
  %1840 = vmatprep.subr.mxu0 0.0
  %1841 = vmatpush1.msra.mxu0 0.0
  %1842 = vmatprep.subr.mxu0 0.0
  %1843 = vmatpush1.msra.mxu0 0.0
  %1844 = vmatprep.mubr.f32.mxu0 0.0
  %1845 = vmatmul.mubr.f32.gmra.mrb[0].mxu0 %v1778
  %v1846 = vpop.f32.mrb[0].mxu0
  %v1847 = vadd.f32 0.0, %v1846
  %v1848 = vpop.f32.mrb[0].mxu0
  %1849 = vdwg.mxu0
  %v1851 = vsel %vm1688, %v1769, 0
  %1853 = vmatprep.subr.mxu0 0.0
  %1854 = vmatpush1.msra.mxu0 %v295
  %1855 = vmatprep.subr.mxu0 0.0
  %1856 = vmatpush1.msra.mxu0 0.0
  %1857 = vmatprep.subr.mxu0 0.0
  %1858 = vmatpush1.msra.mxu0 0.0
  %1859 = vmatprep.subr.mxu0 0.0
  %1860 = vmatpush1.msra.mxu0 0.0
  %1861 = vmatprep.subr.mxu0 0.0
  %1862 = vmatpush1.msra.mxu0 0.0
  %1863 = vmatprep.subr.mxu0 0.0
  %1864 = vmatpush1.msra.mxu0 0.0
  %1865 = vmatprep.subr.mxu0 0.0
  %1866 = vmatpush1.msra.mxu0 0.0
  %1867 = vmatprep.subr.mxu0 0.0
  %1868 = vmatpush1.msra.mxu0 0.0
  %1869 = vmatprep.subr.mxu0 0.0
  %1870 = vmatpush1.msra.mxu0 0.0
  %1871 = vmatprep.subr.mxu0 0.0
  %1872 = vmatpush1.msra.mxu0 0.0
  %1873 = vmatprep.subr.mxu0 0.0
  %1874 = vmatpush1.msra.mxu0 0.0
  %1875 = vmatprep.subr.mxu0 0.0
  %1876 = vmatpush1.msra.mxu0 0.0
  %1877 = vmatprep.subr.mxu0 0.0
  %1878 = vmatpush1.msra.mxu0 0.0
  %1879 = vmatprep.subr.mxu0 0.0
  %1880 = vmatpush1.msra.mxu0 0.0
  %1881 = vmatprep.subr.mxu0 0.0
  %1882 = vmatpush1.msra.mxu0 0.0
  %1883 = vmatprep.subr.mxu0 0.0
  %1884 = vmatpush1.msra.mxu0 0.0
  %1885 = vmatprep.subr.mxu0 0.0
  %1886 = vmatpush1.msra.mxu0 0.0
  %1887 = vmatprep.subr.mxu0 0.0
  %1888 = vmatpush1.msra.mxu0 0.0
  %1889 = vmatprep.subr.mxu0 0.0
  %1890 = vmatpush1.msra.mxu0 0.0
  %1891 = vmatprep.subr.mxu0 0.0
  %1892 = vmatpush1.msra.mxu0 0.0
  %1893 = vmatprep.subr.mxu0 0.0
  %1894 = vmatpush1.msra.mxu0 0.0
  %1895 = vmatprep.subr.mxu0 0.0
  %1896 = vmatpush1.msra.mxu0 0.0
  %1897 = vmatprep.subr.mxu0 0.0
  %1898 = vmatpush1.msra.mxu0 0.0
  %1899 = vmatprep.subr.mxu0 0.0
  %1900 = vmatpush1.msra.mxu0 0.0
  %1901 = vmatprep.subr.mxu0 0.0
  %1902 = vmatpush1.msra.mxu0 0.0
  %1903 = vmatprep.subr.mxu0 0.0
  %1904 = vmatpush1.msra.mxu0 0.0
  %1905 = vmatprep.subr.mxu0 0.0
  %1906 = vmatpush1.msra.mxu0 0.0
  %1907 = vmatprep.subr.mxu0 0.0
  %1908 = vmatpush1.msra.mxu0 0.0
  %1909 = vmatprep.subr.mxu0 0.0
  %1910 = vmatpush1.msra.mxu0 0.0
  %1911 = vmatprep.subr.mxu0 0.0
  %1912 = vmatpush1.msra.mxu0 0.0
  %1913 = vmatprep.subr.mxu0 0.0
  %1914 = vmatpush1.msra.mxu0 0.0
  %1915 = vmatprep.subr.mxu0 0.0
  %1916 = vmatpush1.msra.mxu0 0.0
  %1917 = vmatprep.mubr.f32.mxu0 0.0
  %1918 = vmatmul.mubr.f32.gmra.mrb[0].mxu0 %v1851
  %v1919 = vpop.f32.mrb[0].mxu0
  %v1920 = vadd.f32 %v1847, %v1919
  %v1921 = vpop.f32.mrb[0].mxu0
  %1922 = vdwg.mxu0
  %v1924 = vsel %vm1688, %v1773, 0
  %1926 = vmatprep.subr.mxu0 0.0
  %1927 = vmatpush1.msra.mxu0 %v1117
  %1928 = vmatprep.subr.mxu0 0.0
  %1929 = vmatpush1.msra.mxu0 0.0
  %1930 = vmatprep.subr.mxu0 0.0
  %1931 = vmatpush1.msra.mxu0 0.0
  %1932 = vmatprep.subr.mxu0 0.0
  %1933 = vmatpush1.msra.mxu0 0.0
  %1934 = vmatprep.subr.mxu0 0.0
  %1935 = vmatpush1.msra.mxu0 0.0
  %1936 = vmatprep.subr.mxu0 0.0
  %1937 = vmatpush1.msra.mxu0 0.0
  %1938 = vmatprep.subr.mxu0 0.0
  %1939 = vmatpush1.msra.mxu0 0.0
  %1940 = vmatprep.subr.mxu0 0.0
  %1941 = vmatpush1.msra.mxu0 0.0
  %1942 = vmatprep.subr.mxu0 0.0
  %1943 = vmatpush1.msra.mxu0 0.0
  %1944 = vmatprep.subr.mxu0 0.0
  %1945 = vmatpush1.msra.mxu0 0.0
  %1946 = vmatprep.subr.mxu0 0.0
  %1947 = vmatpush1.msra.mxu0 0.0
  %1948 = vmatprep.subr.mxu0 0.0
  %1949 = vmatpush1.msra.mxu0 0.0
  %1950 = vmatprep.subr.mxu0 0.0
  %1951 = vmatpush1.msra.mxu0 0.0
  %1952 = vmatprep.subr.mxu0 0.0
  %1953 = vmatpush1.msra.mxu0 0.0
  %1954 = vmatprep.subr.mxu0 0.0
  %1955 = vmatpush1.msra.mxu0 0.0
  %1956 = vmatprep.subr.mxu0 0.0
  %1957 = vmatpush1.msra.mxu0 0.0
  %1958 = vmatprep.subr.mxu0 0.0
  %1959 = vmatpush1.msra.mxu0 0.0
  %1960 = vmatprep.subr.mxu0 0.0
  %1961 = vmatpush1.msra.mxu0 0.0
  %1962 = vmatprep.subr.mxu0 0.0
  %1963 = vmatpush1.msra.mxu0 0.0
  %1964 = vmatprep.subr.mxu0 0.0
  %1965 = vmatpush1.msra.mxu0 0.0
  %1966 = vmatprep.subr.mxu0 0.0
  %1967 = vmatpush1.msra.mxu0 0.0
  %1968 = vmatprep.subr.mxu0 0.0
  %1969 = vmatpush1.msra.mxu0 0.0
  %1970 = vmatprep.subr.mxu0 0.0
  %1971 = vmatpush1.msra.mxu0 0.0
  %1972 = vmatprep.subr.mxu0 0.0
  %1973 = vmatpush1.msra.mxu0 0.0
  %1974 = vmatprep.subr.mxu0 0.0
  %1975 = vmatpush1.msra.mxu0 0.0
  %1976 = vmatprep.subr.mxu0 0.0
  %1977 = vmatpush1.msra.mxu0 0.0
  %1978 = vmatprep.subr.mxu0 0.0
  %1979 = vmatpush1.msra.mxu0 0.0
  %1980 = vmatprep.subr.mxu0 0.0
  %1981 = vmatpush1.msra.mxu0 0.0
  %1982 = vmatprep.subr.mxu0 0.0
  %1983 = vmatpush1.msra.mxu0 0.0
  %1984 = vmatprep.subr.mxu0 0.0
  %1985 = vmatpush1.msra.mxu0 0.0
  %1986 = vmatprep.subr.mxu0 0.0
  %1987 = vmatpush1.msra.mxu0 0.0
  %1988 = vmatprep.subr.mxu0 0.0
  %1989 = vmatpush1.msra.mxu0 0.0
  %1990 = vmatprep.mubr.f32.mxu0 0.0
  %1991 = vmatmul.mubr.f32.gmra.mrb[0].mxu0 %v1924
  %v1992 = vpop.f32.mrb[0].mxu0
  %v1993 = vadd.f32 0.0, %v1992
  %v1994 = vpop.f32.mrb[0].mxu0
  %1995 = vdwg.mxu0
  %v1996 = vadd.f32 %v1920, %v1993
  %v1998 = vsel %vm1688, %v1775, 0
  %2000 = vmatprep.subr.mxu0 0.0
  %2001 = vmatpush1.msra.mxu0 %v1528
  %2002 = vmatprep.subr.mxu0 0.0
  %2003 = vmatpush1.msra.mxu0 0.0
  %2004 = vmatprep.subr.mxu0 0.0
  %2005 = vmatpush1.msra.mxu0 0.0
  %2006 = vmatprep.subr.mxu0 0.0
  %2007 = vmatpush1.msra.mxu0 0.0
  %2008 = vmatprep.subr.mxu0 0.0
  %2009 = vmatpush1.msra.mxu0 0.0
  %2010 = vmatprep.subr.mxu0 0.0
  %2011 = vmatpush1.msra.mxu0 0.0
  %2012 = vmatprep.subr.mxu0 0.0
  %2013 = vmatpush1.msra.mxu0 0.0
  %2014 = vmatprep.subr.mxu0 0.0
  %2015 = vmatpush1.msra.mxu0 0.0
  %2016 = vmatprep.subr.mxu0 0.0
  %2017 = vmatpush1.msra.mxu0 0.0
  %2018 = vmatprep.subr.mxu0 0.0
  %2019 = vmatpush1.msra.mxu0 0.0
  %2020 = vmatprep.subr.mxu0 0.0
  %2021 = vmatpush1.msra.mxu0 0.0
  %2022 = vmatprep.subr.mxu0 0.0
  %2023 = vmatpush1.msra.mxu0 0.0
  %2024 = vmatprep.subr.mxu0 0.0
  %2025 = vmatpush1.msra.mxu0 0.0
  %2026 = vmatprep.subr.mxu0 0.0
  %2027 = vmatpush1.msra.mxu0 0.0
  %2028 = vmatprep.subr.mxu0 0.0
  %2029 = vmatpush1.msra.mxu0 0.0
  %2030 = vmatprep.subr.mxu0 0.0
  %2031 = vmatpush1.msra.mxu0 0.0
  %2032 = vmatprep.subr.mxu0 0.0
  %2033 = vmatpush1.msra.mxu0 0.0
  %2034 = vmatprep.subr.mxu0 0.0
  %2035 = vmatpush1.msra.mxu0 0.0
  %2036 = vmatprep.subr.mxu0 0.0
  %2037 = vmatpush1.msra.mxu0 0.0
  %2038 = vmatprep.subr.mxu0 0.0
  %2039 = vmatpush1.msra.mxu0 0.0
  %2040 = vmatprep.subr.mxu0 0.0
  %2041 = vmatpush1.msra.mxu0 0.0
  %2042 = vmatprep.subr.mxu0 0.0
  %2043 = vmatpush1.msra.mxu0 0.0
  %2044 = vmatprep.subr.mxu0 0.0
  %2045 = vmatpush1.msra.mxu0 0.0
  %2046 = vmatprep.subr.mxu0 0.0
  %2047 = vmatpush1.msra.mxu0 0.0
  %2048 = vmatprep.subr.mxu0 0.0
  %2049 = vmatpush1.msra.mxu0 0.0
  %2050 = vmatprep.subr.mxu0 0.0
  %2051 = vmatpush1.msra.mxu0 0.0
  %2052 = vmatprep.subr.mxu0 0.0
  %2053 = vmatpush1.msra.mxu0 0.0
  %2054 = vmatprep.subr.mxu0 0.0
  %2055 = vmatpush1.msra.mxu0 0.0
  %2056 = vmatprep.subr.mxu0 0.0
  %2057 = vmatpush1.msra.mxu0 0.0
  %2058 = vmatprep.subr.mxu0 0.0
  %2059 = vmatpush1.msra.mxu0 0.0
  %2060 = vmatprep.subr.mxu0 0.0
  %2061 = vmatpush1.msra.mxu0 0.0
  %2062 = vmatprep.subr.mxu0 0.0
  %2063 = vmatpush1.msra.mxu0 0.0
  %2064 = vmatprep.mubr.f32.mxu0 0.0
  %2065 = vmatmul.mubr.f32.gmra.mrb[0].mxu0 %v1998
  %v2066 = vpop.f32.mrb[0].mxu0
  %v2067 = vadd.f32 0.0, %v2066
  %v2068 = vpop.f32.mrb[0].mxu0
  %2069 = vdwg.mxu0
  %v2070 = vadd.f32 %v1996, %v2067
  %v2072 = vsel %vm1688, %v1772, 0
  %2074 = vmatprep.subr.mxu0 0.0
  %2075 = vmatpush1.msra.mxu0 %v711
  %2076 = vmatprep.subr.mxu0 0.0
  %2077 = vmatpush1.msra.mxu0 0.0
  %2078 = vmatprep.subr.mxu0 0.0
  %2079 = vmatpush1.msra.mxu0 0.0
  %2080 = vmatprep.subr.mxu0 0.0
  %2081 = vmatpush1.msra.mxu0 0.0
  %2082 = vmatprep.subr.mxu0 0.0
  %2083 = vmatpush1.msra.mxu0 0.0
  %2084 = vmatprep.subr.mxu0 0.0
  %2085 = vmatpush1.msra.mxu0 0.0
  %2086 = vmatprep.subr.mxu0 0.0
  %2087 = vmatpush1.msra.mxu0 0.0
  %2088 = vmatprep.subr.mxu0 0.0
  %2089 = vmatpush1.msra.mxu0 0.0
  %2090 = vmatprep.subr.mxu0 0.0
  %2091 = vmatpush1.msra.mxu0 0.0
  %2092 = vmatprep.subr.mxu0 0.0
  %2093 = vmatpush1.msra.mxu0 0.0
  %2094 = vmatprep.subr.mxu0 0.0
  %2095 = vmatpush1.msra.mxu0 0.0
  %2096 = vmatprep.subr.mxu0 0.0
  %2097 = vmatpush1.msra.mxu0 0.0
  %2098 = vmatprep.subr.mxu0 0.0
  %2099 = vmatpush1.msra.mxu0 0.0
  %2100 = vmatprep.subr.mxu0 0.0
  %2101 = vmatpush1.msra.mxu0 0.0
  %2102 = vmatprep.subr.mxu0 0.0
  %2103 = vmatpush1.msra.mxu0 0.0
  %2104 = vmatprep.subr.mxu0 0.0
  %2105 = vmatpush1.msra.mxu0 0.0
  %2106 = vmatprep.subr.mxu0 0.0
  %2107 = vmatpush1.msra.mxu0 0.0
  %2108 = vmatprep.subr.mxu0 0.0
  %2109 = vmatpush1.msra.mxu0 0.0
  %2110 = vmatprep.subr.mxu0 0.0
  %2111 = vmatpush1.msra.mxu0 0.0
  %2112 = vmatprep.subr.mxu0 0.0
  %2113 = vmatpush1.msra.mxu0 0.0
  %2114 = vmatprep.subr.mxu0 0.0
  %2115 = vmatpush1.msra.mxu0 0.0
  %2116 = vmatprep.subr.mxu0 0.0
  %2117 = vmatpush1.msra.mxu0 0.0
  %2118 = vmatprep.subr.mxu0 0.0
  %2119 = vmatpush1.msra.mxu0 0.0
  %2120 = vmatprep.subr.mxu0 0.0
  %2121 = vmatpush1.msra.mxu0 0.0
  %2122 = vmatprep.subr.mxu0 0.0
  %2123 = vmatpush1.msra.mxu0 0.0
  %2124 = vmatprep.subr.mxu0 0.0
  %2125 = vmatpush1.msra.mxu0 0.0
  %2126 = vmatprep.subr.mxu0 0.0
  %2127 = vmatpush1.msra.mxu0 0.0
  %2128 = vmatprep.subr.mxu0 0.0
  %2129 = vmatpush1.msra.mxu0 0.0
  %2130 = vmatprep.subr.mxu0 0.0
  %2131 = vmatpush1.msra.mxu0 0.0
  %2132 = vmatprep.subr.mxu0 0.0
  %2133 = vmatpush1.msra.mxu0 0.0
  %2134 = vmatprep.subr.mxu0 0.0
  %2135 = vmatpush1.msra.mxu0 0.0
  %2136 = vmatprep.subr.mxu0 0.0
  %2137 = vmatpush1.msra.mxu0 0.0
  %2138 = vmatprep.mubr.f32.mxu0 0.0
  %2139 = vmatmul.mubr.f32.gmra.mrb[0].mxu0 %v2072
  %v2140 = vpop.f32.mrb[0].mxu0
  %v2141 = vadd.f32 0.0, %v2140
  %v2142 = vpop.f32.mrb[0].mxu0
  %2143 = vdwg.mxu0
  %v2145 = vsel %vm1688, %v1770, 0
  %2147 = vmatprep.subr.mxu0 0.0
  %2148 = vmatpush1.msra.mxu0 %v300
  %2149 = vmatprep.subr.mxu0 0.0
  %2150 = vmatpush1.msra.mxu0 0.0
  %2151 = vmatprep.subr.mxu0 0.0
  %2152 = vmatpush1.msra.mxu0 0.0
  %2153 = vmatprep.subr.mxu0 0.0
  %2154 = vmatpush1.msra.mxu0 0.0
  %2155 = vmatprep.subr.mxu0 0.0
  %2156 = vmatpush1.msra.mxu0 0.0
  %2157 = vmatprep.subr.mxu0 0.0
  %2158 = vmatpush1.msra.mxu0 0.0
  %2159 = vmatprep.subr.mxu0 0.0
  %2160 = vmatpush1.msra.mxu0 0.0
  %2161 = vmatprep.subr.mxu0 0.0
  %2162 = vmatpush1.msra.mxu0 0.0
  %2163 = vmatprep.subr.mxu0 0.0
  %2164 = vmatpush1.msra.mxu0 0.0
  %2165 = vmatprep.subr.mxu0 0.0
  %2166 = vmatpush1.msra.mxu0 0.0
  %2167 = vmatprep.subr.mxu0 0.0
  %2168 = vmatpush1.msra.mxu0 0.0
  %2169 = vmatprep.subr.mxu0 0.0
  %2170 = vmatpush1.msra.mxu0 0.0
  %2171 = vmatprep.subr.mxu0 0.0
  %2172 = vmatpush1.msra.mxu0 0.0
  %2173 = vmatprep.subr.mxu0 0.0
  %2174 = vmatpush1.msra.mxu0 0.0
  %2175 = vmatprep.subr.mxu0 0.0
  %2176 = vmatpush1.msra.mxu0 0.0
  %2177 = vmatprep.subr.mxu0 0.0
  %2178 = vmatpush1.msra.mxu0 0.0
  %2179 = vmatprep.subr.mxu0 0.0
  %2180 = vmatpush1.msra.mxu0 0.0
  %2181 = vmatprep.subr.mxu0 0.0
  %2182 = vmatpush1.msra.mxu0 0.0
  %2183 = vmatprep.subr.mxu0 0.0
  %2184 = vmatpush1.msra.mxu0 0.0
  %2185 = vmatprep.subr.mxu0 0.0
  %2186 = vmatpush1.msra.mxu0 0.0
  %2187 = vmatprep.subr.mxu0 0.0
  %2188 = vmatpush1.msra.mxu0 0.0
  %2189 = vmatprep.subr.mxu0 0.0
  %2190 = vmatpush1.msra.mxu0 0.0
  %2191 = vmatprep.subr.mxu0 0.0
  %2192 = vmatpush1.msra.mxu0 0.0
  %2193 = vmatprep.subr.mxu0 0.0
  %2194 = vmatpush1.msra.mxu0 0.0
  %2195 = vmatprep.subr.mxu0 0.0
  %2196 = vmatpush1.msra.mxu0 0.0
  %2197 = vmatprep.subr.mxu0 0.0
  %2198 = vmatpush1.msra.mxu0 0.0
  %2199 = vmatprep.subr.mxu0 0.0
  %2200 = vmatpush1.msra.mxu0 0.0
  %2201 = vmatprep.subr.mxu0 0.0
  %2202 = vmatpush1.msra.mxu0 0.0
  %2203 = vmatprep.subr.mxu0 0.0
  %2204 = vmatpush1.msra.mxu0 0.0
  %2205 = vmatprep.subr.mxu0 0.0
  %2206 = vmatpush1.msra.mxu0 0.0
  %2207 = vmatprep.subr.mxu0 0.0
  %2208 = vmatpush1.msra.mxu0 0.0
  %2209 = vmatprep.subr.mxu0 0.0
  %2210 = vmatpush1.msra.mxu0 0.0
  %2211 = vmatprep.mubr.f32.mxu0 0.0
  %2212 = vmatmul.mubr.f32.gmra.mrb[0].mxu0 %v2145
  %v2213 = vpop.f32.mrb[0].mxu0
  %v2214 = vadd.f32 %v2141, %v2213
  %v2215 = vpop.f32.mrb[0].mxu0
  %2216 = vdwg.mxu0
  %v2218 = vsel %vm1688, %v1774, 0
  %2220 = vmatprep.subr.mxu0 0.0
  %2221 = vmatpush1.msra.mxu0 %v1122
  %2222 = vmatprep.subr.mxu0 0.0
  %2223 = vmatpush1.msra.mxu0 0.0
  %2224 = vmatprep.subr.mxu0 0.0
  %2225 = vmatpush1.msra.mxu0 0.0
  %2226 = vmatprep.subr.mxu0 0.0
  %2227 = vmatpush1.msra.mxu0 0.0
  %2228 = vmatprep.subr.mxu0 0.0
  %2229 = vmatpush1.msra.mxu0 0.0
  %2230 = vmatprep.subr.mxu0 0.0
  %2231 = vmatpush1.msra.mxu0 0.0
  %2232 = vmatprep.subr.mxu0 0.0
  %2233 = vmatpush1.msra.mxu0 0.0
  %2234 = vmatprep.subr.mxu0 0.0
  %2235 = vmatpush1.msra.mxu0 0.0
  %2236 = vmatprep.subr.mxu0 0.0
  %2237 = vmatpush1.msra.mxu0 0.0
  %2238 = vmatprep.subr.mxu0 0.0
  %2239 = vmatpush1.msra.mxu0 0.0
  %2240 = vmatprep.subr.mxu0 0.0
  %2241 = vmatpush1.msra.mxu0 0.0
  %2242 = vmatprep.subr.mxu0 0.0
  %2243 = vmatpush1.msra.mxu0 0.0
  %2244 = vmatprep.subr.mxu0 0.0
  %2245 = vmatpush1.msra.mxu0 0.0
  %2246 = vmatprep.subr.mxu0 0.0
  %2247 = vmatpush1.msra.mxu0 0.0
  %2248 = vmatprep.subr.mxu0 0.0
  %2249 = vmatpush1.msra.mxu0 0.0
  %2250 = vmatprep.subr.mxu0 0.0
  %2251 = vmatpush1.msra.mxu0 0.0
  %2252 = vmatprep.subr.mxu0 0.0
  %2253 = vmatpush1.msra.mxu0 0.0
  %2254 = vmatprep.subr.mxu0 0.0
  %2255 = vmatpush1.msra.mxu0 0.0
  %2256 = vmatprep.subr.mxu0 0.0
  %2257 = vmatpush1.msra.mxu0 0.0
  %2258 = vmatprep.subr.mxu0 0.0
  %2259 = vmatpush1.msra.mxu0 0.0
  %2260 = vmatprep.subr.mxu0 0.0
  %2261 = vmatpush1.msra.mxu0 0.0
  %2262 = vmatprep.subr.mxu0 0.0
  %2263 = vmatpush1.msra.mxu0 0.0
  %2264 = vmatprep.subr.mxu0 0.0
  %2265 = vmatpush1.msra.mxu0 0.0
  %2266 = vmatprep.subr.mxu0 0.0
  %2267 = vmatpush1.msra.mxu0 0.0
  %2268 = vmatprep.subr.mxu0 0.0
  %2269 = vmatpush1.msra.mxu0 0.0
  %2270 = vmatprep.subr.mxu0 0.0
  %2271 = vmatpush1.msra.mxu0 0.0
  %2272 = vmatprep.subr.mxu0 0.0
  %2273 = vmatpush1.msra.mxu0 0.0
  %2274 = vmatprep.subr.mxu0 0.0
  %2275 = vmatpush1.msra.mxu0 0.0
  %2276 = vmatprep.subr.mxu0 0.0
  %2277 = vmatpush1.msra.mxu0 0.0
  %2278 = vmatprep.subr.mxu0 0.0
  %2279 = vmatpush1.msra.mxu0 0.0
  %2280 = vmatprep.subr.mxu0 0.0
  %2281 = vmatpush1.msra.mxu0 0.0
  %2282 = vmatprep.subr.mxu0 0.0
  %2283 = vmatpush1.msra.mxu0 0.0
  %2284 = vmatprep.mubr.f32.mxu0 0.0
  %2285 = vmatmul.mubr.f32.gmra.mrb[0].mxu0 %v2218
  %v2286 = vpop.f32.mrb[0].mxu0
  %v2287 = vadd.f32 0.0, %v2286
  %v2288 = vpop.f32.mrb[0].mxu0
  %2289 = vdwg.mxu0
  %v2290 = vadd.f32 %v2214, %v2287
  %v2292 = vsel %vm1688, %v1776, 0
  %2294 = vmatprep.subr.mxu0 0.0
  %2295 = vmatpush1.msra.mxu0 %v1533
  %2296 = vmatprep.subr.mxu0 0.0
  %2297 = vmatpush1.msra.mxu0 0.0
  %2298 = vmatprep.subr.mxu0 0.0
  %2299 = vmatpush1.msra.mxu0 0.0
  %2300 = vmatprep.subr.mxu0 0.0
  %2301 = vmatpush1.msra.mxu0 0.0
  %2302 = vmatprep.subr.mxu0 0.0
  %2303 = vmatpush1.msra.mxu0 0.0
  %2304 = vmatprep.subr.mxu0 0.0
  %2305 = vmatpush1.msra.mxu0 0.0
  %2306 = vmatprep.subr.mxu0 0.0
  %2307 = vmatpush1.msra.mxu0 0.0
  %2308 = vmatprep.subr.mxu0 0.0
  %2309 = vmatpush1.msra.mxu0 0.0
  %2310 = vmatprep.subr.mxu0 0.0
  %2311 = vmatpush1.msra.mxu0 0.0
  %2312 = vmatprep.subr.mxu0 0.0
  %2313 = vmatpush1.msra.mxu0 0.0
  %2314 = vmatprep.subr.mxu0 0.0
  %2315 = vmatpush1.msra.mxu0 0.0
  %2316 = vmatprep.subr.mxu0 0.0
  %2317 = vmatpush1.msra.mxu0 0.0
  %2318 = vmatprep.subr.mxu0 0.0
  %2319 = vmatpush1.msra.mxu0 0.0
  %2320 = vmatprep.subr.mxu0 0.0
  %2321 = vmatpush1.msra.mxu0 0.0
  %2322 = vmatprep.subr.mxu0 0.0
  %2323 = vmatpush1.msra.mxu0 0.0
  %2324 = vmatprep.subr.mxu0 0.0
  %2325 = vmatpush1.msra.mxu0 0.0
  %2326 = vmatprep.subr.mxu0 0.0
  %2327 = vmatpush1.msra.mxu0 0.0
  %2328 = vmatprep.subr.mxu0 0.0
  %2329 = vmatpush1.msra.mxu0 0.0
  %2330 = vmatprep.subr.mxu0 0.0
  %2331 = vmatpush1.msra.mxu0 0.0
  %2332 = vmatprep.subr.mxu0 0.0
  %2333 = vmatpush1.msra.mxu0 0.0
  %2334 = vmatprep.subr.mxu0 0.0
  %2335 = vmatpush1.msra.mxu0 0.0
  %2336 = vmatprep.subr.mxu0 0.0
  %2337 = vmatpush1.msra.mxu0 0.0
  %2338 = vmatprep.subr.mxu0 0.0
  %2339 = vmatpush1.msra.mxu0 0.0
  %2340 = vmatprep.subr.mxu0 0.0
  %2341 = vmatpush1.msra.mxu0 0.0
  %2342 = vmatprep.subr.mxu0 0.0
  %2343 = vmatpush1.msra.mxu0 0.0
  %2344 = vmatprep.subr.mxu0 0.0
  %2345 = vmatpush1.msra.mxu0 0.0
  %2346 = vmatprep.subr.mxu0 0.0
  %2347 = vmatpush1.msra.mxu0 0.0
  %2348 = vmatprep.subr.mxu0 0.0
  %2349 = vmatpush1.msra.mxu0 0.0
  %2350 = vmatprep.subr.mxu0 0.0
  %2351 = vmatpush1.msra.mxu0 0.0
  %2352 = vmatprep.subr.mxu0 0.0
  %2353 = vmatpush1.msra.mxu0 0.0
  %2354 = vmatprep.subr.mxu0 0.0
  %2355 = vmatpush1.msra.mxu0 0.0
  %2356 = vmatprep.subr.mxu0 0.0
  %2357 = vmatpush1.msra.mxu0 0.0
  %2358 = vmatprep.mubr.f32.mxu0 0.0
  %2359 = vmatmul.mubr.f32.gmra.mrb[0].mxu0 %v2292
  %v2360 = vpop.f32.mrb[0].mxu0
  %v2361 = vadd.f32 0.0, %v2360
  %v2362 = vpop.f32.mrb[0].mxu0
  %2363 = vdwg.mxu0
  %v2364 = vadd.f32 %v2290, %v2361
  %v2365 = vld [vmem:[%s3 + $0x8] sm:$0x1]
  %v2366 = vlaneseq
  %v2367 = vshrl.u32 %v2366, 7
  %v2368 = vsub.s32 0, %v2367
  %v2369 = vrot.slane %v2365, %v2368
  %v2370 = vadd.f32 %v2070, %v2369
  %v2371 = vadd.f32 %v2364, %v2369
  %v2372 = vadd.f32 %v35, %v2370
  %v2373 = vadd.f32 %v36, %v2371
  %v2374 = vsel %vm66, %v2372, 0.0
  %2375 = vadd.xlane.f32.xlu0 %v2374
  %v2376 = vpop.xlane.xlu0 %2375
  %v2377 = vsel %vm66, %v2373, 0.0
  %2378 = vadd.xlane.f32.xlu0 %v2377
  %v2379 = vpop.xlane.xlu0 %2378
  %v2380 = vrcp.pop 64.0
  %v2381 = vmul.f32 %v2376, %v2380
  %v2382 = vmul.f32 %v2379, %v2380
  %v2383 = vsub.f32 %v2372, %v2381
  %v2384 = vsub.f32 %v2373, %v2382
  %v2385 = vmul.f32 %v2383, %v2383
  %v2386 = vmul.f32 %v2384, %v2384
  %v2387 = vsel %vm66, %v2385, 0.0
  %2388 = vadd.xlane.f32.xlu0 %v2387
  %v2389 = vpop.xlane.xlu0 %2388
  %v2390 = vsel %vm66, %v2386, 0.0
  %2391 = vadd.xlane.f32.xlu0 %v2390
  %v2392 = vpop.xlane.xlu0 %2391
  %v2393 = vmul.f32 %v2389, %v2380
  %v2394 = vmul.f32 %v2392, %v2380
  %v2395 = vadd.f32 %v2393, 1e-05
  %v2396 = vadd.f32 %v2394, 1e-05
  %v2397 = vrsqrt.pop %v2395
  %v2398 = vrsqrt.pop %v2396
  %v2399 = vmul.f32 %v2383, %v2397
  %v2400 = vmul.f32 %v2384, %v2398
  %v2401 = vld [vmem:[%s3 + $0x9] sm:$0x1]
  %v2402 = vlaneseq
  %v2403 = vshrl.u32 %v2402, 7
  %v2404 = vsub.s32 0, %v2403
  %v2405 = vrot.slane %v2401, %v2404
  %v2406 = vmul.f32 %v2399, %v2405
  %v2407 = vmul.f32 %v2400, %v2405
  %v2408 = vld [vmem:[%s3 + $0xa] sm:$0x1]
  %v2409 = vlaneseq
  %v2410 = vshrl.u32 %v2409, 7
  %v2411 = vsub.s32 0, %v2410
  %v2412 = vrot.slane %v2408, %v2411
  %v2413 = vadd.f32 %v2406, %v2412
  %v2414 = vadd.f32 %v2407, %v2412
  %v2415 = vld [vmem:[%s2] sm:$0xff]
  %v2416 = vld [vmem:[%s2 + $0x8] sm:$0xff]
  %v2417 = vld [vmem:[%s2 + $0x10] sm:$0xff]
  %v2418 = vld [vmem:[%s2 + $0x18] sm:$0xff]
  %v2419 = vld [vmem:[%s2 + $0x20] sm:$0xff]
  %v2420 = vld [vmem:[%s2 + $0x28] sm:$0xff]
  %v2421 = vld [vmem:[%s2 + $0x30] sm:$0xff]
  %v2422 = vld [vmem:[%s2 + $0x38] sm:$0xff]
  %v2423 = vld [vmem:[%s3 + $0xb] sm:$0x1]
  %v2424 = vlaneseq
  %v2425 = vshrl.u32 %v2424, 7
  %v2426 = vsub.s32 0, %v2425
  %v2427 = vrot.slane %v2423, %v2426
  %v2429 = vsel %vm66, %v2413, 0
  %v2432 = vsel %vm66, %v2414, 0
  %2434 = vmatprep.subr.mxu0 0.0
  %2435 = vmatpush1.msra.mxu0 %v2415
  %2436 = vmatprep.subr.mxu0 0.0
  %2437 = vmatpush1.msra.mxu0 %v2416
  %2438 = vmatprep.subr.mxu0 0.0
  %2439 = vmatpush1.msra.mxu0 %v2417
  %2440 = vmatprep.subr.mxu0 0.0
  %2441 = vmatpush1.msra.mxu0 %v2418
  %2442 = vmatprep.subr.mxu0 0.0
  %2443 = vmatpush1.msra.mxu0 %v2419
  %2444 = vmatprep.subr.mxu0 0.0
  %2445 = vmatpush1.msra.mxu0 %v2420
  %2446 = vmatprep.subr.mxu0 0.0
  %2447 = vmatpush1.msra.mxu0 %v2421
  %2448 = vmatprep.subr.mxu0 0.0
  %2449 = vmatpush1.msra.mxu0 %v2422
  %2450 = vmatprep.subr.mxu0 0.0
  %2451 = vmatpush1.msra.mxu0 0.0
  %2452 = vmatprep.subr.mxu0 0.0
  %2453 = vmatpush1.msra.mxu0 0.0
  %2454 = vmatprep.subr.mxu0 0.0
  %2455 = vmatpush1.msra.mxu0 0.0
  %2456 = vmatprep.subr.mxu0 0.0
  %2457 = vmatpush1.msra.mxu0 0.0
  %2458 = vmatprep.subr.mxu0 0.0
  %2459 = vmatpush1.msra.mxu0 0.0
  %2460 = vmatprep.subr.mxu0 0.0
  %2461 = vmatpush1.msra.mxu0 0.0
  %2462 = vmatprep.subr.mxu0 0.0
  %2463 = vmatpush1.msra.mxu0 0.0
  %2464 = vmatprep.subr.mxu0 0.0
  %2465 = vmatpush1.msra.mxu0 0.0
  %2466 = vmatprep.subr.mxu0 0.0
  %2467 = vmatpush1.msra.mxu0 0.0
  %2468 = vmatprep.subr.mxu0 0.0
  %2469 = vmatpush1.msra.mxu0 0.0
  %2470 = vmatprep.subr.mxu0 0.0
  %2471 = vmatpush1.msra.mxu0 0.0
  %2472 = vmatprep.subr.mxu0 0.0
  %2473 = vmatpush1.msra.mxu0 0.0
  %2474 = vmatprep.subr.mxu0 0.0
  %2475 = vmatpush1.msra.mxu0 0.0
  %2476 = vmatprep.subr.mxu0 0.0
  %2477 = vmatpush1.msra.mxu0 0.0
  %2478 = vmatprep.subr.mxu0 0.0
  %2479 = vmatpush1.msra.mxu0 0.0
  %2480 = vmatprep.subr.mxu0 0.0
  %2481 = vmatpush1.msra.mxu0 0.0
  %2482 = vmatprep.subr.mxu0 0.0
  %2483 = vmatpush1.msra.mxu0 0.0
  %2484 = vmatprep.subr.mxu0 0.0
  %2485 = vmatpush1.msra.mxu0 0.0
  %2486 = vmatprep.subr.mxu0 0.0
  %2487 = vmatpush1.msra.mxu0 0.0
  %2488 = vmatprep.subr.mxu0 0.0
  %2489 = vmatpush1.msra.mxu0 0.0
  %2490 = vmatprep.subr.mxu0 0.0
  %2491 = vmatpush1.msra.mxu0 0.0
  %2492 = vmatprep.subr.mxu0 0.0
  %2493 = vmatpush1.msra.mxu0 0.0
  %2494 = vmatprep.subr.mxu0 0.0
  %2495 = vmatpush1.msra.mxu0 0.0
  %2496 = vmatprep.subr.mxu0 0.0
  %2497 = vmatpush1.msra.mxu0 0.0
  %2498 = vmatprep.mubr.f32.mxu0 0.0
  %2499 = vmatmul.mubr.f32.gmra.mrb[0].mxu0 %v2429
  %v2500 = vpop.f32.mrb[0].mxu0
  %v2501 = vadd.f32 %v2427, %v2500
  %v2502 = vpop.f32.mrb[0].mxu0
  %2503 = vmatprep.mubr.f32.mxu0 0.0
  %2504 = vmatmul.mubr.f32.gmra.mrb[0].mxu0 %v2432
  %v2505 = vpop.f32.mrb[0].mxu0
  %v2506 = vadd.f32 %v2427, %v2505
  %v2507 = vpop.f32.mrb[0].mxu0
  %2508 = vdwg.mxu0
  %v2509 = vmul.f32 %v2501, 0.5
  %v2510 = vmul.f32 %v2506, 0.5
  %v2511 = vmul.f32 %v2501, 0.044715
  %v2512 = vmul.f32 %v2506, 0.044715
  %v2513 = vmul.f32 %v2511, %v2501
  %v2514 = vmul.f32 %v2512, %v2506
  %v2515 = vmul.f32 %v2513, %v2501
  %v2516 = vmul.f32 %v2514, %v2506
  %v2517 = vadd.f32 %v2501, %v2515
  %v2518 = vadd.f32 %v2506, %v2516
  %v2519 = vmul.f32 %v2517, 0.7978846
  %v2520 = vmul.f32 %v2518, 0.7978846
  %v2521 = vtanh.pop %v2519
  %v2522 = vtanh.pop %v2520
  %v2523 = vadd.f32 %v2521, 1.0
  %v2524 = vadd.f32 %v2522, 1.0
  %v2525 = vmul.f32 %v2509, %v2523
  %v2526 = vmul.f32 %v2510, %v2524
  %v2527 = vld [vmem:[%s2 + $0x40] sm:$0xff]
  %v2528 = vld [vmem:[%s2 + $0x48] sm:$0xff]
  %v2529 = vld [vmem:[%s2 + $0x50] sm:$0xff]
  %v2530 = vld [vmem:[%s2 + $0x58] sm:$0xff]
  %v2531 = vld [vmem:[%s2 + $0x60] sm:$0xff]
  %v2532 = vld [vmem:[%s2 + $0x68] sm:$0xff]
  %v2533 = vld [vmem:[%s2 + $0x70] sm:$0xff]
  %v2534 = vld [vmem:[%s2 + $0x78] sm:$0xff]
  %v2535 = vld [vmem:[%s2 + $0x80] sm:$0xff]
  %v2536 = vld [vmem:[%s2 + $0x88] sm:$0xff]
  %v2537 = vld [vmem:[%s2 + $0x90] sm:$0xff]
  %v2538 = vld [vmem:[%s2 + $0x98] sm:$0xff]
  %v2539 = vld [vmem:[%s2 + $0xa0] sm:$0xff]
  %v2540 = vld [vmem:[%s2 + $0xa8] sm:$0xff]
  %v2541 = vld [vmem:[%s2 + $0xb0] sm:$0xff]
  %v2542 = vld [vmem:[%s2 + $0xb8] sm:$0xff]
  %v2543 = vld [vmem:[%s3 + $0xc] sm:$0x1]
  %v2544 = vlaneseq
  %v2545 = vshrl.u32 %v2544, 7
  %v2546 = vsub.s32 0, %v2545
  %v2547 = vrot.slane %v2543, %v2546
  %2548 = vmatprep.subr.mxu0 0.0
  %2549 = vmatpush1.msra.mxu0 %v2527
  %2550 = vmatprep.subr.mxu0 0.0
  %2551 = vmatpush1.msra.mxu0 %v2528
  %2552 = vmatprep.subr.mxu0 0.0
  %2553 = vmatpush1.msra.mxu0 %v2529
  %2554 = vmatprep.subr.mxu0 0.0
  %2555 = vmatpush1.msra.mxu0 %v2530
  %2556 = vmatprep.subr.mxu0 0.0
  %2557 = vmatpush1.msra.mxu0 %v2531
  %2558 = vmatprep.subr.mxu0 0.0
  %2559 = vmatpush1.msra.mxu0 %v2532
  %2560 = vmatprep.subr.mxu0 0.0
  %2561 = vmatpush1.msra.mxu0 %v2533
  %2562 = vmatprep.subr.mxu0 0.0
  %2563 = vmatpush1.msra.mxu0 %v2534
  %2564 = vmatprep.subr.mxu0 0.0
  %2565 = vmatpush1.msra.mxu0 %v2535
  %2566 = vmatprep.subr.mxu0 0.0
  %2567 = vmatpush1.msra.mxu0 %v2536
  %2568 = vmatprep.subr.mxu0 0.0
  %2569 = vmatpush1.msra.mxu0 %v2537
  %2570 = vmatprep.subr.mxu0 0.0
  %2571 = vmatpush1.msra.mxu0 %v2538
  %2572 = vmatprep.subr.mxu0 0.0
  %2573 = vmatpush1.msra.mxu0 %v2539
  %2574 = vmatprep.subr.mxu0 0.0
  %2575 = vmatpush1.msra.mxu0 %v2540
  %2576 = vmatprep.subr.mxu0 0.0
  %2577 = vmatpush1.msra.mxu0 %v2541
  %2578 = vmatprep.subr.mxu0 0.0
  %2579 = vmatpush1.msra.mxu0 %v2542
  %2580 = vmatprep.subr.mxu0 0.0
  %2581 = vmatpush1.msra.mxu0 0.0
  %2582 = vmatprep.subr.mxu0 0.0
  %2583 = vmatpush1.msra.mxu0 0.0
  %2584 = vmatprep.subr.mxu0 0.0
  %2585 = vmatpush1.msra.mxu0 0.0
  %2586 = vmatprep.subr.mxu0 0.0
  %2587 = vmatpush1.msra.mxu0 0.0
  %2588 = vmatprep.subr.mxu0 0.0
  %2589 = vmatpush1.msra.mxu0 0.0
  %2590 = vmatprep.subr.mxu0 0.0
  %2591 = vmatpush1.msra.mxu0 0.0
  %2592 = vmatprep.subr.mxu0 0.0
  %2593 = vmatpush1.msra.mxu0 0.0
  %2594 = vmatprep.subr.mxu0 0.0
  %2595 = vmatpush1.msra.mxu0 0.0
  %2596 = vmatprep.subr.mxu0 0.0
  %2597 = vmatpush1.msra.mxu0 0.0
  %2598 = vmatprep.subr.mxu0 0.0
  %2599 = vmatpush1.msra.mxu0 0.0
  %2600 = vmatprep.subr.mxu0 0.0
  %2601 = vmatpush1.msra.mxu0 0.0
  %2602 = vmatprep.subr.mxu0 0.0
  %2603 = vmatpush1.msra.mxu0 0.0
  %2604 = vmatprep.subr.mxu0 0.0
  %2605 = vmatpush1.msra.mxu0 0.0
  %2606 = vmatprep.subr.mxu0 0.0
  %2607 = vmatpush1.msra.mxu0 0.0
  %2608 = vmatprep.subr.mxu0 0.0
  %2609 = vmatpush1.msra.mxu0 0.0
  %2610 = vmatprep.subr.mxu0 0.0
  %2611 = vmatpush1.msra.mxu0 0.0
  %2612 = vmatprep.mubr.f32.mxu0 0.0
  %2613 = vmatmul.mubr.f32.gmra.mrb[0].mxu0 %v2525
  %v2614 = vpop.f32.mrb[0].mxu0
  %v2615 = vadd.f32 %v2547, %v2614
  %v2616 = vpop.f32.mrb[0].mxu0
  %2617 = vmatprep.mubr.f32.mxu0 0.0
  %2618 = vmatmul.mubr.f32.gmra.mrb[0].mxu0 %v2526
  %v2619 = vpop.f32.mrb[0].mxu0
  %v2620 = vadd.f32 %v2547, %v2619
  %v2621 = vpop.f32.mrb[0].mxu0
  %2622 = vdwg.mxu0
  %v2623 = vld [vmem:[%s4] sm:$0xff]
  %v2624 = vld [vmem:[%s4 + $0x8] sm:$0xff]
  %v2625 = vld [vmem:[%s4 + $0x10] sm:$0xff]
  %v2626 = vld [vmem:[%s4 + $0x18] sm:$0xff]
  %v2627 = vld [vmem:[%s4 + $0x80] sm:$0xff]
  %v2628 = vld [vmem:[%s4 + $0x88] sm:$0xff]
  %v2629 = vld [vmem:[%s4 + $0x90] sm:$0xff]
  %v2630 = vld [vmem:[%s4 + $0x98] sm:$0xff]
  %v2631 = vld [vmem:[%s4 + $0x100] sm:$0xff]
  %v2632 = vld [vmem:[%s4 + $0x108] sm:$0xff]
  %v2633 = vld [vmem:[%s4 + $0x110] sm:$0xff]
  %v2634 = vld [vmem:[%s4 + $0x118] sm:$0xff]
  %v2635 = vld [vmem:[%s6] sm:$0x1]
  %v2636 = vlaneseq
  %v2637 = vshrl.u32 %v2636, 7
  %v2638 = vsub.s32 0, %v2637
  %v2639 = vrot.slane %v2635, %v2638
  %vm2640 = vcmask 261120
  %v2642 = vsel %vm2640, %v2615, 0
  %v2645 = vsel %vm2640, %v2620, 0
  %2647 = vmatprep.subr.mxu0 0.0
  %2648 = vmatpush1.msra.mxu0 %v2623
  %2649 = vmatprep.subr.mxu0 0.0
  %2650 = vmatpush1.msra.mxu0 %v2624
  %2651 = vmatprep.subr.mxu0 0.0
  %2652 = vmatpush1.msra.mxu0 %v2625
  %2653 = vmatprep.subr.mxu0 0.0
  %2654 = vmatpush1.msra.mxu0 %v2626
  %2655 = vmatprep.subr.mxu0 0.0
  %2656 = vmatpush1.msra.mxu0 0.0
  %2657 = vmatprep.subr.mxu0 0.0
  %2658 = vmatpush1.msra.mxu0 0.0
  %2659 = vmatprep.subr.mxu0 0.0
  %2660 = vmatpush1.msra.mxu0 0.0
  %2661 = vmatprep.subr.mxu0 0.0
  %2662 = vmatpush1.msra.mxu0 0.0
  %2663 = vmatprep.subr.mxu0 0.0
  %2664 = vmatpush1.msra.mxu0 0.0
  %2665 = vmatprep.subr.mxu0 0.0
  %2666 = vmatpush1.msra.mxu0 0.0
  %2667 = vmatprep.subr.mxu0 0.0
  %2668 = vmatpush1.msra.mxu0 0.0
  %2669 = vmatprep.subr.mxu0 0.0
  %2670 = vmatpush1.msra.mxu0 0.0
  %2671 = vmatprep.subr.mxu0 0.0
  %2672 = vmatpush1.msra.mxu0 0.0
  %2673 = vmatprep.subr.mxu0 0.0
  %2674 = vmatpush1.msra.mxu0 0.0
  %2675 = vmatprep.subr.mxu0 0.0
  %2676 = vmatpush1.msra.mxu0 0.0
  %2677 = vmatprep.subr.mxu0 0.0
  %2678 = vmatpush1.msra.mxu0 0.0
  %2679 = vmatprep.subr.mxu0 0.0
  %2680 = vmatpush1.msra.mxu0 0.0
  %2681 = vmatprep.subr.mxu0 0.0
  %2682 = vmatpush1.msra.mxu0 0.0
  %2683 = vmatprep.subr.mxu0 0.0
  %2684 = vmatpush1.msra.mxu0 0.0
  %2685 = vmatprep.subr.mxu0 0.0
  %2686 = vmatpush1.msra.mxu0 0.0
  %2687 = vmatprep.subr.mxu0 0.0
  %2688 = vmatpush1.msra.mxu0 0.0
  %2689 = vmatprep.subr.mxu0 0.0
  %2690 = vmatpush1.msra.mxu0 0.0
  %2691 = vmatprep.subr.mxu0 0.0
  %2692 = vmatpush1.msra.mxu0 0.0
  %2693 = vmatprep.subr.mxu0 0.0
  %2694 = vmatpush1.msra.mxu0 0.0
  %2695 = vmatprep.subr.mxu0 0.0
  %2696 = vmatpush1.msra.mxu0 0.0
  %2697 = vmatprep.subr.mxu0 0.0
  %2698 = vmatpush1.msra.mxu0 0.0
  %2699 = vmatprep.subr.mxu0 0.0
  %2700 = vmatpush1.msra.mxu0 0.0
  %2701 = vmatprep.subr.mxu0 0.0
  %2702 = vmatpush1.msra.mxu0 0.0
  %2703 = vmatprep.subr.mxu0 0.0
  %2704 = vmatpush1.msra.mxu0 0.0
  %2705 = vmatprep.subr.mxu0 0.0
  %2706 = vmatpush1.msra.mxu0 0.0
  %2707 = vmatprep.subr.mxu0 0.0
  %2708 = vmatpush1.msra.mxu0 0.0
  %2709 = vmatprep.subr.mxu0 0.0
  %2710 = vmatpush1.msra.mxu0 0.0
  %2711 = vmatprep.mubr.f32.mxu0 0.0
  %2712 = vmatmul.mubr.f32.gmra.mrb[0].mxu0 %v2642
  %v2713 = vpop.f32.mrb[0].mxu0
  %v2714 = vadd.f32 %v2639, %v2713
  %v2715 = vpop.f32.mrb[0].mxu0
  %2716 = vmatprep.mubr.f32.mxu0 0.0
  %2717 = vmatmul.mubr.f32.gmra.mrb[0].mxu0 %v2645
  %v2718 = vpop.f32.mrb[0].mxu0
  %v2719 = vadd.f32 %v2639, %v2718
  %v2720 = vpop.f32.mrb[0].mxu0
  %2721 = vdwg.mxu0
  %2722 = vmatprep.subr.mxu0 0.0
  %2723 = vmatpush1.msra.mxu0 %v2627
  %2724 = vmatprep.subr.mxu0 0.0
  %2725 = vmatpush1.msra.mxu0 %v2628
  %2726 = vmatprep.subr.mxu0 0.0
  %2727 = vmatpush1.msra.mxu0 %v2629
  %2728 = vmatprep.subr.mxu0 0.0
  %2729 = vmatpush1.msra.mxu0 %v2630
  %2730 = vmatprep.subr.mxu0 0.0
  %2731 = vmatpush1.msra.mxu0 0.0
  %2732 = vmatprep.subr.mxu0 0.0
  %2733 = vmatpush1.msra.mxu0 0.0
  %2734 = vmatprep.subr.mxu0 0.0
  %2735 = vmatpush1.msra.mxu0 0.0
  %2736 = vmatprep.subr.mxu0 0.0
  %2737 = vmatpush1.msra.mxu0 0.0
  %2738 = vmatprep.subr.mxu0 0.0
  %2739 = vmatpush1.msra.mxu0 0.0
  %2740 = vmatprep.subr.mxu0 0.0
  %2741 = vmatpush1.msra.mxu0 0.0
  %2742 = vmatprep.subr.mxu0 0.0
  %2743 = vmatpush1.msra.mxu0 0.0
  %2744 = vmatprep.subr.mxu0 0.0
  %2745 = vmatpush1.msra.mxu0 0.0
  %2746 = vmatprep.subr.mxu0 0.0
  %2747 = vmatpush1.msra.mxu0 0.0
  %2748 = vmatprep.subr.mxu0 0.0
  %2749 = vmatpush1.msra.mxu0 0.0
  %2750 = vmatprep.subr.mxu0 0.0
  %2751 = vmatpush1.msra.mxu0 0.0
  %2752 = vmatprep.subr.mxu0 0.0
  %2753 = vmatpush1.msra.mxu0 0.0
  %2754 = vmatprep.subr.mxu0 0.0
  %2755 = vmatpush1.msra.mxu0 0.0
  %2756 = vmatprep.subr.mxu0 0.0
  %2757 = vmatpush1.msra.mxu0 0.0
  %2758 = vmatprep.subr.mxu0 0.0
  %2759 = vmatpush1.msra.mxu0 0.0
  %2760 = vmatprep.subr.mxu0 0.0
  %2761 = vmatpush1.msra.mxu0 0.0
  %2762 = vmatprep.subr.mxu0 0.0
  %2763 = vmatpush1.msra.mxu0 0.0
  %2764 = vmatprep.subr.mxu0 0.0
  %2765 = vmatpush1.msra.mxu0 0.0
  %2766 = vmatprep.subr.mxu0 0.0
  %2767 = vmatpush1.msra.mxu0 0.0
  %2768 = vmatprep.subr.mxu0 0.0
  %2769 = vmatpush1.msra.mxu0 0.0
  %2770 = vmatprep.subr.mxu0 0.0
  %2771 = vmatpush1.msra.mxu0 0.0
  %2772 = vmatprep.subr.mxu0 0.0
  %2773 = vmatpush1.msra.mxu0 0.0
  %2774 = vmatprep.subr.mxu0 0.0
  %2775 = vmatpush1.msra.mxu0 0.0
  %2776 = vmatprep.subr.mxu0 0.0
  %2777 = vmatpush1.msra.mxu0 0.0
  %2778 = vmatprep.subr.mxu0 0.0
  %2779 = vmatpush1.msra.mxu0 0.0
  %2780 = vmatprep.subr.mxu0 0.0
  %2781 = vmatpush1.msra.mxu0 0.0
  %2782 = vmatprep.subr.mxu0 0.0
  %2783 = vmatpush1.msra.mxu0 0.0
  %2784 = vmatprep.subr.mxu0 0.0
  %2785 = vmatpush1.msra.mxu0 0.0
  %2786 = vmatprep.mubr.f32.mxu0 0.0
  %2787 = vmatmul.mubr.f32.gmra.mrb[0].mxu0 %v2642
  %v2788 = vpop.f32.mrb[0].mxu0
  %v2789 = vadd.f32 0.0, %v2788
  %v2790 = vpop.f32.mrb[0].mxu0
  %2791 = vmatprep.mubr.f32.mxu0 0.0
  %2792 = vmatmul.mubr.f32.gmra.mrb[0].mxu0 %v2645
  %v2793 = vpop.f32.mrb[0].mxu0
  %v2794 = vadd.f32 0.0, %v2793
  %v2795 = vpop.f32.mrb[0].mxu0
  %2796 = vdwg.mxu0
  %v2797 = vld [vmem:[%s6 + $0x4] sm:$0x1]
  %v2798 = vlaneseq
  %v2799 = vshrl.u32 %v2798, 7
  %v2800 = vsub.s32 0, %v2799
  %v2801 = vrot.slane %v2797, %v2800
  %2802 = vmatprep.subr.mxu0 0.0
  %2803 = vmatpush1.msra.mxu0 %v2631
  %2804 = vmatprep.subr.mxu0 0.0
  %2805 = vmatpush1.msra.mxu0 %v2632
  %2806 = vmatprep.subr.mxu0 0.0
  %2807 = vmatpush1.msra.mxu0 %v2633
  %2808 = vmatprep.subr.mxu0 0.0
  %2809 = vmatpush1.msra.mxu0 %v2634
  %2810 = vmatprep.subr.mxu0 0.0
  %2811 = vmatpush1.msra.mxu0 0.0
  %2812 = vmatprep.subr.mxu0 0.0
  %2813 = vmatpush1.msra.mxu0 0.0
  %2814 = vmatprep.subr.mxu0 0.0
  %2815 = vmatpush1.msra.mxu0 0.0
  %2816 = vmatprep.subr.mxu0 0.0
  %2817 = vmatpush1.msra.mxu0 0.0
  %2818 = vmatprep.subr.mxu0 0.0
  %2819 = vmatpush1.msra.mxu0 0.0
  %2820 = vmatprep.subr.mxu0 0.0
  %2821 = vmatpush1.msra.mxu0 0.0
  %2822 = vmatprep.subr.mxu0 0.0
  %2823 = vmatpush1.msra.mxu0 0.0
  %2824 = vmatprep.subr.mxu0 0.0
  %2825 = vmatpush1.msra.mxu0 0.0
  %2826 = vmatprep.subr.mxu0 0.0
  %2827 = vmatpush1.msra.mxu0 0.0
  %2828 = vmatprep.subr.mxu0 0.0
  %2829 = vmatpush1.msra.mxu0 0.0
  %2830 = vmatprep.subr.mxu0 0.0
  %2831 = vmatpush1.msra.mxu0 0.0
  %2832 = vmatprep.subr.mxu0 0.0
  %2833 = vmatpush1.msra.mxu0 0.0
  %2834 = vmatprep.subr.mxu0 0.0
  %2835 = vmatpush1.msra.mxu0 0.0
  %2836 = vmatprep.subr.mxu0 0.0
  %2837 = vmatpush1.msra.mxu0 0.0
  %2838 = vmatprep.subr.mxu0 0.0
  %2839 = vmatpush1.msra.mxu0 0.0
  %2840 = vmatprep.subr.mxu0 0.0
  %2841 = vmatpush1.msra.mxu0 0.0
  %2842 = vmatprep.subr.mxu0 0.0
  %2843 = vmatpush1.msra.mxu0 0.0
  %2844 = vmatprep.subr.mxu0 0.0
  %2845 = vmatpush1.msra.mxu0 0.0
  %2846 = vmatprep.subr.mxu0 0.0
  %2847 = vmatpush1.msra.mxu0 0.0
  %2848 = vmatprep.subr.mxu0 0.0
  %2849 = vmatpush1.msra.mxu0 0.0
  %2850 = vmatprep.subr.mxu0 0.0
  %2851 = vmatpush1.msra.mxu0 0.0
  %2852 = vmatprep.subr.mxu0 0.0
  %2853 = vmatpush1.msra.mxu0 0.0
  %2854 = vmatprep.subr.mxu0 0.0
  %2855 = vmatpush1.msra.mxu0 0.0
  %2856 = vmatprep.subr.mxu0 0.0
  %2857 = vmatpush1.msra.mxu0 0.0
  %2858 = vmatprep.subr.mxu0 0.0
  %2859 = vmatpush1.msra.mxu0 0.0
  %2860 = vmatprep.subr.mxu0 0.0
  %2861 = vmatpush1.msra.mxu0 0.0
  %2862 = vmatprep.subr.mxu0 0.0
  %2863 = vmatpush1.msra.mxu0 0.0
  %2864 = vmatprep.subr.mxu0 0.0
  %2865 = vmatpush1.msra.mxu0 0.0
  %2866 = vmatprep.mubr.f32.mxu0 0.0
  %2867 = vmatmul.mubr.f32.gmra.mrb[0].mxu0 %v2642
  %v2868 = vpop.f32.mrb[0].mxu0
  %v2869 = vadd.f32 %v2801, %v2868
  %v2870 = vpop.f32.mrb[0].mxu0
  %2871 = vmatprep.mubr.f32.mxu0 0.0
  %2872 = vmatmul.mubr.f32.gmra.mrb[0].mxu0 %v2645
  %v2873 = vpop.f32.mrb[0].mxu0
  %v2874 = vadd.f32 %v2801, %v2873
  %v2875 = vpop.f32.mrb[0].mxu0
  %2876 = vdwg.mxu0
  %v2878 = vsel %vm2640, %v2714, 0
  %v2881 = vsel %vm2640, %v2789, 0
  %2883 = vmatprep.subr.mxu0 0.0
  %2884 = vmatpush1.xpose.msra.mxu0 %v2881
  %2885 = vmatprep.subr.mxu0 0.0
  %2886 = vmatpush1.xpose.msra.mxu0 0.0
  %2887 = vmatprep.subr.mxu0 0.0
  %2888 = vmatpush1.xpose.msra.mxu0 0.0
  %2889 = vmatprep.subr.mxu0 0.0
  %2890 = vmatpush1.xpose.msra.mxu0 0.0
  %2891 = vmatprep.subr.mxu0 0.0
  %2892 = vmatpush1.xpose.msra.mxu0 0.0
  %2893 = vmatprep.subr.mxu0 0.0
  %2894 = vmatpush1.xpose.msra.mxu0 0.0
  %2895 = vmatprep.subr.mxu0 0.0
  %2896 = vmatpush1.xpose.msra.mxu0 0.0
  %2897 = vmatprep.subr.mxu0 0.0
  %2898 = vmatpush1.xpose.msra.mxu0 0.0
  %2899 = vmatprep.subr.mxu0 0.0
  %2900 = vmatpush1.xpose.msra.mxu0 0.0
  %2901 = vmatprep.subr.mxu0 0.0
  %2902 = vmatpush1.xpose.msra.mxu0 0.0
  %2903 = vmatprep.subr.mxu0 0.0
  %2904 = vmatpush1.xpose.msra.mxu0 0.0
  %2905 = vmatprep.subr.mxu0 0.0
  %2906 = vmatpush1.xpose.msra.mxu0 0.0
  %2907 = vmatprep.subr.mxu0 0.0
  %2908 = vmatpush1.xpose.msra.mxu0 0.0
  %2909 = vmatprep.subr.mxu0 0.0
  %2910 = vmatpush1.xpose.msra.mxu0 0.0
  %2911 = vmatprep.subr.mxu0 0.0
  %2912 = vmatpush1.xpose.msra.mxu0 0.0
  %2913 = vmatprep.subr.mxu0 0.0
  %2914 = vmatpush1.xpose.msra.mxu0 0.0
  %2915 = vmatprep.subr.mxu0 0.0
  %2916 = vmatpush1.xpose.msra.mxu0 0.0
  %2917 = vmatprep.subr.mxu0 0.0
  %2918 = vmatpush1.xpose.msra.mxu0 0.0
  %2919 = vmatprep.subr.mxu0 0.0
  %2920 = vmatpush1.xpose.msra.mxu0 0.0
  %2921 = vmatprep.subr.mxu0 0.0
  %2922 = vmatpush1.xpose.msra.mxu0 0.0
  %2923 = vmatprep.subr.mxu0 0.0
  %2924 = vmatpush1.xpose.msra.mxu0 0.0
  %2925 = vmatprep.subr.mxu0 0.0
  %2926 = vmatpush1.xpose.msra.mxu0 0.0
  %2927 = vmatprep.subr.mxu0 0.0
  %2928 = vmatpush1.xpose.msra.mxu0 0.0
  %2929 = vmatprep.subr.mxu0 0.0
  %2930 = vmatpush1.xpose.msra.mxu0 0.0
  %2931 = vmatprep.subr.mxu0 0.0
  %2932 = vmatpush1.xpose.msra.mxu0 0.0
  %2933 = vmatprep.subr.mxu0 0.0
  %2934 = vmatpush1.xpose.msra.mxu0 0.0
  %2935 = vmatprep.subr.mxu0 0.0
  %2936 = vmatpush1.xpose.msra.mxu0 0.0
  %2937 = vmatprep.subr.mxu0 0.0
  %2938 = vmatpush1.xpose.msra.mxu0 0.0
  %2939 = vmatprep.subr.mxu0 0.0
  %2940 = vmatpush1.xpose.msra.mxu0 0.0
  %2941 = vmatprep.subr.mxu0 0.0
  %2942 = vmatpush1.xpose.msra.mxu0 0.0
  %2943 = vmatprep.subr.mxu0 0.0
  %2944 = vmatpush1.xpose.msra.mxu0 0.0
  %2945 = vmatprep.subr.mxu0 0.0
  %2946 = vmatpush1.xpose.msra.mxu0 0.0
  %2947 = vmatprep.mubr.f32.mxu0 0.0
  %2948 = vmatmul.mubr.f32.gmra.mrb[0].mxu0 %v2878
  %v2949 = vpop.f32.mrb[0].mxu0
  %v2950 = vadd.f32 0.0, %v2949
  %v2951 = vpop.f32.mrb[0].mxu0
  %2952 = vdwg.mxu0
  %v2954 = vsel %vm2640, %v2719, 0
  %v2957 = vsel %vm2640, %v2794, 0
  %2959 = vmatprep.subr.mxu0 0.0
  %2960 = vmatpush1.xpose.msra.mxu0 %v2957
  %2961 = vmatprep.subr.mxu0 0.0
  %2962 = vmatpush1.xpose.msra.mxu0 0.0
  %2963 = vmatprep.subr.mxu0 0.0
  %2964 = vmatpush1.xpose.msra.mxu0 0.0
  %2965 = vmatprep.subr.mxu0 0.0
  %2966 = vmatpush1.xpose.msra.mxu0 0.0
  %2967 = vmatprep.subr.mxu0 0.0
  %2968 = vmatpush1.xpose.msra.mxu0 0.0
  %2969 = vmatprep.subr.mxu0 0.0
  %2970 = vmatpush1.xpose.msra.mxu0 0.0
  %2971 = vmatprep.subr.mxu0 0.0
  %2972 = vmatpush1.xpose.msra.mxu0 0.0
  %2973 = vmatprep.subr.mxu0 0.0
  %2974 = vmatpush1.xpose.msra.mxu0 0.0
  %2975 = vmatprep.subr.mxu0 0.0
  %2976 = vmatpush1.xpose.msra.mxu0 0.0
  %2977 = vmatprep.subr.mxu0 0.0
  %2978 = vmatpush1.xpose.msra.mxu0 0.0
  %2979 = vmatprep.subr.mxu0 0.0
  %2980 = vmatpush1.xpose.msra.mxu0 0.0
  %2981 = vmatprep.subr.mxu0 0.0
  %2982 = vmatpush1.xpose.msra.mxu0 0.0
  %2983 = vmatprep.subr.mxu0 0.0
  %2984 = vmatpush1.xpose.msra.mxu0 0.0
  %2985 = vmatprep.subr.mxu0 0.0
  %2986 = vmatpush1.xpose.msra.mxu0 0.0
  %2987 = vmatprep.subr.mxu0 0.0
  %2988 = vmatpush1.xpose.msra.mxu0 0.0
  %2989 = vmatprep.subr.mxu0 0.0
  %2990 = vmatpush1.xpose.msra.mxu0 0.0
  %2991 = vmatprep.subr.mxu0 0.0
  %2992 = vmatpush1.xpose.msra.mxu0 0.0
  %2993 = vmatprep.subr.mxu0 0.0
  %2994 = vmatpush1.xpose.msra.mxu0 0.0
  %2995 = vmatprep.subr.mxu0 0.0
  %2996 = vmatpush1.xpose.msra.mxu0 0.0
  %2997 = vmatprep.subr.mxu0 0.0
  %2998 = vmatpush1.xpose.msra.mxu0 0.0
  %2999 = vmatprep.subr.mxu0 0.0
  %3000 = vmatpush1.xpose.msra.mxu0 0.0
  %3001 = vmatprep.subr.mxu0 0.0
  %3002 = vmatpush1.xpose.msra.mxu0 0.0
  %3003 = vmatprep.subr.mxu0 0.0
  %3004 = vmatpush1.xpose.msra.mxu0 0.0
  %3005 = vmatprep.subr.mxu0 0.0
  %3006 = vmatpush1.xpose.msra.mxu0 0.0
  %3007 = vmatprep.subr.mxu0 0.0
  %3008 = vmatpush1.xpose.msra.mxu0 0.0
  %3009 = vmatprep.subr.mxu0 0.0
  %3010 = vmatpush1.xpose.msra.mxu0 0.0
  %3011 = vmatprep.subr.mxu0 0.0
  %3012 = vmatpush1.xpose.msra.mxu0 0.0
  %3013 = vmatprep.subr.mxu0 0.0
  %3014 = vmatpush1.xpose.msra.mxu0 0.0
  %3015 = vmatprep.subr.mxu0 0.0
  %3016 = vmatpush1.xpose.msra.mxu0 0.0
  %3017 = vmatprep.subr.mxu0 0.0
  %3018 = vmatpush1.xpose.msra.mxu0 0.0
  %3019 = vmatprep.subr.mxu0 0.0
  %3020 = vmatpush1.xpose.msra.mxu0 0.0
  %3021 = vmatprep.subr.mxu0 0.0
  %3022 = vmatpush1.xpose.msra.mxu0 0.0
  %3023 = vmatprep.mubr.f32.mxu0 0.0
  %3024 = vmatmul.mubr.f32.gmra.mrb[0].mxu0 %v2954
  %v3025 = vpop.f32.mrb[0].mxu0
  %v3026 = vadd.f32 0.0, %v3025
  %v3027 = vpop.f32.mrb[0].mxu0
  %3028 = vdwg.mxu0
  %v3029 = vld [vmem:[%s4 + $0x20] sm:$0xff]
  %v3030 = vld [vmem:[%s4 + $0x28] sm:$0xff]
  %v3031 = vld [vmem:[%s4 + $0x30] sm:$0xff]
  %v3032 = vld [vmem:[%s4 + $0x38] sm:$0xff]
  %v3033 = vld [vmem:[%s4 + $0xa0] sm:$0xff]
  %v3034 = vld [vmem:[%s4 + $0xa8] sm:$0xff]
  %v3035 = vld [vmem:[%s4 + $0xb0] sm:$0xff]
  %v3036 = vld [vmem:[%s4 + $0xb8] sm:$0xff]
  %v3037 = vld [vmem:[%s4 + $0x120] sm:$0xff]
  %v3038 = vld [vmem:[%s4 + $0x128] sm:$0xff]
  %v3039 = vld [vmem:[%s4 + $0x130] sm:$0xff]
  %v3040 = vld [vmem:[%s4 + $0x138] sm:$0xff]
  %v3041 = vld [vmem:[%s6 + $0x1] sm:$0x1]
  %v3042 = vlaneseq
  %v3043 = vshrl.u32 %v3042, 7
  %v3044 = vsub.s32 0, %v3043
  %v3045 = vrot.slane %v3041, %v3044
  %3046 = vmatprep.subr.mxu0 0.0
  %3047 = vmatpush1.msra.mxu0 %v3029
  %3048 = vmatprep.subr.mxu0 0.0
  %3049 = vmatpush1.msra.mxu0 %v3030
  %3050 = vmatprep.subr.mxu0 0.0
  %3051 = vmatpush1.msra.mxu0 %v3031
  %3052 = vmatprep.subr.mxu0 0.0
  %3053 = vmatpush1.msra.mxu0 %v3032
  %3054 = vmatprep.subr.mxu0 0.0
  %3055 = vmatpush1.msra.mxu0 0.0
  %3056 = vmatprep.subr.mxu0 0.0
  %3057 = vmatpush1.msra.mxu0 0.0
  %3058 = vmatprep.subr.mxu0 0.0
  %3059 = vmatpush1.msra.mxu0 0.0
  %3060 = vmatprep.subr.mxu0 0.0
  %3061 = vmatpush1.msra.mxu0 0.0
  %3062 = vmatprep.subr.mxu0 0.0
  %3063 = vmatpush1.msra.mxu0 0.0
  %3064 = vmatprep.subr.mxu0 0.0
  %3065 = vmatpush1.msra.mxu0 0.0
  %3066 = vmatprep.subr.mxu0 0.0
  %3067 = vmatpush1.msra.mxu0 0.0
  %3068 = vmatprep.subr.mxu0 0.0
  %3069 = vmatpush1.msra.mxu0 0.0
  %3070 = vmatprep.subr.mxu0 0.0
  %3071 = vmatpush1.msra.mxu0 0.0
  %3072 = vmatprep.subr.mxu0 0.0
  %3073 = vmatpush1.msra.mxu0 0.0
  %3074 = vmatprep.subr.mxu0 0.0
  %3075 = vmatpush1.msra.mxu0 0.0
  %3076 = vmatprep.subr.mxu0 0.0
  %3077 = vmatpush1.msra.mxu0 0.0
  %3078 = vmatprep.subr.mxu0 0.0
  %3079 = vmatpush1.msra.mxu0 0.0
  %3080 = vmatprep.subr.mxu0 0.0
  %3081 = vmatpush1.msra.mxu0 0.0
  %3082 = vmatprep.subr.mxu0 0.0
  %3083 = vmatpush1.msra.mxu0 0.0
  %3084 = vmatprep.subr.mxu0 0.0
  %3085 = vmatpush1.msra.mxu0 0.0
  %3086 = vmatprep.subr.mxu0 0.0
  %3087 = vmatpush1.msra.mxu0 0.0
  %3088 = vmatprep.subr.mxu0 0.0
  %3089 = vmatpush1.msra.mxu0 0.0
  %3090 = vmatprep.subr.mxu0 0.0
  %3091 = vmatpush1.msra.mxu0 0.0
  %3092 = vmatprep.subr.mxu0 0.0
  %3093 = vmatpush1.msra.mxu0 0.0
  %3094 = vmatprep.subr.mxu0 0.0
  %3095 = vmatpush1.msra.mxu0 0.0
  %3096 = vmatprep.subr.mxu0 0.0
  %3097 = vmatpush1.msra.mxu0 0.0
  %3098 = vmatprep.subr.mxu0 0.0
  %3099 = vmatpush1.msra.mxu0 0.0
  %3100 = vmatprep.subr.mxu0 0.0
  %3101 = vmatpush1.msra.mxu0 0.0
  %3102 = vmatprep.subr.mxu0 0.0
  %3103 = vmatpush1.msra.mxu0 0.0
  %3104 = vmatprep.subr.mxu0 0.0
  %3105 = vmatpush1.msra.mxu0 0.0
  %3106 = vmatprep.subr.mxu0 0.0
  %3107 = vmatpush1.msra.mxu0 0.0
  %3108 = vmatprep.subr.mxu0 0.0
  %3109 = vmatpush1.msra.mxu0 0.0
  %3110 = vmatprep.mubr.f32.mxu0 0.0
  %3111 = vmatmul.mubr.f32.gmra.mrb[0].mxu0 %v2642
  %v3112 = vpop.f32.mrb[0].mxu0
  %v3113 = vadd.f32 %v3045, %v3112
  %v3114 = vpop.f32.mrb[0].mxu0
  %3115 = vmatprep.mubr.f32.mxu0 0.0
  %3116 = vmatmul.mubr.f32.gmra.mrb[0].mxu0 %v2645
  %v3117 = vpop.f32.mrb[0].mxu0
  %v3118 = vadd.f32 %v3045, %v3117
  %v3119 = vpop.f32.mrb[0].mxu0
  %3120 = vdwg.mxu0
  %3121 = vmatprep.subr.mxu0 0.0
  %3122 = vmatpush1.msra.mxu0 %v3033
  %3123 = vmatprep.subr.mxu0 0.0
  %3124 = vmatpush1.msra.mxu0 %v3034
  %3125 = vmatprep.subr.mxu0 0.0
  %3126 = vmatpush1.msra.mxu0 %v3035
  %3127 = vmatprep.subr.mxu0 0.0
  %3128 = vmatpush1.msra.mxu0 %v3036
  %3129 = vmatprep.subr.mxu0 0.0
  %3130 = vmatpush1.msra.mxu0 0.0
  %3131 = vmatprep.subr.mxu0 0.0
  %3132 = vmatpush1.msra.mxu0 0.0
  %3133 = vmatprep.subr.mxu0 0.0
  %3134 = vmatpush1.msra.mxu0 0.0
  %3135 = vmatprep.subr.mxu0 0.0
  %3136 = vmatpush1.msra.mxu0 0.0
  %3137 = vmatprep.subr.mxu0 0.0
  %3138 = vmatpush1.msra.mxu0 0.0
  %3139 = vmatprep.subr.mxu0 0.0
  %3140 = vmatpush1.msra.mxu0 0.0
  %3141 = vmatprep.subr.mxu0 0.0
  %3142 = vmatpush1.msra.mxu0 0.0
  %3143 = vmatprep.subr.mxu0 0.0
  %3144 = vmatpush1.msra.mxu0 0.0
  %3145 = vmatprep.subr.mxu0 0.0
  %3146 = vmatpush1.msra.mxu0 0.0
  %3147 = vmatprep.subr.mxu0 0.0
  %3148 = vmatpush1.msra.mxu0 0.0
  %3149 = vmatprep.subr.mxu0 0.0
  %3150 = vmatpush1.msra.mxu0 0.0
  %3151 = vmatprep.subr.mxu0 0.0
  %3152 = vmatpush1.msra.mxu0 0.0
  %3153 = vmatprep.subr.mxu0 0.0
  %3154 = vmatpush1.msra.mxu0 0.0
  %3155 = vmatprep.subr.mxu0 0.0
  %3156 = vmatpush1.msra.mxu0 0.0
  %3157 = vmatprep.subr.mxu0 0.0
  %3158 = vmatpush1.msra.mxu0 0.0
  %3159 = vmatprep.subr.mxu0 0.0
  %3160 = vmatpush1.msra.mxu0 0.0
  %3161 = vmatprep.subr.mxu0 0.0
  %3162 = vmatpush1.msra.mxu0 0.0
  %3163 = vmatprep.subr.mxu0 0.0
  %3164 = vmatpush1.msra.mxu0 0.0
  %3165 = vmatprep.subr.mxu0 0.0
  %3166 = vmatpush1.msra.mxu0 0.0
  %3167 = vmatprep.subr.mxu0 0.0
  %3168 = vmatpush1.msra.mxu0 0.0
  %3169 = vmatprep.subr.mxu0 0.0
  %3170 = vmatpush1.msra.mxu0 0.0
  %3171 = vmatprep.subr.mxu0 0.0
  %3172 = vmatpush1.msra.mxu0 0.0
  %3173 = vmatprep.subr.mxu0 0.0
  %3174 = vmatpush1.msra.mxu0 0.0
  %3175 = vmatprep.subr.mxu0 0.0
  %3176 = vmatpush1.msra.mxu0 0.0
  %3177 = vmatprep.subr.mxu0 0.0
  %3178 = vmatpush1.msra.mxu0 0.0
  %3179 = vmatprep.subr.mxu0 0.0
  %3180 = vmatpush1.msra.mxu0 0.0
  %3181 = vmatprep.subr.mxu0 0.0
  %3182 = vmatpush1.msra.mxu0 0.0
  %3183 = vmatprep.subr.mxu0 0.0
  %3184 = vmatpush1.msra.mxu0 0.0
  %3185 = vmatprep.mubr.f32.mxu0 0.0
  %3186 = vmatmul.mubr.f32.gmra.mrb[0].mxu0 %v2642
  %v3187 = vpop.f32.mrb[0].mxu0
  %v3188 = vadd.f32 0.0, %v3187
  %v3189 = vpop.f32.mrb[0].mxu0
  %3190 = vmatprep.mubr.f32.mxu0 0.0
  %3191 = vmatmul.mubr.f32.gmra.mrb[0].mxu0 %v2645
  %v3192 = vpop.f32.mrb[0].mxu0
  %v3193 = vadd.f32 0.0, %v3192
  %v3194 = vpop.f32.mrb[0].mxu0
  %3195 = vdwg.mxu0
  %v3196 = vld [vmem:[%s6 + $0x5] sm:$0x1]
  %v3197 = vlaneseq
  %v3198 = vshrl.u32 %v3197, 7
  %v3199 = vsub.s32 0, %v3198
  %v3200 = vrot.slane %v3196, %v3199
  %3201 = vmatprep.subr.mxu0 0.0
  %3202 = vmatpush1.msra.mxu0 %v3037
  %3203 = vmatprep.subr.mxu0 0.0
  %3204 = vmatpush1.msra.mxu0 %v3038
  %3205 = vmatprep.subr.mxu0 0.0
  %3206 = vmatpush1.msra.mxu0 %v3039
  %3207 = vmatprep.subr.mxu0 0.0
  %3208 = vmatpush1.msra.mxu0 %v3040
  %3209 = vmatprep.subr.mxu0 0.0
  %3210 = vmatpush1.msra.mxu0 0.0
  %3211 = vmatprep.subr.mxu0 0.0
  %3212 = vmatpush1.msra.mxu0 0.0
  %3213 = vmatprep.subr.mxu0 0.0
  %3214 = vmatpush1.msra.mxu0 0.0
  %3215 = vmatprep.subr.mxu0 0.0
  %3216 = vmatpush1.msra.mxu0 0.0
  %3217 = vmatprep.subr.mxu0 0.0
  %3218 = vmatpush1.msra.mxu0 0.0
  %3219 = vmatprep.subr.mxu0 0.0
  %3220 = vmatpush1.msra.mxu0 0.0
  %3221 = vmatprep.subr.mxu0 0.0
  %3222 = vmatpush1.msra.mxu0 0.0
  %3223 = vmatprep.subr.mxu0 0.0
  %3224 = vmatpush1.msra.mxu0 0.0
  %3225 = vmatprep.subr.mxu0 0.0
  %3226 = vmatpush1.msra.mxu0 0.0
  %3227 = vmatprep.subr.mxu0 0.0
  %3228 = vmatpush1.msra.mxu0 0.0
  %3229 = vmatprep.subr.mxu0 0.0
  %3230 = vmatpush1.msra.mxu0 0.0
  %3231 = vmatprep.subr.mxu0 0.0
  %3232 = vmatpush1.msra.mxu0 0.0
  %3233 = vmatprep.subr.mxu0 0.0
  %3234 = vmatpush1.msra.mxu0 0.0
  %3235 = vmatprep.subr.mxu0 0.0
  %3236 = vmatpush1.msra.mxu0 0.0
  %3237 = vmatprep.subr.mxu0 0.0
  %3238 = vmatpush1.msra.mxu0 0.0
  %3239 = vmatprep.subr.mxu0 0.0
  %3240 = vmatpush1.msra.mxu0 0.0
  %3241 = vmatprep.subr.mxu0 0.0
  %3242 = vmatpush1.msra.mxu0 0.0
  %3243 = vmatprep.subr.mxu0 0.0
  %3244 = vmatpush1.msra.mxu0 0.0
  %3245 = vmatprep.subr.mxu0 0.0
  %3246 = vmatpush1.msra.mxu0 0.0
  %3247 = vmatprep.subr.mxu0 0.0
  %3248 = vmatpush1.msra.mxu0 0.0
  %3249 = vmatprep.subr.mxu0 0.0
  %3250 = vmatpush1.msra.mxu0 0.0
  %3251 = vmatprep.subr.mxu0 0.0
  %3252 = vmatpush1.msra.mxu0 0.0
  %3253 = vmatprep.subr.mxu0 0.0
  %3254 = vmatpush1.msra.mxu0 0.0
  %3255 = vmatprep.subr.mxu0 0.0
  %3256 = vmatpush1.msra.mxu0 0.0
  %3257 = vmatprep.subr.mxu0 0.0
  %3258 = vmatpush1.msra.mxu0 0.0
  %3259 = vmatprep.subr.mxu0 0.0
  %3260 = vmatpush1.msra.mxu0 0.0
  %3261 = vmatprep.subr.mxu0 0.0
  %3262 = vmatpush1.msra.mxu0 0.0
  %3263 = vmatprep.subr.mxu0 0.0
  %3264 = vmatpush1.msra.mxu0 0.0
  %3265 = vmatprep.mubr.f32.mxu0 0.0
  %3266 = vmatmul.mubr.f32.gmra.mrb[0].mxu0 %v2642
  %v3267 = vpop.f32.mrb[0].mxu0
  %v3268 = vadd.f32 %v3200, %v3267
  %v3269 = vpop.f32.mrb[0].mxu0
  %3270 = vmatprep.mubr.f32.mxu0 0.0
  %3271 = vmatmul.mubr.f32.gmra.mrb[0].mxu0 %v2645
  %v3272 = vpop.f32.mrb[0].mxu0
  %v3273 = vadd.f32 %v3200, %v3272
  %v3274 = vpop.f32.mrb[0].mxu0
  %3275 = vdwg.mxu0
  %v3277 = vsel %vm2640, %v3113, 0
  %v3280 = vsel %vm2640, %v3188, 0
  %3282 = vmatprep.subr.mxu0 0.0
  %3283 = vmatpush1.xpose.msra.mxu0 %v3280
  %3284 = vmatprep.subr.mxu0 0.0
  %3285 = vmatpush1.xpose.msra.mxu0 0.0
  %3286 = vmatprep.subr.mxu0 0.0
  %3287 = vmatpush1.xpose.msra.mxu0 0.0
  %3288 = vmatprep.subr.mxu0 0.0
  %3289 = vmatpush1.xpose.msra.mxu0 0.0
  %3290 = vmatprep.subr.mxu0 0.0
  %3291 = vmatpush1.xpose.msra.mxu0 0.0
  %3292 = vmatprep.subr.mxu0 0.0
  %3293 = vmatpush1.xpose.msra.mxu0 0.0
  %3294 = vmatprep.subr.mxu0 0.0
  %3295 = vmatpush1.xpose.msra.mxu0 0.0
  %3296 = vmatprep.subr.mxu0 0.0
  %3297 = vmatpush1.xpose.msra.mxu0 0.0
  %3298 = vmatprep.subr.mxu0 0.0
  %3299 = vmatpush1.xpose.msra.mxu0 0.0
  %3300 = vmatprep.subr.mxu0 0.0
  %3301 = vmatpush1.xpose.msra.mxu0 0.0
  %3302 = vmatprep.subr.mxu0 0.0
  %3303 = vmatpush1.xpose.msra.mxu0 0.0
  %3304 = vmatprep.subr.mxu0 0.0
  %3305 = vmatpush1.xpose.msra.mxu0 0.0
  %3306 = vmatprep.subr.mxu0 0.0
  %3307 = vmatpush1.xpose.msra.mxu0 0.0
  %3308 = vmatprep.subr.mxu0 0.0
  %3309 = vmatpush1.xpose.msra.mxu0 0.0
  %3310 = vmatprep.subr.mxu0 0.0
  %3311 = vmatpush1.xpose.msra.mxu0 0.0
  %3312 = vmatprep.subr.mxu0 0.0
  %3313 = vmatpush1.xpose.msra.mxu0 0.0
  %3314 = vmatprep.subr.mxu0 0.0
  %3315 = vmatpush1.xpose.msra.mxu0 0.0
  %3316 = vmatprep.subr.mxu0 0.0
  %3317 = vmatpush1.xpose.msra.mxu0 0.0
  %3318 = vmatprep.subr.mxu0 0.0
  %3319 = vmatpush1.xpose.msra.mxu0 0.0
  %3320 = vmatprep.subr.mxu0 0.0
  %3321 = vmatpush1.xpose.msra.mxu0 0.0
  %3322 = vmatprep.subr.mxu0 0.0
  %3323 = vmatpush1.xpose.msra.mxu0 0.0
  %3324 = vmatprep.subr.mxu0 0.0
  %3325 = vmatpush1.xpose.msra.mxu0 0.0
  %3326 = vmatprep.subr.mxu0 0.0
  %3327 = vmatpush1.xpose.msra.mxu0 0.0
  %3328 = vmatprep.subr.mxu0 0.0
  %3329 = vmatpush1.xpose.msra.mxu0 0.0
  %3330 = vmatprep.subr.mxu0 0.0
  %3331 = vmatpush1.xpose.msra.mxu0 0.0
  %3332 = vmatprep.subr.mxu0 0.0
  %3333 = vmatpush1.xpose.msra.mxu0 0.0
  %3334 = vmatprep.subr.mxu0 0.0
  %3335 = vmatpush1.xpose.msra.mxu0 0.0
  %3336 = vmatprep.subr.mxu0 0.0
  %3337 = vmatpush1.xpose.msra.mxu0 0.0
  %3338 = vmatprep.subr.mxu0 0.0
  %3339 = vmatpush1.xpose.msra.mxu0 0.0
  %3340 = vmatprep.subr.mxu0 0.0
  %3341 = vmatpush1.xpose.msra.mxu0 0.0
  %3342 = vmatprep.subr.mxu0 0.0
  %3343 = vmatpush1.xpose.msra.mxu0 0.0
  %3344 = vmatprep.subr.mxu0 0.0
  %3345 = vmatpush1.xpose.msra.mxu0 0.0
  %3346 = vmatprep.mubr.f32.mxu0 0.0
  %3347 = vmatmul.mubr.f32.gmra.mrb[0].mxu0 %v3277
  %v3348 = vpop.f32.mrb[0].mxu0
  %v3349 = vadd.f32 0.0, %v3348
  %v3350 = vpop.f32.mrb[0].mxu0
  %3351 = vdwg.mxu0
  %v3353 = vsel %vm2640, %v3118, 0
  %v3356 = vsel %vm2640, %v3193, 0
  %3358 = vmatprep.subr.mxu0 0.0
  %3359 = vmatpush1.xpose.msra.mxu0 %v3356
  %3360 = vmatprep.subr.mxu0 0.0
  %3361 = vmatpush1.xpose.msra.mxu0 0.0
  %3362 = vmatprep.subr.mxu0 0.0
  %3363 = vmatpush1.xpose.msra.mxu0 0.0
  %3364 = vmatprep.subr.mxu0 0.0
  %3365 = vmatpush1.xpose.msra.mxu0 0.0
  %3366 = vmatprep.subr.mxu0 0.0
  %3367 = vmatpush1.xpose.msra.mxu0 0.0
  %3368 = vmatprep.subr.mxu0 0.0
  %3369 = vmatpush1.xpose.msra.mxu0 0.0
  %3370 = vmatprep.subr.mxu0 0.0
  %3371 = vmatpush1.xpose.msra.mxu0 0.0
  %3372 = vmatprep.subr.mxu0 0.0
  %3373 = vmatpush1.xpose.msra.mxu0 0.0
  %3374 = vmatprep.subr.mxu0 0.0
  %3375 = vmatpush1.xpose.msra.mxu0 0.0
  %3376 = vmatprep.subr.mxu0 0.0
  %3377 = vmatpush1.xpose.msra.mxu0 0.0
  %3378 = vmatprep.subr.mxu0 0.0
  %3379 = vmatpush1.xpose.msra.mxu0 0.0
  %3380 = vmatprep.subr.mxu0 0.0
  %3381 = vmatpush1.xpose.msra.mxu0 0.0
  %3382 = vmatprep.subr.mxu0 0.0
  %3383 = vmatpush1.xpose.msra.mxu0 0.0
  %3384 = vmatprep.subr.mxu0 0.0
  %3385 = vmatpush1.xpose.msra.mxu0 0.0
  %3386 = vmatprep.subr.mxu0 0.0
  %3387 = vmatpush1.xpose.msra.mxu0 0.0
  %3388 = vmatprep.subr.mxu0 0.0
  %3389 = vmatpush1.xpose.msra.mxu0 0.0
  %3390 = vmatprep.subr.mxu0 0.0
  %3391 = vmatpush1.xpose.msra.mxu0 0.0
  %3392 = vmatprep.subr.mxu0 0.0
  %3393 = vmatpush1.xpose.msra.mxu0 0.0
  %3394 = vmatprep.subr.mxu0 0.0
  %3395 = vmatpush1.xpose.msra.mxu0 0.0
  %3396 = vmatprep.subr.mxu0 0.0
  %3397 = vmatpush1.xpose.msra.mxu0 0.0
  %3398 = vmatprep.subr.mxu0 0.0
  %3399 = vmatpush1.xpose.msra.mxu0 0.0
  %3400 = vmatprep.subr.mxu0 0.0
  %3401 = vmatpush1.xpose.msra.mxu0 0.0
  %3402 = vmatprep.subr.mxu0 0.0
  %3403 = vmatpush1.xpose.msra.mxu0 0.0
  %3404 = vmatprep.subr.mxu0 0.0
  %3405 = vmatpush1.xpose.msra.mxu0 0.0
  %3406 = vmatprep.subr.mxu0 0.0
  %3407 = vmatpush1.xpose.msra.mxu0 0.0
  %3408 = vmatprep.subr.mxu0 0.0
  %3409 = vmatpush1.xpose.msra.mxu0 0.0
  %3410 = vmatprep.subr.mxu0 0.0
  %3411 = vmatpush1.xpose.msra.mxu0 0.0
  %3412 = vmatprep.subr.mxu0 0.0
  %3413 = vmatpush1.xpose.msra.mxu0 0.0
  %3414 = vmatprep.subr.mxu0 0.0
  %3415 = vmatpush1.xpose.msra.mxu0 0.0
  %3416 = vmatprep.subr.mxu0 0.0
  %3417 = vmatpush1.xpose.msra.mxu0 0.0
  %3418 = vmatprep.subr.mxu0 0.0
  %3419 = vmatpush1.xpose.msra.mxu0 0.0
  %3420 = vmatprep.subr.mxu0 0.0
  %3421 = vmatpush1.xpose.msra.mxu0 0.0
  %3422 = vmatprep.mubr.f32.mxu0 0.0
  %3423 = vmatmul.mubr.f32.gmra.mrb[0].mxu0 %v3353
  %v3424 = vpop.f32.mrb[0].mxu0
  %v3425 = vadd.f32 0.0, %v3424
  %v3426 = vpop.f32.mrb[0].mxu0
  %3427 = vdwg.mxu0
  %v3428 = vld [vmem:[%s4 + $0x40] sm:$0xff]
  %v3429 = vld [vmem:[%s4 + $0x48] sm:$0xff]
  %v3430 = vld [vmem:[%s4 + $0x50] sm:$0xff]
  %v3431 = vld [vmem:[%s4 + $0x58] sm:$0xff]
  %v3432 = vld [vmem:[%s4 + $0xc0] sm:$0xff]
  %v3433 = vld [vmem:[%s4 + $0xc8] sm:$0xff]
  %v3434 = vld [vmem:[%s4 + $0xd0] sm:$0xff]
  %v3435 = vld [vmem:[%s4 + $0xd8] sm:$0xff]
  %v3436 = vld [vmem:[%s4 + $0x140] sm:$0xff]
  %v3437 = vld [vmem:[%s4 + $0x148] sm:$0xff]
  %v3438 = vld [vmem:[%s4 + $0x150] sm:$0xff]
  %v3439 = vld [vmem:[%s4 + $0x158] sm:$0xff]
  %v3440 = vld [vmem:[%s6 + $0x2] sm:$0x1]
  %v3441 = vlaneseq
  %v3442 = vshrl.u32 %v3441, 7
  %v3443 = vsub.s32 0, %v3442
  %v3444 = vrot.slane %v3440, %v3443
  %3445 = vmatprep.subr.mxu0 0.0
  %3446 = vmatpush1.msra.mxu0 %v3428
  %3447 = vmatprep.subr.mxu0 0.0
  %3448 = vmatpush1.msra.mxu0 %v3429
  %3449 = vmatprep.subr.mxu0 0.0
  %3450 = vmatpush1.msra.mxu0 %v3430
  %3451 = vmatprep.subr.mxu0 0.0
  %3452 = vmatpush1.msra.mxu0 %v3431
  %3453 = vmatprep.subr.mxu0 0.0
  %3454 = vmatpush1.msra.mxu0 0.0
  %3455 = vmatprep.subr.mxu0 0.0
  %3456 = vmatpush1.msra.mxu0 0.0
  %3457 = vmatprep.subr.mxu0 0.0
  %3458 = vmatpush1.msra.mxu0 0.0
  %3459 = vmatprep.subr.mxu0 0.0
  %3460 = vmatpush1.msra.mxu0 0.0
  %3461 = vmatprep.subr.mxu0 0.0
  %3462 = vmatpush1.msra.mxu0 0.0
  %3463 = vmatprep.subr.mxu0 0.0
  %3464 = vmatpush1.msra.mxu0 0.0
  %3465 = vmatprep.subr.mxu0 0.0
  %3466 = vmatpush1.msra.mxu0 0.0
  %3467 = vmatprep.subr.mxu0 0.0
  %3468 = vmatpush1.msra.mxu0 0.0
  %3469 = vmatprep.subr.mxu0 0.0
  %3470 = vmatpush1.msra.mxu0 0.0
  %3471 = vmatprep.subr.mxu0 0.0
  %3472 = vmatpush1.msra.mxu0 0.0
  %3473 = vmatprep.subr.mxu0 0.0
  %3474 = vmatpush1.msra.mxu0 0.0
  %3475 = vmatprep.subr.mxu0 0.0
  %3476 = vmatpush1.msra.mxu0 0.0
  %3477 = vmatprep.subr.mxu0 0.0
  %3478 = vmatpush1.msra.mxu0 0.0
  %3479 = vmatprep.subr.mxu0 0.0
  %3480 = vmatpush1.msra.mxu0 0.0
  %3481 = vmatprep.subr.mxu0 0.0
  %3482 = vmatpush1.msra.mxu0 0.0
  %3483 = vmatprep.subr.mxu0 0.0
  %3484 = vmatpush1.msra.mxu0 0.0
  %3485 = vmatprep.subr.mxu0 0.0
  %3486 = vmatpush1.msra.mxu0 0.0
  %3487 = vmatprep.subr.mxu0 0.0
  %3488 = vmatpush1.msra.mxu0 0.0
  %3489 = vmatprep.subr.mxu0 0.0
  %3490 = vmatpush1.msra.mxu0 0.0
  %3491 = vmatprep.subr.mxu0 0.0
  %3492 = vmatpush1.msra.mxu0 0.0
  %3493 = vmatprep.subr.mxu0 0.0
  %3494 = vmatpush1.msra.mxu0 0.0
  %3495 = vmatprep.subr.mxu0 0.0
  %3496 = vmatpush1.msra.mxu0 0.0
  %3497 = vmatprep.subr.mxu0 0.0
  %3498 = vmatpush1.msra.mxu0 0.0
  %3499 = vmatprep.subr.mxu0 0.0
  %3500 = vmatpush1.msra.mxu0 0.0
  %3501 = vmatprep.subr.mxu0 0.0
  %3502 = vmatpush1.msra.mxu0 0.0
  %3503 = vmatprep.subr.mxu0 0.0
  %3504 = vmatpush1.msra.mxu0 0.0
  %3505 = vmatprep.subr.mxu0 0.0
  %3506 = vmatpush1.msra.mxu0 0.0
  %3507 = vmatprep.subr.mxu0 0.0
  %3508 = vmatpush1.msra.mxu0 0.0
  %3509 = vmatprep.mubr.f32.mxu0 0.0
  %3510 = vmatmul.mubr.f32.gmra.mrb[0].mxu0 %v2642
  %v3511 = vpop.f32.mrb[0].mxu0
  %v3512 = vadd.f32 %v3444, %v3511
  %v3513 = vpop.f32.mrb[0].mxu0
  %3514 = vmatprep.mubr.f32.mxu0 0.0
  %3515 = vmatmul.mubr.f32.gmra.mrb[0].mxu0 %v2645
  %v3516 = vpop.f32.mrb[0].mxu0
  %v3517 = vadd.f32 %v3444, %v3516
  %v3518 = vpop.f32.mrb[0].mxu0
  %3519 = vdwg.mxu0
  %3520 = vmatprep.subr.mxu0 0.0
  %3521 = vmatpush1.msra.mxu0 %v3432
  %3522 = vmatprep.subr.mxu0 0.0
  %3523 = vmatpush1.msra.mxu0 %v3433
  %3524 = vmatprep.subr.mxu0 0.0
  %3525 = vmatpush1.msra.mxu0 %v3434
  %3526 = vmatprep.subr.mxu0 0.0
  %3527 = vmatpush1.msra.mxu0 %v3435
  %3528 = vmatprep.subr.mxu0 0.0
  %3529 = vmatpush1.msra.mxu0 0.0
  %3530 = vmatprep.subr.mxu0 0.0
  %3531 = vmatpush1.msra.mxu0 0.0
  %3532 = vmatprep.subr.mxu0 0.0
  %3533 = vmatpush1.msra.mxu0 0.0
  %3534 = vmatprep.subr.mxu0 0.0
  %3535 = vmatpush1.msra.mxu0 0.0
  %3536 = vmatprep.subr.mxu0 0.0
  %3537 = vmatpush1.msra.mxu0 0.0
  %3538 = vmatprep.subr.mxu0 0.0
  %3539 = vmatpush1.msra.mxu0 0.0
  %3540 = vmatprep.subr.mxu0 0.0
  %3541 = vmatpush1.msra.mxu0 0.0
  %3542 = vmatprep.subr.mxu0 0.0
  %3543 = vmatpush1.msra.mxu0 0.0
  %3544 = vmatprep.subr.mxu0 0.0
  %3545 = vmatpush1.msra.mxu0 0.0
  %3546 = vmatprep.subr.mxu0 0.0
  %3547 = vmatpush1.msra.mxu0 0.0
  %3548 = vmatprep.subr.mxu0 0.0
  %3549 = vmatpush1.msra.mxu0 0.0
  %3550 = vmatprep.subr.mxu0 0.0
  %3551 = vmatpush1.msra.mxu0 0.0
  %3552 = vmatprep.subr.mxu0 0.0
  %3553 = vmatpush1.msra.mxu0 0.0
  %3554 = vmatprep.subr.mxu0 0.0
  %3555 = vmatpush1.msra.mxu0 0.0
  %3556 = vmatprep.subr.mxu0 0.0
  %3557 = vmatpush1.msra.mxu0 0.0
  %3558 = vmatprep.subr.mxu0 0.0
  %3559 = vmatpush1.msra.mxu0 0.0
  %3560 = vmatprep.subr.mxu0 0.0
  %3561 = vmatpush1.msra.mxu0 0.0
  %3562 = vmatprep.subr.mxu0 0.0
  %3563 = vmatpush1.msra.mxu0 0.0
  %3564 = vmatprep.subr.mxu0 0.0
  %3565 = vmatpush1.msra.mxu0 0.0
  %3566 = vmatprep.subr.mxu0 0.0
  %3567 = vmatpush1.msra.mxu0 0.0
  %3568 = vmatprep.subr.mxu0 0.0
  %3569 = vmatpush1.msra.mxu0 0.0
  %3570 = vmatprep.subr.mxu0 0.0
  %3571 = vmatpush1.msra.mxu0 0.0
  %3572 = vmatprep.subr.mxu0 0.0
  %3573 = vmatpush1.msra.mxu0 0.0
  %3574 = vmatprep.subr.mxu0 0.0
  %3575 = vmatpush1.msra.mxu0 0.0
  %3576 = vmatprep.subr.mxu0 0.0
  %3577 = vmatpush1.msra.mxu0 0.0
  %3578 = vmatprep.subr.mxu0 0.0
  %3579 = vmatpush1.msra.mxu0 0.0
  %3580 = vmatprep.subr.mxu0 0.0
  %3581 = vmatpush1.msra.mxu0 0.0
  %3582 = vmatprep.subr.mxu0 0.0
  %3583 = vmatpush1.msra.mxu0 0.0
  %3584 = vmatprep.mubr.f32.mxu0 0.0
  %3585 = vmatmul.mubr.f32.gmra.mrb[0].mxu0 %v2642
  %v3586 = vpop.f32.mrb[0].mxu0
  %v3587 = vadd.f32 0.0, %v3586
  %v3588 = vpop.f32.mrb[0].mxu0
  %3589 = vmatprep.mubr.f32.mxu0 0.0
  %3590 = vmatmul.mubr.f32.gmra.mrb[0].mxu0 %v2645
  %v3591 = vpop.f32.mrb[0].mxu0
  %v3592 = vadd.f32 0.0, %v3591
  %v3593 = vpop.f32.mrb[0].mxu0
  %3594 = vdwg.mxu0
  %v3595 = vld [vmem:[%s6 + $0x6] sm:$0x1]
  %v3596 = vlaneseq
  %v3597 = vshrl.u32 %v3596, 7
  %v3598 = vsub.s32 0, %v3597
  %v3599 = vrot.slane %v3595, %v3598
  %3600 = vmatprep.subr.mxu0 0.0
  %3601 = vmatpush1.msra.mxu0 %v3436
  %3602 = vmatprep.subr.mxu0 0.0
  %3603 = vmatpush1.msra.mxu0 %v3437
  %3604 = vmatprep.subr.mxu0 0.0
  %3605 = vmatpush1.msra.mxu0 %v3438
  %3606 = vmatprep.subr.mxu0 0.0
  %3607 = vmatpush1.msra.mxu0 %v3439
  %3608 = vmatprep.subr.mxu0 0.0
  %3609 = vmatpush1.msra.mxu0 0.0
  %3610 = vmatprep.subr.mxu0 0.0
  %3611 = vmatpush1.msra.mxu0 0.0
  %3612 = vmatprep.subr.mxu0 0.0
  %3613 = vmatpush1.msra.mxu0 0.0
  %3614 = vmatprep.subr.mxu0 0.0
  %3615 = vmatpush1.msra.mxu0 0.0
  %3616 = vmatprep.subr.mxu0 0.0
  %3617 = vmatpush1.msra.mxu0 0.0
  %3618 = vmatprep.subr.mxu0 0.0
  %3619 = vmatpush1.msra.mxu0 0.0
  %3620 = vmatprep.subr.mxu0 0.0
  %3621 = vmatpush1.msra.mxu0 0.0
  %3622 = vmatprep.subr.mxu0 0.0
  %3623 = vmatpush1.msra.mxu0 0.0
  %3624 = vmatprep.subr.mxu0 0.0
  %3625 = vmatpush1.msra.mxu0 0.0
  %3626 = vmatprep.subr.mxu0 0.0
  %3627 = vmatpush1.msra.mxu0 0.0
  %3628 = vmatprep.subr.mxu0 0.0
  %3629 = vmatpush1.msra.mxu0 0.0
  %3630 = vmatprep.subr.mxu0 0.0
  %3631 = vmatpush1.msra.mxu0 0.0
  %3632 = vmatprep.subr.mxu0 0.0
  %3633 = vmatpush1.msra.mxu0 0.0
  %3634 = vmatprep.subr.mxu0 0.0
  %3635 = vmatpush1.msra.mxu0 0.0
  %3636 = vmatprep.subr.mxu0 0.0
  %3637 = vmatpush1.msra.mxu0 0.0
  %3638 = vmatprep.subr.mxu0 0.0
  %3639 = vmatpush1.msra.mxu0 0.0
  %3640 = vmatprep.subr.mxu0 0.0
  %3641 = vmatpush1.msra.mxu0 0.0
  %3642 = vmatprep.subr.mxu0 0.0
  %3643 = vmatpush1.msra.mxu0 0.0
  %3644 = vmatprep.subr.mxu0 0.0
  %3645 = vmatpush1.msra.mxu0 0.0
  %3646 = vmatprep.subr.mxu0 0.0
  %3647 = vmatpush1.msra.mxu0 0.0
  %3648 = vmatprep.subr.mxu0 0.0
  %3649 = vmatpush1.msra.mxu0 0.0
  %3650 = vmatprep.subr.mxu0 0.0
  %3651 = vmatpush1.msra.mxu0 0.0
  %3652 = vmatprep.subr.mxu0 0.0
  %3653 = vmatpush1.msra.mxu0 0.0
  %3654 = vmatprep.subr.mxu0 0.0
  %3655 = vmatpush1.msra.mxu0 0.0
  %3656 = vmatprep.subr.mxu0 0.0
  %3657 = vmatpush1.msra.mxu0 0.0
  %3658 = vmatprep.subr.mxu0 0.0
  %3659 = vmatpush1.msra.mxu0 0.0
  %3660 = vmatprep.subr.mxu0 0.0
  %3661 = vmatpush1.msra.mxu0 0.0
  %3662 = vmatprep.subr.mxu0 0.0
  %3663 = vmatpush1.msra.mxu0 0.0
  %3664 = vmatprep.mubr.f32.mxu0 0.0
  %3665 = vmatmul.mubr.f32.gmra.mrb[0].mxu0 %v2642
  %v3666 = vpop.f32.mrb[0].mxu0
  %v3667 = vadd.f32 %v3599, %v3666
  %v3668 = vpop.f32.mrb[0].mxu0
  %3669 = vmatprep.mubr.f32.mxu0 0.0
  %3670 = vmatmul.mubr.f32.gmra.mrb[0].mxu0 %v2645
  %v3671 = vpop.f32.mrb[0].mxu0
  %v3672 = vadd.f32 %v3599, %v3671
  %v3673 = vpop.f32.mrb[0].mxu0
  %3674 = vdwg.mxu0
  %v3676 = vsel %vm2640, %v3512, 0
  %v3679 = vsel %vm2640, %v3587, 0
  %3681 = vmatprep.subr.mxu0 0.0
  %3682 = vmatpush1.xpose.msra.mxu0 %v3679
  %3683 = vmatprep.subr.mxu0 0.0
  %3684 = vmatpush1.xpose.msra.mxu0 0.0
  %3685 = vmatprep.subr.mxu0 0.0
  %3686 = vmatpush1.xpose.msra.mxu0 0.0
  %3687 = vmatprep.subr.mxu0 0.0
  %3688 = vmatpush1.xpose.msra.mxu0 0.0
  %3689 = vmatprep.subr.mxu0 0.0
  %3690 = vmatpush1.xpose.msra.mxu0 0.0
  %3691 = vmatprep.subr.mxu0 0.0
  %3692 = vmatpush1.xpose.msra.mxu0 0.0
  %3693 = vmatprep.subr.mxu0 0.0
  %3694 = vmatpush1.xpose.msra.mxu0 0.0
  %3695 = vmatprep.subr.mxu0 0.0
  %3696 = vmatpush1.xpose.msra.mxu0 0.0
  %3697 = vmatprep.subr.mxu0 0.0
  %3698 = vmatpush1.xpose.msra.mxu0 0.0
  %3699 = vmatprep.subr.mxu0 0.0
  %3700 = vmatpush1.xpose.msra.mxu0 0.0
  %3701 = vmatprep.subr.mxu0 0.0
  %3702 = vmatpush1.xpose.msra.mxu0 0.0
  %3703 = vmatprep.subr.mxu0 0.0
  %3704 = vmatpush1.xpose.msra.mxu0 0.0
  %3705 = vmatprep.subr.mxu0 0.0
  %3706 = vmatpush1.xpose.msra.mxu0 0.0
  %3707 = vmatprep.subr.mxu0 0.0
  %3708 = vmatpush1.xpose.msra.mxu0 0.0
  %3709 = vmatprep.subr.mxu0 0.0
  %3710 = vmatpush1.xpose.msra.mxu0 0.0
  %3711 = vmatprep.subr.mxu0 0.0
  %3712 = vmatpush1.xpose.msra.mxu0 0.0
  %3713 = vmatprep.subr.mxu0 0.0
  %3714 = vmatpush1.xpose.msra.mxu0 0.0
  %3715 = vmatprep.subr.mxu0 0.0
  %3716 = vmatpush1.xpose.msra.mxu0 0.0
  %3717 = vmatprep.subr.mxu0 0.0
  %3718 = vmatpush1.xpose.msra.mxu0 0.0
  %3719 = vmatprep.subr.mxu0 0.0
  %3720 = vmatpush1.xpose.msra.mxu0 0.0
  %3721 = vmatprep.subr.mxu0 0.0
  %3722 = vmatpush1.xpose.msra.mxu0 0.0
  %3723 = vmatprep.subr.mxu0 0.0
  %3724 = vmatpush1.xpose.msra.mxu0 0.0
  %3725 = vmatprep.subr.mxu0 0.0
  %3726 = vmatpush1.xpose.msra.mxu0 0.0
  %3727 = vmatprep.subr.mxu0 0.0
  %3728 = vmatpush1.xpose.msra.mxu0 0.0
  %3729 = vmatprep.subr.mxu0 0.0
  %3730 = vmatpush1.xpose.msra.mxu0 0.0
  %3731 = vmatprep.subr.mxu0 0.0
  %3732 = vmatpush1.xpose.msra.mxu0 0.0
  %3733 = vmatprep.subr.mxu0 0.0
  %3734 = vmatpush1.xpose.msra.mxu0 0.0
  %3735 = vmatprep.subr.mxu0 0.0
  %3736 = vmatpush1.xpose.msra.mxu0 0.0
  %3737 = vmatprep.subr.mxu0 0.0
  %3738 = vmatpush1.xpose.msra.mxu0 0.0
  %3739 = vmatprep.subr.mxu0 0.0
  %3740 = vmatpush1.xpose.msra.mxu0 0.0
  %3741 = vmatprep.subr.mxu0 0.0
  %3742 = vmatpush1.xpose.msra.mxu0 0.0
  %3743 = vmatprep.subr.mxu0 0.0
  %3744 = vmatpush1.xpose.msra.mxu0 0.0
  %3745 = vmatprep.mubr.f32.mxu0 0.0
  %3746 = vmatmul.mubr.f32.gmra.mrb[0].mxu0 %v3676
  %v3747 = vpop.f32.mrb[0].mxu0
  %v3748 = vadd.f32 0.0, %v3747
  %v3749 = vpop.f32.mrb[0].mxu0
  %3750 = vdwg.mxu0
  %v3752 = vsel %vm2640, %v3517, 0
  %v3755 = vsel %vm2640, %v3592, 0
  %3757 = vmatprep.subr.mxu0 0.0
  %3758 = vmatpush1.xpose.msra.mxu0 %v3755
  %3759 = vmatprep.subr.mxu0 0.0
  %3760 = vmatpush1.xpose.msra.mxu0 0.0
  %3761 = vmatprep.subr.mxu0 0.0
  %3762 = vmatpush1.xpose.msra.mxu0 0.0
  %3763 = vmatprep.subr.mxu0 0.0
  %3764 = vmatpush1.xpose.msra.mxu0 0.0
  %3765 = vmatprep.subr.mxu0 0.0
  %3766 = vmatpush1.xpose.msra.mxu0 0.0
  %3767 = vmatprep.subr.mxu0 0.0
  %3768 = vmatpush1.xpose.msra.mxu0 0.0
  %3769 = vmatprep.subr.mxu0 0.0
  %3770 = vmatpush1.xpose.msra.mxu0 0.0
  %3771 = vmatprep.subr.mxu0 0.0
  %3772 = vmatpush1.xpose.msra.mxu0 0.0
  %3773 = vmatprep.subr.mxu0 0.0
  %3774 = vmatpush1.xpose.msra.mxu0 0.0
  %3775 = vmatprep.subr.mxu0 0.0
  %3776 = vmatpush1.xpose.msra.mxu0 0.0
  %3777 = vmatprep.subr.mxu0 0.0
  %3778 = vmatpush1.xpose.msra.mxu0 0.0
  %3779 = vmatprep.subr.mxu0 0.0
  %3780 = vmatpush1.xpose.msra.mxu0 0.0
  %3781 = vmatprep.subr.mxu0 0.0
  %3782 = vmatpush1.xpose.msra.mxu0 0.0
  %3783 = vmatprep.subr.mxu0 0.0
  %3784 = vmatpush1.xpose.msra.mxu0 0.0
  %3785 = vmatprep.subr.mxu0 0.0
  %3786 = vmatpush1.xpose.msra.mxu0 0.0
  %3787 = vmatprep.subr.mxu0 0.0
  %3788 = vmatpush1.xpose.msra.mxu0 0.0
  %3789 = vmatprep.subr.mxu0 0.0
  %3790 = vmatpush1.xpose.msra.mxu0 0.0
  %3791 = vmatprep.subr.mxu0 0.0
  %3792 = vmatpush1.xpose.msra.mxu0 0.0
  %3793 = vmatprep.subr.mxu0 0.0
  %3794 = vmatpush1.xpose.msra.mxu0 0.0
  %3795 = vmatprep.subr.mxu0 0.0
  %3796 = vmatpush1.xpose.msra.mxu0 0.0
  %3797 = vmatprep.subr.mxu0 0.0
  %3798 = vmatpush1.xpose.msra.mxu0 0.0
  %3799 = vmatprep.subr.mxu0 0.0
  %3800 = vmatpush1.xpose.msra.mxu0 0.0
  %3801 = vmatprep.subr.mxu0 0.0
  %3802 = vmatpush1.xpose.msra.mxu0 0.0
  %3803 = vmatprep.subr.mxu0 0.0
  %3804 = vmatpush1.xpose.msra.mxu0 0.0
  %3805 = vmatprep.subr.mxu0 0.0
  %3806 = vmatpush1.xpose.msra.mxu0 0.0
  %3807 = vmatprep.subr.mxu0 0.0
  %3808 = vmatpush1.xpose.msra.mxu0 0.0
  %3809 = vmatprep.subr.mxu0 0.0
  %3810 = vmatpush1.xpose.msra.mxu0 0.0
  %3811 = vmatprep.subr.mxu0 0.0
  %3812 = vmatpush1.xpose.msra.mxu0 0.0
  %3813 = vmatprep.subr.mxu0 0.0
  %3814 = vmatpush1.xpose.msra.mxu0 0.0
  %3815 = vmatprep.subr.mxu0 0.0
  %3816 = vmatpush1.xpose.msra.mxu0 0.0
  %3817 = vmatprep.subr.mxu0 0.0
  %3818 = vmatpush1.xpose.msra.mxu0 0.0
  %3819 = vmatprep.subr.mxu0 0.0
  %3820 = vmatpush1.xpose.msra.mxu0 0.0
  %3821 = vmatprep.mubr.f32.mxu0 0.0
  %3822 = vmatmul.mubr.f32.gmra.mrb[0].mxu0 %v3752
  %v3823 = vpop.f32.mrb[0].mxu0
  %v3824 = vadd.f32 0.0, %v3823
  %v3825 = vpop.f32.mrb[0].mxu0
  %3826 = vdwg.mxu0
  %v3827 = vld [vmem:[%s4 + $0x60] sm:$0xff]
  %v3828 = vld [vmem:[%s4 + $0x68] sm:$0xff]
  %v3829 = vld [vmem:[%s4 + $0x70] sm:$0xff]
  %v3830 = vld [vmem:[%s4 + $0x78] sm:$0xff]
  %v3831 = vld [vmem:[%s4 + $0xe0] sm:$0xff]
  %v3832 = vld [vmem:[%s4 + $0xe8] sm:$0xff]
  %v3833 = vld [vmem:[%s4 + $0xf0] sm:$0xff]
  %v3834 = vld [vmem:[%s4 + $0xf8] sm:$0xff]
  %v3835 = vld [vmem:[%s4 + $0x160] sm:$0xff]
  %v3836 = vld [vmem:[%s4 + $0x168] sm:$0xff]
  %v3837 = vld [vmem:[%s4 + $0x170] sm:$0xff]
  %v3838 = vld [vmem:[%s4 + $0x178] sm:$0xff]
  %v3839 = vld [vmem:[%s6 + $0x3] sm:$0x1]
  %v3840 = vlaneseq
  %v3841 = vshrl.u32 %v3840, 7
  %v3842 = vsub.s32 0, %v3841
  %v3843 = vrot.slane %v3839, %v3842
  %3844 = vmatprep.subr.mxu0 0.0
  %3845 = vmatpush1.msra.mxu0 %v3827
  %3846 = vmatprep.subr.mxu0 0.0
  %3847 = vmatpush1.msra.mxu0 %v3828
  %3848 = vmatprep.subr.mxu0 0.0
  %3849 = vmatpush1.msra.mxu0 %v3829
  %3850 = vmatprep.subr.mxu0 0.0
  %3851 = vmatpush1.msra.mxu0 %v3830
  %3852 = vmatprep.subr.mxu0 0.0
  %3853 = vmatpush1.msra.mxu0 0.0
  %3854 = vmatprep.subr.mxu0 0.0
  %3855 = vmatpush1.msra.mxu0 0.0
  %3856 = vmatprep.subr.mxu0 0.0
  %3857 = vmatpush1.msra.mxu0 0.0
  %3858 = vmatprep.subr.mxu0 0.0
  %3859 = vmatpush1.msra.mxu0 0.0
  %3860 = vmatprep.subr.mxu0 0.0
  %3861 = vmatpush1.msra.mxu0 0.0
  %3862 = vmatprep.subr.mxu0 0.0
  %3863 = vmatpush1.msra.mxu0 0.0
  %3864 = vmatprep.subr.mxu0 0.0
  %3865 = vmatpush1.msra.mxu0 0.0
  %3866 = vmatprep.subr.mxu0 0.0
  %3867 = vmatpush1.msra.mxu0 0.0
  %3868 = vmatprep.subr.mxu0 0.0
  %3869 = vmatpush1.msra.mxu0 0.0
  %3870 = vmatprep.subr.mxu0 0.0
  %3871 = vmatpush1.msra.mxu0 0.0
  %3872 = vmatprep.subr.mxu0 0.0
  %3873 = vmatpush1.msra.mxu0 0.0
  %3874 = vmatprep.subr.mxu0 0.0
  %3875 = vmatpush1.msra.mxu0 0.0
  %3876 = vmatprep.subr.mxu0 0.0
  %3877 = vmatpush1.msra.mxu0 0.0
  %3878 = vmatprep.subr.mxu0 0.0
  %3879 = vmatpush1.msra.mxu0 0.0
  %3880 = vmatprep.subr.mxu0 0.0
  %3881 = vmatpush1.msra.mxu0 0.0
  %3882 = vmatprep.subr.mxu0 0.0
  %3883 = vmatpush1.msra.mxu0 0.0
  %3884 = vmatprep.subr.mxu0 0.0
  %3885 = vmatpush1.msra.mxu0 0.0
  %3886 = vmatprep.subr.mxu0 0.0
  %3887 = vmatpush1.msra.mxu0 0.0
  %3888 = vmatprep.subr.mxu0 0.0
  %3889 = vmatpush1.msra.mxu0 0.0
  %3890 = vmatprep.subr.mxu0 0.0
  %3891 = vmatpush1.msra.mxu0 0.0
  %3892 = vmatprep.subr.mxu0 0.0
  %3893 = vmatpush1.msra.mxu0 0.0
  %3894 = vmatprep.subr.mxu0 0.0
  %3895 = vmatpush1.msra.mxu0 0.0
  %3896 = vmatprep.subr.mxu0 0.0
  %3897 = vmatpush1.msra.mxu0 0.0
  %3898 = vmatprep.subr.mxu0 0.0
  %3899 = vmatpush1.msra.mxu0 0.0
  %3900 = vmatprep.subr.mxu0 0.0
  %3901 = vmatpush1.msra.mxu0 0.0
  %3902 = vmatprep.subr.mxu0 0.0
  %3903 = vmatpush1.msra.mxu0 0.0
  %3904 = vmatprep.subr.mxu0 0.0
  %3905 = vmatpush1.msra.mxu0 0.0
  %3906 = vmatprep.subr.mxu0 0.0
  %3907 = vmatpush1.msra.mxu0 0.0
  %3908 = vmatprep.mubr.f32.mxu0 0.0
  %3909 = vmatmul.mubr.f32.gmra.mrb[0].mxu0 %v2642
  %v3910 = vpop.f32.mrb[0].mxu0
  %v3911 = vadd.f32 %v3843, %v3910
  %v3912 = vpop.f32.mrb[0].mxu0
  %3913 = vmatprep.mubr.f32.mxu0 0.0
  %3914 = vmatmul.mubr.f32.gmra.mrb[0].mxu0 %v2645
  %v3915 = vpop.f32.mrb[0].mxu0
  %v3916 = vadd.f32 %v3843, %v3915
  %v3917 = vpop.f32.mrb[0].mxu0
  %3918 = vdwg.mxu0
  %3919 = vmatprep.subr.mxu0 0.0
  %3920 = vmatpush1.msra.mxu0 %v3831
  %3921 = vmatprep.subr.mxu0 0.0
  %3922 = vmatpush1.msra.mxu0 %v3832
  %3923 = vmatprep.subr.mxu0 0.0
  %3924 = vmatpush1.msra.mxu0 %v3833
  %3925 = vmatprep.subr.mxu0 0.0
  %3926 = vmatpush1.msra.mxu0 %v3834
  %3927 = vmatprep.subr.mxu0 0.0
  %3928 = vmatpush1.msra.mxu0 0.0
  %3929 = vmatprep.subr.mxu0 0.0
  %3930 = vmatpush1.msra.mxu0 0.0
  %3931 = vmatprep.subr.mxu0 0.0
  %3932 = vmatpush1.msra.mxu0 0.0
  %3933 = vmatprep.subr.mxu0 0.0
  %3934 = vmatpush1.msra.mxu0 0.0
  %3935 = vmatprep.subr.mxu0 0.0
  %3936 = vmatpush1.msra.mxu0 0.0
  %3937 = vmatprep.subr.mxu0 0.0
  %3938 = vmatpush1.msra.mxu0 0.0
  %3939 = vmatprep.subr.mxu0 0.0
  %3940 = vmatpush1.msra.mxu0 0.0
  %3941 = vmatprep.subr.mxu0 0.0
  %3942 = vmatpush1.msra.mxu0 0.0
  %3943 = vmatprep.subr.mxu0 0.0
  %3944 = vmatpush1.msra.mxu0 0.0
  %3945 = vmatprep.subr.mxu0 0.0
  %3946 = vmatpush1.msra.mxu0 0.0
  %3947 = vmatprep.subr.mxu0 0.0
  %3948 = vmatpush1.msra.mxu0 0.0
  %3949 = vmatprep.subr.mxu0 0.0
  %3950 = vmatpush1.msra.mxu0 0.0
  %3951 = vmatprep.subr.mxu0 0.0
  %3952 = vmatpush1.msra.mxu0 0.0
  %3953 = vmatprep.subr.mxu0 0.0
  %3954 = vmatpush1.msra.mxu0 0.0
  %3955 = vmatprep.subr.mxu0 0.0
  %3956 = vmatpush1.msra.mxu0 0.0
  %3957 = vmatprep.subr.mxu0 0.0
  %3958 = vmatpush1.msra.mxu0 0.0
  %3959 = vmatprep.subr.mxu0 0.0
  %3960 = vmatpush1.msra.mxu0 0.0
  %3961 = vmatprep.subr.mxu0 0.0
  %3962 = vmatpush1.msra.mxu0 0.0
  %3963 = vmatprep.subr.mxu0 0.0
  %3964 = vmatpush1.msra.mxu0 0.0
  %3965 = vmatprep.subr.mxu0 0.0
  %3966 = vmatpush1.msra.mxu0 0.0
  %3967 = vmatprep.subr.mxu0 0.0
  %3968 = vmatpush1.msra.mxu0 0.0
  %3969 = vmatprep.subr.mxu0 0.0
  %3970 = vmatpush1.msra.mxu0 0.0
  %3971 = vmatprep.subr.mxu0 0.0
  %3972 = vmatpush1.msra.mxu0 0.0
  %3973 = vmatprep.subr.mxu0 0.0
  %3974 = vmatpush1.msra.mxu0 0.0
  %3975 = vmatprep.subr.mxu0 0.0
  %3976 = vmatpush1.msra.mxu0 0.0
  %3977 = vmatprep.subr.mxu0 0.0
  %3978 = vmatpush1.msra.mxu0 0.0
  %3979 = vmatprep.subr.mxu0 0.0
  %3980 = vmatpush1.msra.mxu0 0.0
  %3981 = vmatprep.subr.mxu0 0.0
  %3982 = vmatpush1.msra.mxu0 0.0
  %3983 = vmatprep.mubr.f32.mxu0 0.0
  %3984 = vmatmul.mubr.f32.gmra.mrb[0].mxu0 %v2642
  %v3985 = vpop.f32.mrb[0].mxu0
  %v3986 = vadd.f32 0.0, %v3985
  %v3987 = vpop.f32.mrb[0].mxu0
  %3988 = vmatprep.mubr.f32.mxu0 0.0
  %3989 = vmatmul.mubr.f32.gmra.mrb[0].mxu0 %v2645
  %v3990 = vpop.f32.mrb[0].mxu0
  %v3991 = vadd.f32 0.0, %v3990
  %v3992 = vpop.f32.mrb[0].mxu0
  %3993 = vdwg.mxu0
  %v3994 = vld [vmem:[%s6 + $0x7] sm:$0x1]
  %v3995 = vlaneseq
  %v3996 = vshrl.u32 %v3995, 7
  %v3997 = vsub.s32 0, %v3996
  %v3998 = vrot.slane %v3994, %v3997
  %3999 = vmatprep.subr.mxu0 0.0
  %4000 = vmatpush1.msra.mxu0 %v3835
  %4001 = vmatprep.subr.mxu0 0.0
  %4002 = vmatpush1.msra.mxu0 %v3836
  %4003 = vmatprep.subr.mxu0 0.0
  %4004 = vmatpush1.msra.mxu0 %v3837
  %4005 = vmatprep.subr.mxu0 0.0
  %4006 = vmatpush1.msra.mxu0 %v3838
  %4007 = vmatprep.subr.mxu0 0.0
  %4008 = vmatpush1.msra.mxu0 0.0
  %4009 = vmatprep.subr.mxu0 0.0
  %4010 = vmatpush1.msra.mxu0 0.0
  %4011 = vmatprep.subr.mxu0 0.0
  %4012 = vmatpush1.msra.mxu0 0.0
  %4013 = vmatprep.subr.mxu0 0.0
  %4014 = vmatpush1.msra.mxu0 0.0
  %4015 = vmatprep.subr.mxu0 0.0
  %4016 = vmatpush1.msra.mxu0 0.0
  %4017 = vmatprep.subr.mxu0 0.0
  %4018 = vmatpush1.msra.mxu0 0.0
  %4019 = vmatprep.subr.mxu0 0.0
  %4020 = vmatpush1.msra.mxu0 0.0
  %4021 = vmatprep.subr.mxu0 0.0
  %4022 = vmatpush1.msra.mxu0 0.0
  %4023 = vmatprep.subr.mxu0 0.0
  %4024 = vmatpush1.msra.mxu0 0.0
  %4025 = vmatprep.subr.mxu0 0.0
  %4026 = vmatpush1.msra.mxu0 0.0
  %4027 = vmatprep.subr.mxu0 0.0
  %4028 = vmatpush1.msra.mxu0 0.0
  %4029 = vmatprep.subr.mxu0 0.0
  %4030 = vmatpush1.msra.mxu0 0.0
  %4031 = vmatprep.subr.mxu0 0.0
  %4032 = vmatpush1.msra.mxu0 0.0
  %4033 = vmatprep.subr.mxu0 0.0
  %4034 = vmatpush1.msra.mxu0 0.0
  %4035 = vmatprep.subr.mxu0 0.0
  %4036 = vmatpush1.msra.mxu0 0.0
  %4037 = vmatprep.subr.mxu0 0.0
  %4038 = vmatpush1.msra.mxu0 0.0
  %4039 = vmatprep.subr.mxu0 0.0
  %4040 = vmatpush1.msra.mxu0 0.0
  %4041 = vmatprep.subr.mxu0 0.0
  %4042 = vmatpush1.msra.mxu0 0.0
  %4043 = vmatprep.subr.mxu0 0.0
  %4044 = vmatpush1.msra.mxu0 0.0
  %4045 = vmatprep.subr.mxu0 0.0
  %4046 = vmatpush1.msra.mxu0 0.0
  %4047 = vmatprep.subr.mxu0 0.0
  %4048 = vmatpush1.msra.mxu0 0.0
  %4049 = vmatprep.subr.mxu0 0.0
  %4050 = vmatpush1.msra.mxu0 0.0
  %4051 = vmatprep.subr.mxu0 0.0
  %4052 = vmatpush1.msra.mxu0 0.0
  %4053 = vmatprep.subr.mxu0 0.0
  %4054 = vmatpush1.msra.mxu0 0.0
  %4055 = vmatprep.subr.mxu0 0.0
  %4056 = vmatpush1.msra.mxu0 0.0
  %4057 = vmatprep.subr.mxu0 0.0
  %4058 = vmatpush1.msra.mxu0 0.0
  %4059 = vmatprep.subr.mxu0 0.0
  %4060 = vmatpush1.msra.mxu0 0.0
  %4061 = vmatprep.subr.mxu0 0.0
  %4062 = vmatpush1.msra.mxu0 0.0
  %4063 = vmatprep.mubr.f32.mxu0 0.0
  %4064 = vmatmul.mubr.f32.gmra.mrb[0].mxu0 %v2642
  %v4065 = vpop.f32.mrb[0].mxu0
  %v4066 = vadd.f32 %v3998, %v4065
  %v4067 = vpop.f32.mrb[0].mxu0
  %4068 = vmatprep.mubr.f32.mxu0 0.0
  %4069 = vmatmul.mubr.f32.gmra.mrb[0].mxu0 %v2645
  %v4070 = vpop.f32.mrb[0].mxu0
  %v4071 = vadd.f32 %v3998, %v4070
  %v4072 = vpop.f32.mrb[0].mxu0
  %4073 = vdwg.mxu0
  %v4075 = vsel %vm2640, %v3911, 0
  %v4078 = vsel %vm2640, %v3986, 0
  %4080 = vmatprep.subr.mxu0 0.0
  %4081 = vmatpush1.xpose.msra.mxu0 %v4078
  %4082 = vmatprep.subr.mxu0 0.0
  %4083 = vmatpush1.xpose.msra.mxu0 0.0
  %4084 = vmatprep.subr.mxu0 0.0
  %4085 = vmatpush1.xpose.msra.mxu0 0.0
  %4086 = vmatprep.subr.mxu0 0.0
  %4087 = vmatpush1.xpose.msra.mxu0 0.0
  %4088 = vmatprep.subr.mxu0 0.0
  %4089 = vmatpush1.xpose.msra.mxu0 0.0
  %4090 = vmatprep.subr.mxu0 0.0
  %4091 = vmatpush1.xpose.msra.mxu0 0.0
  %4092 = vmatprep.subr.mxu0 0.0
  %4093 = vmatpush1.xpose.msra.mxu0 0.0
  %4094 = vmatprep.subr.mxu0 0.0
  %4095 = vmatpush1.xpose.msra.mxu0 0.0
  %4096 = vmatprep.subr.mxu0 0.0
  %4097 = vmatpush1.xpose.msra.mxu0 0.0
  %4098 = vmatprep.subr.mxu0 0.0
  %4099 = vmatpush1.xpose.msra.mxu0 0.0
  %4100 = vmatprep.subr.mxu0 0.0
  %4101 = vmatpush1.xpose.msra.mxu0 0.0
  %4102 = vmatprep.subr.mxu0 0.0
  %4103 = vmatpush1.xpose.msra.mxu0 0.0
  %4104 = vmatprep.subr.mxu0 0.0
  %4105 = vmatpush1.xpose.msra.mxu0 0.0
  %4106 = vmatprep.subr.mxu0 0.0
  %4107 = vmatpush1.xpose.msra.mxu0 0.0
  %4108 = vmatprep.subr.mxu0 0.0
  %4109 = vmatpush1.xpose.msra.mxu0 0.0
  %4110 = vmatprep.subr.mxu0 0.0
  %4111 = vmatpush1.xpose.msra.mxu0 0.0
  %4112 = vmatprep.subr.mxu0 0.0
  %4113 = vmatpush1.xpose.msra.mxu0 0.0
  %4114 = vmatprep.subr.mxu0 0.0
  %4115 = vmatpush1.xpose.msra.mxu0 0.0
  %4116 = vmatprep.subr.mxu0 0.0
  %4117 = vmatpush1.xpose.msra.mxu0 0.0
  %4118 = vmatprep.subr.mxu0 0.0
  %4119 = vmatpush1.xpose.msra.mxu0 0.0
  %4120 = vmatprep.subr.mxu0 0.0
  %4121 = vmatpush1.xpose.msra.mxu0 0.0
  %4122 = vmatprep.subr.mxu0 0.0
  %4123 = vmatpush1.xpose.msra.mxu0 0.0
  %4124 = vmatprep.subr.mxu0 0.0
  %4125 = vmatpush1.xpose.msra.mxu0 0.0
  %4126 = vmatprep.subr.mxu0 0.0
  %4127 = vmatpush1.xpose.msra.mxu0 0.0
  %4128 = vmatprep.subr.mxu0 0.0
  %4129 = vmatpush1.xpose.msra.mxu0 0.0
  %4130 = vmatprep.subr.mxu0 0.0
  %4131 = vmatpush1.xpose.msra.mxu0 0.0
  %4132 = vmatprep.subr.mxu0 0.0
  %4133 = vmatpush1.xpose.msra.mxu0 0.0
  %4134 = vmatprep.subr.mxu0 0.0
  %4135 = vmatpush1.xpose.msra.mxu0 0.0
  %4136 = vmatprep.subr.mxu0 0.0
  %4137 = vmatpush1.xpose.msra.mxu0 0.0
  %4138 = vmatprep.subr.mxu0 0.0
  %4139 = vmatpush1.xpose.msra.mxu0 0.0
  %4140 = vmatprep.subr.mxu0 0.0
  %4141 = vmatpush1.xpose.msra.mxu0 0.0
  %4142 = vmatprep.subr.mxu0 0.0
  %4143 = vmatpush1.xpose.msra.mxu0 0.0
  %4144 = vmatprep.mubr.f32.mxu0 0.0
  %4145 = vmatmul.mubr.f32.gmra.mrb[0].mxu0 %v4075
  %v4146 = vpop.f32.mrb[0].mxu0
  %v4147 = vadd.f32 0.0, %v4146
  %v4148 = vpop.f32.mrb[0].mxu0
  %4149 = vdwg.mxu0
  %v4151 = vsel %vm2640, %v3916, 0
  %v4154 = vsel %vm2640, %v3991, 0
  %4156 = vmatprep.subr.mxu0 0.0
  %4157 = vmatpush1.xpose.msra.mxu0 %v4154
  %4158 = vmatprep.subr.mxu0 0.0
  %4159 = vmatpush1.xpose.msra.mxu0 0.0
  %4160 = vmatprep.subr.mxu0 0.0
  %4161 = vmatpush1.xpose.msra.mxu0 0.0
  %4162 = vmatprep.subr.mxu0 0.0
  %4163 = vmatpush1.xpose.msra.mxu0 0.0
  %4164 = vmatprep.subr.mxu0 0.0
  %4165 = vmatpush1.xpose.msra.mxu0 0.0
  %4166 = vmatprep.subr.mxu0 0.0
  %4167 = vmatpush1.xpose.msra.mxu0 0.0
  %4168 = vmatprep.subr.mxu0 0.0
  %4169 = vmatpush1.xpose.msra.mxu0 0.0
  %4170 = vmatprep.subr.mxu0 0.0
  %4171 = vmatpush1.xpose.msra.mxu0 0.0
  %4172 = vmatprep.subr.mxu0 0.0
  %4173 = vmatpush1.xpose.msra.mxu0 0.0
  %4174 = vmatprep.subr.mxu0 0.0
  %4175 = vmatpush1.xpose.msra.mxu0 0.0
  %4176 = vmatprep.subr.mxu0 0.0
  %4177 = vmatpush1.xpose.msra.mxu0 0.0
  %4178 = vmatprep.subr.mxu0 0.0
  %4179 = vmatpush1.xpose.msra.mxu0 0.0
  %4180 = vmatprep.subr.mxu0 0.0
  %4181 = vmatpush1.xpose.msra.mxu0 0.0
  %4182 = vmatprep.subr.mxu0 0.0
  %4183 = vmatpush1.xpose.msra.mxu0 0.0
  %4184 = vmatprep.subr.mxu0 0.0
  %4185 = vmatpush1.xpose.msra.mxu0 0.0
  %4186 = vmatprep.subr.mxu0 0.0
  %4187 = vmatpush1.xpose.msra.mxu0 0.0
  %4188 = vmatprep.subr.mxu0 0.0
  %4189 = vmatpush1.xpose.msra.mxu0 0.0
  %4190 = vmatprep.subr.mxu0 0.0
  %4191 = vmatpush1.xpose.msra.mxu0 0.0
  %4192 = vmatprep.subr.mxu0 0.0
  %4193 = vmatpush1.xpose.msra.mxu0 0.0
  %4194 = vmatprep.subr.mxu0 0.0
  %4195 = vmatpush1.xpose.msra.mxu0 0.0
  %4196 = vmatprep.subr.mxu0 0.0
  %4197 = vmatpush1.xpose.msra.mxu0 0.0
  %4198 = vmatprep.subr.mxu0 0.0
  %4199 = vmatpush1.xpose.msra.mxu0 0.0
  %4200 = vmatprep.subr.mxu0 0.0
  %4201 = vmatpush1.xpose.msra.mxu0 0.0
  %4202 = vmatprep.subr.mxu0 0.0
  %4203 = vmatpush1.xpose.msra.mxu0 0.0
  %4204 = vmatprep.subr.mxu0 0.0
  %4205 = vmatpush1.xpose.msra.mxu0 0.0
  %4206 = vmatprep.subr.mxu0 0.0
  %4207 = vmatpush1.xpose.msra.mxu0 0.0
  %4208 = vmatprep.subr.mxu0 0.0
  %4209 = vmatpush1.xpose.msra.mxu0 0.0
  %4210 = vmatprep.subr.mxu0 0.0
  %4211 = vmatpush1.xpose.msra.mxu0 0.0
  %4212 = vmatprep.subr.mxu0 0.0
  %4213 = vmatpush1.xpose.msra.mxu0 0.0
  %4214 = vmatprep.subr.mxu0 0.0
  %4215 = vmatpush1.xpose.msra.mxu0 0.0
  %4216 = vmatprep.subr.mxu0 0.0
  %4217 = vmatpush1.xpose.msra.mxu0 0.0
  %4218 = vmatprep.subr.mxu0 0.0
  %4219 = vmatpush1.xpose.msra.mxu0 0.0
  %4220 = vmatprep.mubr.f32.mxu0 0.0
  %4221 = vmatmul.mubr.f32.gmra.mrb[0].mxu0 %v4151
  %v4222 = vpop.f32.mrb[0].mxu0
  %v4223 = vadd.f32 0.0, %v4222
  %v4224 = vpop.f32.mrb[0].mxu0
  %4225 = vdwg.mxu0
  %v4226 = vsel %vm1688, %v2950, -inf
  %4227 = vmax.xlane.f32.xlu0 %v4226
  %v4228 = vpop.xlane.xlu0 %4227
  %v4229 = vsel %vm1688, %v3026, -inf
  %4230 = vmax.xlane.f32.xlu0 %v4229
  %v4231 = vpop.xlane.xlu0 %4230
  %v4232 = vsel %vm1688, %v3349, -inf
  %4233 = vmax.xlane.f32.xlu0 %v4232
  %v4234 = vpop.xlane.xlu0 %4233
  %v4235 = vsel %vm1688, %v3425, -inf
  %4236 = vmax.xlane.f32.xlu0 %v4235
  %v4237 = vpop.xlane.xlu0 %4236
  %v4238 = vsel %vm1688, %v3748, -inf
  %4239 = vmax.xlane.f32.xlu0 %v4238
  %v4240 = vpop.xlane.xlu0 %4239
  %v4241 = vsel %vm1688, %v3824, -inf
  %4242 = vmax.xlane.f32.xlu0 %v4241
  %v4243 = vpop.xlane.xlu0 %4242
  %v4244 = vsel %vm1688, %v4147, -inf
  %4245 = vmax.xlane.f32.xlu0 %v4244
  %v4246 = vpop.xlane.xlu0 %4245
  %v4247 = vsel %vm1688, %v4223, -inf
  %4248 = vmax.xlane.f32.xlu0 %v4247
  %v4249 = vpop.xlane.xlu0 %4248
  %v4250 = vsub.f32 %v2950, %v4228
  %v4251 = vsub.f32 %v3026, %v4231
  %v4252 = vsub.f32 %v3349, %v4234
  %v4253 = vsub.f32 %v3425, %v4237
  %v4254 = vsub.f32 %v3748, %v4240
  %v4255 = vsub.f32 %v3824, %v4243
  %v4256 = vsub.f32 %v4147, %v4246
  %v4257 = vsub.f32 %v4223, %v4249
  %v4258 = vmul.f32 %v4250, 1.442695
  %v4259 = vpow.pop %v4258
  %v4260 = vmul.f32 %v4251, 1.442695
  %v4261 = vpow.pop %v4260
  %v4262 = vmul.f32 %v4252, 1.442695
  %v4263 = vpow.pop %v4262
  %v4264 = vmul.f32 %v4253, 1.442695
  %v4265 = vpow.pop %v4264
  %v4266 = vmul.f32 %v4254, 1.442695
  %v4267 = vpow.pop %v4266
  %v4268 = vmul.f32 %v4255, 1.442695
  %v4269 = vpow.pop %v4268
  %v4270 = vmul.f32 %v4256, 1.442695
  %v4271 = vpow.pop %v4270
  %v4272 = vmul.f32 %v4257, 1.442695
  %v4273 = vpow.pop %v4272
  %v4274 = vsel %vm1688, %v4259, 0.0
  %4275 = vadd.xlane.f32.xlu0 %v4274
  %v4276 = vpop.xlane.xlu0 %4275
  %v4277 = vsel %vm1688, %v4261, 0.0
  %4278 = vadd.xlane.f32.xlu0 %v4277
  %v4279 = vpop.xlane.xlu0 %4278
  %v4280 = vsel %vm1688, %v4263, 0.0
  %4281 = vadd.xlane.f32.xlu0 %v4280
  %v4282 = vpop.xlane.xlu0 %4281
  %v4283 = vsel %vm1688, %v4265, 0.0
  %4284 = vadd.xlane.f32.xlu0 %v4283
  %v4285 = vpop.xlane.xlu0 %4284
  %v4286 = vsel %vm1688, %v4267, 0.0
  %4287 = vadd.xlane.f32.xlu0 %v4286
  %v4288 = vpop.xlane.xlu0 %4287
  %v4289 = vsel %vm1688, %v4269, 0.0
  %4290 = vadd.xlane.f32.xlu0 %v4289
  %v4291 = vpop.xlane.xlu0 %4290
  %v4292 = vsel %vm1688, %v4271, 0.0
  %4293 = vadd.xlane.f32.xlu0 %v4292
  %v4294 = vpop.xlane.xlu0 %4293
  %v4295 = vsel %vm1688, %v4273, 0.0
  %4296 = vadd.xlane.f32.xlu0 %v4295
  %v4297 = vpop.xlane.xlu0 %4296
  %v4298 = vrcp.pop %v4276
  %v4299 = vrcp.pop %v4279
  %v4300 = vrcp.pop %v4282
  %v4301 = vrcp.pop %v4285
  %v4302 = vrcp.pop %v4288
  %v4303 = vrcp.pop %v4291
  %v4304 = vrcp.pop %v4294
  %v4305 = vrcp.pop %v4297
  %v4306 = vmul.f32 %v4259, %v4298
  %v4307 = vmul.f32 %v4261, %v4299
  %v4308 = vmul.f32 %v4263, %v4300
  %v4309 = vmul.f32 %v4265, %v4301
  %v4310 = vmul.f32 %v4267, %v4302
  %v4311 = vmul.f32 %v4269, %v4303
  %v4312 = vmul.f32 %v4271, %v4304
  %v4313 = vmul.f32 %v4273, %v4305
  %v4315 = vsel %vm1688, %v4308, 0
  %4317 = vmatprep.subr.mxu0 0.0
  %4318 = vmatpush1.msra.mxu0 %v3268
  %4319 = vmatprep.subr.mxu0 0.0
  %4320 = vmatpush1.msra.mxu0 0.0
  %4321 = vmatprep.subr.mxu0 0.0
  %4322 = vmatpush1.msra.mxu0 0.0
  %4323 = vmatprep.subr.mxu0 0.0
  %4324 = vmatpush1.msra.mxu0 0.0
  %4325 = vmatprep.subr.mxu0 0.0
  %4326 = vmatpush1.msra.mxu0 0.0
  %4327 = vmatprep.subr.mxu0 0.0
  %4328 = vmatpush1.msra.mxu0 0.0
  %4329 = vmatprep.subr.mxu0 0.0
  %4330 = vmatpush1.msra.mxu0 0.0
  %4331 = vmatprep.subr.mxu0 0.0
  %4332 = vmatpush1.msra.mxu0 0.0
  %4333 = vmatprep.subr.mxu0 0.0
  %4334 = vmatpush1.msra.mxu0 0.0
  %4335 = vmatprep.subr.mxu0 0.0
  %4336 = vmatpush1.msra.mxu0 0.0
  %4337 = vmatprep.subr.mxu0 0.0
  %4338 = vmatpush1.msra.mxu0 0.0
  %4339 = vmatprep.subr.mxu0 0.0
  %4340 = vmatpush1.msra.mxu0 0.0
  %4341 = vmatprep.subr.mxu0 0.0
  %4342 = vmatpush1.msra.mxu0 0.0
  %4343 = vmatprep.subr.mxu0 0.0
  %4344 = vmatpush1.msra.mxu0 0.0
  %4345 = vmatprep.subr.mxu0 0.0
  %4346 = vmatpush1.msra.mxu0 0.0
  %4347 = vmatprep.subr.mxu0 0.0
  %4348 = vmatpush1.msra.mxu0 0.0
  %4349 = vmatprep.subr.mxu0 0.0
  %4350 = vmatpush1.msra.mxu0 0.0
  %4351 = vmatprep.subr.mxu0 0.0
  %4352 = vmatpush1.msra.mxu0 0.0
  %4353 = vmatprep.subr.mxu0 0.0
  %4354 = vmatpush1.msra.mxu0 0.0
  %4355 = vmatprep.subr.mxu0 0.0
  %4356 = vmatpush1.msra.mxu0 0.0
  %4357 = vmatprep.subr.mxu0 0.0
  %4358 = vmatpush1.msra.mxu0 0.0
  %4359 = vmatprep.subr.mxu0 0.0
  %4360 = vmatpush1.msra.mxu0 0.0
  %4361 = vmatprep.subr.mxu0 0.0
  %4362 = vmatpush1.msra.mxu0 0.0
  %4363 = vmatprep.subr.mxu0 0.0
  %4364 = vmatpush1.msra.mxu0 0.0
  %4365 = vmatprep.subr.mxu0 0.0
  %4366 = vmatpush1.msra.mxu0 0.0
  %4367 = vmatprep.subr.mxu0 0.0
  %4368 = vmatpush1.msra.mxu0 0.0
  %4369 = vmatprep.subr.mxu0 0.0
  %4370 = vmatpush1.msra.mxu0 0.0
  %4371 = vmatprep.subr.mxu0 0.0
  %4372 = vmatpush1.msra.mxu0 0.0
  %4373 = vmatprep.subr.mxu0 0.0
  %4374 = vmatpush1.msra.mxu0 0.0
  %4375 = vmatprep.subr.mxu0 0.0
  %4376 = vmatpush1.msra.mxu0 0.0
  %4377 = vmatprep.subr.mxu0 0.0
  %4378 = vmatpush1.msra.mxu0 0.0
  %4379 = vmatprep.subr.mxu0 0.0
  %4380 = vmatpush1.msra.mxu0 0.0
  %4381 = vmatprep.mubr.f32.mxu0 0.0
  %4382 = vmatmul.mubr.f32.gmra.mrb[0].mxu0 %v4315
  %v4383 = vpop.f32.mrb[0].mxu0
  %v4384 = vadd.f32 0.0, %v4383
  %v4385 = vpop.f32.mrb[0].mxu0
  %4386 = vdwg.mxu0
  %v4388 = vsel %vm1688, %v4306, 0
  %4390 = vmatprep.subr.mxu0 0.0
  %4391 = vmatpush1.msra.mxu0 %v2869
  %4392 = vmatprep.subr.mxu0 0.0
  %4393 = vmatpush1.msra.mxu0 0.0
  %4394 = vmatprep.subr.mxu0 0.0
  %4395 = vmatpush1.msra.mxu0 0.0
  %4396 = vmatprep.subr.mxu0 0.0
  %4397 = vmatpush1.msra.mxu0 0.0
  %4398 = vmatprep.subr.mxu0 0.0
  %4399 = vmatpush1.msra.mxu0 0.0
  %4400 = vmatprep.subr.mxu0 0.0
  %4401 = vmatpush1.msra.mxu0 0.0
  %4402 = vmatprep.subr.mxu0 0.0
  %4403 = vmatpush1.msra.mxu0 0.0
  %4404 = vmatprep.subr.mxu0 0.0
  %4405 = vmatpush1.msra.mxu0 0.0
  %4406 = vmatprep.subr.mxu0 0.0
  %4407 = vmatpush1.msra.mxu0 0.0
  %4408 = vmatprep.subr.mxu0 0.0
  %4409 = vmatpush1.msra.mxu0 0.0
  %4410 = vmatprep.subr.mxu0 0.0
  %4411 = vmatpush1.msra.mxu0 0.0
  %4412 = vmatprep.subr.mxu0 0.0
  %4413 = vmatpush1.msra.mxu0 0.0
  %4414 = vmatprep.subr.mxu0 0.0
  %4415 = vmatpush1.msra.mxu0 0.0
  %4416 = vmatprep.subr.mxu0 0.0
  %4417 = vmatpush1.msra.mxu0 0.0
  %4418 = vmatprep.subr.mxu0 0.0
  %4419 = vmatpush1.msra.mxu0 0.0
  %4420 = vmatprep.subr.mxu0 0.0
  %4421 = vmatpush1.msra.mxu0 0.0
  %4422 = vmatprep.subr.mxu0 0.0
  %4423 = vmatpush1.msra.mxu0 0.0
  %4424 = vmatprep.subr.mxu0 0.0
  %4425 = vmatpush1.msra.mxu0 0.0
  %4426 = vmatprep.subr.mxu0 0.0
  %4427 = vmatpush1.msra.mxu0 0.0
  %4428 = vmatprep.subr.mxu0 0.0
  %4429 = vmatpush1.msra.mxu0 0.0
  %4430 = vmatprep.subr.mxu0 0.0
  %4431 = vmatpush1.msra.mxu0 0.0
  %4432 = vmatprep.subr.mxu0 0.0
  %4433 = vmatpush1.msra.mxu0 0.0
  %4434 = vmatprep.subr.mxu0 0.0
  %4435 = vmatpush1.msra.mxu0 0.0
  %4436 = vmatprep.subr.mxu0 0.0
  %4437 = vmatpush1.msra.mxu0 0.0
  %4438 = vmatprep.subr.mxu0 0.0
  %4439 = vmatpush1.msra.mxu0 0.0
  %4440 = vmatprep.subr.mxu0 0.0
  %4441 = vmatpush1.msra.mxu0 0.0
  %4442 = vmatprep.subr.mxu0 0.0
  %4443 = vmatpush1.msra.mxu0 0.0
  %4444 = vmatprep.subr.mxu0 0.0
  %4445 = vmatpush1.msra.mxu0 0.0
  %4446 = vmatprep.subr.mxu0 0.0
  %4447 = vmatpush1.msra.mxu0 0.0
  %4448 = vmatprep.subr.mxu0 0.0
  %4449 = vmatpush1.msra.mxu0 0.0
  %4450 = vmatprep.subr.mxu0 0.0
  %4451 = vmatpush1.msra.mxu0 0.0
  %4452 = vmatprep.subr.mxu0 0.0
  %4453 = vmatpush1.msra.mxu0 0.0
  %4454 = vmatprep.mubr.f32.mxu0 0.0
  %4455 = vmatmul.mubr.f32.gmra.mrb[0].mxu0 %v4388
  %v4456 = vpop.f32.mrb[0].mxu0
  %v4457 = vadd.f32 %v4384, %v4456
  %v4458 = vpop.f32.mrb[0].mxu0
  %4459 = vdwg.mxu0
  %v4461 = vsel %vm1688, %v4310, 0
  %4463 = vmatprep.subr.mxu0 0.0
  %4464 = vmatpush1.msra.mxu0 %v3667
  %4465 = vmatprep.subr.mxu0 0.0
  %4466 = vmatpush1.msra.mxu0 0.0
  %4467 = vmatprep.subr.mxu0 0.0
  %4468 = vmatpush1.msra.mxu0 0.0
  %4469 = vmatprep.subr.mxu0 0.0
  %4470 = vmatpush1.msra.mxu0 0.0
  %4471 = vmatprep.subr.mxu0 0.0
  %4472 = vmatpush1.msra.mxu0 0.0
  %4473 = vmatprep.subr.mxu0 0.0
  %4474 = vmatpush1.msra.mxu0 0.0
  %4475 = vmatprep.subr.mxu0 0.0
  %4476 = vmatpush1.msra.mxu0 0.0
  %4477 = vmatprep.subr.mxu0 0.0
  %4478 = vmatpush1.msra.mxu0 0.0
  %4479 = vmatprep.subr.mxu0 0.0
  %4480 = vmatpush1.msra.mxu0 0.0
  %4481 = vmatprep.subr.mxu0 0.0
  %4482 = vmatpush1.msra.mxu0 0.0
  %4483 = vmatprep.subr.mxu0 0.0
  %4484 = vmatpush1.msra.mxu0 0.0
  %4485 = vmatprep.subr.mxu0 0.0
  %4486 = vmatpush1.msra.mxu0 0.0
  %4487 = vmatprep.subr.mxu0 0.0
  %4488 = vmatpush1.msra.mxu0 0.0
  %4489 = vmatprep.subr.mxu0 0.0
  %4490 = vmatpush1.msra.mxu0 0.0
  %4491 = vmatprep.subr.mxu0 0.0
  %4492 = vmatpush1.msra.mxu0 0.0
  %4493 = vmatprep.subr.mxu0 0.0
  %4494 = vmatpush1.msra.mxu0 0.0
  %4495 = vmatprep.subr.mxu0 0.0
  %4496 = vmatpush1.msra.mxu0 0.0
  %4497 = vmatprep.subr.mxu0 0.0
  %4498 = vmatpush1.msra.mxu0 0.0
  %4499 = vmatprep.subr.mxu0 0.0
  %4500 = vmatpush1.msra.mxu0 0.0
  %4501 = vmatprep.subr.mxu0 0.0
  %4502 = vmatpush1.msra.mxu0 0.0
  %4503 = vmatprep.subr.mxu0 0.0
  %4504 = vmatpush1.msra.mxu0 0.0
  %4505 = vmatprep.subr.mxu0 0.0
  %4506 = vmatpush1.msra.mxu0 0.0
  %4507 = vmatprep.subr.mxu0 0.0
  %4508 = vmatpush1.msra.mxu0 0.0
  %4509 = vmatprep.subr.mxu0 0.0
  %4510 = vmatpush1.msra.mxu0 0.0
  %4511 = vmatprep.subr.mxu0 0.0
  %4512 = vmatpush1.msra.mxu0 0.0
  %4513 = vmatprep.subr.mxu0 0.0
  %4514 = vmatpush1.msra.mxu0 0.0
  %4515 = vmatprep.subr.mxu0 0.0
  %4516 = vmatpush1.msra.mxu0 0.0
  %4517 = vmatprep.subr.mxu0 0.0
  %4518 = vmatpush1.msra.mxu0 0.0
  %4519 = vmatprep.subr.mxu0 0.0
  %4520 = vmatpush1.msra.mxu0 0.0
  %4521 = vmatprep.subr.mxu0 0.0
  %4522 = vmatpush1.msra.mxu0 0.0
  %4523 = vmatprep.subr.mxu0 0.0
  %4524 = vmatpush1.msra.mxu0 0.0
  %4525 = vmatprep.subr.mxu0 0.0
  %4526 = vmatpush1.msra.mxu0 0.0
  %4527 = vmatprep.mubr.f32.mxu0 0.0
  %4528 = vmatmul.mubr.f32.gmra.mrb[0].mxu0 %v4461
  %v4529 = vpop.f32.mrb[0].mxu0
  %v4530 = vadd.f32 0.0, %v4529
  %v4531 = vpop.f32.mrb[0].mxu0
  %4532 = vdwg.mxu0
  %v4533 = vadd.f32 %v4457, %v4530
  %v4535 = vsel %vm1688, %v4312, 0
  %4537 = vmatprep.subr.mxu0 0.0
  %4538 = vmatpush1.msra.mxu0 %v4066
  %4539 = vmatprep.subr.mxu0 0.0
  %4540 = vmatpush1.msra.mxu0 0.0
  %4541 = vmatprep.subr.mxu0 0.0
  %4542 = vmatpush1.msra.mxu0 0.0
  %4543 = vmatprep.subr.mxu0 0.0
  %4544 = vmatpush1.msra.mxu0 0.0
  %4545 = vmatprep.subr.mxu0 0.0
  %4546 = vmatpush1.msra.mxu0 0.0
  %4547 = vmatprep.subr.mxu0 0.0
  %4548 = vmatpush1.msra.mxu0 0.0
  %4549 = vmatprep.subr.mxu0 0.0
  %4550 = vmatpush1.msra.mxu0 0.0
  %4551 = vmatprep.subr.mxu0 0.0
  %4552 = vmatpush1.msra.mxu0 0.0
  %4553 = vmatprep.subr.mxu0 0.0
  %4554 = vmatpush1.msra.mxu0 0.0
  %4555 = vmatprep.subr.mxu0 0.0
  %4556 = vmatpush1.msra.mxu0 0.0
  %4557 = vmatprep.subr.mxu0 0.0
  %4558 = vmatpush1.msra.mxu0 0.0
  %4559 = vmatprep.subr.mxu0 0.0
  %4560 = vmatpush1.msra.mxu0 0.0
  %4561 = vmatprep.subr.mxu0 0.0
  %4562 = vmatpush1.msra.mxu0 0.0
  %4563 = vmatprep.subr.mxu0 0.0
  %4564 = vmatpush1.msra.mxu0 0.0
  %4565 = vmatprep.subr.mxu0 0.0
  %4566 = vmatpush1.msra.mxu0 0.0
  %4567 = vmatprep.subr.mxu0 0.0
  %4568 = vmatpush1.msra.mxu0 0.0
  %4569 = vmatprep.subr.mxu0 0.0
  %4570 = vmatpush1.msra.mxu0 0.0
  %4571 = vmatprep.subr.mxu0 0.0
  %4572 = vmatpush1.msra.mxu0 0.0
  %4573 = vmatprep.subr.mxu0 0.0
  %4574 = vmatpush1.msra.mxu0 0.0
  %4575 = vmatprep.subr.mxu0 0.0
  %4576 = vmatpush1.msra.mxu0 0.0
  %4577 = vmatprep.subr.mxu0 0.0
  %4578 = vmatpush1.msra.mxu0 0.0
  %4579 = vmatprep.subr.mxu0 0.0
  %4580 = vmatpush1.msra.mxu0 0.0
  %4581 = vmatprep.subr.mxu0 0.0
  %4582 = vmatpush1.msra.mxu0 0.0
  %4583 = vmatprep.subr.mxu0 0.0
  %4584 = vmatpush1.msra.mxu0 0.0
  %4585 = vmatprep.subr.mxu0 0.0
  %4586 = vmatpush1.msra.mxu0 0.0
  %4587 = vmatprep.subr.mxu0 0.0
  %4588 = vmatpush1.msra.mxu0 0.0
  %4589 = vmatprep.subr.mxu0 0.0
  %4590 = vmatpush1.msra.mxu0 0.0
  %4591 = vmatprep.subr.mxu0 0.0
  %4592 = vmatpush1.msra.mxu0 0.0
  %4593 = vmatprep.subr.mxu0 0.0
  %4594 = vmatpush1.msra.mxu0 0.0
  %4595 = vmatprep.subr.mxu0 0.0
  %4596 = vmatpush1.msra.mxu0 0.0
  %4597 = vmatprep.subr.mxu0 0.0
  %4598 = vmatpush1.msra.mxu0 0.0
  %4599 = vmatprep.subr.mxu0 0.0
  %4600 = vmatpush1.msra.mxu0 0.0
  %4601 = vmatprep.mubr.f32.mxu0 0.0
  %4602 = vmatmul.mubr.f32.gmra.mrb[0].mxu0 %v4535
  %v4603 = vpop.f32.mrb[0].mxu0
  %v4604 = vadd.f32 0.0, %v4603
  %v4605 = vpop.f32.mrb[0].mxu0
  %4606 = vdwg.mxu0
  %v4607 = vadd.f32 %v4533, %v4604
  %v4609 = vsel %vm1688, %v4309, 0
  %4611 = vmatprep.subr.mxu0 0.0
  %4612 = vmatpush1.msra.mxu0 %v3273
  %4613 = vmatprep.subr.mxu0 0.0
  %4614 = vmatpush1.msra.mxu0 0.0
  %4615 = vmatprep.subr.mxu0 0.0
  %4616 = vmatpush1.msra.mxu0 0.0
  %4617 = vmatprep.subr.mxu0 0.0
  %4618 = vmatpush1.msra.mxu0 0.0
  %4619 = vmatprep.subr.mxu0 0.0
  %4620 = vmatpush1.msra.mxu0 0.0
  %4621 = vmatprep.subr.mxu0 0.0
  %4622 = vmatpush1.msra.mxu0 0.0
  %4623 = vmatprep.subr.mxu0 0.0
  %4624 = vmatpush1.msra.mxu0 0.0
  %4625 = vmatprep.subr.mxu0 0.0
  %4626 = vmatpush1.msra.mxu0 0.0
  %4627 = vmatprep.subr.mxu0 0.0
  %4628 = vmatpush1.msra.mxu0 0.0
  %4629 = vmatprep.subr.mxu0 0.0
  %4630 = vmatpush1.msra.mxu0 0.0
  %4631 = vmatprep.subr.mxu0 0.0
  %4632 = vmatpush1.msra.mxu0 0.0
  %4633 = vmatprep.subr.mxu0 0.0
  %4634 = vmatpush1.msra.mxu0 0.0
  %4635 = vmatprep.subr.mxu0 0.0
  %4636 = vmatpush1.msra.mxu0 0.0
  %4637 = vmatprep.subr.mxu0 0.0
  %4638 = vmatpush1.msra.mxu0 0.0
  %4639 = vmatprep.subr.mxu0 0.0
  %4640 = vmatpush1.msra.mxu0 0.0
  %4641 = vmatprep.subr.mxu0 0.0
  %4642 = vmatpush1.msra.mxu0 0.0
  %4643 = vmatprep.subr.mxu0 0.0
  %4644 = vmatpush1.msra.mxu0 0.0
  %4645 = vmatprep.subr.mxu0 0.0
  %4646 = vmatpush1.msra.mxu0 0.0
  %4647 = vmatprep.subr.mxu0 0.0
  %4648 = vmatpush1.msra.mxu0 0.0
  %4649 = vmatprep.subr.mxu0 0.0
  %4650 = vmatpush1.msra.mxu0 0.0
  %4651 = vmatprep.subr.mxu0 0.0
  %4652 = vmatpush1.msra.mxu0 0.0
  %4653 = vmatprep.subr.mxu0 0.0
  %4654 = vmatpush1.msra.mxu0 0.0
  %4655 = vmatprep.subr.mxu0 0.0
  %4656 = vmatpush1.msra.mxu0 0.0
  %4657 = vmatprep.subr.mxu0 0.0
  %4658 = vmatpush1.msra.mxu0 0.0
  %4659 = vmatprep.subr.mxu0 0.0
  %4660 = vmatpush1.msra.mxu0 0.0
  %4661 = vmatprep.subr.mxu0 0.0
  %4662 = vmatpush1.msra.mxu0 0.0
  %4663 = vmatprep.subr.mxu0 0.0
  %4664 = vmatpush1.msra.mxu0 0.0
  %4665 = vmatprep.subr.mxu0 0.0
  %4666 = vmatpush1.msra.mxu0 0.0
  %4667 = vmatprep.subr.mxu0 0.0
  %4668 = vmatpush1.msra.mxu0 0.0
  %4669 = vmatprep.subr.mxu0 0.0
  %4670 = vmatpush1.msra.mxu0 0.0
  %4671 = vmatprep.subr.mxu0 0.0
  %4672 = vmatpush1.msra.mxu0 0.0
  %4673 = vmatprep.subr.mxu0 0.0
  %4674 = vmatpush1.msra.mxu0 0.0
  %4675 = vmatprep.mubr.f32.mxu0 0.0
  %4676 = vmatmul.mubr.f32.gmra.mrb[0].mxu0 %v4609
  %v4677 = vpop.f32.mrb[0].mxu0
  %v4678 = vadd.f32 0.0, %v4677
  %v4679 = vpop.f32.mrb[0].mxu0
  %4680 = vdwg.mxu0
  %v4682 = vsel %vm1688, %v4307, 0
  %4684 = vmatprep.subr.mxu0 0.0
  %4685 = vmatpush1.msra.mxu0 %v2874
  %4686 = vmatprep.subr.mxu0 0.0
  %4687 = vmatpush1.msra.mxu0 0.0
  %4688 = vmatprep.subr.mxu0 0.0
  %4689 = vmatpush1.msra.mxu0 0.0
  %4690 = vmatprep.subr.mxu0 0.0
  %4691 = vmatpush1.msra.mxu0 0.0
  %4692 = vmatprep.subr.mxu0 0.0
  %4693 = vmatpush1.msra.mxu0 0.0
  %4694 = vmatprep.subr.mxu0 0.0
  %4695 = vmatpush1.msra.mxu0 0.0
  %4696 = vmatprep.subr.mxu0 0.0
  %4697 = vmatpush1.msra.mxu0 0.0
  %4698 = vmatprep.subr.mxu0 0.0
  %4699 = vmatpush1.msra.mxu0 0.0
  %4700 = vmatprep.subr.mxu0 0.0
  %4701 = vmatpush1.msra.mxu0 0.0
  %4702 = vmatprep.subr.mxu0 0.0
  %4703 = vmatpush1.msra.mxu0 0.0
  %4704 = vmatprep.subr.mxu0 0.0
  %4705 = vmatpush1.msra.mxu0 0.0
  %4706 = vmatprep.subr.mxu0 0.0
  %4707 = vmatpush1.msra.mxu0 0.0
  %4708 = vmatprep.subr.mxu0 0.0
  %4709 = vmatpush1.msra.mxu0 0.0
  %4710 = vmatprep.subr.mxu0 0.0
  %4711 = vmatpush1.msra.mxu0 0.0
  %4712 = vmatprep.subr.mxu0 0.0
  %4713 = vmatpush1.msra.mxu0 0.0
  %4714 = vmatprep.subr.mxu0 0.0
  %4715 = vmatpush1.msra.mxu0 0.0
  %4716 = vmatprep.subr.mxu0 0.0
  %4717 = vmatpush1.msra.mxu0 0.0
  %4718 = vmatprep.subr.mxu0 0.0
  %4719 = vmatpush1.msra.mxu0 0.0
  %4720 = vmatprep.subr.mxu0 0.0
  %4721 = vmatpush1.msra.mxu0 0.0
  %4722 = vmatprep.subr.mxu0 0.0
  %4723 = vmatpush1.msra.mxu0 0.0
  %4724 = vmatprep.subr.mxu0 0.0
  %4725 = vmatpush1.msra.mxu0 0.0
  %4726 = vmatprep.subr.mxu0 0.0
  %4727 = vmatpush1.msra.mxu0 0.0
  %4728 = vmatprep.subr.mxu0 0.0
  %4729 = vmatpush1.msra.mxu0 0.0
  %4730 = vmatprep.subr.mxu0 0.0
  %4731 = vmatpush1.msra.mxu0 0.0
  %4732 = vmatprep.subr.mxu0 0.0
  %4733 = vmatpush1.msra.mxu0 0.0
  %4734 = vmatprep.subr.mxu0 0.0
  %4735 = vmatpush1.msra.mxu0 0.0
  %4736 = vmatprep.subr.mxu0 0.0
  %4737 = vmatpush1.msra.mxu0 0.0
  %4738 = vmatprep.subr.mxu0 0.0
  %4739 = vmatpush1.msra.mxu0 0.0
  %4740 = vmatprep.subr.mxu0 0.0
  %4741 = vmatpush1.msra.mxu0 0.0
  %4742 = vmatprep.subr.mxu0 0.0
  %4743 = vmatpush1.msra.mxu0 0.0
  %4744 = vmatprep.subr.mxu0 0.0
  %4745 = vmatpush1.msra.mxu0 0.0
  %4746 = vmatprep.subr.mxu0 0.0
  %4747 = vmatpush1.msra.mxu0 0.0
  %4748 = vmatprep.mubr.f32.mxu0 0.0
  %4749 = vmatmul.mubr.f32.gmra.mrb[0].mxu0 %v4682
  %v4750 = vpop.f32.mrb[0].mxu0
  %v4751 = vadd.f32 %v4678, %v4750
  %v4752 = vpop.f32.mrb[0].mxu0
  %4753 = vdwg.mxu0
  %v4755 = vsel %vm1688, %v4311, 0
  %4757 = vmatprep.subr.mxu0 0.0
  %4758 = vmatpush1.msra.mxu0 %v3672
  %4759 = vmatprep.subr.mxu0 0.0
  %4760 = vmatpush1.msra.mxu0 0.0
  %4761 = vmatprep.subr.mxu0 0.0
  %4762 = vmatpush1.msra.mxu0 0.0
  %4763 = vmatprep.subr.mxu0 0.0
  %4764 = vmatpush1.msra.mxu0 0.0
  %4765 = vmatprep.subr.mxu0 0.0
  %4766 = vmatpush1.msra.mxu0 0.0
  %4767 = vmatprep.subr.mxu0 0.0
  %4768 = vmatpush1.msra.mxu0 0.0
  %4769 = vmatprep.subr.mxu0 0.0
  %4770 = vmatpush1.msra.mxu0 0.0
  %4771 = vmatprep.subr.mxu0 0.0
  %4772 = vmatpush1.msra.mxu0 0.0
  %4773 = vmatprep.subr.mxu0 0.0
  %4774 = vmatpush1.msra.mxu0 0.0
  %4775 = vmatprep.subr.mxu0 0.0
  %4776 = vmatpush1.msra.mxu0 0.0
  %4777 = vmatprep.subr.mxu0 0.0
  %4778 = vmatpush1.msra.mxu0 0.0
  %4779 = vmatprep.subr.mxu0 0.0
  %4780 = vmatpush1.msra.mxu0 0.0
  %4781 = vmatprep.subr.mxu0 0.0
  %4782 = vmatpush1.msra.mxu0 0.0
  %4783 = vmatprep.subr.mxu0 0.0
  %4784 = vmatpush1.msra.mxu0 0.0
  %4785 = vmatprep.subr.mxu0 0.0
  %4786 = vmatpush1.msra.mxu0 0.0
  %4787 = vmatprep.subr.mxu0 0.0
  %4788 = vmatpush1.msra.mxu0 0.0
  %4789 = vmatprep.subr.mxu0 0.0
  %4790 = vmatpush1.msra.mxu0 0.0
  %4791 = vmatprep.subr.mxu0 0.0
  %4792 = vmatpush1.msra.mxu0 0.0
  %4793 = vmatprep.subr.mxu0 0.0
  %4794 = vmatpush1.msra.mxu0 0.0
  %4795 = vmatprep.subr.mxu0 0.0
  %4796 = vmatpush1.msra.mxu0 0.0
  %4797 = vmatprep.subr.mxu0 0.0
  %4798 = vmatpush1.msra.mxu0 0.0
  %4799 = vmatprep.subr.mxu0 0.0
  %4800 = vmatpush1.msra.mxu0 0.0
  %4801 = vmatprep.subr.mxu0 0.0
  %4802 = vmatpush1.msra.mxu0 0.0
  %4803 = vmatprep.subr.mxu0 0.0
  %4804 = vmatpush1.msra.mxu0 0.0
  %4805 = vmatprep.subr.mxu0 0.0
  %4806 = vmatpush1.msra.mxu0 0.0
  %4807 = vmatprep.subr.mxu0 0.0
  %4808 = vmatpush1.msra.mxu0 0.0
  %4809 = vmatprep.subr.mxu0 0.0
  %4810 = vmatpush1.msra.mxu0 0.0
  %4811 = vmatprep.subr.mxu0 0.0
  %4812 = vmatpush1.msra.mxu0 0.0
  %4813 = vmatprep.subr.mxu0 0.0
  %4814 = vmatpush1.msra.mxu0 0.0
  %4815 = vmatprep.subr.mxu0 0.0
  %4816 = vmatpush1.msra.mxu0 0.0
  %4817 = vmatprep.subr.mxu0 0.0
  %4818 = vmatpush1.msra.mxu0 0.0
  %4819 = vmatprep.subr.mxu0 0.0
  %4820 = vmatpush1.msra.mxu0 0.0
  %4821 = vmatprep.mubr.f32.mxu0 0.0
  %4822 = vmatmul.mubr.f32.gmra.mrb[0].mxu0 %v4755
  %v4823 = vpop.f32.mrb[0].mxu0
  %v4824 = vadd.f32 0.0, %v4823
  %v4825 = vpop.f32.mrb[0].mxu0
  %4826 = vdwg.mxu0
  %v4827 = vadd.f32 %v4751, %v4824
  %v4829 = vsel %vm1688, %v4313, 0
  %4831 = vmatprep.subr.mxu0 0.0
  %4832 = vmatpush1.msra.mxu0 %v4071
  %4833 = vmatprep.subr.mxu0 0.0
  %4834 = vmatpush1.msra.mxu0 0.0
  %4835 = vmatprep.subr.mxu0 0.0
  %4836 = vmatpush1.msra.mxu0 0.0
  %4837 = vmatprep.subr.mxu0 0.0
  %4838 = vmatpush1.msra.mxu0 0.0
  %4839 = vmatprep.subr.mxu0 0.0
  %4840 = vmatpush1.msra.mxu0 0.0
  %4841 = vmatprep.subr.mxu0 0.0
  %4842 = vmatpush1.msra.mxu0 0.0
  %4843 = vmatprep.subr.mxu0 0.0
  %4844 = vmatpush1.msra.mxu0 0.0
  %4845 = vmatprep.subr.mxu0 0.0
  %4846 = vmatpush1.msra.mxu0 0.0
  %4847 = vmatprep.subr.mxu0 0.0
  %4848 = vmatpush1.msra.mxu0 0.0
  %4849 = vmatprep.subr.mxu0 0.0
  %4850 = vmatpush1.msra.mxu0 0.0
  %4851 = vmatprep.subr.mxu0 0.0
  %4852 = vmatpush1.msra.mxu0 0.0
  %4853 = vmatprep.subr.mxu0 0.0
  %4854 = vmatpush1.msra.mxu0 0.0
  %4855 = vmatprep.subr.mxu0 0.0
  %4856 = vmatpush1.msra.mxu0 0.0
  %4857 = vmatprep.subr.mxu0 0.0
  %4858 = vmatpush1.msra.mxu0 0.0
  %4859 = vmatprep.subr.mxu0 0.0
  %4860 = vmatpush1.msra.mxu0 0.0
  %4861 = vmatprep.subr.mxu0 0.0
  %4862 = vmatpush1.msra.mxu0 0.0
  %4863 = vmatprep.subr.mxu0 0.0
  %4864 = vmatpush1.msra.mxu0 0.0
  %4865 = vmatprep.subr.mxu0 0.0
  %4866 = vmatpush1.msra.mxu0 0.0
  %4867 = vmatprep.subr.mxu0 0.0
  %4868 = vmatpush1.msra.mxu0 0.0
  %4869 = vmatprep.subr.mxu0 0.0
  %4870 = vmatpush1.msra.mxu0 0.0
  %4871 = vmatprep.subr.mxu0 0.0
  %4872 = vmatpush1.msra.mxu0 0.0
  %4873 = vmatprep.subr.mxu0 0.0
  %4874 = vmatpush1.msra.mxu0 0.0
  %4875 = vmatprep.subr.mxu0 0.0
  %4876 = vmatpush1.msra.mxu0 0.0
  %4877 = vmatprep.subr.mxu0 0.0
  %4878 = vmatpush1.msra.mxu0 0.0
  %4879 = vmatprep.subr.mxu0 0.0
  %4880 = vmatpush1.msra.mxu0 0.0
  %4881 = vmatprep.subr.mxu0 0.0
  %4882 = vmatpush1.msra.mxu0 0.0
  %4883 = vmatprep.subr.mxu0 0.0
  %4884 = vmatpush1.msra.mxu0 0.0
  %4885 = vmatprep.subr.mxu0 0.0
  %4886 = vmatpush1.msra.mxu0 0.0
  %4887 = vmatprep.subr.mxu0 0.0
  %4888 = vmatpush1.msra.mxu0 0.0
  %4889 = vmatprep.subr.mxu0 0.0
  %4890 = vmatpush1.msra.mxu0 0.0
  %4891 = vmatprep.subr.mxu0 0.0
  %4892 = vmatpush1.msra.mxu0 0.0
  %4893 = vmatprep.subr.mxu0 0.0
  %4894 = vmatpush1.msra.mxu0 0.0
  %4895 = vmatprep.mubr.f32.mxu0 0.0
  %4896 = vmatmul.mubr.f32.gmra.mrb[0].mxu0 %v4829
  %v4897 = vpop.f32.mrb[0].mxu0
  %v4898 = vadd.f32 0.0, %v4897
  %v4899 = vpop.f32.mrb[0].mxu0
  %4900 = vdwg.mxu0
  %v4901 = vadd.f32 %v4827, %v4898
  %v4902 = vld [vmem:[%s6 + $0x8] sm:$0x1]
  %v4903 = vlaneseq
  %v4904 = vshrl.u32 %v4903, 7
  %v4905 = vsub.s32 0, %v4904
  %v4906 = vrot.slane %v4902, %v4905
  %v4907 = vadd.f32 %v4607, %v4906
  %v4908 = vadd.f32 %v4901, %v4906
  %v4909 = vadd.f32 %v2615, %v4907
  %v4910 = vadd.f32 %v2620, %v4908
  %v4911 = vsel %vm2640, %v4909, 0.0
  %4912 = vadd.xlane.f32.xlu0 %v4911
  %v4913 = vpop.xlane.xlu0 %4912
  %v4914 = vsel %vm2640, %v4910, 0.0
  %4915 = vadd.xlane.f32.xlu0 %v4914
  %v4916 = vpop.xlane.xlu0 %4915
  %v4917 = vrcp.pop 32.0
  %v4918 = vmul.f32 %v4913, %v4917
  %v4919 = vmul.f32 %v4916, %v4917
  %v4920 = vsub.f32 %v4909, %v4918
  %v4921 = vsub.f32 %v4910, %v4919
  %v4922 = vmul.f32 %v4920, %v4920
  %v4923 = vmul.f32 %v4921, %v4921
  %v4924 = vsel %vm2640, %v4922, 0.0
  %4925 = vadd.xlane.f32.xlu0 %v4924
  %v4926 = vpop.xlane.xlu0 %4925
  %v4927 = vsel %vm2640, %v4923, 0.0
  %4928 = vadd.xlane.f32.xlu0 %v4927
  %v4929 = vpop.xlane.xlu0 %4928
  %v4930 = vmul.f32 %v4926, %v4917
  %v4931 = vmul.f32 %v4929, %v4917
  %v4932 = vadd.f32 %v4930, 1e-05
  %v4933 = vadd.f32 %v4931, 1e-05
  %v4934 = vrsqrt.pop %v4932
  %v4935 = vrsqrt.pop %v4933
  %v4936 = vmul.f32 %v4920, %v4934
  %v4937 = vmul.f32 %v4921, %v4935
  %v4938 = vld [vmem:[%s6 + $0x9] sm:$0x1]
  %v4939 = vlaneseq
  %v4940 = vshrl.u32 %v4939, 7
  %v4941 = vsub.s32 0, %v4940
  %v4942 = vrot.slane %v4938, %v4941
  %v4943 = vmul.f32 %v4936, %v4942
  %v4944 = vmul.f32 %v4937, %v4942
  %v4945 = vld [vmem:[%s6 + $0xa] sm:$0x1]
  %v4946 = vlaneseq
  %v4947 = vshrl.u32 %v4946, 7
  %v4948 = vsub.s32 0, %v4947
  %v4949 = vrot.slane %v4945, %v4948
  %v4950 = vadd.f32 %v4943, %v4949
  %v4951 = vadd.f32 %v4944, %v4949
  %v4952 = vld [vmem:[%s5] sm:$0xff]
  %v4953 = vld [vmem:[%s5 + $0x8] sm:$0xff]
  %v4954 = vld [vmem:[%s5 + $0x10] sm:$0xff]
  %v4955 = vld [vmem:[%s5 + $0x18] sm:$0xff]
  %v4956 = vld [vmem:[%s6 + $0xb] sm:$0x1]
  %v4957 = vlaneseq
  %v4958 = vshrl.u32 %v4957, 7
  %v4959 = vsub.s32 0, %v4958
  %v4960 = vrot.slane %v4956, %v4959
  %v4962 = vsel %vm2640, %v4950, 0
  %v4965 = vsel %vm2640, %v4951, 0
  %4967 = vmatprep.subr.mxu0 0.0
  %4968 = vmatpush1.msra.mxu0 %v4952
  %4969 = vmatprep.subr.mxu0 0.0
  %4970 = vmatpush1.msra.mxu0 %v4953
  %4971 = vmatprep.subr.mxu0 0.0
  %4972 = vmatpush1.msra.mxu0 %v4954
  %4973 = vmatprep.subr.mxu0 0.0
  %4974 = vmatpush1.msra.mxu0 %v4955
  %4975 = vmatprep.subr.mxu0 0.0
  %4976 = vmatpush1.msra.mxu0 0.0
  %4977 = vmatprep.subr.mxu0 0.0
  %4978 = vmatpush1.msra.mxu0 0.0
  %4979 = vmatprep.subr.mxu0 0.0
  %4980 = vmatpush1.msra.mxu0 0.0
  %4981 = vmatprep.subr.mxu0 0.0
  %4982 = vmatpush1.msra.mxu0 0.0
  %4983 = vmatprep.subr.mxu0 0.0
  %4984 = vmatpush1.msra.mxu0 0.0
  %4985 = vmatprep.subr.mxu0 0.0
  %4986 = vmatpush1.msra.mxu0 0.0
  %4987 = vmatprep.subr.mxu0 0.0
  %4988 = vmatpush1.msra.mxu0 0.0
  %4989 = vmatprep.subr.mxu0 0.0
  %4990 = vmatpush1.msra.mxu0 0.0
  %4991 = vmatprep.subr.mxu0 0.0
  %4992 = vmatpush1.msra.mxu0 0.0
  %4993 = vmatprep.subr.mxu0 0.0
  %4994 = vmatpush1.msra.mxu0 0.0
  %4995 = vmatprep.subr.mxu0 0.0
  %4996 = vmatpush1.msra.mxu0 0.0
  %4997 = vmatprep.subr.mxu0 0.0
  %4998 = vmatpush1.msra.mxu0 0.0
  %4999 = vmatprep.subr.mxu0 0.0
  %5000 = vmatpush1.msra.mxu0 0.0
  %5001 = vmatprep.subr.mxu0 0.0
  %5002 = vmatpush1.msra.mxu0 0.0
  %5003 = vmatprep.subr.mxu0 0.0
  %5004 = vmatpush1.msra.mxu0 0.0
  %5005 = vmatprep.subr.mxu0 0.0
  %5006 = vmatpush1.msra.mxu0 0.0
  %5007 = vmatprep.subr.mxu0 0.0
  %5008 = vmatpush1.msra.mxu0 0.0
  %5009 = vmatprep.subr.mxu0 0.0
  %5010 = vmatpush1.msra.mxu0 0.0
  %5011 = vmatprep.subr.mxu0 0.0
  %5012 = vmatpush1.msra.mxu0 0.0
  %5013 = vmatprep.subr.mxu0 0.0
  %5014 = vmatpush1.msra.mxu0 0.0
  %5015 = vmatprep.subr.mxu0 0.0
  %5016 = vmatpush1.msra.mxu0 0.0
  %5017 = vmatprep.subr.mxu0 0.0
  %5018 = vmatpush1.msra.mxu0 0.0
  %5019 = vmatprep.subr.mxu0 0.0
  %5020 = vmatpush1.msra.mxu0 0.0
  %5021 = vmatprep.subr.mxu0 0.0
  %5022 = vmatpush1.msra.mxu0 0.0
  %5023 = vmatprep.subr.mxu0 0.0
  %5024 = vmatpush1.msra.mxu0 0.0
  %5025 = vmatprep.subr.mxu0 0.0
  %5026 = vmatpush1.msra.mxu0 0.0
  %5027 = vmatprep.subr.mxu0 0.0
  %5028 = vmatpush1.msra.mxu0 0.0
  %5029 = vmatprep.subr.mxu0 0.0
  %5030 = vmatpush1.msra.mxu0 0.0
  %5031 = vmatprep.mubr.f32.mxu0 0.0
  %5032 = vmatmul.mubr.f32.gmra.mrb[0].mxu0 %v4962
  %v5033 = vpop.f32.mrb[0].mxu0
  %v5034 = vadd.f32 %v4960, %v5033
  %v5035 = vpop.f32.mrb[0].mxu0
  %5036 = vmatprep.mubr.f32.mxu0 0.0
  %5037 = vmatmul.mubr.f32.gmra.mrb[0].mxu0 %v4965
  %v5038 = vpop.f32.mrb[0].mxu0
  %v5039 = vadd.f32 %v4960, %v5038
  %v5040 = vpop.f32.mrb[0].mxu0
  %5041 = vdwg.mxu0
  %v5042 = vmul.f32 %v5034, 0.5
  %v5043 = vmul.f32 %v5039, 0.5
  %v5044 = vmul.f32 %v5034, 0.044715
  %v5045 = vmul.f32 %v5039, 0.044715
  %v5046 = vmul.f32 %v5044, %v5034
  %v5047 = vmul.f32 %v5045, %v5039
  %v5048 = vmul.f32 %v5046, %v5034
  %v5049 = vmul.f32 %v5047, %v5039
  %v5050 = vadd.f32 %v5034, %v5048
  %v5051 = vadd.f32 %v5039, %v5049
  %v5052 = vmul.f32 %v5050, 0.7978846
  %v5053 = vmul.f32 %v5051, 0.7978846
  %v5054 = vtanh.pop %v5052
  %v5055 = vtanh.pop %v5053
  %v5056 = vadd.f32 %v5054, 1.0
  %v5057 = vadd.f32 %v5055, 1.0
  %v5058 = vmul.f32 %v5042, %v5056
  %v5059 = vmul.f32 %v5043, %v5057
  %v5060 = vld [vmem:[%s5 + $0x20] sm:$0xff]
  %v5061 = vld [vmem:[%s5 + $0x28] sm:$0xff]
  %v5062 = vld [vmem:[%s5 + $0x30] sm:$0xff]
  %v5063 = vld [vmem:[%s5 + $0x38] sm:$0xff]
  %v5064 = vld [vmem:[%s5 + $0x40] sm:$0xff]
  %v5065 = vld [vmem:[%s5 + $0x48] sm:$0xff]
  %v5066 = vld [vmem:[%s5 + $0x50] sm:$0xff]
  %v5067 = vld [vmem:[%s5 + $0x58] sm:$0xff]
  %v5068 = vld [vmem:[%s5 + $0x60] sm:$0xff]
  %v5069 = vld [vmem:[%s5 + $0x68] sm:$0xff]
  %v5070 = vld [vmem:[%s5 + $0x70] sm:$0xff]
  %v5071 = vld [vmem:[%s5 + $0x78] sm:$0xff]
  %v5072 = vld [vmem:[%s5 + $0x80] sm:$0xff]
  %v5073 = vld [vmem:[%s5 + $0x88] sm:$0xff]
  %v5074 = vld [vmem:[%s5 + $0x90] sm:$0xff]
  %v5075 = vld [vmem:[%s5 + $0x98] sm:$0xff]
  %v5076 = vld [vmem:[%s6 + $0xc] sm:$0x1]
  %v5077 = vlaneseq
  %v5078 = vshrl.u32 %v5077, 7
  %v5079 = vsub.s32 0, %v5078
  %v5080 = vrot.slane %v5076, %v5079
  %5081 = vmatprep.subr.mxu0 0.0
  %5082 = vmatpush1.msra.mxu0 %v5060
  %5083 = vmatprep.subr.mxu0 0.0
  %5084 = vmatpush1.msra.mxu0 %v5061
  %5085 = vmatprep.subr.mxu0 0.0
  %5086 = vmatpush1.msra.mxu0 %v5062
  %5087 = vmatprep.subr.mxu0 0.0
  %5088 = vmatpush1.msra.mxu0 %v5063
  %5089 = vmatprep.subr.mxu0 0.0
  %5090 = vmatpush1.msra.mxu0 %v5064
  %5091 = vmatprep.subr.mxu0 0.0
  %5092 = vmatpush1.msra.mxu0 %v5065
  %5093 = vmatprep.subr.mxu0 0.0
  %5094 = vmatpush1.msra.mxu0 %v5066
  %5095 = vmatprep.subr.mxu0 0.0
  %5096 = vmatpush1.msra.mxu0 %v5067
  %5097 = vmatprep.subr.mxu0 0.0
  %5098 = vmatpush1.msra.mxu0 %v5068
  %5099 = vmatprep.subr.mxu0 0.0
  %5100 = vmatpush1.msra.mxu0 %v5069
  %5101 = vmatprep.subr.mxu0 0.0
  %5102 = vmatpush1.msra.mxu0 %v5070
  %5103 = vmatprep.subr.mxu0 0.0
  %5104 = vmatpush1.msra.mxu0 %v5071
  %5105 = vmatprep.subr.mxu0 0.0
  %5106 = vmatpush1.msra.mxu0 %v5072
  %5107 = vmatprep.subr.mxu0 0.0
  %5108 = vmatpush1.msra.mxu0 %v5073
  %5109 = vmatprep.subr.mxu0 0.0
  %5110 = vmatpush1.msra.mxu0 %v5074
  %5111 = vmatprep.subr.mxu0 0.0
  %5112 = vmatpush1.msra.mxu0 %v5075
  %5113 = vmatprep.subr.mxu0 0.0
  %5114 = vmatpush1.msra.mxu0 0.0
  %5115 = vmatprep.subr.mxu0 0.0
  %5116 = vmatpush1.msra.mxu0 0.0
  %5117 = vmatprep.subr.mxu0 0.0
  %5118 = vmatpush1.msra.mxu0 0.0
  %5119 = vmatprep.subr.mxu0 0.0
  %5120 = vmatpush1.msra.mxu0 0.0
  %5121 = vmatprep.subr.mxu0 0.0
  %5122 = vmatpush1.msra.mxu0 0.0
  %5123 = vmatprep.subr.mxu0 0.0
  %5124 = vmatpush1.msra.mxu0 0.0
  %5125 = vmatprep.subr.mxu0 0.0
  %5126 = vmatpush1.msra.mxu0 0.0
  %5127 = vmatprep.subr.mxu0 0.0
  %5128 = vmatpush1.msra.mxu0 0.0
  %5129 = vmatprep.subr.mxu0 0.0
  %5130 = vmatpush1.msra.mxu0 0.0
  %5131 = vmatprep.subr.mxu0 0.0
  %5132 = vmatpush1.msra.mxu0 0.0
  %5133 = vmatprep.subr.mxu0 0.0
  %5134 = vmatpush1.msra.mxu0 0.0
  %5135 = vmatprep.subr.mxu0 0.0
  %5136 = vmatpush1.msra.mxu0 0.0
  %5137 = vmatprep.subr.mxu0 0.0
  %5138 = vmatpush1.msra.mxu0 0.0
  %5139 = vmatprep.subr.mxu0 0.0
  %5140 = vmatpush1.msra.mxu0 0.0
  %5141 = vmatprep.subr.mxu0 0.0
  %5142 = vmatpush1.msra.mxu0 0.0
  %5143 = vmatprep.subr.mxu0 0.0
  %5144 = vmatpush1.msra.mxu0 0.0
  %5145 = vmatprep.mubr.f32.mxu0 0.0
  %5146 = vmatmul.mubr.f32.gmra.mrb[0].mxu0 %v5058
  %v5147 = vpop.f32.mrb[0].mxu0
  %v5148 = vadd.f32 %v5080, %v5147
  %v5149 = vpop.f32.mrb[0].mxu0
  %5150 = vmatprep.mubr.f32.mxu0 0.0
  %5151 = vmatmul.mubr.f32.gmra.mrb[0].mxu0 %v5059
  %v5152 = vpop.f32.mrb[0].mxu0
  %v5153 = vadd.f32 %v5080, %v5152
  %v5154 = vpop.f32.mrb[0].mxu0
  %5155 = vdwg.mxu0
  %v5156 = vld [vmem:[%s7] sm:$0xff]
  %v5157 = vld [vmem:[%s7 + $0x8] sm:$0xff]
  %v5158 = vld [vmem:[%s7 + $0x40] sm:$0xff]
  %v5159 = vld [vmem:[%s7 + $0x48] sm:$0xff]
  %v5160 = vld [vmem:[%s7 + $0x80] sm:$0xff]
  %v5161 = vld [vmem:[%s7 + $0x88] sm:$0xff]
  %v5162 = vld [vmem:[%s9] sm:$0x1]
  %v5163 = vlaneseq
  %v5164 = vshrl.u32 %v5163, 7
  %v5165 = vsub.s32 0, %v5164
  %v5166 = vrot.slane %v5162, %v5165
  %vm5167 = vcmask 130048
  %v5169 = vsel %vm5167, %v5148, 0
  %v5172 = vsel %vm5167, %v5153, 0
  %5174 = vmatprep.subr.mxu0 0.0
  %5175 = vmatpush1.msra.mxu0 %v5156
  %5176 = vmatprep.subr.mxu0 0.0
  %5177 = vmatpush1.msra.mxu0 %v5157
  %5178 = vmatprep.subr.mxu0 0.0
  %5179 = vmatpush1.msra.mxu0 0.0
  %5180 = vmatprep.subr.mxu0 0.0
  %5181 = vmatpush1.msra.mxu0 0.0
  %5182 = vmatprep.subr.mxu0 0.0
  %5183 = vmatpush1.msra.mxu0 0.0
  %5184 = vmatprep.subr.mxu0 0.0
  %5185 = vmatpush1.msra.mxu0 0.0
  %5186 = vmatprep.subr.mxu0 0.0
  %5187 = vmatpush1.msra.mxu0 0.0
  %5188 = vmatprep.subr.mxu0 0.0
  %5189 = vmatpush1.msra.mxu0 0.0
  %5190 = vmatprep.subr.mxu0 0.0
  %5191 = vmatpush1.msra.mxu0 0.0
  %5192 = vmatprep.subr.mxu0 0.0
  %5193 = vmatpush1.msra.mxu0 0.0
  %5194 = vmatprep.subr.mxu0 0.0
  %5195 = vmatpush1.msra.mxu0 0.0
  %5196 = vmatprep.subr.mxu0 0.0
  %5197 = vmatpush1.msra.mxu0 0.0
  %5198 = vmatprep.subr.mxu0 0.0
  %5199 = vmatpush1.msra.mxu0 0.0
  %5200 = vmatprep.subr.mxu0 0.0
  %5201 = vmatpush1.msra.mxu0 0.0
  %5202 = vmatprep.subr.mxu0 0.0
  %5203 = vmatpush1.msra.mxu0 0.0
  %5204 = vmatprep.subr.mxu0 0.0
  %5205 = vmatpush1.msra.mxu0 0.0
  %5206 = vmatprep.subr.mxu0 0.0
  %5207 = vmatpush1.msra.mxu0 0.0
  %5208 = vmatprep.subr.mxu0 0.0
  %5209 = vmatpush1.msra.mxu0 0.0
  %5210 = vmatprep.subr.mxu0 0.0
  %5211 = vmatpush1.msra.mxu0 0.0
  %5212 = vmatprep.subr.mxu0 0.0
  %5213 = vmatpush1.msra.mxu0 0.0
  %5214 = vmatprep.subr.mxu0 0.0
  %5215 = vmatpush1.msra.mxu0 0.0
  %5216 = vmatprep.subr.mxu0 0.0
  %5217 = vmatpush1.msra.mxu0 0.0
  %5218 = vmatprep.subr.mxu0 0.0
  %5219 = vmatpush1.msra.mxu0 0.0
  %5220 = vmatprep.subr.mxu0 0.0
  %5221 = vmatpush1.msra.mxu0 0.0
  %5222 = vmatprep.subr.mxu0 0.0
  %5223 = vmatpush1.msra.mxu0 0.0
  %5224 = vmatprep.subr.mxu0 0.0
  %5225 = vmatpush1.msra.mxu0 0.0
  %5226 = vmatprep.subr.mxu0 0.0
  %5227 = vmatpush1.msra.mxu0 0.0
  %5228 = vmatprep.subr.mxu0 0.0
  %5229 = vmatpush1.msra.mxu0 0.0
  %5230 = vmatprep.subr.mxu0 0.0
  %5231 = vmatpush1.msra.mxu0 0.0
  %5232 = vmatprep.subr.mxu0 0.0
  %5233 = vmatpush1.msra.mxu0 0.0
  %5234 = vmatprep.subr.mxu0 0.0
  %5235 = vmatpush1.msra.mxu0 0.0
  %5236 = vmatprep.subr.mxu0 0.0
  %5237 = vmatpush1.msra.mxu0 0.0
  %5238 = vmatprep.mubr.f32.mxu0 0.0
  %5239 = vmatmul.mubr.f32.gmra.mrb[0].mxu0 %v5169
  %v5240 = vpop.f32.mrb[0].mxu0
  %v5241 = vadd.f32 %v5166, %v5240
  %v5242 = vpop.f32.mrb[0].mxu0
  %5243 = vmatprep.mubr.f32.mxu0 0.0
  %5244 = vmatmul.mubr.f32.gmra.mrb[0].mxu0 %v5172
  %v5245 = vpop.f32.mrb[0].mxu0
  %v5246 = vadd.f32 %v5166, %v5245
  %v5247 = vpop.f32.mrb[0].mxu0
  %5248 = vdwg.mxu0
  %5249 = vmatprep.subr.mxu0 0.0
  %5250 = vmatpush1.msra.mxu0 %v5158
  %5251 = vmatprep.subr.mxu0 0.0
  %5252 = vmatpush1.msra.mxu0 %v5159
  %5253 = vmatprep.subr.mxu0 0.0
  %5254 = vmatpush1.msra.mxu0 0.0
  %5255 = vmatprep.subr.mxu0 0.0
  %5256 = vmatpush1.msra.mxu0 0.0
  %5257 = vmatprep.subr.mxu0 0.0
  %5258 = vmatpush1.msra.mxu0 0.0
  %5259 = vmatprep.subr.mxu0 0.0
  %5260 = vmatpush1.msra.mxu0 0.0
  %5261 = vmatprep.subr.mxu0 0.0
  %5262 = vmatpush1.msra.mxu0 0.0
  %5263 = vmatprep.subr.mxu0 0.0
  %5264 = vmatpush1.msra.mxu0 0.0
  %5265 = vmatprep.subr.mxu0 0.0
  %5266 = vmatpush1.msra.mxu0 0.0
  %5267 = vmatprep.subr.mxu0 0.0
  %5268 = vmatpush1.msra.mxu0 0.0
  %5269 = vmatprep.subr.mxu0 0.0
  %5270 = vmatpush1.msra.mxu0 0.0
  %5271 = vmatprep.subr.mxu0 0.0
  %5272 = vmatpush1.msra.mxu0 0.0
  %5273 = vmatprep.subr.mxu0 0.0
  %5274 = vmatpush1.msra.mxu0 0.0
  %5275 = vmatprep.subr.mxu0 0.0
  %5276 = vmatpush1.msra.mxu0 0.0
  %5277 = vmatprep.subr.mxu0 0.0
  %5278 = vmatpush1.msra.mxu0 0.0
  %5279 = vmatprep.subr.mxu0 0.0
  %5280 = vmatpush1.msra.mxu0 0.0
  %5281 = vmatprep.subr.mxu0 0.0
  %5282 = vmatpush1.msra.mxu0 0.0
  %5283 = vmatprep.subr.mxu0 0.0
  %5284 = vmatpush1.msra.mxu0 0.0
  %5285 = vmatprep.subr.mxu0 0.0
  %5286 = vmatpush1.msra.mxu0 0.0
  %5287 = vmatprep.subr.mxu0 0.0
  %5288 = vmatpush1.msra.mxu0 0.0
  %5289 = vmatprep.subr.mxu0 0.0
  %5290 = vmatpush1.msra.mxu0 0.0
  %5291 = vmatprep.subr.mxu0 0.0
  %5292 = vmatpush1.msra.mxu0 0.0
  %5293 = vmatprep.subr.mxu0 0.0
  %5294 = vmatpush1.msra.mxu0 0.0
  %5295 = vmatprep.subr.mxu0 0.0
  %5296 = vmatpush1.msra.mxu0 0.0
  %5297 = vmatprep.subr.mxu0 0.0
  %5298 = vmatpush1.msra.mxu0 0.0
  %5299 = vmatprep.subr.mxu0 0.0
  %5300 = vmatpush1.msra.mxu0 0.0
  %5301 = vmatprep.subr.mxu0 0.0
  %5302 = vmatpush1.msra.mxu0 0.0
  %5303 = vmatprep.subr.mxu0 0.0
  %5304 = vmatpush1.msra.mxu0 0.0
  %5305 = vmatprep.subr.mxu0 0.0
  %5306 = vmatpush1.msra.mxu0 0.0
  %5307 = vmatprep.subr.mxu0 0.0
  %5308 = vmatpush1.msra.mxu0 0.0
  %5309 = vmatprep.subr.mxu0 0.0
  %5310 = vmatpush1.msra.mxu0 0.0
  %5311 = vmatprep.subr.mxu0 0.0
  %5312 = vmatpush1.msra.mxu0 0.0
  %5313 = vmatprep.mubr.f32.mxu0 0.0
  %5314 = vmatmul.mubr.f32.gmra.mrb[0].mxu0 %v5169
  %v5315 = vpop.f32.mrb[0].mxu0
  %v5316 = vadd.f32 0.0, %v5315
  %v5317 = vpop.f32.mrb[0].mxu0
  %5318 = vmatprep.mubr.f32.mxu0 0.0
  %5319 = vmatmul.mubr.f32.gmra.mrb[0].mxu0 %v5172
  %v5320 = vpop.f32.mrb[0].mxu0
  %v5321 = vadd.f32 0.0, %v5320
  %v5322 = vpop.f32.mrb[0].mxu0
  %5323 = vdwg.mxu0
  %v5324 = vld [vmem:[%s9 + $0x4] sm:$0x1]
  %v5325 = vlaneseq
  %v5326 = vshrl.u32 %v5325, 7
  %v5327 = vsub.s32 0, %v5326
  %v5328 = vrot.slane %v5324, %v5327
  %5329 = vmatprep.subr.mxu0 0.0
  %5330 = vmatpush1.msra.mxu0 %v5160
  %5331 = vmatprep.subr.mxu0 0.0
  %5332 = vmatpush1.msra.mxu0 %v5161
  %5333 = vmatprep.subr.mxu0 0.0
  %5334 = vmatpush1.msra.mxu0 0.0
  %5335 = vmatprep.subr.mxu0 0.0
  %5336 = vmatpush1.msra.mxu0 0.0
  %5337 = vmatprep.subr.mxu0 0.0
  %5338 = vmatpush1.msra.mxu0 0.0
  %5339 = vmatprep.subr.mxu0 0.0
  %5340 = vmatpush1.msra.mxu0 0.0
  %5341 = vmatprep.subr.mxu0 0.0
  %5342 = vmatpush1.msra.mxu0 0.0
  %5343 = vmatprep.subr.mxu0 0.0
  %5344 = vmatpush1.msra.mxu0 0.0
  %5345 = vmatprep.subr.mxu0 0.0
  %5346 = vmatpush1.msra.mxu0 0.0
  %5347 = vmatprep.subr.mxu0 0.0
  %5348 = vmatpush1.msra.mxu0 0.0
  %5349 = vmatprep.subr.mxu0 0.0
  %5350 = vmatpush1.msra.mxu0 0.0
  %5351 = vmatprep.subr.mxu0 0.0
  %5352 = vmatpush1.msra.mxu0 0.0
  %5353 = vmatprep.subr.mxu0 0.0
  %5354 = vmatpush1.msra.mxu0 0.0
  %5355 = vmatprep.subr.mxu0 0.0
  %5356 = vmatpush1.msra.mxu0 0.0
  %5357 = vmatprep.subr.mxu0 0.0
  %5358 = vmatpush1.msra.mxu0 0.0
  %5359 = vmatprep.subr.mxu0 0.0
  %5360 = vmatpush1.msra.mxu0 0.0
  %5361 = vmatprep.subr.mxu0 0.0
  %5362 = vmatpush1.msra.mxu0 0.0
  %5363 = vmatprep.subr.mxu0 0.0
  %5364 = vmatpush1.msra.mxu0 0.0
  %5365 = vmatprep.subr.mxu0 0.0
  %5366 = vmatpush1.msra.mxu0 0.0
  %5367 = vmatprep.subr.mxu0 0.0
  %5368 = vmatpush1.msra.mxu0 0.0
  %5369 = vmatprep.subr.mxu0 0.0
  %5370 = vmatpush1.msra.mxu0 0.0
  %5371 = vmatprep.subr.mxu0 0.0
  %5372 = vmatpush1.msra.mxu0 0.0
  %5373 = vmatprep.subr.mxu0 0.0
  %5374 = vmatpush1.msra.mxu0 0.0
  %5375 = vmatprep.subr.mxu0 0.0
  %5376 = vmatpush1.msra.mxu0 0.0
  %5377 = vmatprep.subr.mxu0 0.0
  %5378 = vmatpush1.msra.mxu0 0.0
  %5379 = vmatprep.subr.mxu0 0.0
  %5380 = vmatpush1.msra.mxu0 0.0
  %5381 = vmatprep.subr.mxu0 0.0
  %5382 = vmatpush1.msra.mxu0 0.0
  %5383 = vmatprep.subr.mxu0 0.0
  %5384 = vmatpush1.msra.mxu0 0.0
  %5385 = vmatprep.subr.mxu0 0.0
  %5386 = vmatpush1.msra.mxu0 0.0
  %5387 = vmatprep.subr.mxu0 0.0
  %5388 = vmatpush1.msra.mxu0 0.0
  %5389 = vmatprep.subr.mxu0 0.0
  %5390 = vmatpush1.msra.mxu0 0.0
  %5391 = vmatprep.subr.mxu0 0.0
  %5392 = vmatpush1.msra.mxu0 0.0
  %5393 = vmatprep.mubr.f32.mxu0 0.0
  %5394 = vmatmul.mubr.f32.gmra.mrb[0].mxu0 %v5169
  %v5395 = vpop.f32.mrb[0].mxu0
  %v5396 = vadd.f32 %v5328, %v5395
  %v5397 = vpop.f32.mrb[0].mxu0
  %5398 = vmatprep.mubr.f32.mxu0 0.0
  %5399 = vmatmul.mubr.f32.gmra.mrb[0].mxu0 %v5172
  %v5400 = vpop.f32.mrb[0].mxu0
  %v5401 = vadd.f32 %v5328, %v5400
  %v5402 = vpop.f32.mrb[0].mxu0
  %5403 = vdwg.mxu0
  %v5405 = vsel %vm5167, %v5241, 0
  %v5408 = vsel %vm5167, %v5316, 0
  %5410 = vmatprep.subr.mxu0 0.0
  %5411 = vmatpush1.xpose.msra.mxu0 %v5408
  %5412 = vmatprep.subr.mxu0 0.0
  %5413 = vmatpush1.xpose.msra.mxu0 0.0
  %5414 = vmatprep.subr.mxu0 0.0
  %5415 = vmatpush1.xpose.msra.mxu0 0.0
  %5416 = vmatprep.subr.mxu0 0.0
  %5417 = vmatpush1.xpose.msra.mxu0 0.0
  %5418 = vmatprep.subr.mxu0 0.0
  %5419 = vmatpush1.xpose.msra.mxu0 0.0
  %5420 = vmatprep.subr.mxu0 0.0
  %5421 = vmatpush1.xpose.msra.mxu0 0.0
  %5422 = vmatprep.subr.mxu0 0.0
  %5423 = vmatpush1.xpose.msra.mxu0 0.0
  %5424 = vmatprep.subr.mxu0 0.0
  %5425 = vmatpush1.xpose.msra.mxu0 0.0
  %5426 = vmatprep.subr.mxu0 0.0
  %5427 = vmatpush1.xpose.msra.mxu0 0.0
  %5428 = vmatprep.subr.mxu0 0.0
  %5429 = vmatpush1.xpose.msra.mxu0 0.0
  %5430 = vmatprep.subr.mxu0 0.0
  %5431 = vmatpush1.xpose.msra.mxu0 0.0
  %5432 = vmatprep.subr.mxu0 0.0
  %5433 = vmatpush1.xpose.msra.mxu0 0.0
  %5434 = vmatprep.subr.mxu0 0.0
  %5435 = vmatpush1.xpose.msra.mxu0 0.0
  %5436 = vmatprep.subr.mxu0 0.0
  %5437 = vmatpush1.xpose.msra.mxu0 0.0
  %5438 = vmatprep.subr.mxu0 0.0
  %5439 = vmatpush1.xpose.msra.mxu0 0.0
  %5440 = vmatprep.subr.mxu0 0.0
  %5441 = vmatpush1.xpose.msra.mxu0 0.0
  %5442 = vmatprep.subr.mxu0 0.0
  %5443 = vmatpush1.xpose.msra.mxu0 0.0
  %5444 = vmatprep.subr.mxu0 0.0
  %5445 = vmatpush1.xpose.msra.mxu0 0.0
  %5446 = vmatprep.subr.mxu0 0.0
  %5447 = vmatpush1.xpose.msra.mxu0 0.0
  %5448 = vmatprep.subr.mxu0 0.0
  %5449 = vmatpush1.xpose.msra.mxu0 0.0
  %5450 = vmatprep.subr.mxu0 0.0
  %5451 = vmatpush1.xpose.msra.mxu0 0.0
  %5452 = vmatprep.subr.mxu0 0.0
  %5453 = vmatpush1.xpose.msra.mxu0 0.0
  %5454 = vmatprep.subr.mxu0 0.0
  %5455 = vmatpush1.xpose.msra.mxu0 0.0
  %5456 = vmatprep.subr.mxu0 0.0
  %5457 = vmatpush1.xpose.msra.mxu0 0.0
  %5458 = vmatprep.subr.mxu0 0.0
  %5459 = vmatpush1.xpose.msra.mxu0 0.0
  %5460 = vmatprep.subr.mxu0 0.0
  %5461 = vmatpush1.xpose.msra.mxu0 0.0
  %5462 = vmatprep.subr.mxu0 0.0
  %5463 = vmatpush1.xpose.msra.mxu0 0.0
  %5464 = vmatprep.subr.mxu0 0.0
  %5465 = vmatpush1.xpose.msra.mxu0 0.0
  %5466 = vmatprep.subr.mxu0 0.0
  %5467 = vmatpush1.xpose.msra.mxu0 0.0
  %5468 = vmatprep.subr.mxu0 0.0
  %5469 = vmatpush1.xpose.msra.mxu0 0.0
  %5470 = vmatprep.subr.mxu0 0.0
  %5471 = vmatpush1.xpose.msra.mxu0 0.0
  %5472 = vmatprep.subr.mxu0 0.0
  %5473 = vmatpush1.xpose.msra.mxu0 0.0
  %5474 = vmatprep.mubr.f32.mxu0 0.0
  %5475 = vmatmul.mubr.f32.gmra.mrb[0].mxu0 %v5405
  %v5476 = vpop.f32.mrb[0].mxu0
  %v5477 = vadd.f32 0.0, %v5476
  %v5478 = vpop.f32.mrb[0].mxu0
  %5479 = vdwg.mxu0
  %v5481 = vsel %vm5167, %v5246, 0
  %v5484 = vsel %vm5167, %v5321, 0
  %5486 = vmatprep.subr.mxu0 0.0
  %5487 = vmatpush1.xpose.msra.mxu0 %v5484
  %5488 = vmatprep.subr.mxu0 0.0
  %5489 = vmatpush1.xpose.msra.mxu0 0.0
  %5490 = vmatprep.subr.mxu0 0.0
  %5491 = vmatpush1.xpose.msra.mxu0 0.0
  %5492 = vmatprep.subr.mxu0 0.0
  %5493 = vmatpush1.xpose.msra.mxu0 0.0
  %5494 = vmatprep.subr.mxu0 0.0
  %5495 = vmatpush1.xpose.msra.mxu0 0.0
  %5496 = vmatprep.subr.mxu0 0.0
  %5497 = vmatpush1.xpose.msra.mxu0 0.0
  %5498 = vmatprep.subr.mxu0 0.0
  %5499 = vmatpush1.xpose.msra.mxu0 0.0
  %5500 = vmatprep.subr.mxu0 0.0
  %5501 = vmatpush1.xpose.msra.mxu0 0.0
  %5502 = vmatprep.subr.mxu0 0.0
  %5503 = vmatpush1.xpose.msra.mxu0 0.0
  %5504 = vmatprep.subr.mxu0 0.0
  %5505 = vmatpush1.xpose.msra.mxu0 0.0
  %5506 = vmatprep.subr.mxu0 0.0
  %5507 = vmatpush1.xpose.msra.mxu0 0.0
  %5508 = vmatprep.subr.mxu0 0.0
  %5509 = vmatpush1.xpose.msra.mxu0 0.0
  %5510 = vmatprep.subr.mxu0 0.0
  %5511 = vmatpush1.xpose.msra.mxu0 0.0
  %5512 = vmatprep.subr.mxu0 0.0
  %5513 = vmatpush1.xpose.msra.mxu0 0.0
  %5514 = vmatprep.subr.mxu0 0.0
  %5515 = vmatpush1.xpose.msra.mxu0 0.0
  %5516 = vmatprep.subr.mxu0 0.0
  %5517 = vmatpush1.xpose.msra.mxu0 0.0
  %5518 = vmatprep.subr.mxu0 0.0
  %5519 = vmatpush1.xpose.msra.mxu0 0.0
  %5520 = vmatprep.subr.mxu0 0.0
  %5521 = vmatpush1.xpose.msra.mxu0 0.0
  %5522 = vmatprep.subr.mxu0 0.0
  %5523 = vmatpush1.xpose.msra.mxu0 0.0
  %5524 = vmatprep.subr.mxu0 0.0
  %5525 = vmatpush1.xpose.msra.mxu0 0.0
  %5526 = vmatprep.subr.mxu0 0.0
  %5527 = vmatpush1.xpose.msra.mxu0 0.0
  %5528 = vmatprep.subr.mxu0 0.0
  %5529 = vmatpush1.xpose.msra.mxu0 0.0
  %5530 = vmatprep.subr.mxu0 0.0
  %5531 = vmatpush1.xpose.msra.mxu0 0.0
  %5532 = vmatprep.subr.mxu0 0.0
  %5533 = vmatpush1.xpose.msra.mxu0 0.0
  %5534 = vmatprep.subr.mxu0 0.0
  %5535 = vmatpush1.xpose.msra.mxu0 0.0
  %5536 = vmatprep.subr.mxu0 0.0
  %5537 = vmatpush1.xpose.msra.mxu0 0.0
  %5538 = vmatprep.subr.mxu0 0.0
  %5539 = vmatpush1.xpose.msra.mxu0 0.0
  %5540 = vmatprep.subr.mxu0 0.0
  %5541 = vmatpush1.xpose.msra.mxu0 0.0
  %5542 = vmatprep.subr.mxu0 0.0
  %5543 = vmatpush1.xpose.msra.mxu0 0.0
  %5544 = vmatprep.subr.mxu0 0.0
  %5545 = vmatpush1.xpose.msra.mxu0 0.0
  %5546 = vmatprep.subr.mxu0 0.0
  %5547 = vmatpush1.xpose.msra.mxu0 0.0
  %5548 = vmatprep.subr.mxu0 0.0
  %5549 = vmatpush1.xpose.msra.mxu0 0.0
  %5550 = vmatprep.mubr.f32.mxu0 0.0
  %5551 = vmatmul.mubr.f32.gmra.mrb[0].mxu0 %v5481
  %v5552 = vpop.f32.mrb[0].mxu0
  %v5553 = vadd.f32 0.0, %v5552
  %v5554 = vpop.f32.mrb[0].mxu0
  %5555 = vdwg.mxu0
  %v5556 = vld [vmem:[%s7 + $0x10] sm:$0xff]
  %v5557 = vld [vmem:[%s7 + $0x18] sm:$0xff]
  %v5558 = vld [vmem:[%s7 + $0x50] sm:$0xff]
  %v5559 = vld [vmem:[%s7 + $0x58] sm:$0xff]
  %v5560 = vld [vmem:[%s7 + $0x90] sm:$0xff]
  %v5561 = vld [vmem:[%s7 + $0x98] sm:$0xff]
  %v5562 = vld [vmem:[%s9 + $0x1] sm:$0x1]
  %v5563 = vlaneseq
  %v5564 = vshrl.u32 %v5563, 7
  %v5565 = vsub.s32 0, %v5564
  %v5566 = vrot.slane %v5562, %v5565
  %5567 = vmatprep.subr.mxu0 0.0
  %5568 = vmatpush1.msra.mxu0 %v5556
  %5569 = vmatprep.subr.mxu0 0.0
  %5570 = vmatpush1.msra.mxu0 %v5557
  %5571 = vmatprep.subr.mxu0 0.0
  %5572 = vmatpush1.msra.mxu0 0.0
  %5573 = vmatprep.subr.mxu0 0.0
  %5574 = vmatpush1.msra.mxu0 0.0
  %5575 = vmatprep.subr.mxu0 0.0
  %5576 = vmatpush1.msra.mxu0 0.0
  %5577 = vmatprep.subr.mxu0 0.0
  %5578 = vmatpush1.msra.mxu0 0.0
  %5579 = vmatprep.subr.mxu0 0.0
  %5580 = vmatpush1.msra.mxu0 0.0
  %5581 = vmatprep.subr.mxu0 0.0
  %5582 = vmatpush1.msra.mxu0 0.0
  %5583 = vmatprep.subr.mxu0 0.0
  %5584 = vmatpush1.msra.mxu0 0.0
  %5585 = vmatprep.subr.mxu0 0.0
  %5586 = vmatpush1.msra.mxu0 0.0
  %5587 = vmatprep.subr.mxu0 0.0
  %5588 = vmatpush1.msra.mxu0 0.0
  %5589 = vmatprep.subr.mxu0 0.0
  %5590 = vmatpush1.msra.mxu0 0.0
  %5591 = vmatprep.subr.mxu0 0.0
  %5592 = vmatpush1.msra.mxu0 0.0
  %5593 = vmatprep.subr.mxu0 0.0
  %5594 = vmatpush1.msra.mxu0 0.0
  %5595 = vmatprep.subr.mxu0 0.0
  %5596 = vmatpush1.msra.mxu0 0.0
  %5597 = vmatprep.subr.mxu0 0.0
  %5598 = vmatpush1.msra.mxu0 0.0
  %5599 = vmatprep.subr.mxu0 0.0
  %5600 = vmatpush1.msra.mxu0 0.0
  %5601 = vmatprep.subr.mxu0 0.0
  %5602 = vmatpush1.msra.mxu0 0.0
  %5603 = vmatprep.subr.mxu0 0.0
  %5604 = vmatpush1.msra.mxu0 0.0
  %5605 = vmatprep.subr.mxu0 0.0
  %5606 = vmatpush1.msra.mxu0 0.0
  %5607 = vmatprep.subr.mxu0 0.0
  %5608 = vmatpush1.msra.mxu0 0.0
  %5609 = vmatprep.subr.mxu0 0.0
  %5610 = vmatpush1.msra.mxu0 0.0
  %5611 = vmatprep.subr.mxu0 0.0
  %5612 = vmatpush1.msra.mxu0 0.0
  %5613 = vmatprep.subr.mxu0 0.0
  %5614 = vmatpush1.msra.mxu0 0.0
  %5615 = vmatprep.subr.mxu0 0.0
  %5616 = vmatpush1.msra.mxu0 0.0
  %5617 = vmatprep.subr.mxu0 0.0
  %5618 = vmatpush1.msra.mxu0 0.0
  %5619 = vmatprep.subr.mxu0 0.0
  %5620 = vmatpush1.msra.mxu0 0.0
  %5621 = vmatprep.subr.mxu0 0.0
  %5622 = vmatpush1.msra.mxu0 0.0
  %5623 = vmatprep.subr.mxu0 0.0
  %5624 = vmatpush1.msra.mxu0 0.0
  %5625 = vmatprep.subr.mxu0 0.0
  %5626 = vmatpush1.msra.mxu0 0.0
  %5627 = vmatprep.subr.mxu0 0.0
  %5628 = vmatpush1.msra.mxu0 0.0
  %5629 = vmatprep.subr.mxu0 0.0
  %5630 = vmatpush1.msra.mxu0 0.0
  %5631 = vmatprep.mubr.f32.mxu0 0.0
  %5632 = vmatmul.mubr.f32.gmra.mrb[0].mxu0 %v5169
  %v5633 = vpop.f32.mrb[0].mxu0
  %v5634 = vadd.f32 %v5566, %v5633
  %v5635 = vpop.f32.mrb[0].mxu0
  %5636 = vmatprep.mubr.f32.mxu0 0.0
  %5637 = vmatmul.mubr.f32.gmra.mrb[0].mxu0 %v5172
  %v5638 = vpop.f32.mrb[0].mxu0
  %v5639 = vadd.f32 %v5566, %v5638
  %v5640 = vpop.f32.mrb[0].mxu0
  %5641 = vdwg.mxu0
  %5642 = vmatprep.subr.mxu0 0.0
  %5643 = vmatpush1.msra.mxu0 %v5558
  %5644 = vmatprep.subr.mxu0 0.0
  %5645 = vmatpush1.msra.mxu0 %v5559
  %5646 = vmatprep.subr.mxu0 0.0
  %5647 = vmatpush1.msra.mxu0 0.0
  %5648 = vmatprep.subr.mxu0 0.0
  %5649 = vmatpush1.msra.mxu0 0.0
  %5650 = vmatprep.subr.mxu0 0.0
  %5651 = vmatpush1.msra.mxu0 0.0
  %5652 = vmatprep.subr.mxu0 0.0
  %5653 = vmatpush1.msra.mxu0 0.0
  %5654 = vmatprep.subr.mxu0 0.0
  %5655 = vmatpush1.msra.mxu0 0.0
  %5656 = vmatprep.subr.mxu0 0.0
  %5657 = vmatpush1.msra.mxu0 0.0
  %5658 = vmatprep.subr.mxu0 0.0
  %5659 = vmatpush1.msra.mxu0 0.0
  %5660 = vmatprep.subr.mxu0 0.0
  %5661 = vmatpush1.msra.mxu0 0.0
  %5662 = vmatprep.subr.mxu0 0.0
  %5663 = vmatpush1.msra.mxu0 0.0
  %5664 = vmatprep.subr.mxu0 0.0
  %5665 = vmatpush1.msra.mxu0 0.0
  %5666 = vmatprep.subr.mxu0 0.0
  %5667 = vmatpush1.msra.mxu0 0.0
  %5668 = vmatprep.subr.mxu0 0.0
  %5669 = vmatpush1.msra.mxu0 0.0
  %5670 = vmatprep.subr.mxu0 0.0
  %5671 = vmatpush1.msra.mxu0 0.0
  %5672 = vmatprep.subr.mxu0 0.0
  %5673 = vmatpush1.msra.mxu0 0.0
  %5674 = vmatprep.subr.mxu0 0.0
  %5675 = vmatpush1.msra.mxu0 0.0
  %5676 = vmatprep.subr.mxu0 0.0
  %5677 = vmatpush1.msra.mxu0 0.0
  %5678 = vmatprep.subr.mxu0 0.0
  %5679 = vmatpush1.msra.mxu0 0.0
  %5680 = vmatprep.subr.mxu0 0.0
  %5681 = vmatpush1.msra.mxu0 0.0
  %5682 = vmatprep.subr.mxu0 0.0
  %5683 = vmatpush1.msra.mxu0 0.0
  %5684 = vmatprep.subr.mxu0 0.0
  %5685 = vmatpush1.msra.mxu0 0.0
  %5686 = vmatprep.subr.mxu0 0.0
  %5687 = vmatpush1.msra.mxu0 0.0
  %5688 = vmatprep.subr.mxu0 0.0
  %5689 = vmatpush1.msra.mxu0 0.0
  %5690 = vmatprep.subr.mxu0 0.0
  %5691 = vmatpush1.msra.mxu0 0.0
  %5692 = vmatprep.subr.mxu0 0.0
  %5693 = vmatpush1.msra.mxu0 0.0
  %5694 = vmatprep.subr.mxu0 0.0
  %5695 = vmatpush1.msra.mxu0 0.0
  %5696 = vmatprep.subr.mxu0 0.0
  %5697 = vmatpush1.msra.mxu0 0.0
  %5698 = vmatprep.subr.mxu0 0.0
  %5699 = vmatpush1.msra.mxu0 0.0
  %5700 = vmatprep.subr.mxu0 0.0
  %5701 = vmatpush1.msra.mxu0 0.0
  %5702 = vmatprep.subr.mxu0 0.0
  %5703 = vmatpush1.msra.mxu0 0.0
  %5704 = vmatprep.subr.mxu0 0.0
  %5705 = vmatpush1.msra.mxu0 0.0
  %5706 = vmatprep.mubr.f32.mxu0 0.0
  %5707 = vmatmul.mubr.f32.gmra.mrb[0].mxu0 %v5169
  %v5708 = vpop.f32.mrb[0].mxu0
  %v5709 = vadd.f32 0.0, %v5708
  %v5710 = vpop.f32.mrb[0].mxu0
  %5711 = vmatprep.mubr.f32.mxu0 0.0
  %5712 = vmatmul.mubr.f32.gmra.mrb[0].mxu0 %v5172
  %v5713 = vpop.f32.mrb[0].mxu0
  %v5714 = vadd.f32 0.0, %v5713
  %v5715 = vpop.f32.mrb[0].mxu0
  %5716 = vdwg.mxu0
  %v5717 = vld [vmem:[%s9 + $0x5] sm:$0x1]
  %v5718 = vlaneseq
  %v5719 = vshrl.u32 %v5718, 7
  %v5720 = vsub.s32 0, %v5719
  %v5721 = vrot.slane %v5717, %v5720
  %5722 = vmatprep.subr.mxu0 0.0
  %5723 = vmatpush1.msra.mxu0 %v5560
  %5724 = vmatprep.subr.mxu0 0.0
  %5725 = vmatpush1.msra.mxu0 %v5561
  %5726 = vmatprep.subr.mxu0 0.0
  %5727 = vmatpush1.msra.mxu0 0.0
  %5728 = vmatprep.subr.mxu0 0.0
  %5729 = vmatpush1.msra.mxu0 0.0
  %5730 = vmatprep.subr.mxu0 0.0
  %5731 = vmatpush1.msra.mxu0 0.0
  %5732 = vmatprep.subr.mxu0 0.0
  %5733 = vmatpush1.msra.mxu0 0.0
  %5734 = vmatprep.subr.mxu0 0.0
  %5735 = vmatpush1.msra.mxu0 0.0
  %5736 = vmatprep.subr.mxu0 0.0
  %5737 = vmatpush1.msra.mxu0 0.0
  %5738 = vmatprep.subr.mxu0 0.0
  %5739 = vmatpush1.msra.mxu0 0.0
  %5740 = vmatprep.subr.mxu0 0.0
  %5741 = vmatpush1.msra.mxu0 0.0
  %5742 = vmatprep.subr.mxu0 0.0
  %5743 = vmatpush1.msra.mxu0 0.0
  %5744 = vmatprep.subr.mxu0 0.0
  %5745 = vmatpush1.msra.mxu0 0.0
  %5746 = vmatprep.subr.mxu0 0.0
  %5747 = vmatpush1.msra.mxu0 0.0
  %5748 = vmatprep.subr.mxu0 0.0
  %5749 = vmatpush1.msra.mxu0 0.0
  %5750 = vmatprep.subr.mxu0 0.0
  %5751 = vmatpush1.msra.mxu0 0.0
  %5752 = vmatprep.subr.mxu0 0.0
  %5753 = vmatpush1.msra.mxu0 0.0
  %5754 = vmatprep.subr.mxu0 0.0
  %5755 = vmatpush1.msra.mxu0 0.0
  %5756 = vmatprep.subr.mxu0 0.0
  %5757 = vmatpush1.msra.mxu0 0.0
  %5758 = vmatprep.subr.mxu0 0.0
  %5759 = vmatpush1.msra.mxu0 0.0
  %5760 = vmatprep.subr.mxu0 0.0
  %5761 = vmatpush1.msra.mxu0 0.0
  %5762 = vmatprep.subr.mxu0 0.0
  %5763 = vmatpush1.msra.mxu0 0.0
  %5764 = vmatprep.subr.mxu0 0.0
  %5765 = vmatpush1.msra.mxu0 0.0
  %5766 = vmatprep.subr.mxu0 0.0
  %5767 = vmatpush1.msra.mxu0 0.0
  %5768 = vmatprep.subr.mxu0 0.0
  %5769 = vmatpush1.msra.mxu0 0.0
  %5770 = vmatprep.subr.mxu0 0.0
  %5771 = vmatpush1.msra.mxu0 0.0
  %5772 = vmatprep.subr.mxu0 0.0
  %5773 = vmatpush1.msra.mxu0 0.0
  %5774 = vmatprep.subr.mxu0 0.0
  %5775 = vmatpush1.msra.mxu0 0.0
  %5776 = vmatprep.subr.mxu0 0.0
  %5777 = vmatpush1.msra.mxu0 0.0
  %5778 = vmatprep.subr.mxu0 0.0
  %5779 = vmatpush1.msra.mxu0 0.0
  %5780 = vmatprep.subr.mxu0 0.0
  %5781 = vmatpush1.msra.mxu0 0.0
  %5782 = vmatprep.subr.mxu0 0.0
  %5783 = vmatpush1.msra.mxu0 0.0
  %5784 = vmatprep.subr.mxu0 0.0
  %5785 = vmatpush1.msra.mxu0 0.0
  %5786 = vmatprep.mubr.f32.mxu0 0.0
  %5787 = vmatmul.mubr.f32.gmra.mrb[0].mxu0 %v5169
  %v5788 = vpop.f32.mrb[0].mxu0
  %v5789 = vadd.f32 %v5721, %v5788
  %v5790 = vpop.f32.mrb[0].mxu0
  %5791 = vmatprep.mubr.f32.mxu0 0.0
  %5792 = vmatmul.mubr.f32.gmra.mrb[0].mxu0 %v5172
  %v5793 = vpop.f32.mrb[0].mxu0
  %v5794 = vadd.f32 %v5721, %v5793
  %v5795 = vpop.f32.mrb[0].mxu0
  %5796 = vdwg.mxu0
  %v5798 = vsel %vm5167, %v5634, 0
  %v5801 = vsel %vm5167, %v5709, 0
  %5803 = vmatprep.subr.mxu0 0.0
  %5804 = vmatpush1.xpose.msra.mxu0 %v5801
  %5805 = vmatprep.subr.mxu0 0.0
  %5806 = vmatpush1.xpose.msra.mxu0 0.0
  %5807 = vmatprep.subr.mxu0 0.0
  %5808 = vmatpush1.xpose.msra.mxu0 0.0
  %5809 = vmatprep.subr.mxu0 0.0
  %5810 = vmatpush1.xpose.msra.mxu0 0.0
  %5811 = vmatprep.subr.mxu0 0.0
  %5812 = vmatpush1.xpose.msra.mxu0 0.0
  %5813 = vmatprep.subr.mxu0 0.0
  %5814 = vmatpush1.xpose.msra.mxu0 0.0
  %5815 = vmatprep.subr.mxu0 0.0
  %5816 = vmatpush1.xpose.msra.mxu0 0.0
  %5817 = vmatprep.subr.mxu0 0.0
  %5818 = vmatpush1.xpose.msra.mxu0 0.0
  %5819 = vmatprep.subr.mxu0 0.0
  %5820 = vmatpush1.xpose.msra.mxu0 0.0
  %5821 = vmatprep.subr.mxu0 0.0
  %5822 = vmatpush1.xpose.msra.mxu0 0.0
  %5823 = vmatprep.subr.mxu0 0.0
  %5824 = vmatpush1.xpose.msra.mxu0 0.0
  %5825 = vmatprep.subr.mxu0 0.0
  %5826 = vmatpush1.xpose.msra.mxu0 0.0
  %5827 = vmatprep.subr.mxu0 0.0
  %5828 = vmatpush1.xpose.msra.mxu0 0.0
  %5829 = vmatprep.subr.mxu0 0.0
  %5830 = vmatpush1.xpose.msra.mxu0 0.0
  %5831 = vmatprep.subr.mxu0 0.0
  %5832 = vmatpush1.xpose.msra.mxu0 0.0
  %5833 = vmatprep.subr.mxu0 0.0
  %5834 = vmatpush1.xpose.msra.mxu0 0.0
  %5835 = vmatprep.subr.mxu0 0.0
  %5836 = vmatpush1.xpose.msra.mxu0 0.0
  %5837 = vmatprep.subr.mxu0 0.0
  %5838 = vmatpush1.xpose.msra.mxu0 0.0
  %5839 = vmatprep.subr.mxu0 0.0
  %5840 = vmatpush1.xpose.msra.mxu0 0.0
  %5841 = vmatprep.subr.mxu0 0.0
  %5842 = vmatpush1.xpose.msra.mxu0 0.0
  %5843 = vmatprep.subr.mxu0 0.0
  %5844 = vmatpush1.xpose.msra.mxu0 0.0
  %5845 = vmatprep.subr.mxu0 0.0
  %5846 = vmatpush1.xpose.msra.mxu0 0.0
  %5847 = vmatprep.subr.mxu0 0.0
  %5848 = vmatpush1.xpose.msra.mxu0 0.0
  %5849 = vmatprep.subr.mxu0 0.0
  %5850 = vmatpush1.xpose.msra.mxu0 0.0
  %5851 = vmatprep.subr.mxu0 0.0
  %5852 = vmatpush1.xpose.msra.mxu0 0.0
  %5853 = vmatprep.subr.mxu0 0.0
  %5854 = vmatpush1.xpose.msra.mxu0 0.0
  %5855 = vmatprep.subr.mxu0 0.0
  %5856 = vmatpush1.xpose.msra.mxu0 0.0
  %5857 = vmatprep.subr.mxu0 0.0
  %5858 = vmatpush1.xpose.msra.mxu0 0.0
  %5859 = vmatprep.subr.mxu0 0.0
  %5860 = vmatpush1.xpose.msra.mxu0 0.0
  %5861 = vmatprep.subr.mxu0 0.0
  %5862 = vmatpush1.xpose.msra.mxu0 0.0
  %5863 = vmatprep.subr.mxu0 0.0
  %5864 = vmatpush1.xpose.msra.mxu0 0.0
  %5865 = vmatprep.subr.mxu0 0.0
  %5866 = vmatpush1.xpose.msra.mxu0 0.0
  %5867 = vmatprep.mubr.f32.mxu0 0.0
  %5868 = vmatmul.mubr.f32.gmra.mrb[0].mxu0 %v5798
  %v5869 = vpop.f32.mrb[0].mxu0
  %v5870 = vadd.f32 0.0, %v5869
  %v5871 = vpop.f32.mrb[0].mxu0
  %5872 = vdwg.mxu0
  %v5874 = vsel %vm5167, %v5639, 0
  %v5877 = vsel %vm5167, %v5714, 0
  %5879 = vmatprep.subr.mxu0 0.0
  %5880 = vmatpush1.xpose.msra.mxu0 %v5877
  %5881 = vmatprep.subr.mxu0 0.0
  %5882 = vmatpush1.xpose.msra.mxu0 0.0
  %5883 = vmatprep.subr.mxu0 0.0
  %5884 = vmatpush1.xpose.msra.mxu0 0.0
  %5885 = vmatprep.subr.mxu0 0.0
  %5886 = vmatpush1.xpose.msra.mxu0 0.0
  %5887 = vmatprep.subr.mxu0 0.0
  %5888 = vmatpush1.xpose.msra.mxu0 0.0
  %5889 = vmatprep.subr.mxu0 0.0
  %5890 = vmatpush1.xpose.msra.mxu0 0.0
  %5891 = vmatprep.subr.mxu0 0.0
  %5892 = vmatpush1.xpose.msra.mxu0 0.0
  %5893 = vmatprep.subr.mxu0 0.0
  %5894 = vmatpush1.xpose.msra.mxu0 0.0
  %5895 = vmatprep.subr.mxu0 0.0
  %5896 = vmatpush1.xpose.msra.mxu0 0.0
  %5897 = vmatprep.subr.mxu0 0.0
  %5898 = vmatpush1.xpose.msra.mxu0 0.0
  %5899 = vmatprep.subr.mxu0 0.0
  %5900 = vmatpush1.xpose.msra.mxu0 0.0
  %5901 = vmatprep.subr.mxu0 0.0
  %5902 = vmatpush1.xpose.msra.mxu0 0.0
  %5903 = vmatprep.subr.mxu0 0.0
  %5904 = vmatpush1.xpose.msra.mxu0 0.0
  %5905 = vmatprep.subr.mxu0 0.0
  %5906 = vmatpush1.xpose.msra.mxu0 0.0
  %5907 = vmatprep.subr.mxu0 0.0
  %5908 = vmatpush1.xpose.msra.mxu0 0.0
  %5909 = vmatprep.subr.mxu0 0.0
  %5910 = vmatpush1.xpose.msra.mxu0 0.0
  %5911 = vmatprep.subr.mxu0 0.0
  %5912 = vmatpush1.xpose.msra.mxu0 0.0
  %5913 = vmatprep.subr.mxu0 0.0
  %5914 = vmatpush1.xpose.msra.mxu0 0.0
  %5915 = vmatprep.subr.mxu0 0.0
  %5916 = vmatpush1.xpose.msra.mxu0 0.0
  %5917 = vmatprep.subr.mxu0 0.0
  %5918 = vmatpush1.xpose.msra.mxu0 0.0
  %5919 = vmatprep.subr.mxu0 0.0
  %5920 = vmatpush1.xpose.msra.mxu0 0.0
  %5921 = vmatprep.subr.mxu0 0.0
  %5922 = vmatpush1.xpose.msra.mxu0 0.0
  %5923 = vmatprep.subr.mxu0 0.0
  %5924 = vmatpush1.xpose.msra.mxu0 0.0
  %5925 = vmatprep.subr.mxu0 0.0
  %5926 = vmatpush1.xpose.msra.mxu0 0.0
  %5927 = vmatprep.subr.mxu0 0.0
  %5928 = vmatpush1.xpose.msra.mxu0 0.0
  %5929 = vmatprep.subr.mxu0 0.0
  %5930 = vmatpush1.xpose.msra.mxu0 0.0
  %5931 = vmatprep.subr.mxu0 0.0
  %5932 = vmatpush1.xpose.msra.mxu0 0.0
  %5933 = vmatprep.subr.mxu0 0.0
  %5934 = vmatpush1.xpose.msra.mxu0 0.0
  %5935 = vmatprep.subr.mxu0 0.0
  %5936 = vmatpush1.xpose.msra.mxu0 0.0
  %5937 = vmatprep.subr.mxu0 0.0
  %5938 = vmatpush1.xpose.msra.mxu0 0.0
  %5939 = vmatprep.subr.mxu0 0.0
  %5940 = vmatpush1.xpose.msra.mxu0 0.0
  %5941 = vmatprep.subr.mxu0 0.0
  %5942 = vmatpush1.xpose.msra.mxu0 0.0
  %5943 = vmatprep.mubr.f32.mxu0 0.0
  %5944 = vmatmul.mubr.f32.gmra.mrb[0].mxu0 %v5874
  %v5945 = vpop.f32.mrb[0].mxu0
  %v5946 = vadd.f32 0.0, %v5945
  %v5947 = vpop.f32.mrb[0].mxu0
  %5948 = vdwg.mxu0
  %v5949 = vld [vmem:[%s7 + $0x20] sm:$0xff]
  %v5950 = vld [vmem:[%s7 + $0x28] sm:$0xff]
  %v5951 = vld [vmem:[%s7 + $0x60] sm:$0xff]
  %v5952 = vld [vmem:[%s7 + $0x68] sm:$0xff]
  %v5953 = vld [vmem:[%s7 + $0xa0] sm:$0xff]
  %v5954 = vld [vmem:[%s7 + $0xa8] sm:$0xff]
  %v5955 = vld [vmem:[%s9 + $0x2] sm:$0x1]
  %v5956 = vlaneseq
  %v5957 = vshrl.u32 %v5956, 7
  %v5958 = vsub.s32 0, %v5957
  %v5959 = vrot.slane %v5955, %v5958
  %5960 = vmatprep.subr.mxu0 0.0
  %5961 = vmatpush1.msra.mxu0 %v5949
  %5962 = vmatprep.subr.mxu0 0.0
  %5963 = vmatpush1.msra.mxu0 %v5950
  %5964 = vmatprep.subr.mxu0 0.0
  %5965 = vmatpush1.msra.mxu0 0.0
  %5966 = vmatprep.subr.mxu0 0.0
  %5967 = vmatpush1.msra.mxu0 0.0
  %5968 = vmatprep.subr.mxu0 0.0
  %5969 = vmatpush1.msra.mxu0 0.0
  %5970 = vmatprep.subr.mxu0 0.0
  %5971 = vmatpush1.msra.mxu0 0.0
  %5972 = vmatprep.subr.mxu0 0.0
  %5973 = vmatpush1.msra.mxu0 0.0
  %5974 = vmatprep.subr.mxu0 0.0
  %5975 = vmatpush1.msra.mxu0 0.0
  %5976 = vmatprep.subr.mxu0 0.0
  %5977 = vmatpush1.msra.mxu0 0.0
  %5978 = vmatprep.subr.mxu0 0.0
  %5979 = vmatpush1.msra.mxu0 0.0
  %5980 = vmatprep.subr.mxu0 0.0
  %5981 = vmatpush1.msra.mxu0 0.0
  %5982 = vmatprep.subr.mxu0 0.0
  %5983 = vmatpush1.msra.mxu0 0.0
  %5984 = vmatprep.subr.mxu0 0.0
  %5985 = vmatpush1.msra.mxu0 0.0
  %5986 = vmatprep.subr.mxu0 0.0
  %5987 = vmatpush1.msra.mxu0 0.0
  %5988 = vmatprep.subr.mxu0 0.0
  %5989 = vmatpush1.msra.mxu0 0.0
  %5990 = vmatprep.subr.mxu0 0.0
  %5991 = vmatpush1.msra.mxu0 0.0
  %5992 = vmatprep.subr.mxu0 0.0
  %5993 = vmatpush1.msra.mxu0 0.0
  %5994 = vmatprep.subr.mxu0 0.0
  %5995 = vmatpush1.msra.mxu0 0.0
  %5996 = vmatprep.subr.mxu0 0.0
  %5997 = vmatpush1.msra.mxu0 0.0
  %5998 = vmatprep.subr.mxu0 0.0
  %5999 = vmatpush1.msra.mxu0 0.0
  %6000 = vmatprep.subr.mxu0 0.0
  %6001 = vmatpush1.msra.mxu0 0.0
  %6002 = vmatprep.subr.mxu0 0.0
  %6003 = vmatpush1.msra.mxu0 0.0
  %6004 = vmatprep.subr.mxu0 0.0
  %6005 = vmatpush1.msra.mxu0 0.0
  %6006 = vmatprep.subr.mxu0 0.0
  %6007 = vmatpush1.msra.mxu0 0.0
  %6008 = vmatprep.subr.mxu0 0.0
  %6009 = vmatpush1.msra.mxu0 0.0
  %6010 = vmatprep.subr.mxu0 0.0
  %6011 = vmatpush1.msra.mxu0 0.0
  %6012 = vmatprep.subr.mxu0 0.0
  %6013 = vmatpush1.msra.mxu0 0.0
  %6014 = vmatprep.subr.mxu0 0.0
  %6015 = vmatpush1.msra.mxu0 0.0
  %6016 = vmatprep.subr.mxu0 0.0
  %6017 = vmatpush1.msra.mxu0 0.0
  %6018 = vmatprep.subr.mxu0 0.0
  %6019 = vmatpush1.msra.mxu0 0.0
  %6020 = vmatprep.subr.mxu0 0.0
  %6021 = vmatpush1.msra.mxu0 0.0
  %6022 = vmatprep.subr.mxu0 0.0
  %6023 = vmatpush1.msra.mxu0 0.0
  %6024 = vmatprep.mubr.f32.mxu0 0.0
  %6025 = vmatmul.mubr.f32.gmra.mrb[0].mxu0 %v5169
  %v6026 = vpop.f32.mrb[0].mxu0
  %v6027 = vadd.f32 %v5959, %v6026
  %v6028 = vpop.f32.mrb[0].mxu0
  %6029 = vmatprep.mubr.f32.mxu0 0.0
  %6030 = vmatmul.mubr.f32.gmra.mrb[0].mxu0 %v5172
  %v6031 = vpop.f32.mrb[0].mxu0
  %v6032 = vadd.f32 %v5959, %v6031
  %v6033 = vpop.f32.mrb[0].mxu0
  %6034 = vdwg.mxu0
  %6035 = vmatprep.subr.mxu0 0.0
  %6036 = vmatpush1.msra.mxu0 %v5951
  %6037 = vmatprep.subr.mxu0 0.0
  %6038 = vmatpush1.msra.mxu0 %v5952
  %6039 = vmatprep.subr.mxu0 0.0
  %6040 = vmatpush1.msra.mxu0 0.0
  %6041 = vmatprep.subr.mxu0 0.0
  %6042 = vmatpush1.msra.mxu0 0.0
  %6043 = vmatprep.subr.mxu0 0.0
  %6044 = vmatpush1.msra.mxu0 0.0
  %6045 = vmatprep.subr.mxu0 0.0
  %6046 = vmatpush1.msra.mxu0 0.0
  %6047 = vmatprep.subr.mxu0 0.0
  %6048 = vmatpush1.msra.mxu0 0.0
  %6049 = vmatprep.subr.mxu0 0.0
  %6050 = vmatpush1.msra.mxu0 0.0
  %6051 = vmatprep.subr.mxu0 0.0
  %6052 = vmatpush1.msra.mxu0 0.0
  %6053 = vmatprep.subr.mxu0 0.0
  %6054 = vmatpush1.msra.mxu0 0.0
  %6055 = vmatprep.subr.mxu0 0.0
  %6056 = vmatpush1.msra.mxu0 0.0
  %6057 = vmatprep.subr.mxu0 0.0
  %6058 = vmatpush1.msra.mxu0 0.0
  %6059 = vmatprep.subr.mxu0 0.0
  %6060 = vmatpush1.msra.mxu0 0.0
  %6061 = vmatprep.subr.mxu0 0.0
  %6062 = vmatpush1.msra.mxu0 0.0
  %6063 = vmatprep.subr.mxu0 0.0
  %6064 = vmatpush1.msra.mxu0 0.0
  %6065 = vmatprep.subr.mxu0 0.0
  %6066 = vmatpush1.msra.mxu0 0.0
  %6067 = vmatprep.subr.mxu0 0.0
  %6068 = vmatpush1.msra.mxu0 0.0
  %6069 = vmatprep.subr.mxu0 0.0
  %6070 = vmatpush1.msra.mxu0 0.0
  %6071 = vmatprep.subr.mxu0 0.0
  %6072 = vmatpush1.msra.mxu0 0.0
  %6073 = vmatprep.subr.mxu0 0.0
  %6074 = vmatpush1.msra.mxu0 0.0
  %6075 = vmatprep.subr.mxu0 0.0
  %6076 = vmatpush1.msra.mxu0 0.0
  %6077 = vmatprep.subr.mxu0 0.0
  %6078 = vmatpush1.msra.mxu0 0.0
  %6079 = vmatprep.subr.mxu0 0.0
  %6080 = vmatpush1.msra.mxu0 0.0
  %6081 = vmatprep.subr.mxu0 0.0
  %6082 = vmatpush1.msra.mxu0 0.0
  %6083 = vmatprep.subr.mxu0 0.0
  %6084 = vmatpush1.msra.mxu0 0.0
  %6085 = vmatprep.subr.mxu0 0.0
  %6086 = vmatpush1.msra.mxu0 0.0
  %6087 = vmatprep.subr.mxu0 0.0
  %6088 = vmatpush1.msra.mxu0 0.0
  %6089 = vmatprep.subr.mxu0 0.0
  %6090 = vmatpush1.msra.mxu0 0.0
  %6091 = vmatprep.subr.mxu0 0.0
  %6092 = vmatpush1.msra.mxu0 0.0
  %6093 = vmatprep.subr.mxu0 0.0
  %6094 = vmatpush1.msra.mxu0 0.0
  %6095 = vmatprep.subr.mxu0 0.0
  %6096 = vmatpush1.msra.mxu0 0.0
  %6097 = vmatprep.subr.mxu0 0.0
  %6098 = vmatpush1.msra.mxu0 0.0
  %6099 = vmatprep.mubr.f32.mxu0 0.0
  %6100 = vmatmul.mubr.f32.gmra.mrb[0].mxu0 %v5169
  %v6101 = vpop.f32.mrb[0].mxu0
  %v6102 = vadd.f32 0.0, %v6101
  %v6103 = vpop.f32.mrb[0].mxu0
  %6104 = vmatprep.mubr.f32.mxu0 0.0
  %6105 = vmatmul.mubr.f32.gmra.mrb[0].mxu0 %v5172
  %v6106 = vpop.f32.mrb[0].mxu0
  %v6107 = vadd.f32 0.0, %v6106
  %v6108 = vpop.f32.mrb[0].mxu0
  %6109 = vdwg.mxu0
  %v6110 = vld [vmem:[%s9 + $0x6] sm:$0x1]
  %v6111 = vlaneseq
  %v6112 = vshrl.u32 %v6111, 7
  %v6113 = vsub.s32 0, %v6112
  %v6114 = vrot.slane %v6110, %v6113
  %6115 = vmatprep.subr.mxu0 0.0
  %6116 = vmatpush1.msra.mxu0 %v5953
  %6117 = vmatprep.subr.mxu0 0.0
  %6118 = vmatpush1.msra.mxu0 %v5954
  %6119 = vmatprep.subr.mxu0 0.0
  %6120 = vmatpush1.msra.mxu0 0.0
  %6121 = vmatprep.subr.mxu0 0.0
  %6122 = vmatpush1.msra.mxu0 0.0
  %6123 = vmatprep.subr.mxu0 0.0
  %6124 = vmatpush1.msra.mxu0 0.0
  %6125 = vmatprep.subr.mxu0 0.0
  %6126 = vmatpush1.msra.mxu0 0.0
  %6127 = vmatprep.subr.mxu0 0.0
  %6128 = vmatpush1.msra.mxu0 0.0
  %6129 = vmatprep.subr.mxu0 0.0
  %6130 = vmatpush1.msra.mxu0 0.0
  %6131 = vmatprep.subr.mxu0 0.0
  %6132 = vmatpush1.msra.mxu0 0.0
  %6133 = vmatprep.subr.mxu0 0.0
  %6134 = vmatpush1.msra.mxu0 0.0
  %6135 = vmatprep.subr.mxu0 0.0
  %6136 = vmatpush1.msra.mxu0 0.0
  %6137 = vmatprep.subr.mxu0 0.0
  %6138 = vmatpush1.msra.mxu0 0.0
  %6139 = vmatprep.subr.mxu0 0.0
  %6140 = vmatpush1.msra.mxu0 0.0
  %6141 = vmatprep.subr.mxu0 0.0
  %6142 = vmatpush1.msra.mxu0 0.0
  %6143 = vmatprep.subr.mxu0 0.0
  %6144 = vmatpush1.msra.mxu0 0.0
  %6145 = vmatprep.subr.mxu0 0.0
  %6146 = vmatpush1.msra.mxu0 0.0
  %6147 = vmatprep.subr.mxu0 0.0
  %6148 = vmatpush1.msra.mxu0 0.0
  %6149 = vmatprep.subr.mxu0 0.0
  %6150 = vmatpush1.msra.mxu0 0.0
  %6151 = vmatprep.subr.mxu0 0.0
  %6152 = vmatpush1.msra.mxu0 0.0
  %6153 = vmatprep.subr.mxu0 0.0
  %6154 = vmatpush1.msra.mxu0 0.0
  %6155 = vmatprep.subr.mxu0 0.0
  %6156 = vmatpush1.msra.mxu0 0.0
  %6157 = vmatprep.subr.mxu0 0.0
  %6158 = vmatpush1.msra.mxu0 0.0
  %6159 = vmatprep.subr.mxu0 0.0
  %6160 = vmatpush1.msra.mxu0 0.0
  %6161 = vmatprep.subr.mxu0 0.0
  %6162 = vmatpush1.msra.mxu0 0.0
  %6163 = vmatprep.subr.mxu0 0.0
  %6164 = vmatpush1.msra.mxu0 0.0
  %6165 = vmatprep.subr.mxu0 0.0
  %6166 = vmatpush1.msra.mxu0 0.0
  %6167 = vmatprep.subr.mxu0 0.0
  %6168 = vmatpush1.msra.mxu0 0.0
  %6169 = vmatprep.subr.mxu0 0.0
  %6170 = vmatpush1.msra.mxu0 0.0
  %6171 = vmatprep.subr.mxu0 0.0
  %6172 = vmatpush1.msra.mxu0 0.0
  %6173 = vmatprep.subr.mxu0 0.0
  %6174 = vmatpush1.msra.mxu0 0.0
  %6175 = vmatprep.subr.mxu0 0.0
  %6176 = vmatpush1.msra.mxu0 0.0
  %6177 = vmatprep.subr.mxu0 0.0
  %6178 = vmatpush1.msra.mxu0 0.0
  %6179 = vmatprep.mubr.f32.mxu0 0.0
  %6180 = vmatmul.mubr.f32.gmra.mrb[0].mxu0 %v5169
  %v6181 = vpop.f32.mrb[0].mxu0
  %v6182 = vadd.f32 %v6114, %v6181
  %v6183 = vpop.f32.mrb[0].mxu0
  %6184 = vmatprep.mubr.f32.mxu0 0.0
  %6185 = vmatmul.mubr.f32.gmra.mrb[0].mxu0 %v5172
  %v6186 = vpop.f32.mrb[0].mxu0
  %v6187 = vadd.f32 %v6114, %v6186
  %v6188 = vpop.f32.mrb[0].mxu0
  %6189 = vdwg.mxu0
  %v6191 = vsel %vm5167, %v6027, 0
  %v6194 = vsel %vm5167, %v6102, 0
  %6196 = vmatprep.subr.mxu0 0.0
  %6197 = vmatpush1.xpose.msra.mxu0 %v6194
  %6198 = vmatprep.subr.mxu0 0.0
  %6199 = vmatpush1.xpose.msra.mxu0 0.0
  %6200 = vmatprep.subr.mxu0 0.0
  %6201 = vmatpush1.xpose.msra.mxu0 0.0
  %6202 = vmatprep.subr.mxu0 0.0
  %6203 = vmatpush1.xpose.msra.mxu0 0.0
  %6204 = vmatprep.subr.mxu0 0.0
  %6205 = vmatpush1.xpose.msra.mxu0 0.0
  %6206 = vmatprep.subr.mxu0 0.0
  %6207 = vmatpush1.xpose.msra.mxu0 0.0
  %6208 = vmatprep.subr.mxu0 0.0
  %6209 = vmatpush1.xpose.msra.mxu0 0.0
  %6210 = vmatprep.subr.mxu0 0.0
  %6211 = vmatpush1.xpose.msra.mxu0 0.0
  %6212 = vmatprep.subr.mxu0 0.0
  %6213 = vmatpush1.xpose.msra.mxu0 0.0
  %6214 = vmatprep.subr.mxu0 0.0
  %6215 = vmatpush1.xpose.msra.mxu0 0.0
  %6216 = vmatprep.subr.mxu0 0.0
  %6217 = vmatpush1.xpose.msra.mxu0 0.0
  %6218 = vmatprep.subr.mxu0 0.0
  %6219 = vmatpush1.xpose.msra.mxu0 0.0
  %6220 = vmatprep.subr.mxu0 0.0
  %6221 = vmatpush1.xpose.msra.mxu0 0.0
  %6222 = vmatprep.subr.mxu0 0.0
  %6223 = vmatpush1.xpose.msra.mxu0 0.0
  %6224 = vmatprep.subr.mxu0 0.0
  %6225 = vmatpush1.xpose.msra.mxu0 0.0
  %6226 = vmatprep.subr.mxu0 0.0
  %6227 = vmatpush1.xpose.msra.mxu0 0.0
  %6228 = vmatprep.subr.mxu0 0.0
  %6229 = vmatpush1.xpose.msra.mxu0 0.0
  %6230 = vmatprep.subr.mxu0 0.0
  %6231 = vmatpush1.xpose.msra.mxu0 0.0
  %6232 = vmatprep.subr.mxu0 0.0
  %6233 = vmatpush1.xpose.msra.mxu0 0.0
  %6234 = vmatprep.subr.mxu0 0.0
  %6235 = vmatpush1.xpose.msra.mxu0 0.0
  %6236 = vmatprep.subr.mxu0 0.0
  %6237 = vmatpush1.xpose.msra.mxu0 0.0
  %6238 = vmatprep.subr.mxu0 0.0
  %6239 = vmatpush1.xpose.msra.mxu0 0.0
  %6240 = vmatprep.subr.mxu0 0.0
  %6241 = vmatpush1.xpose.msra.mxu0 0.0
  %6242 = vmatprep.subr.mxu0 0.0
  %6243 = vmatpush1.xpose.msra.mxu0 0.0
  %6244 = vmatprep.subr.mxu0 0.0
  %6245 = vmatpush1.xpose.msra.mxu0 0.0
  %6246 = vmatprep.subr.mxu0 0.0
  %6247 = vmatpush1.xpose.msra.mxu0 0.0
  %6248 = vmatprep.subr.mxu0 0.0
  %6249 = vmatpush1.xpose.msra.mxu0 0.0
  %6250 = vmatprep.subr.mxu0 0.0
  %6251 = vmatpush1.xpose.msra.mxu0 0.0
  %6252 = vmatprep.subr.mxu0 0.0
  %6253 = vmatpush1.xpose.msra.mxu0 0.0
  %6254 = vmatprep.subr.mxu0 0.0
  %6255 = vmatpush1.xpose.msra.mxu0 0.0
  %6256 = vmatprep.subr.mxu0 0.0
  %6257 = vmatpush1.xpose.msra.mxu0 0.0
  %6258 = vmatprep.subr.mxu0 0.0
  %6259 = vmatpush1.xpose.msra.mxu0 0.0
  %6260 = vmatprep.mubr.f32.mxu0 0.0
  %6261 = vmatmul.mubr.f32.gmra.mrb[0].mxu0 %v6191
  %v6262 = vpop.f32.mrb[0].mxu0
  %v6263 = vadd.f32 0.0, %v6262
  %v6264 = vpop.f32.mrb[0].mxu0
  %6265 = vdwg.mxu0
  %v6267 = vsel %vm5167, %v6032, 0
  %v6270 = vsel %vm5167, %v6107, 0
  %6272 = vmatprep.subr.mxu0 0.0
  %6273 = vmatpush1.xpose.msra.mxu0 %v6270
  %6274 = vmatprep.subr.mxu0 0.0
  %6275 = vmatpush1.xpose.msra.mxu0 0.0
  %6276 = vmatprep.subr.mxu0 0.0
  %6277 = vmatpush1.xpose.msra.mxu0 0.0
  %6278 = vmatprep.subr.mxu0 0.0
  %6279 = vmatpush1.xpose.msra.mxu0 0.0
  %6280 = vmatprep.subr.mxu0 0.0
  %6281 = vmatpush1.xpose.msra.mxu0 0.0
  %6282 = vmatprep.subr.mxu0 0.0
  %6283 = vmatpush1.xpose.msra.mxu0 0.0
  %6284 = vmatprep.subr.mxu0 0.0
  %6285 = vmatpush1.xpose.msra.mxu0 0.0
  %6286 = vmatprep.subr.mxu0 0.0
  %6287 = vmatpush1.xpose.msra.mxu0 0.0
  %6288 = vmatprep.subr.mxu0 0.0
  %6289 = vmatpush1.xpose.msra.mxu0 0.0
  %6290 = vmatprep.subr.mxu0 0.0
  %6291 = vmatpush1.xpose.msra.mxu0 0.0
  %6292 = vmatprep.subr.mxu0 0.0
  %6293 = vmatpush1.xpose.msra.mxu0 0.0
  %6294 = vmatprep.subr.mxu0 0.0
  %6295 = vmatpush1.xpose.msra.mxu0 0.0
  %6296 = vmatprep.subr.mxu0 0.0
  %6297 = vmatpush1.xpose.msra.mxu0 0.0
  %6298 = vmatprep.subr.mxu0 0.0
  %6299 = vmatpush1.xpose.msra.mxu0 0.0
  %6300 = vmatprep.subr.mxu0 0.0
  %6301 = vmatpush1.xpose.msra.mxu0 0.0
  %6302 = vmatprep.subr.mxu0 0.0
  %6303 = vmatpush1.xpose.msra.mxu0 0.0
  %6304 = vmatprep.subr.mxu0 0.0
  %6305 = vmatpush1.xpose.msra.mxu0 0.0
  %6306 = vmatprep.subr.mxu0 0.0
  %6307 = vmatpush1.xpose.msra.mxu0 0.0
  %6308 = vmatprep.subr.mxu0 0.0
  %6309 = vmatpush1.xpose.msra.mxu0 0.0
  %6310 = vmatprep.subr.mxu0 0.0
  %6311 = vmatpush1.xpose.msra.mxu0 0.0
  %6312 = vmatprep.subr.mxu0 0.0
  %6313 = vmatpush1.xpose.msra.mxu0 0.0
  %6314 = vmatprep.subr.mxu0 0.0
  %6315 = vmatpush1.xpose.msra.mxu0 0.0
  %6316 = vmatprep.subr.mxu0 0.0
  %6317 = vmatpush1.xpose.msra.mxu0 0.0
  %6318 = vmatprep.subr.mxu0 0.0
  %6319 = vmatpush1.xpose.msra.mxu0 0.0
  %6320 = vmatprep.subr.mxu0 0.0
  %6321 = vmatpush1.xpose.msra.mxu0 0.0
  %6322 = vmatprep.subr.mxu0 0.0
  %6323 = vmatpush1.xpose.msra.mxu0 0.0
  %6324 = vmatprep.subr.mxu0 0.0
  %6325 = vmatpush1.xpose.msra.mxu0 0.0
  %6326 = vmatprep.subr.mxu0 0.0
  %6327 = vmatpush1.xpose.msra.mxu0 0.0
  %6328 = vmatprep.subr.mxu0 0.0
  %6329 = vmatpush1.xpose.msra.mxu0 0.0
  %6330 = vmatprep.subr.mxu0 0.0
  %6331 = vmatpush1.xpose.msra.mxu0 0.0
  %6332 = vmatprep.subr.mxu0 0.0
  %6333 = vmatpush1.xpose.msra.mxu0 0.0
  %6334 = vmatprep.subr.mxu0 0.0
  %6335 = vmatpush1.xpose.msra.mxu0 0.0
  %6336 = vmatprep.mubr.f32.mxu0 0.0
  %6337 = vmatmul.mubr.f32.gmra.mrb[0].mxu0 %v6267
  %v6338 = vpop.f32.mrb[0].mxu0
  %v6339 = vadd.f32 0.0, %v6338
  %v6340 = vpop.f32.mrb[0].mxu0
  %6341 = vdwg.mxu0
  %v6342 = vld [vmem:[%s7 + $0x30] sm:$0xff]
  %v6343 = vld [vmem:[%s7 + $0x38] sm:$0xff]
  %v6344 = vld [vmem:[%s7 + $0x70] sm:$0xff]
  %v6345 = vld [vmem:[%s7 + $0x78] sm:$0xff]
  %v6346 = vld [vmem:[%s7 + $0xb0] sm:$0xff]
  %v6347 = vld [vmem:[%s7 + $0xb8] sm:$0xff]
  %v6348 = vld [vmem:[%s9 + $0x3] sm:$0x1]
  %v6349 = vlaneseq
  %v6350 = vshrl.u32 %v6349, 7
  %v6351 = vsub.s32 0, %v6350
  %v6352 = vrot.slane %v6348, %v6351
  %6353 = vmatprep.subr.mxu0 0.0
  %6354 = vmatpush1.msra.mxu0 %v6342
  %6355 = vmatprep.subr.mxu0 0.0
  %6356 = vmatpush1.msra.mxu0 %v6343
  %6357 = vmatprep.subr.mxu0 0.0
  %6358 = vmatpush1.msra.mxu0 0.0
  %6359 = vmatprep.subr.mxu0 0.0
  %6360 = vmatpush1.msra.mxu0 0.0
  %6361 = vmatprep.subr.mxu0 0.0
  %6362 = vmatpush1.msra.mxu0 0.0
  %6363 = vmatprep.subr.mxu0 0.0
  %6364 = vmatpush1.msra.mxu0 0.0
  %6365 = vmatprep.subr.mxu0 0.0
  %6366 = vmatpush1.msra.mxu0 0.0
  %6367 = vmatprep.subr.mxu0 0.0
  %6368 = vmatpush1.msra.mxu0 0.0
  %6369 = vmatprep.subr.mxu0 0.0
  %6370 = vmatpush1.msra.mxu0 0.0
  %6371 = vmatprep.subr.mxu0 0.0
  %6372 = vmatpush1.msra.mxu0 0.0
  %6373 = vmatprep.subr.mxu0 0.0
  %6374 = vmatpush1.msra.mxu0 0.0
  %6375 = vmatprep.subr.mxu0 0.0
  %6376 = vmatpush1.msra.mxu0 0.0
  %6377 = vmatprep.subr.mxu0 0.0
  %6378 = vmatpush1.msra.mxu0 0.0
  %6379 = vmatprep.subr.mxu0 0.0
  %6380 = vmatpush1.msra.mxu0 0.0
  %6381 = vmatprep.subr.mxu0 0.0
  %6382 = vmatpush1.msra.mxu0 0.0
  %6383 = vmatprep.subr.mxu0 0.0
  %6384 = vmatpush1.msra.mxu0 0.0
  %6385 = vmatprep.subr.mxu0 0.0
  %6386 = vmatpush1.msra.mxu0 0.0
  %6387 = vmatprep.subr.mxu0 0.0
  %6388 = vmatpush1.msra.mxu0 0.0
  %6389 = vmatprep.subr.mxu0 0.0
  %6390 = vmatpush1.msra.mxu0 0.0
  %6391 = vmatprep.subr.mxu0 0.0
  %6392 = vmatpush1.msra.mxu0 0.0
  %6393 = vmatprep.subr.mxu0 0.0
  %6394 = vmatpush1.msra.mxu0 0.0
  %6395 = vmatprep.subr.mxu0 0.0
  %6396 = vmatpush1.msra.mxu0 0.0
  %6397 = vmatprep.subr.mxu0 0.0
  %6398 = vmatpush1.msra.mxu0 0.0
  %6399 = vmatprep.subr.mxu0 0.0
  %6400 = vmatpush1.msra.mxu0 0.0
  %6401 = vmatprep.subr.mxu0 0.0
  %6402 = vmatpush1.msra.mxu0 0.0
  %6403 = vmatprep.subr.mxu0 0.0
  %6404 = vmatpush1.msra.mxu0 0.0
  %6405 = vmatprep.subr.mxu0 0.0
  %6406 = vmatpush1.msra.mxu0 0.0
  %6407 = vmatprep.subr.mxu0 0.0
  %6408 = vmatpush1.msra.mxu0 0.0
  %6409 = vmatprep.subr.mxu0 0.0
  %6410 = vmatpush1.msra.mxu0 0.0
  %6411 = vmatprep.subr.mxu0 0.0
  %6412 = vmatpush1.msra.mxu0 0.0
  %6413 = vmatprep.subr.mxu0 0.0
  %6414 = vmatpush1.msra.mxu0 0.0
  %6415 = vmatprep.subr.mxu0 0.0
  %6416 = vmatpush1.msra.mxu0 0.0
  %6417 = vmatprep.mubr.f32.mxu0 0.0
  %6418 = vmatmul.mubr.f32.gmra.mrb[0].mxu0 %v5169
  %v6419 = vpop.f32.mrb[0].mxu0
  %v6420 = vadd.f32 %v6352, %v6419
  %v6421 = vpop.f32.mrb[0].mxu0
  %6422 = vmatprep.mubr.f32.mxu0 0.0
  %6423 = vmatmul.mubr.f32.gmra.mrb[0].mxu0 %v5172
  %v6424 = vpop.f32.mrb[0].mxu0
  %v6425 = vadd.f32 %v6352, %v6424
  %v6426 = vpop.f32.mrb[0].mxu0
  %6427 = vdwg.mxu0
  %6428 = vmatprep.subr.mxu0 0.0
  %6429 = vmatpush1.msra.mxu0 %v6344
  %6430 = vmatprep.subr.mxu0 0.0
  %6431 = vmatpush1.msra.mxu0 %v6345
  %6432 = vmatprep.subr.mxu0 0.0
  %6433 = vmatpush1.msra.mxu0 0.0
  %6434 = vmatprep.subr.mxu0 0.0
  %6435 = vmatpush1.msra.mxu0 0.0
  %6436 = vmatprep.subr.mxu0 0.0
  %6437 = vmatpush1.msra.mxu0 0.0
  %6438 = vmatprep.subr.mxu0 0.0
  %6439 = vmatpush1.msra.mxu0 0.0
  %6440 = vmatprep.subr.mxu0 0.0
  %6441 = vmatpush1.msra.mxu0 0.0
  %6442 = vmatprep.subr.mxu0 0.0
  %6443 = vmatpush1.msra.mxu0 0.0
  %6444 = vmatprep.subr.mxu0 0.0
  %6445 = vmatpush1.msra.mxu0 0.0
  %6446 = vmatprep.subr.mxu0 0.0
  %6447 = vmatpush1.msra.mxu0 0.0
  %6448 = vmatprep.subr.mxu0 0.0
  %6449 = vmatpush1.msra.mxu0 0.0
  %6450 = vmatprep.subr.mxu0 0.0
  %6451 = vmatpush1.msra.mxu0 0.0
  %6452 = vmatprep.subr.mxu0 0.0
  %6453 = vmatpush1.msra.mxu0 0.0
  %6454 = vmatprep.subr.mxu0 0.0
  %6455 = vmatpush1.msra.mxu0 0.0
  %6456 = vmatprep.subr.mxu0 0.0
  %6457 = vmatpush1.msra.mxu0 0.0
  %6458 = vmatprep.subr.mxu0 0.0
  %6459 = vmatpush1.msra.mxu0 0.0
  %6460 = vmatprep.subr.mxu0 0.0
  %6461 = vmatpush1.msra.mxu0 0.0
  %6462 = vmatprep.subr.mxu0 0.0
  %6463 = vmatpush1.msra.mxu0 0.0
  %6464 = vmatprep.subr.mxu0 0.0
  %6465 = vmatpush1.msra.mxu0 0.0
  %6466 = vmatprep.subr.mxu0 0.0
  %6467 = vmatpush1.msra.mxu0 0.0
  %6468 = vmatprep.subr.mxu0 0.0
  %6469 = vmatpush1.msra.mxu0 0.0
  %6470 = vmatprep.subr.mxu0 0.0
  %6471 = vmatpush1.msra.mxu0 0.0
  %6472 = vmatprep.subr.mxu0 0.0
  %6473 = vmatpush1.msra.mxu0 0.0
  %6474 = vmatprep.subr.mxu0 0.0
  %6475 = vmatpush1.msra.mxu0 0.0
  %6476 = vmatprep.subr.mxu0 0.0
  %6477 = vmatpush1.msra.mxu0 0.0
  %6478 = vmatprep.subr.mxu0 0.0
  %6479 = vmatpush1.msra.mxu0 0.0
  %6480 = vmatprep.subr.mxu0 0.0
  %6481 = vmatpush1.msra.mxu0 0.0
  %6482 = vmatprep.subr.mxu0 0.0
  %6483 = vmatpush1.msra.mxu0 0.0
  %6484 = vmatprep.subr.mxu0 0.0
  %6485 = vmatpush1.msra.mxu0 0.0
  %6486 = vmatprep.subr.mxu0 0.0
  %6487 = vmatpush1.msra.mxu0 0.0
  %6488 = vmatprep.subr.mxu0 0.0
  %6489 = vmatpush1.msra.mxu0 0.0
  %6490 = vmatprep.subr.mxu0 0.0
  %6491 = vmatpush1.msra.mxu0 0.0
  %6492 = vmatprep.mubr.f32.mxu0 0.0
  %6493 = vmatmul.mubr.f32.gmra.mrb[0].mxu0 %v5169
  %v6494 = vpop.f32.mrb[0].mxu0
  %v6495 = vadd.f32 0.0, %v6494
  %v6496 = vpop.f32.mrb[0].mxu0
  %6497 = vmatprep.mubr.f32.mxu0 0.0
  %6498 = vmatmul.mubr.f32.gmra.mrb[0].mxu0 %v5172
  %v6499 = vpop.f32.mrb[0].mxu0
  %v6500 = vadd.f32 0.0, %v6499
  %v6501 = vpop.f32.mrb[0].mxu0
  %6502 = vdwg.mxu0
  %v6503 = vld [vmem:[%s9 + $0x7] sm:$0x1]
  %v6504 = vlaneseq
  %v6505 = vshrl.u32 %v6504, 7
  %v6506 = vsub.s32 0, %v6505
  %v6507 = vrot.slane %v6503, %v6506
  %6508 = vmatprep.subr.mxu0 0.0
  %6509 = vmatpush1.msra.mxu0 %v6346
  %6510 = vmatprep.subr.mxu0 0.0
  %6511 = vmatpush1.msra.mxu0 %v6347
  %6512 = vmatprep.subr.mxu0 0.0
  %6513 = vmatpush1.msra.mxu0 0.0
  %6514 = vmatprep.subr.mxu0 0.0
  %6515 = vmatpush1.msra.mxu0 0.0
  %6516 = vmatprep.subr.mxu0 0.0
  %6517 = vmatpush1.msra.mxu0 0.0
  %6518 = vmatprep.subr.mxu0 0.0
  %6519 = vmatpush1.msra.mxu0 0.0
  %6520 = vmatprep.subr.mxu0 0.0
  %6521 = vmatpush1.msra.mxu0 0.0
  %6522 = vmatprep.subr.mxu0 0.0
  %6523 = vmatpush1.msra.mxu0 0.0
  %6524 = vmatprep.subr.mxu0 0.0
  %6525 = vmatpush1.msra.mxu0 0.0
  %6526 = vmatprep.subr.mxu0 0.0
  %6527 = vmatpush1.msra.mxu0 0.0
  %6528 = vmatprep.subr.mxu0 0.0
  %6529 = vmatpush1.msra.mxu0 0.0
  %6530 = vmatprep.subr.mxu0 0.0
  %6531 = vmatpush1.msra.mxu0 0.0
  %6532 = vmatprep.subr.mxu0 0.0
  %6533 = vmatpush1.msra.mxu0 0.0
  %6534 = vmatprep.subr.mxu0 0.0
  %6535 = vmatpush1.msra.mxu0 0.0
  %6536 = vmatprep.subr.mxu0 0.0
  %6537 = vmatpush1.msra.mxu0 0.0
  %6538 = vmatprep.subr.mxu0 0.0
  %6539 = vmatpush1.msra.mxu0 0.0
  %6540 = vmatprep.subr.mxu0 0.0
  %6541 = vmatpush1.msra.mxu0 0.0
  %6542 = vmatprep.subr.mxu0 0.0
  %6543 = vmatpush1.msra.mxu0 0.0
  %6544 = vmatprep.subr.mxu0 0.0
  %6545 = vmatpush1.msra.mxu0 0.0
  %6546 = vmatprep.subr.mxu0 0.0
  %6547 = vmatpush1.msra.mxu0 0.0
  %6548 = vmatprep.subr.mxu0 0.0
  %6549 = vmatpush1.msra.mxu0 0.0
  %6550 = vmatprep.subr.mxu0 0.0
  %6551 = vmatpush1.msra.mxu0 0.0
  %6552 = vmatprep.subr.mxu0 0.0
  %6553 = vmatpush1.msra.mxu0 0.0
  %6554 = vmatprep.subr.mxu0 0.0
  %6555 = vmatpush1.msra.mxu0 0.0
  %6556 = vmatprep.subr.mxu0 0.0
  %6557 = vmatpush1.msra.mxu0 0.0
  %6558 = vmatprep.subr.mxu0 0.0
  %6559 = vmatpush1.msra.mxu0 0.0
  %6560 = vmatprep.subr.mxu0 0.0
  %6561 = vmatpush1.msra.mxu0 0.0
  %6562 = vmatprep.subr.mxu0 0.0
  %6563 = vmatpush1.msra.mxu0 0.0
  %6564 = vmatprep.subr.mxu0 0.0
  %6565 = vmatpush1.msra.mxu0 0.0
  %6566 = vmatprep.subr.mxu0 0.0
  %6567 = vmatpush1.msra.mxu0 0.0
  %6568 = vmatprep.subr.mxu0 0.0
  %6569 = vmatpush1.msra.mxu0 0.0
  %6570 = vmatprep.subr.mxu0 0.0
  %6571 = vmatpush1.msra.mxu0 0.0
  %6572 = vmatprep.mubr.f32.mxu0 0.0
  %6573 = vmatmul.mubr.f32.gmra.mrb[0].mxu0 %v5169
  %v6574 = vpop.f32.mrb[0].mxu0
  %v6575 = vadd.f32 %v6507, %v6574
  %v6576 = vpop.f32.mrb[0].mxu0
  %6577 = vmatprep.mubr.f32.mxu0 0.0
  %6578 = vmatmul.mubr.f32.gmra.mrb[0].mxu0 %v5172
  %v6579 = vpop.f32.mrb[0].mxu0
  %v6580 = vadd.f32 %v6507, %v6579
  %v6581 = vpop.f32.mrb[0].mxu0
  %6582 = vdwg.mxu0
  %v6584 = vsel %vm5167, %v6420, 0
  %v6587 = vsel %vm5167, %v6495, 0
  %6589 = vmatprep.subr.mxu0 0.0
  %6590 = vmatpush1.xpose.msra.mxu0 %v6587
  %6591 = vmatprep.subr.mxu0 0.0
  %6592 = vmatpush1.xpose.msra.mxu0 0.0
  %6593 = vmatprep.subr.mxu0 0.0
  %6594 = vmatpush1.xpose.msra.mxu0 0.0
  %6595 = vmatprep.subr.mxu0 0.0
  %6596 = vmatpush1.xpose.msra.mxu0 0.0
  %6597 = vmatprep.subr.mxu0 0.0
  %6598 = vmatpush1.xpose.msra.mxu0 0.0
  %6599 = vmatprep.subr.mxu0 0.0
  %6600 = vmatpush1.xpose.msra.mxu0 0.0
  %6601 = vmatprep.subr.mxu0 0.0
  %6602 = vmatpush1.xpose.msra.mxu0 0.0
  %6603 = vmatprep.subr.mxu0 0.0
  %6604 = vmatpush1.xpose.msra.mxu0 0.0
  %6605 = vmatprep.subr.mxu0 0.0
  %6606 = vmatpush1.xpose.msra.mxu0 0.0
  %6607 = vmatprep.subr.mxu0 0.0
  %6608 = vmatpush1.xpose.msra.mxu0 0.0
  %6609 = vmatprep.subr.mxu0 0.0
  %6610 = vmatpush1.xpose.msra.mxu0 0.0
  %6611 = vmatprep.subr.mxu0 0.0
  %6612 = vmatpush1.xpose.msra.mxu0 0.0
  %6613 = vmatprep.subr.mxu0 0.0
  %6614 = vmatpush1.xpose.msra.mxu0 0.0
  %6615 = vmatprep.subr.mxu0 0.0
  %6616 = vmatpush1.xpose.msra.mxu0 0.0
  %6617 = vmatprep.subr.mxu0 0.0
  %6618 = vmatpush1.xpose.msra.mxu0 0.0
  %6619 = vmatprep.subr.mxu0 0.0
  %6620 = vmatpush1.xpose.msra.mxu0 0.0
  %6621 = vmatprep.subr.mxu0 0.0
  %6622 = vmatpush1.xpose.msra.mxu0 0.0
  %6623 = vmatprep.subr.mxu0 0.0
  %6624 = vmatpush1.xpose.msra.mxu0 0.0
  %6625 = vmatprep.subr.mxu0 0.0
  %6626 = vmatpush1.xpose.msra.mxu0 0.0
  %6627 = vmatprep.subr.mxu0 0.0
  %6628 = vmatpush1.xpose.msra.mxu0 0.0
  %6629 = vmatprep.subr.mxu0 0.0
  %6630 = vmatpush1.xpose.msra.mxu0 0.0
  %6631 = vmatprep.subr.mxu0 0.0
  %6632 = vmatpush1.xpose.msra.mxu0 0.0
  %6633 = vmatprep.subr.mxu0 0.0
  %6634 = vmatpush1.xpose.msra.mxu0 0.0
  %6635 = vmatprep.subr.mxu0 0.0
  %6636 = vmatpush1.xpose.msra.mxu0 0.0
  %6637 = vmatprep.subr.mxu0 0.0
  %6638 = vmatpush1.xpose.msra.mxu0 0.0
  %6639 = vmatprep.subr.mxu0 0.0
  %6640 = vmatpush1.xpose.msra.mxu0 0.0
  %6641 = vmatprep.subr.mxu0 0.0
  %6642 = vmatpush1.xpose.msra.mxu0 0.0
  %6643 = vmatprep.subr.mxu0 0.0
  %6644 = vmatpush1.xpose.msra.mxu0 0.0
  %6645 = vmatprep.subr.mxu0 0.0
  %6646 = vmatpush1.xpose.msra.mxu0 0.0
  %6647 = vmatprep.subr.mxu0 0.0
  %6648 = vmatpush1.xpose.msra.mxu0 0.0
  %6649 = vmatprep.subr.mxu0 0.0
  %6650 = vmatpush1.xpose.msra.mxu0 0.0
  %6651 = vmatprep.subr.mxu0 0.0
  %6652 = vmatpush1.xpose.msra.mxu0 0.0
  %6653 = vmatprep.mubr.f32.mxu0 0.0
  %6654 = vmatmul.mubr.f32.gmra.mrb[0].mxu0 %v6584
  %v6655 = vpop.f32.mrb[0].mxu0
  %v6656 = vadd.f32 0.0, %v6655
  %v6657 = vpop.f32.mrb[0].mxu0
  %6658 = vdwg.mxu0
  %v6660 = vsel %vm5167, %v6425, 0
  %v6663 = vsel %vm5167, %v6500, 0
  %6665 = vmatprep.subr.mxu0 0.0
  %6666 = vmatpush1.xpose.msra.mxu0 %v6663
  %6667 = vmatprep.subr.mxu0 0.0
  %6668 = vmatpush1.xpose.msra.mxu0 0.0
  %6669 = vmatprep.subr.mxu0 0.0
  %6670 = vmatpush1.xpose.msra.mxu0 0.0
  %6671 = vmatprep.subr.mxu0 0.0
  %6672 = vmatpush1.xpose.msra.mxu0 0.0
  %6673 = vmatprep.subr.mxu0 0.0
  %6674 = vmatpush1.xpose.msra.mxu0 0.0
  %6675 = vmatprep.subr.mxu0 0.0
  %6676 = vmatpush1.xpose.msra.mxu0 0.0
  %6677 = vmatprep.subr.mxu0 0.0
  %6678 = vmatpush1.xpose.msra.mxu0 0.0
  %6679 = vmatprep.subr.mxu0 0.0
  %6680 = vmatpush1.xpose.msra.mxu0 0.0
  %6681 = vmatprep.subr.mxu0 0.0
  %6682 = vmatpush1.xpose.msra.mxu0 0.0
  %6683 = vmatprep.subr.mxu0 0.0
  %6684 = vmatpush1.xpose.msra.mxu0 0.0
  %6685 = vmatprep.subr.mxu0 0.0
  %6686 = vmatpush1.xpose.msra.mxu0 0.0
  %6687 = vmatprep.subr.mxu0 0.0
  %6688 = vmatpush1.xpose.msra.mxu0 0.0
  %6689 = vmatprep.subr.mxu0 0.0
  %6690 = vmatpush1.xpose.msra.mxu0 0.0
  %6691 = vmatprep.subr.mxu0 0.0
  %6692 = vmatpush1.xpose.msra.mxu0 0.0
  %6693 = vmatprep.subr.mxu0 0.0
  %6694 = vmatpush1.xpose.msra.mxu0 0.0
  %6695 = vmatprep.subr.mxu0 0.0
  %6696 = vmatpush1.xpose.msra.mxu0 0.0
  %6697 = vmatprep.subr.mxu0 0.0
  %6698 = vmatpush1.xpose.msra.mxu0 0.0
  %6699 = vmatprep.subr.mxu0 0.0
  %6700 = vmatpush1.xpose.msra.mxu0 0.0
  %6701 = vmatprep.subr.mxu0 0.0
  %6702 = vmatpush1.xpose.msra.mxu0 0.0
  %6703 = vmatprep.subr.mxu0 0.0
  %6704 = vmatpush1.xpose.msra.mxu0 0.0
  %6705 = vmatprep.subr.mxu0 0.0
  %6706 = vmatpush1.xpose.msra.mxu0 0.0
  %6707 = vmatprep.subr.mxu0 0.0
  %6708 = vmatpush1.xpose.msra.mxu0 0.0
  %6709 = vmatprep.subr.mxu0 0.0
  %6710 = vmatpush1.xpose.msra.mxu0 0.0
  %6711 = vmatprep.subr.mxu0 0.0
  %6712 = vmatpush1.xpose.msra.mxu0 0.0
  %6713 = vmatprep.subr.mxu0 0.0
  %6714 = vmatpush1.xpose.msra.mxu0 0.0
  %6715 = vmatprep.subr.mxu0 0.0
  %6716 = vmatpush1.xpose.msra.mxu0 0.0
  %6717 = vmatprep.subr.mxu0 0.0
  %6718 = vmatpush1.xpose.msra.mxu0 0.0
  %6719 = vmatprep.subr.mxu0 0.0
  %6720 = vmatpush1.xpose.msra.mxu0 0.0
  %6721 = vmatprep.subr.mxu0 0.0
  %6722 = vmatpush1.xpose.msra.mxu0 0.0
  %6723 = vmatprep.subr.mxu0 0.0
  %6724 = vmatpush1.xpose.msra.mxu0 0.0
  %6725 = vmatprep.subr.mxu0 0.0
  %6726 = vmatpush1.xpose.msra.mxu0 0.0
  %6727 = vmatprep.subr.mxu0 0.0
  %6728 = vmatpush1.xpose.msra.mxu0 0.0
  %6729 = vmatprep.mubr.f32.mxu0 0.0
  %6730 = vmatmul.mubr.f32.gmra.mrb[0].mxu0 %v6660
  %v6731 = vpop.f32.mrb[0].mxu0
  %v6732 = vadd.f32 0.0, %v6731
  %v6733 = vpop.f32.mrb[0].mxu0
  %6734 = vdwg.mxu0
  %v6735 = vsel %vm1688, %v5477, -inf
  %6736 = vmax.xlane.f32.xlu0 %v6735
  %v6737 = vpop.xlane.xlu0 %6736
  %v6738 = vsel %vm1688, %v5553, -inf
  %6739 = vmax.xlane.f32.xlu0 %v6738
  %v6740 = vpop.xlane.xlu0 %6739
  %v6741 = vsel %vm1688, %v5870, -inf
  %6742 = vmax.xlane.f32.xlu0 %v6741
  %v6743 = vpop.xlane.xlu0 %6742
  %v6744 = vsel %vm1688, %v5946, -inf
  %6745 = vmax.xlane.f32.xlu0 %v6744
  %v6746 = vpop.xlane.xlu0 %6745
  %v6747 = vsel %vm1688, %v6263, -inf
  %6748 = vmax.xlane.f32.xlu0 %v6747
  %v6749 = vpop.xlane.xlu0 %6748
  %v6750 = vsel %vm1688, %v6339, -inf
  %6751 = vmax.xlane.f32.xlu0 %v6750
  %v6752 = vpop.xlane.xlu0 %6751
  %v6753 = vsel %vm1688, %v6656, -inf
  %6754 = vmax.xlane.f32.xlu0 %v6753
  %v6755 = vpop.xlane.xlu0 %6754
  %v6756 = vsel %vm1688, %v6732, -inf
  %6757 = vmax.xlane.f32.xlu0 %v6756
  %v6758 = vpop.xlane.xlu0 %6757
  %v6759 = vsub.f32 %v5477, %v6737
  %v6760 = vsub.f32 %v5553, %v6740
  %v6761 = vsub.f32 %v5870, %v6743
  %v6762 = vsub.f32 %v5946, %v6746
  %v6763 = vsub.f32 %v6263, %v6749
  %v6764 = vsub.f32 %v6339, %v6752
  %v6765 = vsub.f32 %v6656, %v6755
  %v6766 = vsub.f32 %v6732, %v6758
  %v6767 = vmul.f32 %v6759, 1.442695
  %v6768 = vpow.pop %v6767
  %v6769 = vmul.f32 %v6760, 1.442695
  %v6770 = vpow.pop %v6769
  %v6771 = vmul.f32 %v6761, 1.442695
  %v6772 = vpow.pop %v6771
  %v6773 = vmul.f32 %v6762, 1.442695
  %v6774 = vpow.pop %v6773
  %v6775 = vmul.f32 %v6763, 1.442695
  %v6776 = vpow.pop %v6775
  %v6777 = vmul.f32 %v6764, 1.442695
  %v6778 = vpow.pop %v6777
  %v6779 = vmul.f32 %v6765, 1.442695
  %v6780 = vpow.pop %v6779
  %v6781 = vmul.f32 %v6766, 1.442695
  %v6782 = vpow.pop %v6781
  %v6783 = vsel %vm1688, %v6768, 0.0
  %6784 = vadd.xlane.f32.xlu0 %v6783
  %v6785 = vpop.xlane.xlu0 %6784
  %v6786 = vsel %vm1688, %v6770, 0.0
  %6787 = vadd.xlane.f32.xlu0 %v6786
  %v6788 = vpop.xlane.xlu0 %6787
  %v6789 = vsel %vm1688, %v6772, 0.0
  %6790 = vadd.xlane.f32.xlu0 %v6789
  %v6791 = vpop.xlane.xlu0 %6790
  %v6792 = vsel %vm1688, %v6774, 0.0
  %6793 = vadd.xlane.f32.xlu0 %v6792
  %v6794 = vpop.xlane.xlu0 %6793
  %v6795 = vsel %vm1688, %v6776, 0.0
  %6796 = vadd.xlane.f32.xlu0 %v6795
  %v6797 = vpop.xlane.xlu0 %6796
  %v6798 = vsel %vm1688, %v6778, 0.0
  %6799 = vadd.xlane.f32.xlu0 %v6798
  %v6800 = vpop.xlane.xlu0 %6799
  %v6801 = vsel %vm1688, %v6780, 0.0
  %6802 = vadd.xlane.f32.xlu0 %v6801
  %v6803 = vpop.xlane.xlu0 %6802
  %v6804 = vsel %vm1688, %v6782, 0.0
  %6805 = vadd.xlane.f32.xlu0 %v6804
  %v6806 = vpop.xlane.xlu0 %6805
  %v6807 = vrcp.pop %v6785
  %v6808 = vrcp.pop %v6788
  %v6809 = vrcp.pop %v6791
  %v6810 = vrcp.pop %v6794
  %v6811 = vrcp.pop %v6797
  %v6812 = vrcp.pop %v6800
  %v6813 = vrcp.pop %v6803
  %v6814 = vrcp.pop %v6806
  %v6815 = vmul.f32 %v6768, %v6807
  %v6816 = vmul.f32 %v6770, %v6808
  %v6817 = vmul.f32 %v6772, %v6809
  %v6818 = vmul.f32 %v6774, %v6810
  %v6819 = vmul.f32 %v6776, %v6811
  %v6820 = vmul.f32 %v6778, %v6812
  %v6821 = vmul.f32 %v6780, %v6813
  %v6822 = vmul.f32 %v6782, %v6814
  %v6824 = vsel %vm1688, %v6817, 0
  %6826 = vmatprep.subr.mxu0 0.0
  %6827 = vmatpush1.msra.mxu0 %v5789
  %6828 = vmatprep.subr.mxu0 0.0
  %6829 = vmatpush1.msra.mxu0 0.0
  %6830 = vmatprep.subr.mxu0 0.0
  %6831 = vmatpush1.msra.mxu0 0.0
  %6832 = vmatprep.subr.mxu0 0.0
  %6833 = vmatpush1.msra.mxu0 0.0
  %6834 = vmatprep.subr.mxu0 0.0
  %6835 = vmatpush1.msra.mxu0 0.0
  %6836 = vmatprep.subr.mxu0 0.0
  %6837 = vmatpush1.msra.mxu0 0.0
  %6838 = vmatprep.subr.mxu0 0.0
  %6839 = vmatpush1.msra.mxu0 0.0
  %6840 = vmatprep.subr.mxu0 0.0
  %6841 = vmatpush1.msra.mxu0 0.0
  %6842 = vmatprep.subr.mxu0 0.0
  %6843 = vmatpush1.msra.mxu0 0.0
  %6844 = vmatprep.subr.mxu0 0.0
  %6845 = vmatpush1.msra.mxu0 0.0
  %6846 = vmatprep.subr.mxu0 0.0
  %6847 = vmatpush1.msra.mxu0 0.0
  %6848 = vmatprep.subr.mxu0 0.0
  %6849 = vmatpush1.msra.mxu0 0.0
  %6850 = vmatprep.subr.mxu0 0.0
  %6851 = vmatpush1.msra.mxu0 0.0
  %6852 = vmatprep.subr.mxu0 0.0
  %6853 = vmatpush1.msra.mxu0 0.0
  %6854 = vmatprep.subr.mxu0 0.0
  %6855 = vmatpush1.msra.mxu0 0.0
  %6856 = vmatprep.subr.mxu0 0.0
  %6857 = vmatpush1.msra.mxu0 0.0
  %6858 = vmatprep.subr.mxu0 0.0
  %6859 = vmatpush1.msra.mxu0 0.0
  %6860 = vmatprep.subr.mxu0 0.0
  %6861 = vmatpush1.msra.mxu0 0.0
  %6862 = vmatprep.subr.mxu0 0.0
  %6863 = vmatpush1.msra.mxu0 0.0
  %6864 = vmatprep.subr.mxu0 0.0
  %6865 = vmatpush1.msra.mxu0 0.0
  %6866 = vmatprep.subr.mxu0 0.0
  %6867 = vmatpush1.msra.mxu0 0.0
  %6868 = vmatprep.subr.mxu0 0.0
  %6869 = vmatpush1.msra.mxu0 0.0
  %6870 = vmatprep.subr.mxu0 0.0
  %6871 = vmatpush1.msra.mxu0 0.0
  %6872 = vmatprep.subr.mxu0 0.0
  %6873 = vmatpush1.msra.mxu0 0.0
  %6874 = vmatprep.subr.mxu0 0.0
  %6875 = vmatpush1.msra.mxu0 0.0
  %6876 = vmatprep.subr.mxu0 0.0
  %6877 = vmatpush1.msra.mxu0 0.0
  %6878 = vmatprep.subr.mxu0 0.0
  %6879 = vmatpush1.msra.mxu0 0.0
  %6880 = vmatprep.subr.mxu0 0.0
  %6881 = vmatpush1.msra.mxu0 0.0
  %6882 = vmatprep.subr.mxu0 0.0
  %6883 = vmatpush1.msra.mxu0 0.0
  %6884 = vmatprep.subr.mxu0 0.0
  %6885 = vmatpush1.msra.mxu0 0.0
  %6886 = vmatprep.subr.mxu0 0.0
  %6887 = vmatpush1.msra.mxu0 0.0
  %6888 = vmatprep.subr.mxu0 0.0
  %6889 = vmatpush1.msra.mxu0 0.0
  %6890 = vmatprep.mubr.f32.mxu0 0.0
  %6891 = vmatmul.mubr.f32.gmra.mrb[0].mxu0 %v6824
  %v6892 = vpop.f32.mrb[0].mxu0
  %v6893 = vadd.f32 0.0, %v6892
  %v6894 = vpop.f32.mrb[0].mxu0
  %6895 = vdwg.mxu0
  %v6897 = vsel %vm1688, %v6815, 0
  %6899 = vmatprep.subr.mxu0 0.0
  %6900 = vmatpush1.msra.mxu0 %v5396
  %6901 = vmatprep.subr.mxu0 0.0
  %6902 = vmatpush1.msra.mxu0 0.0
  %6903 = vmatprep.subr.mxu0 0.0
  %6904 = vmatpush1.msra.mxu0 0.0
  %6905 = vmatprep.subr.mxu0 0.0
  %6906 = vmatpush1.msra.mxu0 0.0
  %6907 = vmatprep.subr.mxu0 0.0
  %6908 = vmatpush1.msra.mxu0 0.0
  %6909 = vmatprep.subr.mxu0 0.0
  %6910 = vmatpush1.msra.mxu0 0.0
  %6911 = vmatprep.subr.mxu0 0.0
  %6912 = vmatpush1.msra.mxu0 0.0
  %6913 = vmatprep.subr.mxu0 0.0
  %6914 = vmatpush1.msra.mxu0 0.0
  %6915 = vmatprep.subr.mxu0 0.0
  %6916 = vmatpush1.msra.mxu0 0.0
  %6917 = vmatprep.subr.mxu0 0.0
  %6918 = vmatpush1.msra.mxu0 0.0
  %6919 = vmatprep.subr.mxu0 0.0
  %6920 = vmatpush1.msra.mxu0 0.0
  %6921 = vmatprep.subr.mxu0 0.0
  %6922 = vmatpush1.msra.mxu0 0.0
  %6923 = vmatprep.subr.mxu0 0.0
  %6924 = vmatpush1.msra.mxu0 0.0
  %6925 = vmatprep.subr.mxu0 0.0
  %6926 = vmatpush1.msra.mxu0 0.0
  %6927 = vmatprep.subr.mxu0 0.0
  %6928 = vmatpush1.msra.mxu0 0.0
  %6929 = vmatprep.subr.mxu0 0.0
  %6930 = vmatpush1.msra.mxu0 0.0
  %6931 = vmatprep.subr.mxu0 0.0
  %6932 = vmatpush1.msra.mxu0 0.0
  %6933 = vmatprep.subr.mxu0 0.0
  %6934 = vmatpush1.msra.mxu0 0.0
  %6935 = vmatprep.subr.mxu0 0.0
  %6936 = vmatpush1.msra.mxu0 0.0
  %6937 = vmatprep.subr.mxu0 0.0
  %6938 = vmatpush1.msra.mxu0 0.0
  %6939 = vmatprep.subr.mxu0 0.0
  %6940 = vmatpush1.msra.mxu0 0.0
  %6941 = vmatprep.subr.mxu0 0.0
  %6942 = vmatpush1.msra.mxu0 0.0
  %6943 = vmatprep.subr.mxu0 0.0
  %6944 = vmatpush1.msra.mxu0 0.0
  %6945 = vmatprep.subr.mxu0 0.0
  %6946 = vmatpush1.msra.mxu0 0.0
  %6947 = vmatprep.subr.mxu0 0.0
  %6948 = vmatpush1.msra.mxu0 0.0
  %6949 = vmatprep.subr.mxu0 0.0
  %6950 = vmatpush1.msra.mxu0 0.0
  %6951 = vmatprep.subr.mxu0 0.0
  %6952 = vmatpush1.msra.mxu0 0.0
  %6953 = vmatprep.subr.mxu0 0.0
  %6954 = vmatpush1.msra.mxu0 0.0
  %6955 = vmatprep.subr.mxu0 0.0
  %6956 = vmatpush1.msra.mxu0 0.0
  %6957 = vmatprep.subr.mxu0 0.0
  %6958 = vmatpush1.msra.mxu0 0.0
  %6959 = vmatprep.subr.mxu0 0.0
  %6960 = vmatpush1.msra.mxu0 0.0
  %6961 = vmatprep.subr.mxu0 0.0
  %6962 = vmatpush1.msra.mxu0 0.0
  %6963 = vmatprep.mubr.f32.mxu0 0.0
  %6964 = vmatmul.mubr.f32.gmra.mrb[0].mxu0 %v6897
  %v6965 = vpop.f32.mrb[0].mxu0
  %v6966 = vadd.f32 %v6893, %v6965
  %v6967 = vpop.f32.mrb[0].mxu0
  %6968 = vdwg.mxu0
  %v6970 = vsel %vm1688, %v6819, 0
  %6972 = vmatprep.subr.mxu0 0.0
  %6973 = vmatpush1.msra.mxu0 %v6182
  %6974 = vmatprep.subr.mxu0 0.0
  %6975 = vmatpush1.msra.mxu0 0.0
  %6976 = vmatprep.subr.mxu0 0.0
  %6977 = vmatpush1.msra.mxu0 0.0
  %6978 = vmatprep.subr.mxu0 0.0
  %6979 = vmatpush1.msra.mxu0 0.0
  %6980 = vmatprep.subr.mxu0 0.0
  %6981 = vmatpush1.msra.mxu0 0.0
  %6982 = vmatprep.subr.mxu0 0.0
  %6983 = vmatpush1.msra.mxu0 0.0
  %6984 = vmatprep.subr.mxu0 0.0
  %6985 = vmatpush1.msra.mxu0 0.0
  %6986 = vmatprep.subr.mxu0 0.0
  %6987 = vmatpush1.msra.mxu0 0.0
  %6988 = vmatprep.subr.mxu0 0.0
  %6989 = vmatpush1.msra.mxu0 0.0
  %6990 = vmatprep.subr.mxu0 0.0
  %6991 = vmatpush1.msra.mxu0 0.0
  %6992 = vmatprep.subr.mxu0 0.0
  %6993 = vmatpush1.msra.mxu0 0.0
  %6994 = vmatprep.subr.mxu0 0.0
  %6995 = vmatpush1.msra.mxu0 0.0
  %6996 = vmatprep.subr.mxu0 0.0
  %6997 = vmatpush1.msra.mxu0 0.0
  %6998 = vmatprep.subr.mxu0 0.0
  %6999 = vmatpush1.msra.mxu0 0.0
  %7000 = vmatprep.subr.mxu0 0.0
  %7001 = vmatpush1.msra.mxu0 0.0
  %7002 = vmatprep.subr.mxu0 0.0
  %7003 = vmatpush1.msra.mxu0 0.0
  %7004 = vmatprep.subr.mxu0 0.0
  %7005 = vmatpush1.msra.mxu0 0.0
  %7006 = vmatprep.subr.mxu0 0.0
  %7007 = vmatpush1.msra.mxu0 0.0
  %7008 = vmatprep.subr.mxu0 0.0
  %7009 = vmatpush1.msra.mxu0 0.0
  %7010 = vmatprep.subr.mxu0 0.0
  %7011 = vmatpush1.msra.mxu0 0.0
  %7012 = vmatprep.subr.mxu0 0.0
  %7013 = vmatpush1.msra.mxu0 0.0
  %7014 = vmatprep.subr.mxu0 0.0
  %7015 = vmatpush1.msra.mxu0 0.0
  %7016 = vmatprep.subr.mxu0 0.0
  %7017 = vmatpush1.msra.mxu0 0.0
  %7018 = vmatprep.subr.mxu0 0.0
  %7019 = vmatpush1.msra.mxu0 0.0
  %7020 = vmatprep.subr.mxu0 0.0
  %7021 = vmatpush1.msra.mxu0 0.0
  %7022 = vmatprep.subr.mxu0 0.0
  %7023 = vmatpush1.msra.mxu0 0.0
  %7024 = vmatprep.subr.mxu0 0.0
  %7025 = vmatpush1.msra.mxu0 0.0
  %7026 = vmatprep.subr.mxu0 0.0
  %7027 = vmatpush1.msra.mxu0 0.0
  %7028 = vmatprep.subr.mxu0 0.0
  %7029 = vmatpush1.msra.mxu0 0.0
  %7030 = vmatprep.subr.mxu0 0.0
  %7031 = vmatpush1.msra.mxu0 0.0
  %7032 = vmatprep.subr.mxu0 0.0
  %7033 = vmatpush1.msra.mxu0 0.0
  %7034 = vmatprep.subr.mxu0 0.0
  %7035 = vmatpush1.msra.mxu0 0.0
  %7036 = vmatprep.mubr.f32.mxu0 0.0
  %7037 = vmatmul.mubr.f32.gmra.mrb[0].mxu0 %v6970
  %v7038 = vpop.f32.mrb[0].mxu0
  %v7039 = vadd.f32 0.0, %v7038
  %v7040 = vpop.f32.mrb[0].mxu0
  %7041 = vdwg.mxu0
  %v7042 = vadd.f32 %v6966, %v7039
  %v7044 = vsel %vm1688, %v6821, 0
  %7046 = vmatprep.subr.mxu0 0.0
  %7047 = vmatpush1.msra.mxu0 %v6575
  %7048 = vmatprep.subr.mxu0 0.0
  %7049 = vmatpush1.msra.mxu0 0.0
  %7050 = vmatprep.subr.mxu0 0.0
  %7051 = vmatpush1.msra.mxu0 0.0
  %7052 = vmatprep.subr.mxu0 0.0
  %7053 = vmatpush1.msra.mxu0 0.0
  %7054 = vmatprep.subr.mxu0 0.0
  %7055 = vmatpush1.msra.mxu0 0.0
  %7056 = vmatprep.subr.mxu0 0.0
  %7057 = vmatpush1.msra.mxu0 0.0
  %7058 = vmatprep.subr.mxu0 0.0
  %7059 = vmatpush1.msra.mxu0 0.0
  %7060 = vmatprep.subr.mxu0 0.0
  %7061 = vmatpush1.msra.mxu0 0.0
  %7062 = vmatprep.subr.mxu0 0.0
  %7063 = vmatpush1.msra.mxu0 0.0
  %7064 = vmatprep.subr.mxu0 0.0
  %7065 = vmatpush1.msra.mxu0 0.0
  %7066 = vmatprep.subr.mxu0 0.0
  %7067 = vmatpush1.msra.mxu0 0.0
  %7068 = vmatprep.subr.mxu0 0.0
  %7069 = vmatpush1.msra.mxu0 0.0
  %7070 = vmatprep.subr.mxu0 0.0
  %7071 = vmatpush1.msra.mxu0 0.0
  %7072 = vmatprep.subr.mxu0 0.0
  %7073 = vmatpush1.msra.mxu0 0.0
  %7074 = vmatprep.subr.mxu0 0.0
  %7075 = vmatpush1.msra.mxu0 0.0
  %7076 = vmatprep.subr.mxu0 0.0
  %7077 = vmatpush1.msra.mxu0 0.0
  %7078 = vmatprep.subr.mxu0 0.0
  %7079 = vmatpush1.msra.mxu0 0.0
  %7080 = vmatprep.subr.mxu0 0.0
  %7081 = vmatpush1.msra.mxu0 0.0
  %7082 = vmatprep.subr.mxu0 0.0
  %7083 = vmatpush1.msra.mxu0 0.0
  %7084 = vmatprep.subr.mxu0 0.0
  %7085 = vmatpush1.msra.mxu0 0.0
  %7086 = vmatprep.subr.mxu0 0.0
  %7087 = vmatpush1.msra.mxu0 0.0
  %7088 = vmatprep.subr.mxu0 0.0
  %7089 = vmatpush1.msra.mxu0 0.0
  %7090 = vmatprep.subr.mxu0 0.0
  %7091 = vmatpush1.msra.mxu0 0.0
  %7092 = vmatprep.subr.mxu0 0.0
  %7093 = vmatpush1.msra.mxu0 0.0
  %7094 = vmatprep.subr.mxu0 0.0
  %7095 = vmatpush1.msra.mxu0 0.0
  %7096 = vmatprep.subr.mxu0 0.0
  %7097 = vmatpush1.msra.mxu0 0.0
  %7098 = vmatprep.subr.mxu0 0.0
  %7099 = vmatpush1.msra.mxu0 0.0
  %7100 = vmatprep.subr.mxu0 0.0
  %7101 = vmatpush1.msra.mxu0 0.0
  %7102 = vmatprep.subr.mxu0 0.0
  %7103 = vmatpush1.msra.mxu0 0.0
  %7104 = vmatprep.subr.mxu0 0.0
  %7105 = vmatpush1.msra.mxu0 0.0
  %7106 = vmatprep.subr.mxu0 0.0
  %7107 = vmatpush1.msra.mxu0 0.0
  %7108 = vmatprep.subr.mxu0 0.0
  %7109 = vmatpush1.msra.mxu0 0.0
  %7110 = vmatprep.mubr.f32.mxu0 0.0
  %7111 = vmatmul.mubr.f32.gmra.mrb[0].mxu0 %v7044
  %v7112 = vpop.f32.mrb[0].mxu0
  %v7113 = vadd.f32 0.0, %v7112
  %v7114 = vpop.f32.mrb[0].mxu0
  %7115 = vdwg.mxu0
  %v7116 = vadd.f32 %v7042, %v7113
  %v7118 = vsel %vm1688, %v6818, 0
  %7120 = vmatprep.subr.mxu0 0.0
  %7121 = vmatpush1.msra.mxu0 %v5794
  %7122 = vmatprep.subr.mxu0 0.0
  %7123 = vmatpush1.msra.mxu0 0.0
  %7124 = vmatprep.subr.mxu0 0.0
  %7125 = vmatpush1.msra.mxu0 0.0
  %7126 = vmatprep.subr.mxu0 0.0
  %7127 = vmatpush1.msra.mxu0 0.0
  %7128 = vmatprep.subr.mxu0 0.0
  %7129 = vmatpush1.msra.mxu0 0.0
  %7130 = vmatprep.subr.mxu0 0.0
  %7131 = vmatpush1.msra.mxu0 0.0
  %7132 = vmatprep.subr.mxu0 0.0
  %7133 = vmatpush1.msra.mxu0 0.0
  %7134 = vmatprep.subr.mxu0 0.0
  %7135 = vmatpush1.msra.mxu0 0.0
  %7136 = vmatprep.subr.mxu0 0.0
  %7137 = vmatpush1.msra.mxu0 0.0
  %7138 = vmatprep.subr.mxu0 0.0
  %7139 = vmatpush1.msra.mxu0 0.0
  %7140 = vmatprep.subr.mxu0 0.0
  %7141 = vmatpush1.msra.mxu0 0.0
  %7142 = vmatprep.subr.mxu0 0.0
  %7143 = vmatpush1.msra.mxu0 0.0
  %7144 = vmatprep.subr.mxu0 0.0
  %7145 = vmatpush1.msra.mxu0 0.0
  %7146 = vmatprep.subr.mxu0 0.0
  %7147 = vmatpush1.msra.mxu0 0.0
  %7148 = vmatprep.subr.mxu0 0.0
  %7149 = vmatpush1.msra.mxu0 0.0
  %7150 = vmatprep.subr.mxu0 0.0
  %7151 = vmatpush1.msra.mxu0 0.0
  %7152 = vmatprep.subr.mxu0 0.0
  %7153 = vmatpush1.msra.mxu0 0.0
  %7154 = vmatprep.subr.mxu0 0.0
  %7155 = vmatpush1.msra.mxu0 0.0
  %7156 = vmatprep.subr.mxu0 0.0
  %7157 = vmatpush1.msra.mxu0 0.0
  %7158 = vmatprep.subr.mxu0 0.0
  %7159 = vmatpush1.msra.mxu0 0.0
  %7160 = vmatprep.subr.mxu0 0.0
  %7161 = vmatpush1.msra.mxu0 0.0
  %7162 = vmatprep.subr.mxu0 0.0
  %7163 = vmatpush1.msra.mxu0 0.0
  %7164 = vmatprep.subr.mxu0 0.0
  %7165 = vmatpush1.msra.mxu0 0.0
  %7166 = vmatprep.subr.mxu0 0.0
  %7167 = vmatpush1.msra.mxu0 0.0
  %7168 = vmatprep.subr.mxu0 0.0
  %7169 = vmatpush1.msra.mxu0 0.0
  %7170 = vmatprep.subr.mxu0 0.0
  %7171 = vmatpush1.msra.mxu0 0.0
  %7172 = vmatprep.subr.mxu0 0.0
  %7173 = vmatpush1.msra.mxu0 0.0
  %7174 = vmatprep.subr.mxu0 0.0
  %7175 = vmatpush1.msra.mxu0 0.0
  %7176 = vmatprep.subr.mxu0 0.0
  %7177 = vmatpush1.msra.mxu0 0.0
  %7178 = vmatprep.subr.mxu0 0.0
  %7179 = vmatpush1.msra.mxu0 0.0
  %7180 = vmatprep.subr.mxu0 0.0
  %7181 = vmatpush1.msra.mxu0 0.0
  %7182 = vmatprep.subr.mxu0 0.0
  %7183 = vmatpush1.msra.mxu0 0.0
  %7184 = vmatprep.mubr.f32.mxu0 0.0
  %7185 = vmatmul.mubr.f32.gmra.mrb[0].mxu0 %v7118
  %v7186 = vpop.f32.mrb[0].mxu0
  %v7187 = vadd.f32 0.0, %v7186
  %v7188 = vpop.f32.mrb[0].mxu0
  %7189 = vdwg.mxu0
  %v7191 = vsel %vm1688, %v6816, 0
  %7193 = vmatprep.subr.mxu0 0.0
  %7194 = vmatpush1.msra.mxu0 %v5401
  %7195 = vmatprep.subr.mxu0 0.0
  %7196 = vmatpush1.msra.mxu0 0.0
  %7197 = vmatprep.subr.mxu0 0.0
  %7198 = vmatpush1.msra.mxu0 0.0
  %7199 = vmatprep.subr.mxu0 0.0
  %7200 = vmatpush1.msra.mxu0 0.0
  %7201 = vmatprep.subr.mxu0 0.0
  %7202 = vmatpush1.msra.mxu0 0.0
  %7203 = vmatprep.subr.mxu0 0.0
  %7204 = vmatpush1.msra.mxu0 0.0
  %7205 = vmatprep.subr.mxu0 0.0
  %7206 = vmatpush1.msra.mxu0 0.0
  %7207 = vmatprep.subr.mxu0 0.0
  %7208 = vmatpush1.msra.mxu0 0.0
  %7209 = vmatprep.subr.mxu0 0.0
  %7210 = vmatpush1.msra.mxu0 0.0
  %7211 = vmatprep.subr.mxu0 0.0
  %7212 = vmatpush1.msra.mxu0 0.0
  %7213 = vmatprep.subr.mxu0 0.0
  %7214 = vmatpush1.msra.mxu0 0.0
  %7215 = vmatprep.subr.mxu0 0.0
  %7216 = vmatpush1.msra.mxu0 0.0
  %7217 = vmatprep.subr.mxu0 0.0
  %7218 = vmatpush1.msra.mxu0 0.0
  %7219 = vmatprep.subr.mxu0 0.0
  %7220 = vmatpush1.msra.mxu0 0.0
  %7221 = vmatprep.subr.mxu0 0.0
  %7222 = vmatpush1.msra.mxu0 0.0
  %7223 = vmatprep.subr.mxu0 0.0
  %7224 = vmatpush1.msra.mxu0 0.0
  %7225 = vmatprep.subr.mxu0 0.0
  %7226 = vmatpush1.msra.mxu0 0.0
  %7227 = vmatprep.subr.mxu0 0.0
  %7228 = vmatpush1.msra.mxu0 0.0
  %7229 = vmatprep.subr.mxu0 0.0
  %7230 = vmatpush1.msra.mxu0 0.0
  %7231 = vmatprep.subr.mxu0 0.0
  %7232 = vmatpush1.msra.mxu0 0.0
  %7233 = vmatprep.subr.mxu0 0.0
  %7234 = vmatpush1.msra.mxu0 0.0
  %7235 = vmatprep.subr.mxu0 0.0
  %7236 = vmatpush1.msra.mxu0 0.0
  %7237 = vmatprep.subr.mxu0 0.0
  %7238 = vmatpush1.msra.mxu0 0.0
  %7239 = vmatprep.subr.mxu0 0.0
  %7240 = vmatpush1.msra.mxu0 0.0
  %7241 = vmatprep.subr.mxu0 0.0
  %7242 = vmatpush1.msra.mxu0 0.0
  %7243 = vmatprep.subr.mxu0 0.0
  %7244 = vmatpush1.msra.mxu0 0.0
  %7245 = vmatprep.subr.mxu0 0.0
  %7246 = vmatpush1.msra.mxu0 0.0
  %7247 = vmatprep.subr.mxu0 0.0
  %7248 = vmatpush1.msra.mxu0 0.0
  %7249 = vmatprep.subr.mxu0 0.0
  %7250 = vmatpush1.msra.mxu0 0.0
  %7251 = vmatprep.subr.mxu0 0.0
  %7252 = vmatpush1.msra.mxu0 0.0
  %7253 = vmatprep.subr.mxu0 0.0
  %7254 = vmatpush1.msra.mxu0 0.0
  %7255 = vmatprep.subr.mxu0 0.0
  %7256 = vmatpush1.msra.mxu0 0.0
  %7257 = vmatprep.mubr.f32.mxu0 0.0
  %7258 = vmatmul.mubr.f32.gmra.mrb[0].mxu0 %v7191
  %v7259 = vpop.f32.mrb[0].mxu0
  %v7260 = vadd.f32 %v7187, %v7259
  %v7261 = vpop.f32.mrb[0].mxu0
  %7262 = vdwg.mxu0
  %v7264 = vsel %vm1688, %v6820, 0
  %7266 = vmatprep.subr.mxu0 0.0
  %7267 = vmatpush1.msra.mxu0 %v6187
  %7268 = vmatprep.subr.mxu0 0.0
  %7269 = vmatpush1.msra.mxu0 0.0
  %7270 = vmatprep.subr.mxu0 0.0
  %7271 = vmatpush1.msra.mxu0 0.0
  %7272 = vmatprep.subr.mxu0 0.0
  %7273 = vmatpush1.msra.mxu0 0.0
  %7274 = vmatprep.subr.mxu0 0.0
  %7275 = vmatpush1.msra.mxu0 0.0
  %7276 = vmatprep.subr.mxu0 0.0
  %7277 = vmatpush1.msra.mxu0 0.0
  %7278 = vmatprep.subr.mxu0 0.0
  %7279 = vmatpush1.msra.mxu0 0.0
  %7280 = vmatprep.subr.mxu0 0.0
  %7281 = vmatpush1.msra.mxu0 0.0
  %7282 = vmatprep.subr.mxu0 0.0
  %7283 = vmatpush1.msra.mxu0 0.0
  %7284 = vmatprep.subr.mxu0 0.0
  %7285 = vmatpush1.msra.mxu0 0.0
  %7286 = vmatprep.subr.mxu0 0.0
  %7287 = vmatpush1.msra.mxu0 0.0
  %7288 = vmatprep.subr.mxu0 0.0
  %7289 = vmatpush1.msra.mxu0 0.0
  %7290 = vmatprep.subr.mxu0 0.0
  %7291 = vmatpush1.msra.mxu0 0.0
  %7292 = vmatprep.subr.mxu0 0.0
  %7293 = vmatpush1.msra.mxu0 0.0
  %7294 = vmatprep.subr.mxu0 0.0
  %7295 = vmatpush1.msra.mxu0 0.0
  %7296 = vmatprep.subr.mxu0 0.0
  %7297 = vmatpush1.msra.mxu0 0.0
  %7298 = vmatprep.subr.mxu0 0.0
  %7299 = vmatpush1.msra.mxu0 0.0
  %7300 = vmatprep.subr.mxu0 0.0
  %7301 = vmatpush1.msra.mxu0 0.0
  %7302 = vmatprep.subr.mxu0 0.0
  %7303 = vmatpush1.msra.mxu0 0.0
  %7304 = vmatprep.subr.mxu0 0.0
  %7305 = vmatpush1.msra.mxu0 0.0
  %7306 = vmatprep.subr.mxu0 0.0
  %7307 = vmatpush1.msra.mxu0 0.0
  %7308 = vmatprep.subr.mxu0 0.0
  %7309 = vmatpush1.msra.mxu0 0.0
  %7310 = vmatprep.subr.mxu0 0.0
  %7311 = vmatpush1.msra.mxu0 0.0
  %7312 = vmatprep.subr.mxu0 0.0
  %7313 = vmatpush1.msra.mxu0 0.0
  %7314 = vmatprep.subr.mxu0 0.0
  %7315 = vmatpush1.msra.mxu0 0.0
  %7316 = vmatprep.subr.mxu0 0.0
  %7317 = vmatpush1.msra.mxu0 0.0
  %7318 = vmatprep.subr.mxu0 0.0
  %7319 = vmatpush1.msra.mxu0 0.0
  %7320 = vmatprep.subr.mxu0 0.0
  %7321 = vmatpush1.msra.mxu0 0.0
  %7322 = vmatprep.subr.mxu0 0.0
  %7323 = vmatpush1.msra.mxu0 0.0
  %7324 = vmatprep.subr.mxu0 0.0
  %7325 = vmatpush1.msra.mxu0 0.0
  %7326 = vmatprep.subr.mxu0 0.0
  %7327 = vmatpush1.msra.mxu0 0.0
  %7328 = vmatprep.subr.mxu0 0.0
  %7329 = vmatpush1.msra.mxu0 0.0
  %7330 = vmatprep.mubr.f32.mxu0 0.0
  %7331 = vmatmul.mubr.f32.gmra.mrb[0].mxu0 %v7264
  %v7332 = vpop.f32.mrb[0].mxu0
  %v7333 = vadd.f32 0.0, %v7332
  %v7334 = vpop.f32.mrb[0].mxu0
  %7335 = vdwg.mxu0
  %v7336 = vadd.f32 %v7260, %v7333
  %v7338 = vsel %vm1688, %v6822, 0
  %7340 = vmatprep.subr.mxu0 0.0
  %7341 = vmatpush1.msra.mxu0 %v6580
  %7342 = vmatprep.subr.mxu0 0.0
  %7343 = vmatpush1.msra.mxu0 0.0
  %7344 = vmatprep.subr.mxu0 0.0
  %7345 = vmatpush1.msra.mxu0 0.0
  %7346 = vmatprep.subr.mxu0 0.0
  %7347 = vmatpush1.msra.mxu0 0.0
  %7348 = vmatprep.subr.mxu0 0.0
  %7349 = vmatpush1.msra.mxu0 0.0
  %7350 = vmatprep.subr.mxu0 0.0
  %7351 = vmatpush1.msra.mxu0 0.0
  %7352 = vmatprep.subr.mxu0 0.0
  %7353 = vmatpush1.msra.mxu0 0.0
  %7354 = vmatprep.subr.mxu0 0.0
  %7355 = vmatpush1.msra.mxu0 0.0
  %7356 = vmatprep.subr.mxu0 0.0
  %7357 = vmatpush1.msra.mxu0 0.0
  %7358 = vmatprep.subr.mxu0 0.0
  %7359 = vmatpush1.msra.mxu0 0.0
  %7360 = vmatprep.subr.mxu0 0.0
  %7361 = vmatpush1.msra.mxu0 0.0
  %7362 = vmatprep.subr.mxu0 0.0
  %7363 = vmatpush1.msra.mxu0 0.0
  %7364 = vmatprep.subr.mxu0 0.0
  %7365 = vmatpush1.msra.mxu0 0.0
  %7366 = vmatprep.subr.mxu0 0.0
  %7367 = vmatpush1.msra.mxu0 0.0
  %7368 = vmatprep.subr.mxu0 0.0
  %7369 = vmatpush1.msra.mxu0 0.0
  %7370 = vmatprep.subr.mxu0 0.0
  %7371 = vmatpush1.msra.mxu0 0.0
  %7372 = vmatprep.subr.mxu0 0.0
  %7373 = vmatpush1.msra.mxu0 0.0
  %7374 = vmatprep.subr.mxu0 0.0
  %7375 = vmatpush1.msra.mxu0 0.0
  %7376 = vmatprep.subr.mxu0 0.0
  %7377 = vmatpush1.msra.mxu0 0.0
  %7378 = vmatprep.subr.mxu0 0.0
  %7379 = vmatpush1.msra.mxu0 0.0
  %7380 = vmatprep.subr.mxu0 0.0
  %7381 = vmatpush1.msra.mxu0 0.0
  %7382 = vmatprep.subr.mxu0 0.0
  %7383 = vmatpush1.msra.mxu0 0.0
  %7384 = vmatprep.subr.mxu0 0.0
  %7385 = vmatpush1.msra.mxu0 0.0
  %7386 = vmatprep.subr.mxu0 0.0
  %7387 = vmatpush1.msra.mxu0 0.0
  %7388 = vmatprep.subr.mxu0 0.0
  %7389 = vmatpush1.msra.mxu0 0.0
  %7390 = vmatprep.subr.mxu0 0.0
  %7391 = vmatpush1.msra.mxu0 0.0
  %7392 = vmatprep.subr.mxu0 0.0
  %7393 = vmatpush1.msra.mxu0 0.0
  %7394 = vmatprep.subr.mxu0 0.0
  %7395 = vmatpush1.msra.mxu0 0.0
  %7396 = vmatprep.subr.mxu0 0.0
  %7397 = vmatpush1.msra.mxu0 0.0
  %7398 = vmatprep.subr.mxu0 0.0
  %7399 = vmatpush1.msra.mxu0 0.0
  %7400 = vmatprep.subr.mxu0 0.0
  %7401 = vmatpush1.msra.mxu0 0.0
  %7402 = vmatprep.subr.mxu0 0.0
  %7403 = vmatpush1.msra.mxu0 0.0
  %7404 = vmatprep.mubr.f32.mxu0 0.0
  %7405 = vmatmul.mubr.f32.gmra.mrb[0].mxu0 %v7338
  %v7406 = vpop.f32.mrb[0].mxu0
  %v7407 = vadd.f32 0.0, %v7406
  %v7408 = vpop.f32.mrb[0].mxu0
  %7409 = vdwg.mxu0
  %v7410 = vadd.f32 %v7336, %v7407
  %v7411 = vld [vmem:[%s9 + $0x8] sm:$0x1]
  %v7412 = vlaneseq
  %v7413 = vshrl.u32 %v7412, 7
  %v7414 = vsub.s32 0, %v7413
  %v7415 = vrot.slane %v7411, %v7414
  %v7416 = vadd.f32 %v7116, %v7415
  %v7417 = vadd.f32 %v7410, %v7415
  %v7418 = vadd.f32 %v5148, %v7416
  %v7419 = vadd.f32 %v5153, %v7417
  %v7420 = vsel %vm5167, %v7418, 0.0
  %7421 = vadd.xlane.f32.xlu0 %v7420
  %v7422 = vpop.xlane.xlu0 %7421
  %v7423 = vsel %vm5167, %v7419, 0.0
  %7424 = vadd.xlane.f32.xlu0 %v7423
  %v7425 = vpop.xlane.xlu0 %7424
  %v7426 = vrcp.pop 16.0
  %v7427 = vmul.f32 %v7422, %v7426
  %v7428 = vmul.f32 %v7425, %v7426
  %v7429 = vsub.f32 %v7418, %v7427
  %v7430 = vsub.f32 %v7419, %v7428
  %v7431 = vmul.f32 %v7429, %v7429
  %v7432 = vmul.f32 %v7430, %v7430
  %v7433 = vsel %vm5167, %v7431, 0.0
  %7434 = vadd.xlane.f32.xlu0 %v7433
  %v7435 = vpop.xlane.xlu0 %7434
  %v7436 = vsel %vm5167, %v7432, 0.0
  %7437 = vadd.xlane.f32.xlu0 %v7436
  %v7438 = vpop.xlane.xlu0 %7437
  %v7439 = vmul.f32 %v7435, %v7426
  %v7440 = vmul.f32 %v7438, %v7426
  %v7441 = vadd.f32 %v7439, 1e-05
  %v7442 = vadd.f32 %v7440, 1e-05
  %v7443 = vrsqrt.pop %v7441
  %v7444 = vrsqrt.pop %v7442
  %v7445 = vmul.f32 %v7429, %v7443
  %v7446 = vmul.f32 %v7430, %v7444
  %v7447 = vld [vmem:[%s9 + $0x9] sm:$0x1]
  %v7448 = vlaneseq
  %v7449 = vshrl.u32 %v7448, 7
  %v7450 = vsub.s32 0, %v7449
  %v7451 = vrot.slane %v7447, %v7450
  %v7452 = vmul.f32 %v7445, %v7451
  %v7453 = vmul.f32 %v7446, %v7451
  %v7454 = vld [vmem:[%s9 + $0xa] sm:$0x1]
  %v7455 = vlaneseq
  %v7456 = vshrl.u32 %v7455, 7
  %v7457 = vsub.s32 0, %v7456
  %v7458 = vrot.slane %v7454, %v7457
  %v7459 = vadd.f32 %v7452, %v7458
  %v7460 = vadd.f32 %v7453, %v7458
  %v7461 = vld [vmem:[%s8] sm:$0xff]
  %v7462 = vld [vmem:[%s8 + $0x8] sm:$0xff]
  %v7463 = vld [vmem:[%s9 + $0xb] sm:$0x1]
  %v7464 = vlaneseq
  %v7465 = vshrl.u32 %v7464, 7
  %v7466 = vsub.s32 0, %v7465
  %v7467 = vrot.slane %v7463, %v7466
  %v7469 = vsel %vm5167, %v7459, 0
  %v7472 = vsel %vm5167, %v7460, 0
  %7474 = vmatprep.subr.mxu0 0.0
  %7475 = vmatpush1.msra.mxu0 %v7461
  %7476 = vmatprep.subr.mxu0 0.0
  %7477 = vmatpush1.msra.mxu0 %v7462
  %7478 = vmatprep.subr.mxu0 0.0
  %7479 = vmatpush1.msra.mxu0 0.0
  %7480 = vmatprep.subr.mxu0 0.0
  %7481 = vmatpush1.msra.mxu0 0.0
  %7482 = vmatprep.subr.mxu0 0.0
  %7483 = vmatpush1.msra.mxu0 0.0
  %7484 = vmatprep.subr.mxu0 0.0
  %7485 = vmatpush1.msra.mxu0 0.0
  %7486 = vmatprep.subr.mxu0 0.0
  %7487 = vmatpush1.msra.mxu0 0.0
  %7488 = vmatprep.subr.mxu0 0.0
  %7489 = vmatpush1.msra.mxu0 0.0
  %7490 = vmatprep.subr.mxu0 0.0
  %7491 = vmatpush1.msra.mxu0 0.0
  %7492 = vmatprep.subr.mxu0 0.0
  %7493 = vmatpush1.msra.mxu0 0.0
  %7494 = vmatprep.subr.mxu0 0.0
  %7495 = vmatpush1.msra.mxu0 0.0
  %7496 = vmatprep.subr.mxu0 0.0
  %7497 = vmatpush1.msra.mxu0 0.0
  %7498 = vmatprep.subr.mxu0 0.0
  %7499 = vmatpush1.msra.mxu0 0.0
  %7500 = vmatprep.subr.mxu0 0.0
  %7501 = vmatpush1.msra.mxu0 0.0
  %7502 = vmatprep.subr.mxu0 0.0
  %7503 = vmatpush1.msra.mxu0 0.0
  %7504 = vmatprep.subr.mxu0 0.0
  %7505 = vmatpush1.msra.mxu0 0.0
  %7506 = vmatprep.subr.mxu0 0.0
  %7507 = vmatpush1.msra.mxu0 0.0
  %7508 = vmatprep.subr.mxu0 0.0
  %7509 = vmatpush1.msra.mxu0 0.0
  %7510 = vmatprep.subr.mxu0 0.0
  %7511 = vmatpush1.msra.mxu0 0.0
  %7512 = vmatprep.subr.mxu0 0.0
  %7513 = vmatpush1.msra.mxu0 0.0
  %7514 = vmatprep.subr.mxu0 0.0
  %7515 = vmatpush1.msra.mxu0 0.0
  %7516 = vmatprep.subr.mxu0 0.0
  %7517 = vmatpush1.msra.mxu0 0.0
  %7518 = vmatprep.subr.mxu0 0.0
  %7519 = vmatpush1.msra.mxu0 0.0
  %7520 = vmatprep.subr.mxu0 0.0
  %7521 = vmatpush1.msra.mxu0 0.0
  %7522 = vmatprep.subr.mxu0 0.0
  %7523 = vmatpush1.msra.mxu0 0.0
  %7524 = vmatprep.subr.mxu0 0.0
  %7525 = vmatpush1.msra.mxu0 0.0
  %7526 = vmatprep.subr.mxu0 0.0
  %7527 = vmatpush1.msra.mxu0 0.0
  %7528 = vmatprep.subr.mxu0 0.0
  %7529 = vmatpush1.msra.mxu0 0.0
  %7530 = vmatprep.subr.mxu0 0.0
  %7531 = vmatpush1.msra.mxu0 0.0
  %7532 = vmatprep.subr.mxu0 0.0
  %7533 = vmatpush1.msra.mxu0 0.0
  %7534 = vmatprep.subr.mxu0 0.0
  %7535 = vmatpush1.msra.mxu0 0.0
  %7536 = vmatprep.subr.mxu0 0.0
  %7537 = vmatpush1.msra.mxu0 0.0
  %7538 = vmatprep.mubr.f32.mxu0 0.0
  %7539 = vmatmul.mubr.f32.gmra.mrb[0].mxu0 %v7469
  %v7540 = vpop.f32.mrb[0].mxu0
  %v7541 = vadd.f32 %v7467, %v7540
  %v7542 = vpop.f32.mrb[0].mxu0
  %7543 = vmatprep.mubr.f32.mxu0 0.0
  %7544 = vmatmul.mubr.f32.gmra.mrb[0].mxu0 %v7472
  %v7545 = vpop.f32.mrb[0].mxu0
  %v7546 = vadd.f32 %v7467, %v7545
  %v7547 = vpop.f32.mrb[0].mxu0
  %7548 = vdwg.mxu0
  %v7549 = vmul.f32 %v7541, 0.5
  %v7550 = vmul.f32 %v7546, 0.5
  %v7551 = vmul.f32 %v7541, 0.044715
  %v7552 = vmul.f32 %v7546, 0.044715
  %v7553 = vmul.f32 %v7551, %v7541
  %v7554 = vmul.f32 %v7552, %v7546
  %v7555 = vmul.f32 %v7553, %v7541
  %v7556 = vmul.f32 %v7554, %v7546
  %v7557 = vadd.f32 %v7541, %v7555
  %v7558 = vadd.f32 %v7546, %v7556
  %v7559 = vmul.f32 %v7557, 0.7978846
  %v7560 = vmul.f32 %v7558, 0.7978846
  %v7561 = vtanh.pop %v7559
  %v7562 = vtanh.pop %v7560
  %v7563 = vadd.f32 %v7561, 1.0
  %v7564 = vadd.f32 %v7562, 1.0
  %v7565 = vmul.f32 %v7549, %v7563
  %v7566 = vmul.f32 %v7550, %v7564
  %v7567 = vld [vmem:[%s8 + $0x10] sm:$0xff]
  %v7568 = vld [vmem:[%s8 + $0x18] sm:$0xff]
  %v7569 = vld [vmem:[%s8 + $0x20] sm:$0xff]
  %v7570 = vld [vmem:[%s8 + $0x28] sm:$0xff]
  %v7571 = vld [vmem:[%s8 + $0x30] sm:$0xff]
  %v7572 = vld [vmem:[%s8 + $0x38] sm:$0xff]
  %v7573 = vld [vmem:[%s8 + $0x40] sm:$0xff]
  %v7574 = vld [vmem:[%s8 + $0x48] sm:$0xff]
  %v7575 = vld [vmem:[%s8 + $0x50] sm:$0xff]
  %v7576 = vld [vmem:[%s8 + $0x58] sm:$0xff]
  %v7577 = vld [vmem:[%s8 + $0x60] sm:$0xff]
  %v7578 = vld [vmem:[%s8 + $0x68] sm:$0xff]
  %v7579 = vld [vmem:[%s8 + $0x70] sm:$0xff]
  %v7580 = vld [vmem:[%s8 + $0x78] sm:$0xff]
  %v7581 = vld [vmem:[%s8 + $0x80] sm:$0xff]
  %v7582 = vld [vmem:[%s8 + $0x88] sm:$0xff]
  %v7583 = vld [vmem:[%s9 + $0xc] sm:$0x1]
  %v7584 = vlaneseq
  %v7585 = vshrl.u32 %v7584, 7
  %v7586 = vsub.s32 0, %v7585
  %v7587 = vrot.slane %v7583, %v7586
  %7588 = vmatprep.subr.mxu0 0.0
  %7589 = vmatpush1.msra.mxu0 %v7567
  %7590 = vmatprep.subr.mxu0 0.0
  %7591 = vmatpush1.msra.mxu0 %v7568
  %7592 = vmatprep.subr.mxu0 0.0
  %7593 = vmatpush1.msra.mxu0 %v7569
  %7594 = vmatprep.subr.mxu0 0.0
  %7595 = vmatpush1.msra.mxu0 %v7570
  %7596 = vmatprep.subr.mxu0 0.0
  %7597 = vmatpush1.msra.mxu0 %v7571
  %7598 = vmatprep.subr.mxu0 0.0
  %7599 = vmatpush1.msra.mxu0 %v7572
  %7600 = vmatprep.subr.mxu0 0.0
  %7601 = vmatpush1.msra.mxu0 %v7573
  %7602 = vmatprep.subr.mxu0 0.0
  %7603 = vmatpush1.msra.mxu0 %v7574
  %7604 = vmatprep.subr.mxu0 0.0
  %7605 = vmatpush1.msra.mxu0 %v7575
  %7606 = vmatprep.subr.mxu0 0.0
  %7607 = vmatpush1.msra.mxu0 %v7576
  %7608 = vmatprep.subr.mxu0 0.0
  %7609 = vmatpush1.msra.mxu0 %v7577
  %7610 = vmatprep.subr.mxu0 0.0
  %7611 = vmatpush1.msra.mxu0 %v7578
  %7612 = vmatprep.subr.mxu0 0.0
  %7613 = vmatpush1.msra.mxu0 %v7579
  %7614 = vmatprep.subr.mxu0 0.0
  %7615 = vmatpush1.msra.mxu0 %v7580
  %7616 = vmatprep.subr.mxu0 0.0
  %7617 = vmatpush1.msra.mxu0 %v7581
  %7618 = vmatprep.subr.mxu0 0.0
  %7619 = vmatpush1.msra.mxu0 %v7582
  %7620 = vmatprep.subr.mxu0 0.0
  %7621 = vmatpush1.msra.mxu0 0.0
  %7622 = vmatprep.subr.mxu0 0.0
  %7623 = vmatpush1.msra.mxu0 0.0
  %7624 = vmatprep.subr.mxu0 0.0
  %7625 = vmatpush1.msra.mxu0 0.0
  %7626 = vmatprep.subr.mxu0 0.0
  %7627 = vmatpush1.msra.mxu0 0.0
  %7628 = vmatprep.subr.mxu0 0.0
  %7629 = vmatpush1.msra.mxu0 0.0
  %7630 = vmatprep.subr.mxu0 0.0
  %7631 = vmatpush1.msra.mxu0 0.0
  %7632 = vmatprep.subr.mxu0 0.0
  %7633 = vmatpush1.msra.mxu0 0.0
  %7634 = vmatprep.subr.mxu0 0.0
  %7635 = vmatpush1.msra.mxu0 0.0
  %7636 = vmatprep.subr.mxu0 0.0
  %7637 = vmatpush1.msra.mxu0 0.0
  %7638 = vmatprep.subr.mxu0 0.0
  %7639 = vmatpush1.msra.mxu0 0.0
  %7640 = vmatprep.subr.mxu0 0.0
  %7641 = vmatpush1.msra.mxu0 0.0
  %7642 = vmatprep.subr.mxu0 0.0
  %7643 = vmatpush1.msra.mxu0 0.0
  %7644 = vmatprep.subr.mxu0 0.0
  %7645 = vmatpush1.msra.mxu0 0.0
  %7646 = vmatprep.subr.mxu0 0.0
  %7647 = vmatpush1.msra.mxu0 0.0
  %7648 = vmatprep.subr.mxu0 0.0
  %7649 = vmatpush1.msra.mxu0 0.0
  %7650 = vmatprep.subr.mxu0 0.0
  %7651 = vmatpush1.msra.mxu0 0.0
  %7652 = vmatprep.mubr.f32.mxu0 0.0
  %7653 = vmatmul.mubr.f32.gmra.mrb[0].mxu0 %v7565
  %v7654 = vpop.f32.mrb[0].mxu0
  %v7655 = vadd.f32 %v7587, %v7654
  %v7656 = vpop.f32.mrb[0].mxu0
  %7657 = vmatprep.mubr.f32.mxu0 0.0
  %7658 = vmatmul.mubr.f32.gmra.mrb[0].mxu0 %v7566
  %v7659 = vpop.f32.mrb[0].mxu0
  %v7660 = vadd.f32 %v7587, %v7659
  %v7661 = vpop.f32.mrb[0].mxu0
  %7662 = vdwg.mxu0
  %7663 = vst.msk [vmem:[%s10] sm:$0xff] %vm5167, %v7655
  %7664 = vst.msk [vmem:[%s10 + $0x8] sm:$0xff] %vm5167, %v7660
  // Predicated region
  $region42: #{transformer_encoder_forward.1} parent=0 // pred_check
    _
  $region43: #{transformer_encoder_forward.1} parent=0 // pred_check_branch
    %7666 = sbr.rel (0) target = $region45
  $region44: #{transformer_encoder_forward.1} parent=0 // pred_region
    _
  $region45: #{transformer_encoder_forward.1} parent=0 // pred_fallthru
    _
  // Predicated region
  $region46: #{transformer_encoder_forward.1} parent=0 // pred_check
    _
  $region47: #{transformer_encoder_forward.1} parent=0 // pred_check_branch
    %7668 = sbr.rel (0) target = $region49
  $region48: #{transformer_encoder_forward.1} parent=0 // pred_region
    _
  $region49: #{transformer_encoder_forward.1} parent=0 // pred_fallthru
    _

</llo_original>
